<compile_context>
chip_gen: v5e
topology: v5e:2x2
jax: 0.10.0
libtpu: 0.0.40
codegen_flags: <defaults>
</compile_context>

<pallas_src>
import functools

import jax
import jax.numpy as jnp
from jax.experimental import pallas as pl
from jax.experimental.pallas import tpu as pltpu

EPS = 1e-5          # nn.BatchNorm2d default
NEG_SLOPE = 0.01    # nn.LeakyReLU default


def _forward_block_kernel(xcols_ref, w1_ref, g1_ref, b1_ref, w2_ref, g2_ref,
                          b2_ref, out_ref, y1pad_ref, *, channels_major_out):
    """Single-invocation kernel; the whole (small) problem lives in VMEM.

    xcols_ref : (B*H*W, 16)        conv1 im2col columns (9 taps, zero-padded to 16)
    w1_ref    : (16, fn)           conv1 weights, rows = taps (zero-padded)
    w2_ref    : (9*fn, fn)         conv2 weights, row index = tap*fn + cin
    g*/b*_ref : (1, fn)            BN affine parameters
    out_ref   : (B, fn, H*W) if channels_major_out else (B, H*W, fn)
    y1pad_ref : (B, H+2, W+2, fn)  VMEM scratch holding the padded CBL1 output
    """
    B, Hp, Wp, fn = y1pad_ref.shape
    H, W = Hp - 2, Wp - 2
    n = B * H * W
    inv_n = 1.0 / float(n)

    # ---- conv1: one MXU matmul over the prebuilt im2col columns -------------
    a1 = jnp.dot(xcols_ref[...], w1_ref[...],
                 preferred_element_type=jnp.float32)                 # (n, fn)

    # ---- BN1 (training-mode batch stats, single pass) + LeakyReLU -----------
    s1 = jnp.sum(a1, axis=0, keepdims=True)
    q1 = jnp.sum(a1 * a1, axis=0, keepdims=True)
    mean1 = s1 * inv_n
    var1 = q1 * inv_n - mean1 * mean1
    scale1 = g1_ref[...] * jax.lax.rsqrt(var1 + EPS)
    shift1 = b1_ref[...] - mean1 * scale1
    y1 = a1 * scale1 + shift1
    y1 = jnp.where(y1 >= 0, y1, NEG_SLOPE * y1)

    # ---- conv2 halo: zero only the 1-pixel border, write the interior once --
    y1pad_ref[:, 0:1, :, :] = jnp.zeros((B, 1, Wp, fn), jnp.float32)
    y1pad_ref[:, Hp - 1:Hp, :, :] = jnp.zeros((B, 1, Wp, fn), jnp.float32)
    y1pad_ref[:, :, 0:1, :] = jnp.zeros((B, Hp, 1, fn), jnp.float32)
    y1pad_ref[:, :, Wp - 1:Wp, :] = jnp.zeros((B, Hp, 1, fn), jnp.float32)
    y1pad_ref[:, 1:1 + H, 1:1 + W, :] = y1.reshape(B, H, W, fn)

    # ---- conv2: build (n, 9*fn) im2col slab straight from the scratch ref ---
    #      and run ONE K=9*fn matmul on the MXU (instead of 9 K=fn dots).
    parts = [y1pad_ref[:, dy:dy + H, dx:dx + W, :].reshape(n, fn)
             for dy in range(3) for dx in range(3)]
    slab = jnp.concatenate(parts, axis=1)                            # (n, 9*fn)
    a2 = jnp.dot(slab, w2_ref[...],
                 preferred_element_type=jnp.float32)                 # (n, fn)

    # ---- BN2 (single-pass batch stats); activation = Identity ---------------
    s2 = jnp.sum(a2, axis=0, keepdims=True)
    q2 = jnp.sum(a2 * a2, axis=0, keepdims=True)
    mean2 = s2 * inv_n
    var2 = q2 * inv_n - mean2 * mean2
    scale2 = g2_ref[...] * jax.lax.rsqrt(var2 + EPS)
    shift2 = b2_ref[...] - mean2 * scale2
    y2 = a2 * scale2 + shift2                                        # (n, fn)

    if channels_major_out:
        # Lane-dense, NCHW-native output: per-batch (H*W, fn) -> (fn, H*W)
        # XLU transpose; the wrapper then only needs a free reshape.
        y2b = y2.reshape(B, H * W, fn)
        for b in range(B):
            out_ref[b, :, :] = y2b[b].T
    else:
        out_ref[...] = y2.reshape(B, H * W, fn)


def forward_block(x_nchw, params):
    """x_nchw: (B, 1, H, W) float32 -> (B, fn, H, W) float32."""
    w1, g1, b1, w2, g2, b2 = params
    B, _, H, W = x_nchw.shape
    fn = w1.shape[-1]
    K1 = 16  # conv1 contraction (9 taps) zero-padded to an aligned 16

    x = jnp.transpose(x_nchw, (0, 2, 3, 1)).astype(jnp.float32)      # NHWC (Cin=1 -> free)
    xp = jnp.pad(x, ((0, 0), (1, 1), (1, 1), (0, 0)))                # conv1 halo

    # conv1 im2col is pure layout plumbing on the tiny 1-channel input;
    # the actual multiply-accumulate FLOPs stay inside the kernel.
    cols = jnp.concatenate(
        [xp[:, dy:dy + H, dx:dx + W, :] for dy in range(3) for dx in range(3)],
        axis=-1)                                                      # (B, H, W, 9)
    x_cols = jnp.pad(cols.reshape(B * H * W, 9), ((0, 0), (0, K1 - 9)))
    w1_mat = jnp.pad(w1.reshape(9, fn), ((0, K1 - 9), (0, 0)))        # (16, fn)
    w2_mat = w2.reshape(9 * fn, fn)                                   # (9*fn, fn), row = tap*fn+cin

    def call(channels_major_out):
        out_shape = (B, fn, H * W) if channels_major_out else (B, H * W, fn)
        return pl.pallas_call(
            functools.partial(_forward_block_kernel,
                              channels_major_out=channels_major_out),
            out_shape=jax.ShapeDtypeStruct(out_shape, jnp.float32),
            in_specs=[pl.BlockSpec(memory_space=pltpu.MemorySpace.VMEM)] * 7,
            out_specs=pl.BlockSpec(memory_space=pltpu.MemorySpace.VMEM),
            scratch_shapes=[pltpu.VMEM((B, H + 2, W + 2, fn), jnp.float32)],
        )(x_cols, w1_mat, g1, b1, w2_mat, g2, b2)

    try:
        # Preferred path: kernel emits NCHW-flat (B, fn, H*W); reshape is free.
        return call(True).reshape(B, fn, H, W)
    except Exception:
        # Guarded fallback if the in-kernel result transpose does not lower on
        # this jax/libtpu build: emit NHWC-flat and transpose on the XLA side.
        out = call(False)
        return jnp.transpose(out.reshape(B, H, W, fn), (0, 3, 1, 2))


def init_params(key, fn):
    """Deterministic synthetic parameters (shapes per module __init__)."""
    k1, k2 = jax.random.split(key)
    # PyTorch Conv2d weight layout: (Cout, Cin, kH, kW)
    w1_oihw = 0.1 * jax.random.normal(k1, (fn, 1, 3, 3), jnp.float32)
    w2_oihw = 0.1 * jax.random.normal(k2, (fn, fn, 3, 3), jnp.float32)
    # kernel layout: (kH*kW, Cin, Cout)
    w1 = jnp.transpose(w1_oihw, (2, 3, 1, 0)).reshape(9, 1, fn)
    w2 = jnp.transpose(w2_oihw, (2, 3, 1, 0)).reshape(9, fn, fn)
    # BatchNorm2d default init: weight=1, bias=0
    g1 = jnp.ones((1, fn), jnp.float32)
    b1 = jnp.zeros((1, fn), jnp.float32)
    g2 = jnp.ones((1, fn), jnp.float32)
    b2 = jnp.zeros((1, fn), jnp.float32)
    return (w1, g1, b1, w2, g2, b2)


def _reference(x_nchw, params):
    """Pure-JAX reference of the PyTorch forward (training-mode BN)."""
    w1, g1, b1, w2, g2, b2 = params
    fn = w1.shape[-1]
    x = jnp.transpose(x_nchw, (0, 2, 3, 1))
    w1_hwio = w1.reshape(3, 3, 1, fn)
    w2_hwio = w2.reshape(3, 3, fn, fn)

    def conv(x, w):
        return jax.lax.conv_general_dilated(
            x, w, (1, 1), "SAME", dimension_numbers=("NHWC", "HWIO", "NHWC"))

    def bn(x, g, b):
        m = jnp.mean(x, axis=(0, 1, 2), keepdims=True)
        v = jnp.mean((x - m) ** 2, axis=(0, 1, 2), keepdims=True)
        return (x - m) * jax.lax.rsqrt(v + EPS) * g.reshape(1, 1, 1, fn) \
               + b.reshape(1, 1, 1, fn)

    y = bn(conv(x, w1_hwio), g1, b1)
    y = jnp.where(y >= 0, y, NEG_SLOPE * y)
    y = bn(conv(y, w2_hwio), g2, b2)
    return jnp.transpose(y, (0, 3, 1, 2))


if __name__ == "__main__":
    B, H, W = 2, 16, 16
    fn = 32

    key = jax.random.PRNGKey(0)
    kx, kp = jax.random.split(key)
    x = jax.random.normal(kx, (B, 1, H, W), jnp.float32)   # NCHW like PyTorch
    params = init_params(kp, fn)

    out = jax.block_until_ready(forward_block(x, params))

    assert out.shape == (B, fn, H, W)
    assert bool(jnp.all(jnp.isfinite(out)))
    ref = _reference(x, params)
    max_err = float(jnp.max(jnp.abs(out - ref)))
    assert max_err < 1e-3, f"mismatch vs reference: {max_err}"

    print("KERNEL_OK")
</pallas_src>

<mosaic_0001>
module attributes {stable_mosaic.version = 11 : i64} {
  func.func @_forward_block_kernel(%arg0: memref<512x16xf32, #tpu.memory_space<vmem>>, %arg1: memref<16x32xf32, #tpu.memory_space<vmem>>, %arg2: memref<1x32xf32, #tpu.memory_space<vmem>>, %arg3: memref<1x32xf32, #tpu.memory_space<vmem>>, %arg4: memref<288x32xf32, #tpu.memory_space<vmem>>, %arg5: memref<1x32xf32, #tpu.memory_space<vmem>>, %arg6: memref<1x32xf32, #tpu.memory_space<vmem>>, %arg7: memref<2x32x256xf32, #tpu.memory_space<vmem>>, %arg8: memref<2x18x18x32xf32, #tpu.memory_space<vmem>>) attributes {dimension_semantics = [], scalar_prefetch = 0 : i64, scratch_operands = 1 : i64, tpu.core_type = #tpu.core_type<tc>} {
    %c0 = arith.constant 0 : index
    %c0_0 = arith.constant 0 : index
    %0 = vector.load %arg0[%c0, %c0_0] : memref<512x16xf32, #tpu.memory_space<vmem>>, vector<512x16xf32>
    %c0_1 = arith.constant 0 : index
    %c0_2 = arith.constant 0 : index
    %1 = vector.load %arg1[%c0_1, %c0_2] : memref<16x32xf32, #tpu.memory_space<vmem>>, vector<16x32xf32>
    %cst = arith.constant dense<0.000000e+00> : vector<512x32xf32>
    %2 = tpu.matmul %0, %1, %cst {dimension_numbers = #tpu.dot_dimension_numbers<[1], [0], [0], [1], [0, 0, 1, 1], [], []>} : vector<512x16xf32>, vector<16x32xf32>, vector<512x32xf32> -> vector<512x32xf32>
    %cst_3 = arith.constant dense<0.000000e+00> : vector<32xf32>
    %3 = vector.multi_reduction <add>, %2, %cst_3 [0] : vector<512x32xf32> to vector<32xf32>
    %4 = vector.shape_cast %3 : vector<32xf32> to vector<1x32xf32>
    %5 = arith.mulf %2, %2 : vector<512x32xf32>
    %cst_4 = arith.constant dense<0.000000e+00> : vector<32xf32>
    %6 = vector.multi_reduction <add>, %5, %cst_4 [0] : vector<512x32xf32> to vector<32xf32>
    %7 = vector.shape_cast %6 : vector<32xf32> to vector<1x32xf32>
    %cst_5 = arith.constant 0.001953125 : f32
    %8 = vector.broadcast %cst_5 : f32 to vector<1x32xf32>
    %9 = arith.mulf %4, %8 : vector<1x32xf32>
    %cst_6 = arith.constant 0.001953125 : f32
    %10 = vector.broadcast %cst_6 : f32 to vector<1x32xf32>
    %11 = arith.mulf %7, %10 : vector<1x32xf32>
    %12 = arith.mulf %9, %9 : vector<1x32xf32>
    %13 = arith.subf %11, %12 : vector<1x32xf32>
    %c0_7 = arith.constant 0 : index
    %c0_8 = arith.constant 0 : index
    %14 = vector.load %arg2[%c0_7, %c0_8] : memref<1x32xf32, #tpu.memory_space<vmem>>, vector<1x32xf32>
    %cst_9 = arith.constant 9.99999974E-6 : f32
    %15 = vector.broadcast %cst_9 : f32 to vector<1x32xf32>
    %16 = arith.addf %13, %15 : vector<1x32xf32>
    %17 = math.rsqrt %16 : vector<1x32xf32>
    %18 = arith.mulf %14, %17 : vector<1x32xf32>
    %c0_10 = arith.constant 0 : index
    %c0_11 = arith.constant 0 : index
    %19 = vector.load %arg3[%c0_10, %c0_11] : memref<1x32xf32, #tpu.memory_space<vmem>>, vector<1x32xf32>
    %20 = arith.mulf %9, %18 : vector<1x32xf32>
    %21 = arith.subf %19, %20 : vector<1x32xf32>
    %22 = vector.broadcast %18 : vector<1x32xf32> to vector<512x32xf32>
    %23 = arith.mulf %2, %22 : vector<512x32xf32>
    %24 = vector.broadcast %21 : vector<1x32xf32> to vector<512x32xf32>
    %25 = arith.addf %23, %24 : vector<512x32xf32>
    %cst_12 = arith.constant 0.000000e+00 : f32
    %26 = vector.broadcast %cst_12 : f32 to vector<512x32xf32>
    %27 = arith.cmpf oge, %25, %26 : vector<512x32xf32>
    %cst_13 = arith.constant 0.00999999977 : f32
    %28 = vector.broadcast %cst_13 : f32 to vector<512x32xf32>
    %29 = arith.mulf %28, %25 : vector<512x32xf32>
    %30 = arith.select %27, %25, %29 : vector<512x32xi1>, vector<512x32xf32>
    %cst_14 = arith.constant 0.000000e+00 : f32
    %31 = vector.broadcast %cst_14 : f32 to vector<2x1x18x32xf32>
    %c0_15 = arith.constant 0 : index
    %c0_16 = arith.constant 0 : index
    %c0_17 = arith.constant 0 : index
    %c0_18 = arith.constant 0 : index
    %32 = vector.load %arg8[%c0_15, %c0_16, %c0_17, %c0_18] : memref<2x18x18x32xf32, #tpu.memory_space<vmem>>, vector<2x1x18x32xf32>
    tpu.vector_store %arg8[%c0_15, %c0_16, %c0_17, %c0_18], %31 {strides = array<i32>} : memref<2x18x18x32xf32, #tpu.memory_space<vmem>>, vector<2x1x18x32xf32>,
    %cst_19 = arith.constant 0.000000e+00 : f32
    %33 = vector.broadcast %cst_19 : f32 to vector<2x1x18x32xf32>
    %c0_20 = arith.constant 0 : index
    %c17 = arith.constant 17 : index
    %c0_21 = arith.constant 0 : index
    %c0_22 = arith.constant 0 : index
    %34 = vector.load %arg8[%c0_20, %c17, %c0_21, %c0_22] : memref<2x18x18x32xf32, #tpu.memory_space<vmem>>, vector<2x1x18x32xf32>
    tpu.vector_store %arg8[%c0_20, %c17, %c0_21, %c0_22], %33 {strides = array<i32>} : memref<2x18x18x32xf32, #tpu.memory_space<vmem>>, vector<2x1x18x32xf32>,
    %cst_23 = arith.constant 0.000000e+00 : f32
    %35 = vector.broadcast %cst_23 : f32 to vector<2x18x1x32xf32>
    %c0_24 = arith.constant 0 : index
    %c0_25 = arith.constant 0 : index
    %c0_26 = arith.constant 0 : index
    %c0_27 = arith.constant 0 : index
    %36 = vector.load %arg8[%c0_24, %c0_25, %c0_26, %c0_27] : memref<2x18x18x32xf32, #tpu.memory_space<vmem>>, vector<2x18x1x32xf32>
    tpu.vector_store %arg8[%c0_24, %c0_25, %c0_26, %c0_27], %35 {strides = array<i32>} : memref<2x18x18x32xf32, #tpu.memory_space<vmem>>, vector<2x18x1x32xf32>,
    %cst_28 = arith.constant 0.000000e+00 : f32
    %37 = vector.broadcast %cst_28 : f32 to vector<2x18x1x32xf32>
    %c0_29 = arith.constant 0 : index
    %c0_30 = arith.constant 0 : index
    %c17_31 = arith.constant 17 : index
    %c0_32 = arith.constant 0 : index
    %38 = vector.load %arg8[%c0_29, %c0_30, %c17_31, %c0_32] : memref<2x18x18x32xf32, #tpu.memory_space<vmem>>, vector<2x18x1x32xf32>
    tpu.vector_store %arg8[%c0_29, %c0_30, %c17_31, %c0_32], %37 {strides = array<i32>} : memref<2x18x18x32xf32, #tpu.memory_space<vmem>>, vector<2x18x1x32xf32>,
    %39 = vector.shape_cast %30 : vector<512x32xf32> to vector<2x16x16x32xf32>
    %c0_33 = arith.constant 0 : index
    %c1 = arith.constant 1 : index
    %c1_34 = arith.constant 1 : index
    %c0_35 = arith.constant 0 : index
    %40 = vector.load %arg8[%c0_33, %c1, %c1_34, %c0_35] : memref<2x18x18x32xf32, #tpu.memory_space<vmem>>, vector<2x16x16x32xf32>
    tpu.vector_store %arg8[%c0_33, %c1, %c1_34, %c0_35], %39 {strides = array<i32>} : memref<2x18x18x32xf32, #tpu.memory_space<vmem>>, vector<2x16x16x32xf32>,
    %c0_36 = arith.constant 0 : index
    %c0_37 = arith.constant 0 : index
    %c0_38 = arith.constant 0 : index
    %c0_39 = arith.constant 0 : index
    %41 = vector.load %arg8[%c0_36, %c0_37, %c0_38, %c0_39] : memref<2x18x18x32xf32, #tpu.memory_space<vmem>>, vector<2x16x16x32xf32>
    %42 = vector.shape_cast %41 : vector<2x16x16x32xf32> to vector<512x32xf32>
    %c0_40 = arith.constant 0 : index
    %c0_41 = arith.constant 0 : index
    %c1_42 = arith.constant 1 : index
    %c0_43 = arith.constant 0 : index
    %43 = vector.load %arg8[%c0_40, %c0_41, %c1_42, %c0_43] : memref<2x18x18x32xf32, #tpu.memory_space<vmem>>, vector<2x16x16x32xf32>
    %44 = vector.shape_cast %43 : vector<2x16x16x32xf32> to vector<512x32xf32>
    %c0_44 = arith.constant 0 : index
    %c0_45 = arith.constant 0 : index
    %c2 = arith.constant 2 : index
    %c0_46 = arith.constant 0 : index
    %45 = vector.load %arg8[%c0_44, %c0_45, %c2, %c0_46] : memref<2x18x18x32xf32, #tpu.memory_space<vmem>>, vector<2x16x16x32xf32>
    %46 = vector.shape_cast %45 : vector<2x16x16x32xf32> to vector<512x32xf32>
    %c0_47 = arith.constant 0 : index
    %c1_48 = arith.constant 1 : index
    %c0_49 = arith.constant 0 : index
    %c0_50 = arith.constant 0 : index
    %47 = vector.load %arg8[%c0_47, %c1_48, %c0_49, %c0_50] : memref<2x18x18x32xf32, #tpu.memory_space<vmem>>, vector<2x16x16x32xf32>
    %48 = vector.shape_cast %47 : vector<2x16x16x32xf32> to vector<512x32xf32>
    %c0_51 = arith.constant 0 : index
    %c1_52 = arith.constant 1 : index
    %c1_53 = arith.constant 1 : index
    %c0_54 = arith.constant 0 : index
    %49 = vector.load %arg8[%c0_51, %c1_52, %c1_53, %c0_54] : memref<2x18x18x32xf32, #tpu.memory_space<vmem>>, vector<2x16x16x32xf32>
    %50 = vector.shape_cast %49 : vector<2x16x16x32xf32> to vector<512x32xf32>
    %c0_55 = arith.constant 0 : index
    %c1_56 = arith.constant 1 : index
    %c2_57 = arith.constant 2 : index
    %c0_58 = arith.constant 0 : index
    %51 = vector.load %arg8[%c0_55, %c1_56, %c2_57, %c0_58] : memref<2x18x18x32xf32, #tpu.memory_space<vmem>>, vector<2x16x16x32xf32>
    %52 = vector.shape_cast %51 : vector<2x16x16x32xf32> to vector<512x32xf32>
    %c0_59 = arith.constant 0 : index
    %c2_60 = arith.constant 2 : index
    %c0_61 = arith.constant 0 : index
    %c0_62 = arith.constant 0 : index
    %53 = vector.load %arg8[%c0_59, %c2_60, %c0_61, %c0_62] : memref<2x18x18x32xf32, #tpu.memory_space<vmem>>, vector<2x16x16x32xf32>
    %54 = vector.shape_cast %53 : vector<2x16x16x32xf32> to vector<512x32xf32>
    %c0_63 = arith.constant 0 : index
    %c2_64 = arith.constant 2 : index
    %c1_65 = arith.constant 1 : index
    %c0_66 = arith.constant 0 : index
    %55 = vector.load %arg8[%c0_63, %c2_64, %c1_65, %c0_66] : memref<2x18x18x32xf32, #tpu.memory_space<vmem>>, vector<2x16x16x32xf32>
    %56 = vector.shape_cast %55 : vector<2x16x16x32xf32> to vector<512x32xf32>
    %c0_67 = arith.constant 0 : index
    %c2_68 = arith.constant 2 : index
    %c2_69 = arith.constant 2 : index
    %c0_70 = arith.constant 0 : index
    %57 = vector.load %arg8[%c0_67, %c2_68, %c2_69, %c0_70] : memref<2x18x18x32xf32, #tpu.memory_space<vmem>>, vector<2x16x16x32xf32>
    %58 = vector.shape_cast %57 : vector<2x16x16x32xf32> to vector<512x32xf32>
    %59 = tpu.concatenate %42, %44, %46, %48, %50, %52, %54, %56, %58 in 1 : vector<512x32xf32>, vector<512x32xf32>, vector<512x32xf32>, vector<512x32xf32>, vector<512x32xf32>, vector<512x32xf32>, vector<512x32xf32>, vector<512x32xf32>, vector<512x32xf32> -> vector<512x288xf32>
    %c0_71 = arith.constant 0 : index
    %c0_72 = arith.constant 0 : index
    %60 = vector.load %arg4[%c0_71, %c0_72] : memref<288x32xf32, #tpu.memory_space<vmem>>, vector<288x32xf32>
    %cst_73 = arith.constant dense<0.000000e+00> : vector<512x32xf32>
    %61 = tpu.matmul %59, %60, %cst_73 {dimension_numbers = #tpu.dot_dimension_numbers<[1], [0], [0], [1], [0, 0, 1, 1], [], []>} : vector<512x288xf32>, vector<288x32xf32>, vector<512x32xf32> -> vector<512x32xf32>
    %cst_74 = arith.constant dense<0.000000e+00> : vector<32xf32>
    %62 = vector.multi_reduction <add>, %61, %cst_74 [0] : vector<512x32xf32> to vector<32xf32>
    %63 = vector.shape_cast %62 : vector<32xf32> to vector<1x32xf32>
    %64 = arith.mulf %61, %61 : vector<512x32xf32>
    %cst_75 = arith.constant dense<0.000000e+00> : vector<32xf32>
    %65 = vector.multi_reduction <add>, %64, %cst_75 [0] : vector<512x32xf32> to vector<32xf32>
    %66 = vector.shape_cast %65 : vector<32xf32> to vector<1x32xf32>
    %cst_76 = arith.constant 0.001953125 : f32
    %67 = vector.broadcast %cst_76 : f32 to vector<1x32xf32>
    %68 = arith.mulf %63, %67 : vector<1x32xf32>
    %cst_77 = arith.constant 0.001953125 : f32
    %69 = vector.broadcast %cst_77 : f32 to vector<1x32xf32>
    %70 = arith.mulf %66, %69 : vector<1x32xf32>
    %71 = arith.mulf %68, %68 : vector<1x32xf32>
    %72 = arith.subf %70, %71 : vector<1x32xf32>
    %c0_78 = arith.constant 0 : index
    %c0_79 = arith.constant 0 : index
    %73 = vector.load %arg5[%c0_78, %c0_79] : memref<1x32xf32, #tpu.memory_space<vmem>>, vector<1x32xf32>
    %cst_80 = arith.constant 9.99999974E-6 : f32
    %74 = vector.broadcast %cst_80 : f32 to vector<1x32xf32>
    %75 = arith.addf %72, %74 : vector<1x32xf32>
    %76 = math.rsqrt %75 : vector<1x32xf32>
    %77 = arith.mulf %73, %76 : vector<1x32xf32>
    %c0_81 = arith.constant 0 : index
    %c0_82 = arith.constant 0 : index
    %78 = vector.load %arg6[%c0_81, %c0_82] : memref<1x32xf32, #tpu.memory_space<vmem>>, vector<1x32xf32>
    %79 = arith.mulf %68, %77 : vector<1x32xf32>
    %80 = arith.subf %78, %79 : vector<1x32xf32>
    %81 = vector.broadcast %77 : vector<1x32xf32> to vector<512x32xf32>
    %82 = arith.mulf %61, %81 : vector<512x32xf32>
    %83 = vector.broadcast %80 : vector<1x32xf32> to vector<512x32xf32>
    %84 = arith.addf %82, %83 : vector<512x32xf32>
    %85 = vector.shape_cast %84 : vector<512x32xf32> to vector<2x256x32xf32>
    %86 = vector.extract_strided_slice %85 {offsets = [0, 0, 0], sizes = [1, 256, 32], strides = [1, 1, 1]} : vector<2x256x32xf32> to vector<1x256x32xf32>
    %87 = vector.shape_cast %86 : vector<1x256x32xf32> to vector<256x32xf32>
    %88 = tpu.transpose %87, [1, 0] : vector<256x32xf32> -> vector<32x256xf32>
    %c0_83 = arith.constant 0 : index
    %c0_84 = arith.constant 0 : index
    %c0_85 = arith.constant 0 : index
    %89 = vector.load %arg7[%c0_83, %c0_84, %c0_85] : memref<2x32x256xf32, #tpu.memory_space<vmem>>, vector<1x32x256xf32>
    %90 = vector.shape_cast %89 : vector<1x32x256xf32> to vector<32x256xf32>
    %91 = vector.shape_cast %88 : vector<32x256xf32> to vector<1x32x256xf32>
    tpu.vector_store %arg7[%c0_83, %c0_84, %c0_85], %91 {strides = array<i32>} : memref<2x32x256xf32, #tpu.memory_space<vmem>>, vector<1x32x256xf32>,
    %92 = vector.extract_strided_slice %85 {offsets = [1, 0, 0], sizes = [1, 256, 32], strides = [1, 1, 1]} : vector<2x256x32xf32> to vector<1x256x32xf32>
    %93 = vector.shape_cast %92 : vector<1x256x32xf32> to vector<256x32xf32>
    %94 = tpu.transpose %93, [1, 0] : vector<256x32xf32> -> vector<32x256xf32>
    %c1_86 = arith.constant 1 : index
    %c0_87 = arith.constant 0 : index
    %c0_88 = arith.constant 0 : index
    %95 = vector.load %arg7[%c1_86, %c0_87, %c0_88] : memref<2x32x256xf32, #tpu.memory_space<vmem>>, vector<1x32x256xf32>
    %96 = vector.shape_cast %95 : vector<1x32x256xf32> to vector<32x256xf32>
    %97 = vector.shape_cast %94 : vector<32x256xf32> to vector<1x32x256xf32>
    tpu.vector_store %arg7[%c1_86, %c0_87, %c0_88], %97 {strides = array<i32>} : memref<2x32x256xf32, #tpu.memory_space<vmem>>, vector<1x32x256xf32>,
    return
  }
}

module attributes {stable_mosaic.version = 11 : i64} {
  func.func @_forward_block_kernel(%arg0: memref<512x16xf32, #tpu.memory_space<vmem>>, %arg1: memref<16x32xf32, #tpu.memory_space<vmem>>, %arg2: memref<1x32xf32, #tpu.memory_space<vmem>>, %arg3: memref<1x32xf32, #tpu.memory_space<vmem>>, %arg4: memref<288x32xf32, #tpu.memory_space<vmem>>, %arg5: memref<1x32xf32, #tpu.memory_space<vmem>>, %arg6: memref<1x32xf32, #tpu.memory_space<vmem>>, %arg7: memref<2x256x32xf32, #tpu.memory_space<vmem>>, %arg8: memref<2x18x18x32xf32, #tpu.memory_space<vmem>>) attributes {dimension_semantics = [], scalar_prefetch = 0 : i64, scratch_operands = 1 : i64, tpu.core_type = #tpu.core_type<tc>} {
    %c0 = arith.constant 0 : index
    %c0_0 = arith.constant 0 : index
    %0 = vector.load %arg0[%c0, %c0_0] : memref<512x16xf32, #tpu.memory_space<vmem>>, vector<512x16xf32>
    %c0_1 = arith.constant 0 : index
    %c0_2 = arith.constant 0 : index
    %1 = vector.load %arg1[%c0_1, %c0_2] : memref<16x32xf32, #tpu.memory_space<vmem>>, vector<16x32xf32>
    %cst = arith.constant dense<0.000000e+00> : vector<512x32xf32>
    %2 = tpu.matmul %0, %1, %cst {dimension_numbers = #tpu.dot_dimension_numbers<[1], [0], [0], [1], [0, 0, 1, 1], [], []>} : vector<512x16xf32>, vector<16x32xf32>, vector<512x32xf32> -> vector<512x32xf32>
    %cst_3 = arith.constant dense<0.000000e+00> : vector<32xf32>
    %3 = vector.multi_reduction <add>, %2, %cst_3 [0] : vector<512x32xf32> to vector<32xf32>
    %4 = vector.shape_cast %3 : vector<32xf32> to vector<1x32xf32>
    %5 = arith.mulf %2, %2 : vector<512x32xf32>
    %cst_4 = arith.constant dense<0.000000e+00> : vector<32xf32>
    %6 = vector.multi_reduction <add>, %5, %cst_4 [0] : vector<512x32xf32> to vector<32xf32>
    %7 = vector.shape_cast %6 : vector<32xf32> to vector<1x32xf32>
    %cst_5 = arith.constant 0.001953125 : f32
    %8 = vector.broadcast %cst_5 : f32 to vector<1x32xf32>
    %9 = arith.mulf %4, %8 : vector<1x32xf32>
    %cst_6 = arith.constant 0.001953125 : f32
    %10 = vector.broadcast %cst_6 : f32 to vector<1x32xf32>
    %11 = arith.mulf %7, %10 : vector<1x32xf32>
    %12 = arith.mulf %9, %9 : vector<1x32xf32>
    %13 = arith.subf %11, %12 : vector<1x32xf32>
    %c0_7 = arith.constant 0 : index
    %c0_8 = arith.constant 0 : index
    %14 = vector.load %arg2[%c0_7, %c0_8] : memref<1x32xf32, #tpu.memory_space<vmem>>, vector<1x32xf32>
    %cst_9 = arith.constant 9.99999974E-6 : f32
    %15 = vector.broadcast %cst_9 : f32 to vector<1x32xf32>
    %16 = arith.addf %13, %15 : vector<1x32xf32>
    %17 = math.rsqrt %16 : vector<1x32xf32>
    %18 = arith.mulf %14, %17 : vector<1x32xf32>
    %c0_10 = arith.constant 0 : index
    %c0_11 = arith.constant 0 : index
    %19 = vector.load %arg3[%c0_10, %c0_11] : memref<1x32xf32, #tpu.memory_space<vmem>>, vector<1x32xf32>
    %20 = arith.mulf %9, %18 : vector<1x32xf32>
    %21 = arith.subf %19, %20 : vector<1x32xf32>
    %22 = vector.broadcast %18 : vector<1x32xf32> to vector<512x32xf32>
    %23 = arith.mulf %2, %22 : vector<512x32xf32>
    %24 = vector.broadcast %21 : vector<1x32xf32> to vector<512x32xf32>
    %25 = arith.addf %23, %24 : vector<512x32xf32>
    %cst_12 = arith.constant 0.000000e+00 : f32
    %26 = vector.broadcast %cst_12 : f32 to vector<512x32xf32>
    %27 = arith.cmpf oge, %25, %26 : vector<512x32xf32>
    %cst_13 = arith.constant 0.00999999977 : f32
    %28 = vector.broadcast %cst_13 : f32 to vector<512x32xf32>
    %29 = arith.mulf %28, %25 : vector<512x32xf32>
    %30 = arith.select %27, %25, %29 : vector<512x32xi1>, vector<512x32xf32>
    %cst_14 = arith.constant 0.000000e+00 : f32
    %31 = vector.broadcast %cst_14 : f32 to vector<2x1x18x32xf32>
    %c0_15 = arith.constant 0 : index
    %c0_16 = arith.constant 0 : index
    %c0_17 = arith.constant 0 : index
    %c0_18 = arith.constant 0 : index
    %32 = vector.load %arg8[%c0_15, %c0_16, %c0_17, %c0_18] : memref<2x18x18x32xf32, #tpu.memory_space<vmem>>, vector<2x1x18x32xf32>
    tpu.vector_store %arg8[%c0_15, %c0_16, %c0_17, %c0_18], %31 {strides = array<i32>} : memref<2x18x18x32xf32, #tpu.memory_space<vmem>>, vector<2x1x18x32xf32>,
    %cst_19 = arith.constant 0.000000e+00 : f32
    %33 = vector.broadcast %cst_19 : f32 to vector<2x1x18x32xf32>
    %c0_20 = arith.constant 0 : index
    %c17 = arith.constant 17 : index
    %c0_21 = arith.constant 0 : index
    %c0_22 = arith.constant 0 : index
    %34 = vector.load %arg8[%c0_20, %c17, %c0_21, %c0_22] : memref<2x18x18x32xf32, #tpu.memory_space<vmem>>, vector<2x1x18x32xf32>
    tpu.vector_store %arg8[%c0_20, %c17, %c0_21, %c0_22], %33 {strides = array<i32>} : memref<2x18x18x32xf32, #tpu.memory_space<vmem>>, vector<2x1x18x32xf32>,
    %cst_23 = arith.constant 0.000000e+00 : f32
    %35 = vector.broadcast %cst_23 : f32 to vector<2x18x1x32xf32>
    %c0_24 = arith.constant 0 : index
    %c0_25 = arith.constant 0 : index
    %c0_26 = arith.constant 0 : index
    %c0_27 = arith.constant 0 : index
    %36 = vector.load %arg8[%c0_24, %c0_25, %c0_26, %c0_27] : memref<2x18x18x32xf32, #tpu.memory_space<vmem>>, vector<2x18x1x32xf32>
    tpu.vector_store %arg8[%c0_24, %c0_25, %c0_26, %c0_27], %35 {strides = array<i32>} : memref<2x18x18x32xf32, #tpu.memory_space<vmem>>, vector<2x18x1x32xf32>,
    %cst_28 = arith.constant 0.000000e+00 : f32
    %37 = vector.broadcast %cst_28 : f32 to vector<2x18x1x32xf32>
    %c0_29 = arith.constant 0 : index
    %c0_30 = arith.constant 0 : index
    %c17_31 = arith.constant 17 : index
    %c0_32 = arith.constant 0 : index
    %38 = vector.load %arg8[%c0_29, %c0_30, %c17_31, %c0_32] : memref<2x18x18x32xf32, #tpu.memory_space<vmem>>, vector<2x18x1x32xf32>
    tpu.vector_store %arg8[%c0_29, %c0_30, %c17_31, %c0_32], %37 {strides = array<i32>} : memref<2x18x18x32xf32, #tpu.memory_space<vmem>>, vector<2x18x1x32xf32>,
    %39 = vector.shape_cast %30 : vector<512x32xf32> to vector<2x16x16x32xf32>
    %c0_33 = arith.constant 0 : index
    %c1 = arith.constant 1 : index
    %c1_34 = arith.constant 1 : index
    %c0_35 = arith.constant 0 : index
    %40 = vector.load %arg8[%c0_33, %c1, %c1_34, %c0_35] : memref<2x18x18x32xf32, #tpu.memory_space<vmem>>, vector<2x16x16x32xf32>
    tpu.vector_store %arg8[%c0_33, %c1, %c1_34, %c0_35], %39 {strides = array<i32>} : memref<2x18x18x32xf32, #tpu.memory_space<vmem>>, vector<2x16x16x32xf32>,
    %c0_36 = arith.constant 0 : index
    %c0_37 = arith.constant 0 : index
    %c0_38 = arith.constant 0 : index
    %c0_39 = arith.constant 0 : index
    %41 = vector.load %arg8[%c0_36, %c0_37, %c0_38, %c0_39] : memref<2x18x18x32xf32, #tpu.memory_space<vmem>>, vector<2x16x16x32xf32>
    %42 = vector.shape_cast %41 : vector<2x16x16x32xf32> to vector<512x32xf32>
    %c0_40 = arith.constant 0 : index
    %c0_41 = arith.constant 0 : index
    %c1_42 = arith.constant 1 : index
    %c0_43 = arith.constant 0 : index
    %43 = vector.load %arg8[%c0_40, %c0_41, %c1_42, %c0_43] : memref<2x18x18x32xf32, #tpu.memory_space<vmem>>, vector<2x16x16x32xf32>
    %44 = vector.shape_cast %43 : vector<2x16x16x32xf32> to vector<512x32xf32>
    %c0_44 = arith.constant 0 : index
    %c0_45 = arith.constant 0 : index
    %c2 = arith.constant 2 : index
    %c0_46 = arith.constant 0 : index
    %45 = vector.load %arg8[%c0_44, %c0_45, %c2, %c0_46] : memref<2x18x18x32xf32, #tpu.memory_space<vmem>>, vector<2x16x16x32xf32>
    %46 = vector.shape_cast %45 : vector<2x16x16x32xf32> to vector<512x32xf32>
    %c0_47 = arith.constant 0 : index
    %c1_48 = arith.constant 1 : index
    %c0_49 = arith.constant 0 : index
    %c0_50 = arith.constant 0 : index
    %47 = vector.load %arg8[%c0_47, %c1_48, %c0_49, %c0_50] : memref<2x18x18x32xf32, #tpu.memory_space<vmem>>, vector<2x16x16x32xf32>
    %48 = vector.shape_cast %47 : vector<2x16x16x32xf32> to vector<512x32xf32>
    %c0_51 = arith.constant 0 : index
    %c1_52 = arith.constant 1 : index
    %c1_53 = arith.constant 1 : index
    %c0_54 = arith.constant 0 : index
    %49 = vector.load %arg8[%c0_51, %c1_52, %c1_53, %c0_54] : memref<2x18x18x32xf32, #tpu.memory_space<vmem>>, vector<2x16x16x32xf32>
    %50 = vector.shape_cast %49 : vector<2x16x16x32xf32> to vector<512x32xf32>
    %c0_55 = arith.constant 0 : index
    %c1_56 = arith.constant 1 : index
    %c2_57 = arith.constant 2 : index
    %c0_58 = arith.constant 0 : index
    %51 = vector.load %arg8[%c0_55, %c1_56, %c2_57, %c0_58] : memref<2x18x18x32xf32, #tpu.memory_space<vmem>>, vector<2x16x16x32xf32>
    %52 = vector.shape_cast %51 : vector<2x16x16x32xf32> to vector<512x32xf32>
    %c0_59 = arith.constant 0 : index
    %c2_60 = arith.constant 2 : index
    %c0_61 = arith.constant 0 : index
    %c0_62 = arith.constant 0 : index
    %53 = vector.load %arg8[%c0_59, %c2_60, %c0_61, %c0_62] : memref<2x18x18x32xf32, #tpu.memory_space<vmem>>, vector<2x16x16x32xf32>
    %54 = vector.shape_cast %53 : vector<2x16x16x32xf32> to vector<512x32xf32>
    %c0_63 = arith.constant 0 : index
    %c2_64 = arith.constant 2 : index
    %c1_65 = arith.constant 1 : index
    %c0_66 = arith.constant 0 : index
    %55 = vector.load %arg8[%c0_63, %c2_64, %c1_65, %c0_66] : memref<2x18x18x32xf32, #tpu.memory_space<vmem>>, vector<2x16x16x32xf32>
    %56 = vector.shape_cast %55 : vector<2x16x16x32xf32> to vector<512x32xf32>
    %c0_67 = arith.constant 0 : index
    %c2_68 = arith.constant 2 : index
    %c2_69 = arith.constant 2 : index
    %c0_70 = arith.constant 0 : index
    %57 = vector.load %arg8[%c0_67, %c2_68, %c2_69, %c0_70] : memref<2x18x18x32xf32, #tpu.memory_space<vmem>>, vector<2x16x16x32xf32>
    %58 = vector.shape_cast %57 : vector<2x16x16x32xf32> to vector<512x32xf32>
    %59 = tpu.concatenate %42, %44, %46, %48, %50, %52, %54, %56, %58 in 1 : vector<512x32xf32>, vector<512x32xf32>, vector<512x32xf32>, vector<512x32xf32>, vector<512x32xf32>, vector<512x32xf32>, vector<512x32xf32>, vector<512x32xf32>, vector<512x32xf32> -> vector<512x288xf32>
    %c0_71 = arith.constant 0 : index
    %c0_72 = arith.constant 0 : index
    %60 = vector.load %arg4[%c0_71, %c0_72] : memref<288x32xf32, #tpu.memory_space<vmem>>, vector<288x32xf32>
    %cst_73 = arith.constant dense<0.000000e+00> : vector<512x32xf32>
    %61 = tpu.matmul %59, %60, %cst_73 {dimension_numbers = #tpu.dot_dimension_numbers<[1], [0], [0], [1], [0, 0, 1, 1], [], []>} : vector<512x288xf32>, vector<288x32xf32>, vector<512x32xf32> -> vector<512x32xf32>
    %cst_74 = arith.constant dense<0.000000e+00> : vector<32xf32>
    %62 = vector.multi_reduction <add>, %61, %cst_74 [0] : vector<512x32xf32> to vector<32xf32>
    %63 = vector.shape_cast %62 : vector<32xf32> to vector<1x32xf32>
    %64 = arith.mulf %61, %61 : vector<512x32xf32>
    %cst_75 = arith.constant dense<0.000000e+00> : vector<32xf32>
    %65 = vector.multi_reduction <add>, %64, %cst_75 [0] : vector<512x32xf32> to vector<32xf32>
    %66 = vector.shape_cast %65 : vector<32xf32> to vector<1x32xf32>
    %cst_76 = arith.constant 0.001953125 : f32
    %67 = vector.broadcast %cst_76 : f32 to vector<1x32xf32>
    %68 = arith.mulf %63, %67 : vector<1x32xf32>
    %cst_77 = arith.constant 0.001953125 : f32
    %69 = vector.broadcast %cst_77 : f32 to vector<1x32xf32>
    %70 = arith.mulf %66, %69 : vector<1x32xf32>
    %71 = arith.mulf %68, %68 : vector<1x32xf32>
    %72 = arith.subf %70, %71 : vector<1x32xf32>
    %c0_78 = arith.constant 0 : index
    %c0_79 = arith.constant 0 : index
    %73 = vector.load %arg5[%c0_78, %c0_79] : memref<1x32xf32, #tpu.memory_space<vmem>>, vector<1x32xf32>
    %cst_80 = arith.constant 9.99999974E-6 : f32
    %74 = vector.broadcast %cst_80 : f32 to vector<1x32xf32>
    %75 = arith.addf %72, %74 : vector<1x32xf32>
    %76 = math.rsqrt %75 : vector<1x32xf32>
    %77 = arith.mulf %73, %76 : vector<1x32xf32>
    %c0_81 = arith.constant 0 : index
    %c0_82 = arith.constant 0 : index
    %78 = vector.load %arg6[%c0_81, %c0_82] : memref<1x32xf32, #tpu.memory_space<vmem>>, vector<1x32xf32>
    %79 = arith.mulf %68, %77 : vector<1x32xf32>
    %80 = arith.subf %78, %79 : vector<1x32xf32>
    %81 = vector.broadcast %77 : vector<1x32xf32> to vector<512x32xf32>
    %82 = arith.mulf %61, %81 : vector<512x32xf32>
    %83 = vector.broadcast %80 : vector<1x32xf32> to vector<512x32xf32>
    %84 = arith.addf %82, %83 : vector<512x32xf32>
    %85 = vector.shape_cast %84 : vector<512x32xf32> to vector<2x256x32xf32>
    %c0_83 = arith.constant 0 : index
    %c0_84 = arith.constant 0 : index
    %c0_85 = arith.constant 0 : index
    %86 = vector.load %arg7[%c0_83, %c0_84, %c0_85] : memref<2x256x32xf32, #tpu.memory_space<vmem>>, vector<2x256x32xf32>
    tpu.vector_store %arg7[%c0_83, %c0_84, %c0_85], %85 {strides = array<i32>} : memref<2x256x32xf32, #tpu.memory_space<vmem>>, vector<2x256x32xf32>,
    return
  }
}

</mosaic_0001>

<llo_original>
// kernel: tpu_custom_call.1
$region0: #{tpu_custom_call.1}
  #allocation0 [shape = 'u32[]', space=smem, size = 0x4, offset = 0x4, fixed_abs, tag = 'smem constant byte address 0x4 - core index']
  #allocation1 [shape = 'u32[72,128]{1,0:T(1,128)}', space=vmem, size = 0x9000, scoped, tag = 'internal scratch']
  #allocation2 [shape = 'f32[2,18,18,32]{3,2,1,0:T(8,128)}', space=vmem, size = 0x6c000, scoped, tag = 'scratch operand']
  %s0 = inlined_call_operand.vmem [shape: f32[512,16], index: 0, kind: input, shape index: {}]
  %s1 = inlined_call_operand.vmem [shape: f32[16,32], index: 1, kind: input, shape index: {}]
  %s2 = inlined_call_operand.vmem [shape: f32[1,32], index: 2, kind: input, shape index: {}]
  %s3 = inlined_call_operand.vmem [shape: f32[1,32], index: 3, kind: input, shape index: {}]
  %s4 = inlined_call_operand.vmem [shape: f32[288,32], index: 4, kind: input, shape index: {}]
  %s5 = inlined_call_operand.vmem [shape: f32[1,32], index: 5, kind: input, shape index: {}]
  %s6 = inlined_call_operand.vmem [shape: f32[1,32], index: 6, kind: input, shape index: {}]
  %s7 = inlined_call_operand.hbm [shape: f32[2,32,256], index: 7, kind: output, shape index: {}]
  %s8 = sld [smem:[#allocation0]]
  $region38: #{tpu_custom_call.1} parent=0
    _
  %s10 = ssub.s32 1, %s8
  %s11 = scalar_select 0, %s10, %s8
  $region1: #{tpu_custom_call.1} parent=0
    #allocation3 [shape = 'u8[65536]{0}', space=vmem, size = 0x10000, scoped, tag = 'output window, operand 0, single buffered']
    #allocation4 [shape = 's32[1]{0}', space=sflag, size = 0x4, scoped, tag = 'scoped memory for tpu_custom_call.1']
    %12 = vsyncpa [#allocation4], 0
    // Predicated region
    $region2: #{tpu_custom_call.1} parent=1 // pred_check
      _
    $region3: #{tpu_custom_call.1} parent=1 // pred_check_branch
      %14 = sbr.rel (0) target = $region5
    $region4: #{tpu_custom_call.1} parent=1 // pred_region
      _
    $region5: #{tpu_custom_call.1} parent=1 // pred_fallthru
      _
    // Predicated region
    $region6: #{tpu_custom_call.1} parent=1 // pred_check
      _
    $region7: #{tpu_custom_call.1} parent=1 // pred_check_branch
      %16 = sbr.rel (0) target = $region9
    $region8: #{tpu_custom_call.1} parent=1 // pred_region
      _
    $region9: #{tpu_custom_call.1} parent=1 // pred_fallthru
      _
    // Predicated region
    $region10: #{tpu_custom_call.1} parent=1 // pred_check
      _
    $region11: #{tpu_custom_call.1} parent=1 // pred_check_branch
      %18 = sbr.rel (0) target = $region13
    $region12: #{tpu_custom_call.1} parent=1 // pred_region
      _
    $region13: #{tpu_custom_call.1} parent=1 // pred_fallthru
      _
    // Predicated region
    $region14: #{tpu_custom_call.1} parent=1 // pred_check
      _
    $region15: #{tpu_custom_call.1} parent=1 // pred_check_branch
      %20 = sbr.rel (0) target = $region17
    $region16: #{tpu_custom_call.1} parent=1 // pred_region
      _
    $region17: #{tpu_custom_call.1} parent=1 // pred_fallthru
      _
    // Predicated region
    $region18: #{tpu_custom_call.1} parent=1 // pred_check
      _
    $region19: #{tpu_custom_call.1} parent=1 // pred_check_branch
      %22 = sbr.rel (0) target = $region21
    $region20: #{tpu_custom_call.1} parent=1 // pred_region
      _
    $region21: #{tpu_custom_call.1} parent=1 // pred_fallthru
      _
    // Predicated region
    $region22: #{tpu_custom_call.1} parent=1 // pred_check
      _
    $region23: #{tpu_custom_call.1} parent=1 // pred_check_branch
      %24 = sbr.rel (0) target = $region25
    $region24: #{tpu_custom_call.1} parent=1 // pred_region
      _
    $region25: #{tpu_custom_call.1} parent=1 // pred_fallthru
      _
    // Predicated region
    $region26: #{tpu_custom_call.1} parent=1 // pred_check
      _
    $region27: #{tpu_custom_call.1} parent=1 // pred_check_branch
      %26 = sbr.rel (0) target = $region29
    $region28: #{tpu_custom_call.1} parent=1 // pred_region
      _
    $region29: #{tpu_custom_call.1} parent=1 // pred_fallthru
      _
    %v27 = vld [vmem:[%s0] sm:$0xff]
    %v28 = vld [vmem:[%s0 + $0x8] sm:$0xff]
    %v29 = vld [vmem:[%s0 + $0x10] sm:$0xff]
    %v30 = vld [vmem:[%s0 + $0x18] sm:$0xff]
    %v31 = vld [vmem:[%s0 + $0x20] sm:$0xff]
    %v32 = vld [vmem:[%s0 + $0x28] sm:$0xff]
    %v33 = vld [vmem:[%s0 + $0x30] sm:$0xff]
    %v34 = vld [vmem:[%s0 + $0x38] sm:$0xff]
    %v35 = vld [vmem:[%s0 + $0x40] sm:$0xff]
    %v36 = vld [vmem:[%s0 + $0x48] sm:$0xff]
    %v37 = vld [vmem:[%s0 + $0x50] sm:$0xff]
    %v38 = vld [vmem:[%s0 + $0x58] sm:$0xff]
    %v39 = vld [vmem:[%s0 + $0x60] sm:$0xff]
    %v40 = vld [vmem:[%s0 + $0x68] sm:$0xff]
    %v41 = vld [vmem:[%s0 + $0x70] sm:$0xff]
    %v42 = vld [vmem:[%s0 + $0x78] sm:$0xff]
    %v43 = vld [vmem:[%s0 + $0x80] sm:$0xff]
    %v44 = vld [vmem:[%s0 + $0x88] sm:$0xff]
    %v45 = vld [vmem:[%s0 + $0x90] sm:$0xff]
    %v46 = vld [vmem:[%s0 + $0x98] sm:$0xff]
    %v47 = vld [vmem:[%s0 + $0xa0] sm:$0xff]
    %v48 = vld [vmem:[%s0 + $0xa8] sm:$0xff]
    %v49 = vld [vmem:[%s0 + $0xb0] sm:$0xff]
    %v50 = vld [vmem:[%s0 + $0xb8] sm:$0xff]
    %v51 = vld [vmem:[%s0 + $0xc0] sm:$0xff]
    %v52 = vld [vmem:[%s0 + $0xc8] sm:$0xff]
    %v53 = vld [vmem:[%s0 + $0xd0] sm:$0xff]
    %v54 = vld [vmem:[%s0 + $0xd8] sm:$0xff]
    %v55 = vld [vmem:[%s0 + $0xe0] sm:$0xff]
    %v56 = vld [vmem:[%s0 + $0xe8] sm:$0xff]
    %v57 = vld [vmem:[%s0 + $0xf0] sm:$0xff]
    %v58 = vld [vmem:[%s0 + $0xf8] sm:$0xff]
    %v59 = vld [vmem:[%s0 + $0x100] sm:$0xff]
    %v60 = vld [vmem:[%s0 + $0x108] sm:$0xff]
    %v61 = vld [vmem:[%s0 + $0x110] sm:$0xff]
    %v62 = vld [vmem:[%s0 + $0x118] sm:$0xff]
    %v63 = vld [vmem:[%s0 + $0x120] sm:$0xff]
    %v64 = vld [vmem:[%s0 + $0x128] sm:$0xff]
    %v65 = vld [vmem:[%s0 + $0x130] sm:$0xff]
    %v66 = vld [vmem:[%s0 + $0x138] sm:$0xff]
    %v67 = vld [vmem:[%s0 + $0x140] sm:$0xff]
    %v68 = vld [vmem:[%s0 + $0x148] sm:$0xff]
    %v69 = vld [vmem:[%s0 + $0x150] sm:$0xff]
    %v70 = vld [vmem:[%s0 + $0x158] sm:$0xff]
    %v71 = vld [vmem:[%s0 + $0x160] sm:$0xff]
    %v72 = vld [vmem:[%s0 + $0x168] sm:$0xff]
    %v73 = vld [vmem:[%s0 + $0x170] sm:$0xff]
    %v74 = vld [vmem:[%s0 + $0x178] sm:$0xff]
    %v75 = vld [vmem:[%s0 + $0x180] sm:$0xff]
    %v76 = vld [vmem:[%s0 + $0x188] sm:$0xff]
    %v77 = vld [vmem:[%s0 + $0x190] sm:$0xff]
    %v78 = vld [vmem:[%s0 + $0x198] sm:$0xff]
    %v79 = vld [vmem:[%s0 + $0x1a0] sm:$0xff]
    %v80 = vld [vmem:[%s0 + $0x1a8] sm:$0xff]
    %v81 = vld [vmem:[%s0 + $0x1b0] sm:$0xff]
    %v82 = vld [vmem:[%s0 + $0x1b8] sm:$0xff]
    %v83 = vld [vmem:[%s0 + $0x1c0] sm:$0xff]
    %v84 = vld [vmem:[%s0 + $0x1c8] sm:$0xff]
    %v85 = vld [vmem:[%s0 + $0x1d0] sm:$0xff]
    %v86 = vld [vmem:[%s0 + $0x1d8] sm:$0xff]
    %v87 = vld [vmem:[%s0 + $0x1e0] sm:$0xff]
    %v88 = vld [vmem:[%s0 + $0x1e8] sm:$0xff]
    %v89 = vld [vmem:[%s0 + $0x1f0] sm:$0xff]
    %v90 = vld [vmem:[%s0 + $0x1f8] sm:$0xff]
    %v91 = vld [vmem:[%s1] sm:$0xff]
    %v92 = vld [vmem:[%s1 + $0x8] sm:$0xff]
    %vm93 = vcmask 130048
    %v95 = vsel %vm93, %v27, 0
    %v98 = vsel %vm93, %v28, 0
    %v101 = vsel %vm93, %v29, 0
    %v104 = vsel %vm93, %v30, 0
    %v107 = vsel %vm93, %v31, 0
    %v110 = vsel %vm93, %v32, 0
    %v113 = vsel %vm93, %v33, 0
    %v116 = vsel %vm93, %v34, 0
    %v119 = vsel %vm93, %v35, 0
    %v122 = vsel %vm93, %v36, 0
    %v125 = vsel %vm93, %v37, 0
    %v128 = vsel %vm93, %v38, 0
    %v131 = vsel %vm93, %v39, 0
    %v134 = vsel %vm93, %v40, 0
    %v137 = vsel %vm93, %v41, 0
    %v140 = vsel %vm93, %v42, 0
    %v143 = vsel %vm93, %v43, 0
    %v146 = vsel %vm93, %v44, 0
    %v149 = vsel %vm93, %v45, 0
    %v152 = vsel %vm93, %v46, 0
    %v155 = vsel %vm93, %v47, 0
    %v158 = vsel %vm93, %v48, 0
    %v161 = vsel %vm93, %v49, 0
    %v164 = vsel %vm93, %v50, 0
    %v167 = vsel %vm93, %v51, 0
    %v170 = vsel %vm93, %v52, 0
    %v173 = vsel %vm93, %v53, 0
    %v176 = vsel %vm93, %v54, 0
    %v179 = vsel %vm93, %v55, 0
    %v182 = vsel %vm93, %v56, 0
    %v185 = vsel %vm93, %v57, 0
    %v188 = vsel %vm93, %v58, 0
    %v191 = vsel %vm93, %v59, 0
    %v194 = vsel %vm93, %v60, 0
    %v197 = vsel %vm93, %v61, 0
    %v200 = vsel %vm93, %v62, 0
    %v203 = vsel %vm93, %v63, 0
    %v206 = vsel %vm93, %v64, 0
    %v209 = vsel %vm93, %v65, 0
    %v212 = vsel %vm93, %v66, 0
    %v215 = vsel %vm93, %v67, 0
    %v218 = vsel %vm93, %v68, 0
    %v221 = vsel %vm93, %v69, 0
    %v224 = vsel %vm93, %v70, 0
    %v227 = vsel %vm93, %v71, 0
    %v230 = vsel %vm93, %v72, 0
    %v233 = vsel %vm93, %v73, 0
    %v236 = vsel %vm93, %v74, 0
    %v239 = vsel %vm93, %v75, 0
    %v242 = vsel %vm93, %v76, 0
    %v245 = vsel %vm93, %v77, 0
    %v248 = vsel %vm93, %v78, 0
    %v251 = vsel %vm93, %v79, 0
    %v254 = vsel %vm93, %v80, 0
    %v257 = vsel %vm93, %v81, 0
    %v260 = vsel %vm93, %v82, 0
    %v263 = vsel %vm93, %v83, 0
    %v266 = vsel %vm93, %v84, 0
    %v269 = vsel %vm93, %v85, 0
    %v272 = vsel %vm93, %v86, 0
    %v275 = vsel %vm93, %v87, 0
    %v278 = vsel %vm93, %v88, 0
    %v281 = vsel %vm93, %v89, 0
    %v284 = vsel %vm93, %v90, 0
    %286 = vmatpush.msra.mxu0 0.0
    %287 = vmatpush.msra.mxu0 0.0
    %288 = vmatpush.msra.mxu0 0.0
    %289 = vmatpush.msra.mxu0 0.0
    %290 = vmatpush.msra.mxu0 0.0
    %291 = vmatpush.msra.mxu0 0.0
    %292 = vmatpush.msra.mxu0 0.0
    %293 = vmatpush.msra.mxu0 0.0
    %294 = vmatpush.msra.mxu0 0.0
    %295 = vmatpush.msra.mxu0 0.0
    %296 = vmatpush.msra.mxu0 0.0
    %297 = vmatpush.msra.mxu0 0.0
    %298 = vmatpush.msra.mxu0 0.0
    %299 = vmatpush.msra.mxu0 0.0
    %300 = vmatpush.msra.mxu0 %v92
    %301 = vmatpush.msra.mxu0 %v91
    %302 = vmatmul.f32.gmra.mxu0 %v95
    %v303 = vpop.f32.mrf.mxu0
    %v304 = vadd.f32 0.0, %v303
    %305 = vmatmul.f32.gmra.mxu0 %v98
    %v306 = vpop.f32.mrf.mxu0
    %v307 = vadd.f32 0.0, %v306
    %308 = vmatmul.f32.gmra.mxu0 %v101
    %v309 = vpop.f32.mrf.mxu0
    %v310 = vadd.f32 0.0, %v309
    %311 = vmatmul.f32.gmra.mxu0 %v104
    %v312 = vpop.f32.mrf.mxu0
    %v313 = vadd.f32 0.0, %v312
    %314 = vmatmul.f32.gmra.mxu0 %v107
    %v315 = vpop.f32.mrf.mxu0
    %v316 = vadd.f32 0.0, %v315
    %317 = vmatmul.f32.gmra.mxu0 %v110
    %v318 = vpop.f32.mrf.mxu0
    %v319 = vadd.f32 0.0, %v318
    %320 = vmatmul.f32.gmra.mxu0 %v113
    %v321 = vpop.f32.mrf.mxu0
    %v322 = vadd.f32 0.0, %v321
    %323 = vmatmul.f32.gmra.mxu0 %v116
    %v324 = vpop.f32.mrf.mxu0
    %v325 = vadd.f32 0.0, %v324
    %326 = vmatmul.f32.gmra.mxu0 %v119
    %v327 = vpop.f32.mrf.mxu0
    %v328 = vadd.f32 0.0, %v327
    %329 = vmatmul.f32.gmra.mxu0 %v122
    %v330 = vpop.f32.mrf.mxu0
    %v331 = vadd.f32 0.0, %v330
    %332 = vmatmul.f32.gmra.mxu0 %v125
    %v333 = vpop.f32.mrf.mxu0
    %v334 = vadd.f32 0.0, %v333
    %335 = vmatmul.f32.gmra.mxu0 %v128
    %v336 = vpop.f32.mrf.mxu0
    %v337 = vadd.f32 0.0, %v336
    %338 = vmatmul.f32.gmra.mxu0 %v131
    %v339 = vpop.f32.mrf.mxu0
    %v340 = vadd.f32 0.0, %v339
    %341 = vmatmul.f32.gmra.mxu0 %v134
    %v342 = vpop.f32.mrf.mxu0
    %v343 = vadd.f32 0.0, %v342
    %344 = vmatmul.f32.gmra.mxu0 %v137
    %v345 = vpop.f32.mrf.mxu0
    %v346 = vadd.f32 0.0, %v345
    %347 = vmatmul.f32.gmra.mxu0 %v140
    %v348 = vpop.f32.mrf.mxu0
    %v349 = vadd.f32 0.0, %v348
    %350 = vmatmul.f32.gmra.mxu0 %v143
    %v351 = vpop.f32.mrf.mxu0
    %v352 = vadd.f32 0.0, %v351
    %353 = vmatmul.f32.gmra.mxu0 %v146
    %v354 = vpop.f32.mrf.mxu0
    %v355 = vadd.f32 0.0, %v354
    %356 = vmatmul.f32.gmra.mxu0 %v149
    %v357 = vpop.f32.mrf.mxu0
    %v358 = vadd.f32 0.0, %v357
    %359 = vmatmul.f32.gmra.mxu0 %v152
    %v360 = vpop.f32.mrf.mxu0
    %v361 = vadd.f32 0.0, %v360
    %362 = vmatmul.f32.gmra.mxu0 %v155
    %v363 = vpop.f32.mrf.mxu0
    %v364 = vadd.f32 0.0, %v363
    %365 = vmatmul.f32.gmra.mxu0 %v158
    %v366 = vpop.f32.mrf.mxu0
    %v367 = vadd.f32 0.0, %v366
    %368 = vmatmul.f32.gmra.mxu0 %v161
    %v369 = vpop.f32.mrf.mxu0
    %v370 = vadd.f32 0.0, %v369
    %371 = vmatmul.f32.gmra.mxu0 %v164
    %v372 = vpop.f32.mrf.mxu0
    %v373 = vadd.f32 0.0, %v372
    %374 = vmatmul.f32.gmra.mxu0 %v167
    %v375 = vpop.f32.mrf.mxu0
    %v376 = vadd.f32 0.0, %v375
    %377 = vmatmul.f32.gmra.mxu0 %v170
    %v378 = vpop.f32.mrf.mxu0
    %v379 = vadd.f32 0.0, %v378
    %380 = vmatmul.f32.gmra.mxu0 %v173
    %v381 = vpop.f32.mrf.mxu0
    %v382 = vadd.f32 0.0, %v381
    %383 = vmatmul.f32.gmra.mxu0 %v176
    %v384 = vpop.f32.mrf.mxu0
    %v385 = vadd.f32 0.0, %v384
    %386 = vmatmul.f32.gmra.mxu0 %v179
    %v387 = vpop.f32.mrf.mxu0
    %v388 = vadd.f32 0.0, %v387
    %389 = vmatmul.f32.gmra.mxu0 %v182
    %v390 = vpop.f32.mrf.mxu0
    %v391 = vadd.f32 0.0, %v390
    %392 = vmatmul.f32.gmra.mxu0 %v185
    %v393 = vpop.f32.mrf.mxu0
    %v394 = vadd.f32 0.0, %v393
    %395 = vmatmul.f32.gmra.mxu0 %v188
    %v396 = vpop.f32.mrf.mxu0
    %v397 = vadd.f32 0.0, %v396
    %398 = vmatmul.f32.gmra.mxu0 %v191
    %v399 = vpop.f32.mrf.mxu0
    %v400 = vadd.f32 0.0, %v399
    %401 = vmatmul.f32.gmra.mxu0 %v194
    %v402 = vpop.f32.mrf.mxu0
    %v403 = vadd.f32 0.0, %v402
    %404 = vmatmul.f32.gmra.mxu0 %v197
    %v405 = vpop.f32.mrf.mxu0
    %v406 = vadd.f32 0.0, %v405
    %407 = vmatmul.f32.gmra.mxu0 %v200
    %v408 = vpop.f32.mrf.mxu0
    %v409 = vadd.f32 0.0, %v408
    %410 = vmatmul.f32.gmra.mxu0 %v203
    %v411 = vpop.f32.mrf.mxu0
    %v412 = vadd.f32 0.0, %v411
    %413 = vmatmul.f32.gmra.mxu0 %v206
    %v414 = vpop.f32.mrf.mxu0
    %v415 = vadd.f32 0.0, %v414
    %416 = vmatmul.f32.gmra.mxu0 %v209
    %v417 = vpop.f32.mrf.mxu0
    %v418 = vadd.f32 0.0, %v417
    %419 = vmatmul.f32.gmra.mxu0 %v212
    %v420 = vpop.f32.mrf.mxu0
    %v421 = vadd.f32 0.0, %v420
    %422 = vmatmul.f32.gmra.mxu0 %v215
    %v423 = vpop.f32.mrf.mxu0
    %v424 = vadd.f32 0.0, %v423
    %425 = vmatmul.f32.gmra.mxu0 %v218
    %v426 = vpop.f32.mrf.mxu0
    %v427 = vadd.f32 0.0, %v426
    %428 = vmatmul.f32.gmra.mxu0 %v221
    %v429 = vpop.f32.mrf.mxu0
    %v430 = vadd.f32 0.0, %v429
    %431 = vmatmul.f32.gmra.mxu0 %v224
    %v432 = vpop.f32.mrf.mxu0
    %v433 = vadd.f32 0.0, %v432
    %434 = vmatmul.f32.gmra.mxu0 %v227
    %v435 = vpop.f32.mrf.mxu0
    %v436 = vadd.f32 0.0, %v435
    %437 = vmatmul.f32.gmra.mxu0 %v230
    %v438 = vpop.f32.mrf.mxu0
    %v439 = vadd.f32 0.0, %v438
    %440 = vmatmul.f32.gmra.mxu0 %v233
    %v441 = vpop.f32.mrf.mxu0
    %v442 = vadd.f32 0.0, %v441
    %443 = vmatmul.f32.gmra.mxu0 %v236
    %v444 = vpop.f32.mrf.mxu0
    %v445 = vadd.f32 0.0, %v444
    %446 = vmatmul.f32.gmra.mxu0 %v239
    %v447 = vpop.f32.mrf.mxu0
    %v448 = vadd.f32 0.0, %v447
    %449 = vmatmul.f32.gmra.mxu0 %v242
    %v450 = vpop.f32.mrf.mxu0
    %v451 = vadd.f32 0.0, %v450
    %452 = vmatmul.f32.gmra.mxu0 %v245
    %v453 = vpop.f32.mrf.mxu0
    %v454 = vadd.f32 0.0, %v453
    %455 = vmatmul.f32.gmra.mxu0 %v248
    %v456 = vpop.f32.mrf.mxu0
    %v457 = vadd.f32 0.0, %v456
    %458 = vmatmul.f32.gmra.mxu0 %v251
    %v459 = vpop.f32.mrf.mxu0
    %v460 = vadd.f32 0.0, %v459
    %461 = vmatmul.f32.gmra.mxu0 %v254
    %v462 = vpop.f32.mrf.mxu0
    %v463 = vadd.f32 0.0, %v462
    %464 = vmatmul.f32.gmra.mxu0 %v257
    %v465 = vpop.f32.mrf.mxu0
    %v466 = vadd.f32 0.0, %v465
    %467 = vmatmul.f32.gmra.mxu0 %v260
    %v468 = vpop.f32.mrf.mxu0
    %v469 = vadd.f32 0.0, %v468
    %470 = vmatmul.f32.gmra.mxu0 %v263
    %v471 = vpop.f32.mrf.mxu0
    %v472 = vadd.f32 0.0, %v471
    %473 = vmatmul.f32.gmra.mxu0 %v266
    %v474 = vpop.f32.mrf.mxu0
    %v475 = vadd.f32 0.0, %v474
    %476 = vmatmul.f32.gmra.mxu0 %v269
    %v477 = vpop.f32.mrf.mxu0
    %v478 = vadd.f32 0.0, %v477
    %479 = vmatmul.f32.gmra.mxu0 %v272
    %v480 = vpop.f32.mrf.mxu0
    %v481 = vadd.f32 0.0, %v480
    %482 = vmatmul.f32.gmra.mxu0 %v275
    %v483 = vpop.f32.mrf.mxu0
    %v484 = vadd.f32 0.0, %v483
    %485 = vmatmul.f32.gmra.mxu0 %v278
    %v486 = vpop.f32.mrf.mxu0
    %v487 = vadd.f32 0.0, %v486
    %488 = vmatmul.f32.gmra.mxu0 %v281
    %v489 = vpop.f32.mrf.mxu0
    %v490 = vadd.f32 0.0, %v489
    %491 = vmatmul.f32.gmra.mxu0 %v284
    %v492 = vpop.f32.mrf.mxu0
    %v493 = vadd.f32 0.0, %v492
    %494 = vdwg.mxu0
    %vm495 = vcmask 261120
    %v496 = vsel %vm495, %v304, 0.0
    %v497 = vsel %vm495, %v307, 0.0
    %v498 = vadd.f32 %v496, %v497
    %v499 = vsel %vm495, %v310, 0.0
    %v500 = vadd.f32 %v498, %v499
    %v501 = vsel %vm495, %v313, 0.0
    %v502 = vadd.f32 %v500, %v501
    %v503 = vsel %vm495, %v316, 0.0
    %v504 = vadd.f32 %v502, %v503
    %v505 = vsel %vm495, %v319, 0.0
    %v506 = vadd.f32 %v504, %v505
    %v507 = vsel %vm495, %v322, 0.0
    %v508 = vadd.f32 %v506, %v507
    %v509 = vsel %vm495, %v325, 0.0
    %v510 = vadd.f32 %v508, %v509
    %v511 = vsel %vm495, %v328, 0.0
    %v512 = vadd.f32 %v510, %v511
    %v513 = vsel %vm495, %v331, 0.0
    %v514 = vadd.f32 %v512, %v513
    %v515 = vsel %vm495, %v334, 0.0
    %v516 = vadd.f32 %v514, %v515
    %v517 = vsel %vm495, %v337, 0.0
    %v518 = vadd.f32 %v516, %v517
    %v519 = vsel %vm495, %v340, 0.0
    %v520 = vadd.f32 %v518, %v519
    %v521 = vsel %vm495, %v343, 0.0
    %v522 = vadd.f32 %v520, %v521
    %v523 = vsel %vm495, %v346, 0.0
    %v524 = vadd.f32 %v522, %v523
    %v525 = vsel %vm495, %v349, 0.0
    %v526 = vadd.f32 %v524, %v525
    %v527 = vsel %vm495, %v352, 0.0
    %v528 = vadd.f32 %v526, %v527
    %v529 = vsel %vm495, %v355, 0.0
    %v530 = vadd.f32 %v528, %v529
    %v531 = vsel %vm495, %v358, 0.0
    %v532 = vadd.f32 %v530, %v531
    %v533 = vsel %vm495, %v361, 0.0
    %v534 = vadd.f32 %v532, %v533
    %v535 = vsel %vm495, %v364, 0.0
    %v536 = vadd.f32 %v534, %v535
    %v537 = vsel %vm495, %v367, 0.0
    %v538 = vadd.f32 %v536, %v537
    %v539 = vsel %vm495, %v370, 0.0
    %v540 = vadd.f32 %v538, %v539
    %v541 = vsel %vm495, %v373, 0.0
    %v542 = vadd.f32 %v540, %v541
    %v543 = vsel %vm495, %v376, 0.0
    %v544 = vadd.f32 %v542, %v543
    %v545 = vsel %vm495, %v379, 0.0
    %v546 = vadd.f32 %v544, %v545
    %v547 = vsel %vm495, %v382, 0.0
    %v548 = vadd.f32 %v546, %v547
    %v549 = vsel %vm495, %v385, 0.0
    %v550 = vadd.f32 %v548, %v549
    %v551 = vsel %vm495, %v388, 0.0
    %v552 = vadd.f32 %v550, %v551
    %v553 = vsel %vm495, %v391, 0.0
    %v554 = vadd.f32 %v552, %v553
    %v555 = vsel %vm495, %v394, 0.0
    %v556 = vadd.f32 %v554, %v555
    %v557 = vsel %vm495, %v397, 0.0
    %v558 = vadd.f32 %v556, %v557
    %v559 = vsel %vm495, %v400, 0.0
    %v560 = vadd.f32 %v558, %v559
    %v561 = vsel %vm495, %v403, 0.0
    %v562 = vadd.f32 %v560, %v561
    %v563 = vsel %vm495, %v406, 0.0
    %v564 = vadd.f32 %v562, %v563
    %v565 = vsel %vm495, %v409, 0.0
    %v566 = vadd.f32 %v564, %v565
    %v567 = vsel %vm495, %v412, 0.0
    %v568 = vadd.f32 %v566, %v567
    %v569 = vsel %vm495, %v415, 0.0
    %v570 = vadd.f32 %v568, %v569
    %v571 = vsel %vm495, %v418, 0.0
    %v572 = vadd.f32 %v570, %v571
    %v573 = vsel %vm495, %v421, 0.0
    %v574 = vadd.f32 %v572, %v573
    %v575 = vsel %vm495, %v424, 0.0
    %v576 = vadd.f32 %v574, %v575
    %v577 = vsel %vm495, %v427, 0.0
    %v578 = vadd.f32 %v576, %v577
    %v579 = vsel %vm495, %v430, 0.0
    %v580 = vadd.f32 %v578, %v579
    %v581 = vsel %vm495, %v433, 0.0
    %v582 = vadd.f32 %v580, %v581
    %v583 = vsel %vm495, %v436, 0.0
    %v584 = vadd.f32 %v582, %v583
    %v585 = vsel %vm495, %v439, 0.0
    %v586 = vadd.f32 %v584, %v585
    %v587 = vsel %vm495, %v442, 0.0
    %v588 = vadd.f32 %v586, %v587
    %v589 = vsel %vm495, %v445, 0.0
    %v590 = vadd.f32 %v588, %v589
    %v591 = vsel %vm495, %v448, 0.0
    %v592 = vadd.f32 %v590, %v591
    %v593 = vsel %vm495, %v451, 0.0
    %v594 = vadd.f32 %v592, %v593
    %v595 = vsel %vm495, %v454, 0.0
    %v596 = vadd.f32 %v594, %v595
    %v597 = vsel %vm495, %v457, 0.0
    %v598 = vadd.f32 %v596, %v597
    %v599 = vsel %vm495, %v460, 0.0
    %v600 = vadd.f32 %v598, %v599
    %v601 = vsel %vm495, %v463, 0.0
    %v602 = vadd.f32 %v600, %v601
    %v603 = vsel %vm495, %v466, 0.0
    %v604 = vadd.f32 %v602, %v603
    %v605 = vsel %vm495, %v469, 0.0
    %v606 = vadd.f32 %v604, %v605
    %v607 = vsel %vm495, %v472, 0.0
    %v608 = vadd.f32 %v606, %v607
    %v609 = vsel %vm495, %v475, 0.0
    %v610 = vadd.f32 %v608, %v609
    %v611 = vsel %vm495, %v478, 0.0
    %v612 = vadd.f32 %v610, %v611
    %v613 = vsel %vm495, %v481, 0.0
    %v614 = vadd.f32 %v612, %v613
    %v615 = vsel %vm495, %v484, 0.0
    %v616 = vadd.f32 %v614, %v615
    %v617 = vsel %vm495, %v487, 0.0
    %v618 = vadd.f32 %v616, %v617
    %v619 = vsel %vm495, %v490, 0.0
    %v620 = vadd.f32 %v618, %v619
    %v621 = vsel %vm495, %v493, 0.0
    %v622 = vadd.f32 %v620, %v621
    %v623 = vrot.slane %v622, 4
    %v624 = vadd.f32 %v622, %v623
    %v625 = vrot.slane %v624, 2
    %v626 = vadd.f32 %v624, %v625
    %v627 = vrot.slane %v626, 1
    %v628 = vadd.f32 %v626, %v627
    %v629 = vmul.f32 %v304, %v304
    %v630 = vmul.f32 %v307, %v307
    %v631 = vmul.f32 %v310, %v310
    %v632 = vmul.f32 %v313, %v313
    %v633 = vmul.f32 %v316, %v316
    %v634 = vmul.f32 %v319, %v319
    %v635 = vmul.f32 %v322, %v322
    %v636 = vmul.f32 %v325, %v325
    %v637 = vmul.f32 %v328, %v328
    %v638 = vmul.f32 %v331, %v331
    %v639 = vmul.f32 %v334, %v334
    %v640 = vmul.f32 %v337, %v337
    %v641 = vmul.f32 %v340, %v340
    %v642 = vmul.f32 %v343, %v343
    %v643 = vmul.f32 %v346, %v346
    %v644 = vmul.f32 %v349, %v349
    %v645 = vmul.f32 %v352, %v352
    %v646 = vmul.f32 %v355, %v355
    %v647 = vmul.f32 %v358, %v358
    %v648 = vmul.f32 %v361, %v361
    %v649 = vmul.f32 %v364, %v364
    %v650 = vmul.f32 %v367, %v367
    %v651 = vmul.f32 %v370, %v370
    %v652 = vmul.f32 %v373, %v373
    %v653 = vmul.f32 %v376, %v376
    %v654 = vmul.f32 %v379, %v379
    %v655 = vmul.f32 %v382, %v382
    %v656 = vmul.f32 %v385, %v385
    %v657 = vmul.f32 %v388, %v388
    %v658 = vmul.f32 %v391, %v391
    %v659 = vmul.f32 %v394, %v394
    %v660 = vmul.f32 %v397, %v397
    %v661 = vmul.f32 %v400, %v400
    %v662 = vmul.f32 %v403, %v403
    %v663 = vmul.f32 %v406, %v406
    %v664 = vmul.f32 %v409, %v409
    %v665 = vmul.f32 %v412, %v412
    %v666 = vmul.f32 %v415, %v415
    %v667 = vmul.f32 %v418, %v418
    %v668 = vmul.f32 %v421, %v421
    %v669 = vmul.f32 %v424, %v424
    %v670 = vmul.f32 %v427, %v427
    %v671 = vmul.f32 %v430, %v430
    %v672 = vmul.f32 %v433, %v433
    %v673 = vmul.f32 %v436, %v436
    %v674 = vmul.f32 %v439, %v439
    %v675 = vmul.f32 %v442, %v442
    %v676 = vmul.f32 %v445, %v445
    %v677 = vmul.f32 %v448, %v448
    %v678 = vmul.f32 %v451, %v451
    %v679 = vmul.f32 %v454, %v454
    %v680 = vmul.f32 %v457, %v457
    %v681 = vmul.f32 %v460, %v460
    %v682 = vmul.f32 %v463, %v463
    %v683 = vmul.f32 %v466, %v466
    %v684 = vmul.f32 %v469, %v469
    %v685 = vmul.f32 %v472, %v472
    %v686 = vmul.f32 %v475, %v475
    %v687 = vmul.f32 %v478, %v478
    %v688 = vmul.f32 %v481, %v481
    %v689 = vmul.f32 %v484, %v484
    %v690 = vmul.f32 %v487, %v487
    %v691 = vmul.f32 %v490, %v490
    %v692 = vmul.f32 %v493, %v493
    %v693 = vsel %vm495, %v629, 0.0
    %v694 = vsel %vm495, %v630, 0.0
    %v695 = vadd.f32 %v693, %v694
    %v696 = vsel %vm495, %v631, 0.0
    %v697 = vadd.f32 %v695, %v696
    %v698 = vsel %vm495, %v632, 0.0
    %v699 = vadd.f32 %v697, %v698
    %v700 = vsel %vm495, %v633, 0.0
    %v701 = vadd.f32 %v699, %v700
    %v702 = vsel %vm495, %v634, 0.0
    %v703 = vadd.f32 %v701, %v702
    %v704 = vsel %vm495, %v635, 0.0
    %v705 = vadd.f32 %v703, %v704
    %v706 = vsel %vm495, %v636, 0.0
    %v707 = vadd.f32 %v705, %v706
    %v708 = vsel %vm495, %v637, 0.0
    %v709 = vadd.f32 %v707, %v708
    %v710 = vsel %vm495, %v638, 0.0
    %v711 = vadd.f32 %v709, %v710
    %v712 = vsel %vm495, %v639, 0.0
    %v713 = vadd.f32 %v711, %v712
    %v714 = vsel %vm495, %v640, 0.0
    %v715 = vadd.f32 %v713, %v714
    %v716 = vsel %vm495, %v641, 0.0
    %v717 = vadd.f32 %v715, %v716
    %v718 = vsel %vm495, %v642, 0.0
    %v719 = vadd.f32 %v717, %v718
    %v720 = vsel %vm495, %v643, 0.0
    %v721 = vadd.f32 %v719, %v720
    %v722 = vsel %vm495, %v644, 0.0
    %v723 = vadd.f32 %v721, %v722
    %v724 = vsel %vm495, %v645, 0.0
    %v725 = vadd.f32 %v723, %v724
    %v726 = vsel %vm495, %v646, 0.0
    %v727 = vadd.f32 %v725, %v726
    %v728 = vsel %vm495, %v647, 0.0
    %v729 = vadd.f32 %v727, %v728
    %v730 = vsel %vm495, %v648, 0.0
    %v731 = vadd.f32 %v729, %v730
    %v732 = vsel %vm495, %v649, 0.0
    %v733 = vadd.f32 %v731, %v732
    %v734 = vsel %vm495, %v650, 0.0
    %v735 = vadd.f32 %v733, %v734
    %v736 = vsel %vm495, %v651, 0.0
    %v737 = vadd.f32 %v735, %v736
    %v738 = vsel %vm495, %v652, 0.0
    %v739 = vadd.f32 %v737, %v738
    %v740 = vsel %vm495, %v653, 0.0
    %v741 = vadd.f32 %v739, %v740
    %v742 = vsel %vm495, %v654, 0.0
    %v743 = vadd.f32 %v741, %v742
    %v744 = vsel %vm495, %v655, 0.0
    %v745 = vadd.f32 %v743, %v744
    %v746 = vsel %vm495, %v656, 0.0
    %v747 = vadd.f32 %v745, %v746
    %v748 = vsel %vm495, %v657, 0.0
    %v749 = vadd.f32 %v747, %v748
    %v750 = vsel %vm495, %v658, 0.0
    %v751 = vadd.f32 %v749, %v750
    %v752 = vsel %vm495, %v659, 0.0
    %v753 = vadd.f32 %v751, %v752
    %v754 = vsel %vm495, %v660, 0.0
    %v755 = vadd.f32 %v753, %v754
    %v756 = vsel %vm495, %v661, 0.0
    %v757 = vadd.f32 %v755, %v756
    %v758 = vsel %vm495, %v662, 0.0
    %v759 = vadd.f32 %v757, %v758
    %v760 = vsel %vm495, %v663, 0.0
    %v761 = vadd.f32 %v759, %v760
    %v762 = vsel %vm495, %v664, 0.0
    %v763 = vadd.f32 %v761, %v762
    %v764 = vsel %vm495, %v665, 0.0
    %v765 = vadd.f32 %v763, %v764
    %v766 = vsel %vm495, %v666, 0.0
    %v767 = vadd.f32 %v765, %v766
    %v768 = vsel %vm495, %v667, 0.0
    %v769 = vadd.f32 %v767, %v768
    %v770 = vsel %vm495, %v668, 0.0
    %v771 = vadd.f32 %v769, %v770
    %v772 = vsel %vm495, %v669, 0.0
    %v773 = vadd.f32 %v771, %v772
    %v774 = vsel %vm495, %v670, 0.0
    %v775 = vadd.f32 %v773, %v774
    %v776 = vsel %vm495, %v671, 0.0
    %v777 = vadd.f32 %v775, %v776
    %v778 = vsel %vm495, %v672, 0.0
    %v779 = vadd.f32 %v777, %v778
    %v780 = vsel %vm495, %v673, 0.0
    %v781 = vadd.f32 %v779, %v780
    %v782 = vsel %vm495, %v674, 0.0
    %v783 = vadd.f32 %v781, %v782
    %v784 = vsel %vm495, %v675, 0.0
    %v785 = vadd.f32 %v783, %v784
    %v786 = vsel %vm495, %v676, 0.0
    %v787 = vadd.f32 %v785, %v786
    %v788 = vsel %vm495, %v677, 0.0
    %v789 = vadd.f32 %v787, %v788
    %v790 = vsel %vm495, %v678, 0.0
    %v791 = vadd.f32 %v789, %v790
    %v792 = vsel %vm495, %v679, 0.0
    %v793 = vadd.f32 %v791, %v792
    %v794 = vsel %vm495, %v680, 0.0
    %v795 = vadd.f32 %v793, %v794
    %v796 = vsel %vm495, %v681, 0.0
    %v797 = vadd.f32 %v795, %v796
    %v798 = vsel %vm495, %v682, 0.0
    %v799 = vadd.f32 %v797, %v798
    %v800 = vsel %vm495, %v683, 0.0
    %v801 = vadd.f32 %v799, %v800
    %v802 = vsel %vm495, %v684, 0.0
    %v803 = vadd.f32 %v801, %v802
    %v804 = vsel %vm495, %v685, 0.0
    %v805 = vadd.f32 %v803, %v804
    %v806 = vsel %vm495, %v686, 0.0
    %v807 = vadd.f32 %v805, %v806
    %v808 = vsel %vm495, %v687, 0.0
    %v809 = vadd.f32 %v807, %v808
    %v810 = vsel %vm495, %v688, 0.0
    %v811 = vadd.f32 %v809, %v810
    %v812 = vsel %vm495, %v689, 0.0
    %v813 = vadd.f32 %v811, %v812
    %v814 = vsel %vm495, %v690, 0.0
    %v815 = vadd.f32 %v813, %v814
    %v816 = vsel %vm495, %v691, 0.0
    %v817 = vadd.f32 %v815, %v816
    %v818 = vsel %vm495, %v692, 0.0
    %v819 = vadd.f32 %v817, %v818
    %v820 = vrot.slane %v819, 4
    %v821 = vadd.f32 %v819, %v820
    %v822 = vrot.slane %v821, 2
    %v823 = vadd.f32 %v821, %v822
    %v824 = vrot.slane %v823, 1
    %v825 = vadd.f32 %v823, %v824
    %v826 = vmul.f32 %v628, 0.001953125
    %v827 = vmul.f32 %v825, 0.001953125
    %v828 = vmul.f32 %v826, %v826
    %v829 = vsub.f32 %v827, %v828
    %v830 = vld [vmem:[%s2] sm:$0x1]
    %v831 = vadd.f32 %v829, 1e-05
    %v832 = vrsqrt.pop %v831
    %v833 = vmul.f32 %v832, %v831
    %v834 = vmul.f32 %v833, %v832
    %v835 = vmul.f32 0.5, %v834
    %v836 = vsub.f32 1.5, %v835
    %v837 = vmul.f32 %v832, %v836
    %vm838 = vweird.f32 %v831
    %vm839 = vweird.f32 %v832
    %vm840 = vmor %vm838, %vm839
    %v841 = vsel %vm840, %v832, %v837
    %v842 = vmul.f32 %v830, %v841
    %v843 = vld [vmem:[%s3] sm:$0x1]
    %v844 = vmul.f32 %v826, %v842
    %v845 = vsub.f32 %v843, %v844
    %v847 = vperm.slane %v842, 0
    %v849 = vmul.f32 %v304, %v847
    %v850 = vmul.f32 %v307, %v847
    %v851 = vmul.f32 %v310, %v847
    %v852 = vmul.f32 %v313, %v847
    %v853 = vmul.f32 %v316, %v847
    %v854 = vmul.f32 %v319, %v847
    %v855 = vmul.f32 %v322, %v847
    %v856 = vmul.f32 %v325, %v847
    %v857 = vmul.f32 %v328, %v847
    %v858 = vmul.f32 %v331, %v847
    %v859 = vmul.f32 %v334, %v847
    %v860 = vmul.f32 %v337, %v847
    %v861 = vmul.f32 %v340, %v847
    %v862 = vmul.f32 %v343, %v847
    %v863 = vmul.f32 %v346, %v847
    %v864 = vmul.f32 %v349, %v847
    %v865 = vmul.f32 %v352, %v847
    %v866 = vmul.f32 %v355, %v847
    %v867 = vmul.f32 %v358, %v847
    %v868 = vmul.f32 %v361, %v847
    %v869 = vmul.f32 %v364, %v847
    %v870 = vmul.f32 %v367, %v847
    %v871 = vmul.f32 %v370, %v847
    %v872 = vmul.f32 %v373, %v847
    %v873 = vmul.f32 %v376, %v847
    %v874 = vmul.f32 %v379, %v847
    %v875 = vmul.f32 %v382, %v847
    %v876 = vmul.f32 %v385, %v847
    %v877 = vmul.f32 %v388, %v847
    %v878 = vmul.f32 %v391, %v847
    %v879 = vmul.f32 %v394, %v847
    %v880 = vmul.f32 %v397, %v847
    %v881 = vmul.f32 %v400, %v847
    %v882 = vmul.f32 %v403, %v847
    %v883 = vmul.f32 %v406, %v847
    %v884 = vmul.f32 %v409, %v847
    %v885 = vmul.f32 %v412, %v847
    %v886 = vmul.f32 %v415, %v847
    %v887 = vmul.f32 %v418, %v847
    %v888 = vmul.f32 %v421, %v847
    %v889 = vmul.f32 %v424, %v847
    %v890 = vmul.f32 %v427, %v847
    %v891 = vmul.f32 %v430, %v847
    %v892 = vmul.f32 %v433, %v847
    %v893 = vmul.f32 %v436, %v847
    %v894 = vmul.f32 %v439, %v847
    %v895 = vmul.f32 %v442, %v847
    %v896 = vmul.f32 %v445, %v847
    %v897 = vmul.f32 %v448, %v847
    %v898 = vmul.f32 %v451, %v847
    %v899 = vmul.f32 %v454, %v847
    %v900 = vmul.f32 %v457, %v847
    %v901 = vmul.f32 %v460, %v847
    %v902 = vmul.f32 %v463, %v847
    %v903 = vmul.f32 %v466, %v847
    %v904 = vmul.f32 %v469, %v847
    %v905 = vmul.f32 %v472, %v847
    %v906 = vmul.f32 %v475, %v847
    %v907 = vmul.f32 %v478, %v847
    %v908 = vmul.f32 %v481, %v847
    %v909 = vmul.f32 %v484, %v847
    %v910 = vmul.f32 %v487, %v847
    %v911 = vmul.f32 %v490, %v847
    %v912 = vmul.f32 %v493, %v847
    %v914 = vperm.slane %v845, 0
    %v916 = vadd.f32 %v849, %v914
    %v917 = vadd.f32 %v850, %v914
    %v918 = vadd.f32 %v851, %v914
    %v919 = vadd.f32 %v852, %v914
    %v920 = vadd.f32 %v853, %v914
    %v921 = vadd.f32 %v854, %v914
    %v922 = vadd.f32 %v855, %v914
    %v923 = vadd.f32 %v856, %v914
    %v924 = vadd.f32 %v857, %v914
    %v925 = vadd.f32 %v858, %v914
    %v926 = vadd.f32 %v859, %v914
    %v927 = vadd.f32 %v860, %v914
    %v928 = vadd.f32 %v861, %v914
    %v929 = vadd.f32 %v862, %v914
    %v930 = vadd.f32 %v863, %v914
    %v931 = vadd.f32 %v864, %v914
    %v932 = vadd.f32 %v865, %v914
    %v933 = vadd.f32 %v866, %v914
    %v934 = vadd.f32 %v867, %v914
    %v935 = vadd.f32 %v868, %v914
    %v936 = vadd.f32 %v869, %v914
    %v937 = vadd.f32 %v870, %v914
    %v938 = vadd.f32 %v871, %v914
    %v939 = vadd.f32 %v872, %v914
    %v940 = vadd.f32 %v873, %v914
    %v941 = vadd.f32 %v874, %v914
    %v942 = vadd.f32 %v875, %v914
    %v943 = vadd.f32 %v876, %v914
    %v944 = vadd.f32 %v877, %v914
    %v945 = vadd.f32 %v878, %v914
    %v946 = vadd.f32 %v879, %v914
    %v947 = vadd.f32 %v880, %v914
    %v948 = vadd.f32 %v881, %v914
    %v949 = vadd.f32 %v882, %v914
    %v950 = vadd.f32 %v883, %v914
    %v951 = vadd.f32 %v884, %v914
    %v952 = vadd.f32 %v885, %v914
    %v953 = vadd.f32 %v886, %v914
    %v954 = vadd.f32 %v887, %v914
    %v955 = vadd.f32 %v888, %v914
    %v956 = vadd.f32 %v889, %v914
    %v957 = vadd.f32 %v890, %v914
    %v958 = vadd.f32 %v891, %v914
    %v959 = vadd.f32 %v892, %v914
    %v960 = vadd.f32 %v893, %v914
    %v961 = vadd.f32 %v894, %v914
    %v962 = vadd.f32 %v895, %v914
    %v963 = vadd.f32 %v896, %v914
    %v964 = vadd.f32 %v897, %v914
    %v965 = vadd.f32 %v898, %v914
    %v966 = vadd.f32 %v899, %v914
    %v967 = vadd.f32 %v900, %v914
    %v968 = vadd.f32 %v901, %v914
    %v969 = vadd.f32 %v902, %v914
    %v970 = vadd.f32 %v903, %v914
    %v971 = vadd.f32 %v904, %v914
    %v972 = vadd.f32 %v905, %v914
    %v973 = vadd.f32 %v906, %v914
    %v974 = vadd.f32 %v907, %v914
    %v975 = vadd.f32 %v908, %v914
    %v976 = vadd.f32 %v909, %v914
    %v977 = vadd.f32 %v910, %v914
    %v978 = vadd.f32 %v911, %v914
    %v979 = vadd.f32 %v912, %v914
    %vm980 = vcmp.ge.f32.partialorder %v916, 0.0
    %vm981 = vcmp.ge.f32.partialorder %v917, 0.0
    %vm982 = vcmp.ge.f32.partialorder %v918, 0.0
    %vm983 = vcmp.ge.f32.partialorder %v919, 0.0
    %vm984 = vcmp.ge.f32.partialorder %v920, 0.0
    %vm985 = vcmp.ge.f32.partialorder %v921, 0.0
    %vm986 = vcmp.ge.f32.partialorder %v922, 0.0
    %vm987 = vcmp.ge.f32.partialorder %v923, 0.0
    %vm988 = vcmp.ge.f32.partialorder %v924, 0.0
    %vm989 = vcmp.ge.f32.partialorder %v925, 0.0
    %vm990 = vcmp.ge.f32.partialorder %v926, 0.0
    %vm991 = vcmp.ge.f32.partialorder %v927, 0.0
    %vm992 = vcmp.ge.f32.partialorder %v928, 0.0
    %vm993 = vcmp.ge.f32.partialorder %v929, 0.0
    %vm994 = vcmp.ge.f32.partialorder %v930, 0.0
    %vm995 = vcmp.ge.f32.partialorder %v931, 0.0
    %vm996 = vcmp.ge.f32.partialorder %v932, 0.0
    %vm997 = vcmp.ge.f32.partialorder %v933, 0.0
    %vm998 = vcmp.ge.f32.partialorder %v934, 0.0
    %vm999 = vcmp.ge.f32.partialorder %v935, 0.0
    %vm1000 = vcmp.ge.f32.partialorder %v936, 0.0
    %vm1001 = vcmp.ge.f32.partialorder %v937, 0.0
    %vm1002 = vcmp.ge.f32.partialorder %v938, 0.0
    %vm1003 = vcmp.ge.f32.partialorder %v939, 0.0
    %vm1004 = vcmp.ge.f32.partialorder %v940, 0.0
    %vm1005 = vcmp.ge.f32.partialorder %v941, 0.0
    %vm1006 = vcmp.ge.f32.partialorder %v942, 0.0
    %vm1007 = vcmp.ge.f32.partialorder %v943, 0.0
    %vm1008 = vcmp.ge.f32.partialorder %v944, 0.0
    %vm1009 = vcmp.ge.f32.partialorder %v945, 0.0
    %vm1010 = vcmp.ge.f32.partialorder %v946, 0.0
    %vm1011 = vcmp.ge.f32.partialorder %v947, 0.0
    %vm1012 = vcmp.ge.f32.partialorder %v948, 0.0
    %vm1013 = vcmp.ge.f32.partialorder %v949, 0.0
    %vm1014 = vcmp.ge.f32.partialorder %v950, 0.0
    %vm1015 = vcmp.ge.f32.partialorder %v951, 0.0
    %vm1016 = vcmp.ge.f32.partialorder %v952, 0.0
    %vm1017 = vcmp.ge.f32.partialorder %v953, 0.0
    %vm1018 = vcmp.ge.f32.partialorder %v954, 0.0
    %vm1019 = vcmp.ge.f32.partialorder %v955, 0.0
    %vm1020 = vcmp.ge.f32.partialorder %v956, 0.0
    %vm1021 = vcmp.ge.f32.partialorder %v957, 0.0
    %vm1022 = vcmp.ge.f32.partialorder %v958, 0.0
    %vm1023 = vcmp.ge.f32.partialorder %v959, 0.0
    %vm1024 = vcmp.ge.f32.partialorder %v960, 0.0
    %vm1025 = vcmp.ge.f32.partialorder %v961, 0.0
    %vm1026 = vcmp.ge.f32.partialorder %v962, 0.0
    %vm1027 = vcmp.ge.f32.partialorder %v963, 0.0
    %vm1028 = vcmp.ge.f32.partialorder %v964, 0.0
    %vm1029 = vcmp.ge.f32.partialorder %v965, 0.0
    %vm1030 = vcmp.ge.f32.partialorder %v966, 0.0
    %vm1031 = vcmp.ge.f32.partialorder %v967, 0.0
    %vm1032 = vcmp.ge.f32.partialorder %v968, 0.0
    %vm1033 = vcmp.ge.f32.partialorder %v969, 0.0
    %vm1034 = vcmp.ge.f32.partialorder %v970, 0.0
    %vm1035 = vcmp.ge.f32.partialorder %v971, 0.0
    %vm1036 = vcmp.ge.f32.partialorder %v972, 0.0
    %vm1037 = vcmp.ge.f32.partialorder %v973, 0.0
    %vm1038 = vcmp.ge.f32.partialorder %v974, 0.0
    %vm1039 = vcmp.ge.f32.partialorder %v975, 0.0
    %vm1040 = vcmp.ge.f32.partialorder %v976, 0.0
    %vm1041 = vcmp.ge.f32.partialorder %v977, 0.0
    %vm1042 = vcmp.ge.f32.partialorder %v978, 0.0
    %vm1043 = vcmp.ge.f32.partialorder %v979, 0.0
    %v1044 = vmul.f32 %v916, 0.01
    %v1045 = vmul.f32 %v917, 0.01
    %v1046 = vmul.f32 %v918, 0.01
    %v1047 = vmul.f32 %v919, 0.01
    %v1048 = vmul.f32 %v920, 0.01
    %v1049 = vmul.f32 %v921, 0.01
    %v1050 = vmul.f32 %v922, 0.01
    %v1051 = vmul.f32 %v923, 0.01
    %v1052 = vmul.f32 %v924, 0.01
    %v1053 = vmul.f32 %v925, 0.01
    %v1054 = vmul.f32 %v926, 0.01
    %v1055 = vmul.f32 %v927, 0.01
    %v1056 = vmul.f32 %v928, 0.01
    %v1057 = vmul.f32 %v929, 0.01
    %v1058 = vmul.f32 %v930, 0.01
    %v1059 = vmul.f32 %v931, 0.01
    %v1060 = vmul.f32 %v932, 0.01
    %v1061 = vmul.f32 %v933, 0.01
    %v1062 = vmul.f32 %v934, 0.01
    %v1063 = vmul.f32 %v935, 0.01
    %v1064 = vmul.f32 %v936, 0.01
    %v1065 = vmul.f32 %v937, 0.01
    %v1066 = vmul.f32 %v938, 0.01
    %v1067 = vmul.f32 %v939, 0.01
    %v1068 = vmul.f32 %v940, 0.01
    %v1069 = vmul.f32 %v941, 0.01
    %v1070 = vmul.f32 %v942, 0.01
    %v1071 = vmul.f32 %v943, 0.01
    %v1072 = vmul.f32 %v944, 0.01
    %v1073 = vmul.f32 %v945, 0.01
    %v1074 = vmul.f32 %v946, 0.01
    %v1075 = vmul.f32 %v947, 0.01
    %v1076 = vmul.f32 %v948, 0.01
    %v1077 = vmul.f32 %v949, 0.01
    %v1078 = vmul.f32 %v950, 0.01
    %v1079 = vmul.f32 %v951, 0.01
    %v1080 = vmul.f32 %v952, 0.01
    %v1081 = vmul.f32 %v953, 0.01
    %v1082 = vmul.f32 %v954, 0.01
    %v1083 = vmul.f32 %v955, 0.01
    %v1084 = vmul.f32 %v956, 0.01
    %v1085 = vmul.f32 %v957, 0.01
    %v1086 = vmul.f32 %v958, 0.01
    %v1087 = vmul.f32 %v959, 0.01
    %v1088 = vmul.f32 %v960, 0.01
    %v1089 = vmul.f32 %v961, 0.01
    %v1090 = vmul.f32 %v962, 0.01
    %v1091 = vmul.f32 %v963, 0.01
    %v1092 = vmul.f32 %v964, 0.01
    %v1093 = vmul.f32 %v965, 0.01
    %v1094 = vmul.f32 %v966, 0.01
    %v1095 = vmul.f32 %v967, 0.01
    %v1096 = vmul.f32 %v968, 0.01
    %v1097 = vmul.f32 %v969, 0.01
    %v1098 = vmul.f32 %v970, 0.01
    %v1099 = vmul.f32 %v971, 0.01
    %v1100 = vmul.f32 %v972, 0.01
    %v1101 = vmul.f32 %v973, 0.01
    %v1102 = vmul.f32 %v974, 0.01
    %v1103 = vmul.f32 %v975, 0.01
    %v1104 = vmul.f32 %v976, 0.01
    %v1105 = vmul.f32 %v977, 0.01
    %v1106 = vmul.f32 %v978, 0.01
    %v1107 = vmul.f32 %v979, 0.01
    %v1108 = vsel %vm980, %v916, %v1044
    %v1109 = vsel %vm981, %v917, %v1045
    %v1110 = vsel %vm982, %v918, %v1046
    %v1111 = vsel %vm983, %v919, %v1047
    %v1112 = vsel %vm984, %v920, %v1048
    %v1113 = vsel %vm985, %v921, %v1049
    %v1114 = vsel %vm986, %v922, %v1050
    %v1115 = vsel %vm987, %v923, %v1051
    %v1116 = vsel %vm988, %v924, %v1052
    %v1117 = vsel %vm989, %v925, %v1053
    %v1118 = vsel %vm990, %v926, %v1054
    %v1119 = vsel %vm991, %v927, %v1055
    %v1120 = vsel %vm992, %v928, %v1056
    %v1121 = vsel %vm993, %v929, %v1057
    %v1122 = vsel %vm994, %v930, %v1058
    %v1123 = vsel %vm995, %v931, %v1059
    %v1124 = vsel %vm996, %v932, %v1060
    %v1125 = vsel %vm997, %v933, %v1061
    %v1126 = vsel %vm998, %v934, %v1062
    %v1127 = vsel %vm999, %v935, %v1063
    %v1128 = vsel %vm1000, %v936, %v1064
    %v1129 = vsel %vm1001, %v937, %v1065
    %v1130 = vsel %vm1002, %v938, %v1066
    %v1131 = vsel %vm1003, %v939, %v1067
    %v1132 = vsel %vm1004, %v940, %v1068
    %v1133 = vsel %vm1005, %v941, %v1069
    %v1134 = vsel %vm1006, %v942, %v1070
    %v1135 = vsel %vm1007, %v943, %v1071
    %v1136 = vsel %vm1008, %v944, %v1072
    %v1137 = vsel %vm1009, %v945, %v1073
    %v1138 = vsel %vm1010, %v946, %v1074
    %v1139 = vsel %vm1011, %v947, %v1075
    %v1140 = vsel %vm1012, %v948, %v1076
    %v1141 = vsel %vm1013, %v949, %v1077
    %v1142 = vsel %vm1014, %v950, %v1078
    %v1143 = vsel %vm1015, %v951, %v1079
    %v1144 = vsel %vm1016, %v952, %v1080
    %v1145 = vsel %vm1017, %v953, %v1081
    %v1146 = vsel %vm1018, %v954, %v1082
    %v1147 = vsel %vm1019, %v955, %v1083
    %v1148 = vsel %vm1020, %v956, %v1084
    %v1149 = vsel %vm1021, %v957, %v1085
    %v1150 = vsel %vm1022, %v958, %v1086
    %v1151 = vsel %vm1023, %v959, %v1087
    %v1152 = vsel %vm1024, %v960, %v1088
    %v1153 = vsel %vm1025, %v961, %v1089
    %v1154 = vsel %vm1026, %v962, %v1090
    %v1155 = vsel %vm1027, %v963, %v1091
    %v1156 = vsel %vm1028, %v964, %v1092
    %v1157 = vsel %vm1029, %v965, %v1093
    %v1158 = vsel %vm1030, %v966, %v1094
    %v1159 = vsel %vm1031, %v967, %v1095
    %v1160 = vsel %vm1032, %v968, %v1096
    %v1161 = vsel %vm1033, %v969, %v1097
    %v1162 = vsel %vm1034, %v970, %v1098
    %v1163 = vsel %vm1035, %v971, %v1099
    %v1164 = vsel %vm1036, %v972, %v1100
    %v1165 = vsel %vm1037, %v973, %v1101
    %v1166 = vsel %vm1038, %v974, %v1102
    %v1167 = vsel %vm1039, %v975, %v1103
    %v1168 = vsel %vm1040, %v976, %v1104
    %v1169 = vsel %vm1041, %v977, %v1105
    %v1170 = vsel %vm1042, %v978, %v1106
    %v1171 = vsel %vm1043, %v979, %v1107
    %1172 = vst.msk [vmem:[#allocation2] sm:$0xff] %vm495, 0.0
    %1173 = vst.msk [vmem:[#allocation2 + $0x8] sm:$0xff] %vm495, 0.0
    %vm1174 = vcmask 254976
    %1175 = vst.msk [vmem:[#allocation2 + $0x10] sm:$0x3] %vm1174, 0.0
    %1176 = vst.msk [vmem:[#allocation2 + $0x1b0] sm:$0xff] %vm495, 0.0
    %1177 = vst.msk [vmem:[#allocation2 + $0x1b8] sm:$0xff] %vm495, 0.0
    %1178 = vst.msk [vmem:[#allocation2 + $0x1c0] sm:$0x3] %vm1174, 0.0
    %s1179 = scalar_lea.vmem [#allocation2], 408
    %1180 = vst.msk [vmem:[%s1179] sm:$0xff] %vm495, 0.0
    %1181 = vst.msk [vmem:[%s1179 + $0x8] sm:$0xff] %vm495, 0.0
    %1182 = vst.msk [vmem:[%s1179 + $0x10] sm:$0x3] %vm1174, 0.0
    %1183 = vst.msk [vmem:[%s1179 + $0x1b0] sm:$0xff] %vm495, 0.0
    %1184 = vst.msk [vmem:[%s1179 + $0x1b8] sm:$0xff] %vm495, 0.0
    %1185 = vst.msk [vmem:[%s1179 + $0x1c0] sm:$0x3] %vm1174, 0.0
    %vm1186 = vcmask 253952
    %1187 = vst.msk [vmem:[#allocation2] sm:$0x1] %vm1186, 0.0
    %1188 = vst.msk [vmem:[#allocation2 + $0x18] sm:$0x1] %vm1186, 0.0
    %1189 = vst.msk [vmem:[#allocation2 + $0x30] sm:$0x1] %vm1186, 0.0
    %1190 = vst.msk [vmem:[#allocation2 + $0x48] sm:$0x1] %vm1186, 0.0
    %1191 = vst.msk [vmem:[#allocation2 + $0x60] sm:$0x1] %vm1186, 0.0
    %1192 = vst.msk [vmem:[#allocation2 + $0x78] sm:$0x1] %vm1186, 0.0
    %1193 = vst.msk [vmem:[#allocation2 + $0x90] sm:$0x1] %vm1186, 0.0
    %1194 = vst.msk [vmem:[#allocation2 + $0xa8] sm:$0x1] %vm1186, 0.0
    %1195 = vst.msk [vmem:[#allocation2 + $0xc0] sm:$0x1] %vm1186, 0.0
    %1196 = vst.msk [vmem:[#allocation2 + $0xd8] sm:$0x1] %vm1186, 0.0
    %1197 = vst.msk [vmem:[#allocation2 + $0xf0] sm:$0x1] %vm1186, 0.0
    %1198 = vst.msk [vmem:[#allocation2 + $0x108] sm:$0x1] %vm1186, 0.0
    %1199 = vst.msk [vmem:[#allocation2 + $0x120] sm:$0x1] %vm1186, 0.0
    %1200 = vst.msk [vmem:[#allocation2 + $0x138] sm:$0x1] %vm1186, 0.0
    %1201 = vst.msk [vmem:[#allocation2 + $0x150] sm:$0x1] %vm1186, 0.0
    %1202 = vst.msk [vmem:[#allocation2 + $0x168] sm:$0x1] %vm1186, 0.0
    %1203 = vst.msk [vmem:[#allocation2 + $0x180] sm:$0x1] %vm1186, 0.0
    %1204 = vst.msk [vmem:[#allocation2 + $0x198] sm:$0x1] %vm1186, 0.0
    %1205 = vst.msk [vmem:[#allocation2 + $0x1b0] sm:$0x1] %vm1186, 0.0
    %1206 = vst.msk [vmem:[#allocation2 + $0x1c8] sm:$0x1] %vm1186, 0.0
    %1207 = vst.msk [vmem:[#allocation2 + $0x1e0] sm:$0x1] %vm1186, 0.0
    %1208 = vst.msk [vmem:[#allocation2 + $0x1f8] sm:$0x1] %vm1186, 0.0
    %1209 = vst.msk [vmem:[#allocation2 + $0x210] sm:$0x1] %vm1186, 0.0
    %1210 = vst.msk [vmem:[#allocation2 + $0x228] sm:$0x1] %vm1186, 0.0
    %1211 = vst.msk [vmem:[#allocation2 + $0x240] sm:$0x1] %vm1186, 0.0
    %1212 = vst.msk [vmem:[#allocation2 + $0x258] sm:$0x1] %vm1186, 0.0
    %1213 = vst.msk [vmem:[#allocation2 + $0x270] sm:$0x1] %vm1186, 0.0
    %1214 = vst.msk [vmem:[#allocation2 + $0x288] sm:$0x1] %vm1186, 0.0
    %1215 = vst.msk [vmem:[#allocation2 + $0x2a0] sm:$0x1] %vm1186, 0.0
    %1216 = vst.msk [vmem:[#allocation2 + $0x2b8] sm:$0x1] %vm1186, 0.0
    %1217 = vst.msk [vmem:[#allocation2 + $0x2d0] sm:$0x1] %vm1186, 0.0
    %1218 = vst.msk [vmem:[#allocation2 + $0x2e8] sm:$0x1] %vm1186, 0.0
    %1219 = vst.msk [vmem:[#allocation2 + $0x300] sm:$0x1] %vm1186, 0.0
    %1220 = vst.msk [vmem:[#allocation2 + $0x318] sm:$0x1] %vm1186, 0.0
    %1221 = vst.msk [vmem:[#allocation2 + $0x330] sm:$0x1] %vm1186, 0.0
    %1222 = vst.msk [vmem:[#allocation2 + $0x348] sm:$0x1] %vm1186, 0.0
    %1223 = vst.msk [vmem:[#allocation2 + $0x11] sm:$0x1] %vm1186, 0.0
    %1224 = vst.msk [vmem:[#allocation2 + $0x29] sm:$0x1] %vm1186, 0.0
    %1225 = vst.msk [vmem:[#allocation2 + $0x41] sm:$0x1] %vm1186, 0.0
    %1226 = vst.msk [vmem:[#allocation2 + $0x59] sm:$0x1] %vm1186, 0.0
    %1227 = vst.msk [vmem:[#allocation2 + $0x71] sm:$0x1] %vm1186, 0.0
    %1228 = vst.msk [vmem:[#allocation2 + $0x89] sm:$0x1] %vm1186, 0.0
    %1229 = vst.msk [vmem:[#allocation2 + $0xa1] sm:$0x1] %vm1186, 0.0
    %1230 = vst.msk [vmem:[#allocation2 + $0xb9] sm:$0x1] %vm1186, 0.0
    %1231 = vst.msk [vmem:[#allocation2 + $0xd1] sm:$0x1] %vm1186, 0.0
    %1232 = vst.msk [vmem:[#allocation2 + $0xe9] sm:$0x1] %vm1186, 0.0
    %1233 = vst.msk [vmem:[#allocation2 + $0x101] sm:$0x1] %vm1186, 0.0
    %1234 = vst.msk [vmem:[#allocation2 + $0x119] sm:$0x1] %vm1186, 0.0
    %1235 = vst.msk [vmem:[#allocation2 + $0x131] sm:$0x1] %vm1186, 0.0
    %1236 = vst.msk [vmem:[#allocation2 + $0x149] sm:$0x1] %vm1186, 0.0
    %1237 = vst.msk [vmem:[#allocation2 + $0x161] sm:$0x1] %vm1186, 0.0
    %1238 = vst.msk [vmem:[#allocation2 + $0x179] sm:$0x1] %vm1186, 0.0
    %1239 = vst.msk [vmem:[#allocation2 + $0x191] sm:$0x1] %vm1186, 0.0
    %1240 = vst.msk [vmem:[#allocation2 + $0x1a9] sm:$0x1] %vm1186, 0.0
    %1241 = vst.msk [vmem:[#allocation2 + $0x1c1] sm:$0x1] %vm1186, 0.0
    %1242 = vst.msk [vmem:[#allocation2 + $0x1d9] sm:$0x1] %vm1186, 0.0
    %1243 = vst.msk [vmem:[#allocation2 + $0x1f1] sm:$0x1] %vm1186, 0.0
    %1244 = vst.msk [vmem:[#allocation2 + $0x209] sm:$0x1] %vm1186, 0.0
    %1245 = vst.msk [vmem:[#allocation2 + $0x221] sm:$0x1] %vm1186, 0.0
    %1246 = vst.msk [vmem:[#allocation2 + $0x239] sm:$0x1] %vm1186, 0.0
    %1247 = vst.msk [vmem:[#allocation2 + $0x251] sm:$0x1] %vm1186, 0.0
    %1248 = vst.msk [vmem:[#allocation2 + $0x269] sm:$0x1] %vm1186, 0.0
    %1249 = vst.msk [vmem:[#allocation2 + $0x281] sm:$0x1] %vm1186, 0.0
    %1250 = vst.msk [vmem:[#allocation2 + $0x299] sm:$0x1] %vm1186, 0.0
    %1251 = vst.msk [vmem:[#allocation2 + $0x2b1] sm:$0x1] %vm1186, 0.0
    %1252 = vst.msk [vmem:[#allocation2 + $0x2c9] sm:$0x1] %vm1186, 0.0
    %1253 = vst.msk [vmem:[#allocation2 + $0x2e1] sm:$0x1] %vm1186, 0.0
    %1254 = vst.msk [vmem:[#allocation2 + $0x2f9] sm:$0x1] %vm1186, 0.0
    %1255 = vst.msk [vmem:[#allocation2 + $0x311] sm:$0x1] %vm1186, 0.0
    %1256 = vst.msk [vmem:[#allocation2 + $0x329] sm:$0x1] %vm1186, 0.0
    %1257 = vst.msk [vmem:[#allocation2 + $0x341] sm:$0x1] %vm1186, 0.0
    %1258 = vst.msk [vmem:[#allocation2 + $0x359] sm:$0x1] %vm1186, 0.0
    %s1259 = scalar_lea.vmem [#allocation2], 24
    %1260 = vst.msk [vmem:[%s1259 + $0x1] sm:$0xff] %vm495, %v1108
    %1261 = vst.msk [vmem:[%s1259 + $0x9] sm:$0xff] %vm495, %v1109
    %1262 = vst.msk [vmem:[%s1259 + $0x19] sm:$0xff] %vm495, %v1110
    %1263 = vst.msk [vmem:[%s1259 + $0x21] sm:$0xff] %vm495, %v1111
    %1264 = vst.msk [vmem:[%s1259 + $0x31] sm:$0xff] %vm495, %v1112
    %1265 = vst.msk [vmem:[%s1259 + $0x39] sm:$0xff] %vm495, %v1113
    %1266 = vst.msk [vmem:[%s1259 + $0x49] sm:$0xff] %vm495, %v1114
    %1267 = vst.msk [vmem:[%s1259 + $0x51] sm:$0xff] %vm495, %v1115
    %1268 = vst.msk [vmem:[%s1259 + $0x61] sm:$0xff] %vm495, %v1116
    %1269 = vst.msk [vmem:[%s1259 + $0x69] sm:$0xff] %vm495, %v1117
    %1270 = vst.msk [vmem:[%s1259 + $0x79] sm:$0xff] %vm495, %v1118
    %1271 = vst.msk [vmem:[%s1259 + $0x81] sm:$0xff] %vm495, %v1119
    %1272 = vst.msk [vmem:[%s1259 + $0x91] sm:$0xff] %vm495, %v1120
    %1273 = vst.msk [vmem:[%s1259 + $0x99] sm:$0xff] %vm495, %v1121
    %1274 = vst.msk [vmem:[%s1259 + $0xa9] sm:$0xff] %vm495, %v1122
    %1275 = vst.msk [vmem:[%s1259 + $0xb1] sm:$0xff] %vm495, %v1123
    %1276 = vst.msk [vmem:[%s1259 + $0xc1] sm:$0xff] %vm495, %v1124
    %1277 = vst.msk [vmem:[%s1259 + $0xc9] sm:$0xff] %vm495, %v1125
    %1278 = vst.msk [vmem:[%s1259 + $0xd9] sm:$0xff] %vm495, %v1126
    %1279 = vst.msk [vmem:[%s1259 + $0xe1] sm:$0xff] %vm495, %v1127
    %1280 = vst.msk [vmem:[%s1259 + $0xf1] sm:$0xff] %vm495, %v1128
    %1281 = vst.msk [vmem:[%s1259 + $0xf9] sm:$0xff] %vm495, %v1129
    %1282 = vst.msk [vmem:[%s1259 + $0x109] sm:$0xff] %vm495, %v1130
    %1283 = vst.msk [vmem:[%s1259 + $0x111] sm:$0xff] %vm495, %v1131
    %1284 = vst.msk [vmem:[%s1259 + $0x121] sm:$0xff] %vm495, %v1132
    %1285 = vst.msk [vmem:[%s1259 + $0x129] sm:$0xff] %vm495, %v1133
    %1286 = vst.msk [vmem:[%s1259 + $0x139] sm:$0xff] %vm495, %v1134
    %1287 = vst.msk [vmem:[%s1259 + $0x141] sm:$0xff] %vm495, %v1135
    %1288 = vst.msk [vmem:[%s1259 + $0x151] sm:$0xff] %vm495, %v1136
    %1289 = vst.msk [vmem:[%s1259 + $0x159] sm:$0xff] %vm495, %v1137
    %1290 = vst.msk [vmem:[%s1259 + $0x169] sm:$0xff] %vm495, %v1138
    %1291 = vst.msk [vmem:[%s1259 + $0x171] sm:$0xff] %vm495, %v1139
    %1292 = vst.msk [vmem:[%s1259 + $0x1b1] sm:$0xff] %vm495, %v1140
    %1293 = vst.msk [vmem:[%s1259 + $0x1b9] sm:$0xff] %vm495, %v1141
    %1294 = vst.msk [vmem:[%s1259 + $0x1c9] sm:$0xff] %vm495, %v1142
    %1295 = vst.msk [vmem:[%s1259 + $0x1d1] sm:$0xff] %vm495, %v1143
    %1296 = vst.msk [vmem:[%s1259 + $0x1e1] sm:$0xff] %vm495, %v1144
    %1297 = vst.msk [vmem:[%s1259 + $0x1e9] sm:$0xff] %vm495, %v1145
    %1298 = vst.msk [vmem:[%s1259 + $0x1f9] sm:$0xff] %vm495, %v1146
    %1299 = vst.msk [vmem:[%s1259 + $0x201] sm:$0xff] %vm495, %v1147
    %1300 = vst.msk [vmem:[%s1259 + $0x211] sm:$0xff] %vm495, %v1148
    %1301 = vst.msk [vmem:[%s1259 + $0x219] sm:$0xff] %vm495, %v1149
    %1302 = vst.msk [vmem:[%s1259 + $0x229] sm:$0xff] %vm495, %v1150
    %1303 = vst.msk [vmem:[%s1259 + $0x231] sm:$0xff] %vm495, %v1151
    %1304 = vst.msk [vmem:[%s1259 + $0x241] sm:$0xff] %vm495, %v1152
    %1305 = vst.msk [vmem:[%s1259 + $0x249] sm:$0xff] %vm495, %v1153
    %1306 = vst.msk [vmem:[%s1259 + $0x259] sm:$0xff] %vm495, %v1154
    %1307 = vst.msk [vmem:[%s1259 + $0x261] sm:$0xff] %vm495, %v1155
    %1308 = vst.msk [vmem:[%s1259 + $0x271] sm:$0xff] %vm495, %v1156
    %1309 = vst.msk [vmem:[%s1259 + $0x279] sm:$0xff] %vm495, %v1157
    %1310 = vst.msk [vmem:[%s1259 + $0x289] sm:$0xff] %vm495, %v1158
    %1311 = vst.msk [vmem:[%s1259 + $0x291] sm:$0xff] %vm495, %v1159
    %1312 = vst.msk [vmem:[%s1259 + $0x2a1] sm:$0xff] %vm495, %v1160
    %1313 = vst.msk [vmem:[%s1259 + $0x2a9] sm:$0xff] %vm495, %v1161
    %1314 = vst.msk [vmem:[%s1259 + $0x2b9] sm:$0xff] %vm495, %v1162
    %1315 = vst.msk [vmem:[%s1259 + $0x2c1] sm:$0xff] %vm495, %v1163
    %1316 = vst.msk [vmem:[%s1259 + $0x2d1] sm:$0xff] %vm495, %v1164
    %1317 = vst.msk [vmem:[%s1259 + $0x2d9] sm:$0xff] %vm495, %v1165
    %1318 = vst.msk [vmem:[%s1259 + $0x2e9] sm:$0xff] %vm495, %v1166
    %1319 = vst.msk [vmem:[%s1259 + $0x2f1] sm:$0xff] %vm495, %v1167
    %1320 = vst.msk [vmem:[%s1259 + $0x301] sm:$0xff] %vm495, %v1168
    %1321 = vst.msk [vmem:[%s1259 + $0x309] sm:$0xff] %vm495, %v1169
    %1322 = vst.msk [vmem:[%s1259 + $0x319] sm:$0xff] %vm495, %v1170
    %1323 = vst.msk [vmem:[%s1259 + $0x321] sm:$0xff] %vm495, %v1171
    %v1324 = vld [vmem:[#allocation2] sm:$0xff]
    %v1325 = vld [vmem:[#allocation2 + $0x8] sm:$0xff]
    %v1326 = vld [vmem:[#allocation2 + $0x18] sm:$0xff]
    %v1327 = vld [vmem:[#allocation2 + $0x20] sm:$0xff]
    %v1328 = vld [vmem:[#allocation2 + $0x30] sm:$0xff]
    %v1329 = vld [vmem:[#allocation2 + $0x38] sm:$0xff]
    %v1330 = vld [vmem:[#allocation2 + $0x48] sm:$0xff]
    %v1331 = vld [vmem:[#allocation2 + $0x50] sm:$0xff]
    %v1332 = vld [vmem:[#allocation2 + $0x60] sm:$0xff]
    %v1333 = vld [vmem:[#allocation2 + $0x68] sm:$0xff]
    %v1334 = vld [vmem:[#allocation2 + $0x78] sm:$0xff]
    %v1335 = vld [vmem:[#allocation2 + $0x80] sm:$0xff]
    %v1336 = vld [vmem:[#allocation2 + $0x90] sm:$0xff]
    %v1337 = vld [vmem:[#allocation2 + $0x98] sm:$0xff]
    %v1338 = vld [vmem:[#allocation2 + $0xa8] sm:$0xff]
    %v1339 = vld [vmem:[#allocation2 + $0xb0] sm:$0xff]
    %v1340 = vld [vmem:[#allocation2 + $0xc0] sm:$0xff]
    %v1341 = vld [vmem:[#allocation2 + $0xc8] sm:$0xff]
    %v1342 = vld [vmem:[#allocation2 + $0xd8] sm:$0xff]
    %v1343 = vld [vmem:[#allocation2 + $0xe0] sm:$0xff]
    %v1344 = vld [vmem:[#allocation2 + $0xf0] sm:$0xff]
    %v1345 = vld [vmem:[#allocation2 + $0xf8] sm:$0xff]
    %v1346 = vld [vmem:[#allocation2 + $0x108] sm:$0xff]
    %v1347 = vld [vmem:[#allocation2 + $0x110] sm:$0xff]
    %v1348 = vld [vmem:[#allocation2 + $0x120] sm:$0xff]
    %v1349 = vld [vmem:[#allocation2 + $0x128] sm:$0xff]
    %v1350 = vld [vmem:[#allocation2 + $0x138] sm:$0xff]
    %v1351 = vld [vmem:[#allocation2 + $0x140] sm:$0xff]
    %v1352 = vld [vmem:[#allocation2 + $0x150] sm:$0xff]
    %v1353 = vld [vmem:[#allocation2 + $0x158] sm:$0xff]
    %v1354 = vld [vmem:[#allocation2 + $0x168] sm:$0xff]
    %v1355 = vld [vmem:[#allocation2 + $0x170] sm:$0xff]
    %v1356 = vld [vmem:[#allocation2 + $0x1b0] sm:$0xff]
    %v1357 = vld [vmem:[#allocation2 + $0x1b8] sm:$0xff]
    %v1358 = vld [vmem:[#allocation2 + $0x1c8] sm:$0xff]
    %v1359 = vld [vmem:[#allocation2 + $0x1d0] sm:$0xff]
    %v1360 = vld [vmem:[#allocation2 + $0x1e0] sm:$0xff]
    %v1361 = vld [vmem:[#allocation2 + $0x1e8] sm:$0xff]
    %v1362 = vld [vmem:[#allocation2 + $0x1f8] sm:$0xff]
    %v1363 = vld [vmem:[#allocation2 + $0x200] sm:$0xff]
    %v1364 = vld [vmem:[#allocation2 + $0x210] sm:$0xff]
    %v1365 = vld [vmem:[#allocation2 + $0x218] sm:$0xff]
    %v1366 = vld [vmem:[#allocation2 + $0x228] sm:$0xff]
    %v1367 = vld [vmem:[#allocation2 + $0x230] sm:$0xff]
    %v1368 = vld [vmem:[#allocation2 + $0x240] sm:$0xff]
    %v1369 = vld [vmem:[#allocation2 + $0x248] sm:$0xff]
    %v1370 = vld [vmem:[#allocation2 + $0x258] sm:$0xff]
    %v1371 = vld [vmem:[#allocation2 + $0x260] sm:$0xff]
    %v1372 = vld [vmem:[#allocation2 + $0x270] sm:$0xff]
    %v1373 = vld [vmem:[#allocation2 + $0x278] sm:$0xff]
    %v1374 = vld [vmem:[#allocation2 + $0x288] sm:$0xff]
    %v1375 = vld [vmem:[#allocation2 + $0x290] sm:$0xff]
    %v1376 = vld [vmem:[#allocation2 + $0x2a0] sm:$0xff]
    %v1377 = vld [vmem:[#allocation2 + $0x2a8] sm:$0xff]
    %v1378 = vld [vmem:[#allocation2 + $0x2b8] sm:$0xff]
    %v1379 = vld [vmem:[#allocation2 + $0x2c0] sm:$0xff]
    %v1380 = vld [vmem:[#allocation2 + $0x2d0] sm:$0xff]
    %v1381 = vld [vmem:[#allocation2 + $0x2d8] sm:$0xff]
    %v1382 = vld [vmem:[#allocation2 + $0x2e8] sm:$0xff]
    %v1383 = vld [vmem:[#allocation2 + $0x2f0] sm:$0xff]
    %v1384 = vld [vmem:[#allocation2 + $0x300] sm:$0xff]
    %v1385 = vld [vmem:[#allocation2 + $0x308] sm:$0xff]
    %v1386 = vld [vmem:[#allocation2 + $0x318] sm:$0xff]
    %v1387 = vld [vmem:[#allocation2 + $0x320] sm:$0xff]
    %v1388 = vld [vmem:[#allocation2 + $0x1] sm:$0xff]
    %v1389 = vld [vmem:[#allocation2 + $0x9] sm:$0xff]
    %v1390 = vld [vmem:[#allocation2 + $0x19] sm:$0xff]
    %v1391 = vld [vmem:[#allocation2 + $0x21] sm:$0xff]
    %v1392 = vld [vmem:[#allocation2 + $0x31] sm:$0xff]
    %v1393 = vld [vmem:[#allocation2 + $0x39] sm:$0xff]
    %v1394 = vld [vmem:[#allocation2 + $0x49] sm:$0xff]
    %v1395 = vld [vmem:[#allocation2 + $0x51] sm:$0xff]
    %v1396 = vld [vmem:[#allocation2 + $0x61] sm:$0xff]
    %v1397 = vld [vmem:[#allocation2 + $0x69] sm:$0xff]
    %v1398 = vld [vmem:[#allocation2 + $0x79] sm:$0xff]
    %v1399 = vld [vmem:[#allocation2 + $0x81] sm:$0xff]
    %v1400 = vld [vmem:[#allocation2 + $0x91] sm:$0xff]
    %v1401 = vld [vmem:[#allocation2 + $0x99] sm:$0xff]
    %v1402 = vld [vmem:[#allocation2 + $0xa9] sm:$0xff]
    %v1403 = vld [vmem:[#allocation2 + $0xb1] sm:$0xff]
    %v1404 = vld [vmem:[#allocation2 + $0xc1] sm:$0xff]
    %v1405 = vld [vmem:[#allocation2 + $0xc9] sm:$0xff]
    %v1406 = vld [vmem:[#allocation2 + $0xd9] sm:$0xff]
    %v1407 = vld [vmem:[#allocation2 + $0xe1] sm:$0xff]
    %v1408 = vld [vmem:[#allocation2 + $0xf1] sm:$0xff]
    %v1409 = vld [vmem:[#allocation2 + $0xf9] sm:$0xff]
    %v1410 = vld [vmem:[#allocation2 + $0x109] sm:$0xff]
    %v1411 = vld [vmem:[#allocation2 + $0x111] sm:$0xff]
    %v1412 = vld [vmem:[#allocation2 + $0x121] sm:$0xff]
    %v1413 = vld [vmem:[#allocation2 + $0x129] sm:$0xff]
    %v1414 = vld [vmem:[#allocation2 + $0x139] sm:$0xff]
    %v1415 = vld [vmem:[#allocation2 + $0x141] sm:$0xff]
    %v1416 = vld [vmem:[#allocation2 + $0x151] sm:$0xff]
    %v1417 = vld [vmem:[#allocation2 + $0x159] sm:$0xff]
    %v1418 = vld [vmem:[#allocation2 + $0x169] sm:$0xff]
    %v1419 = vld [vmem:[#allocation2 + $0x171] sm:$0xff]
    %v1420 = vld [vmem:[#allocation2 + $0x1b1] sm:$0xff]
    %v1421 = vld [vmem:[#allocation2 + $0x1b9] sm:$0xff]
    %v1422 = vld [vmem:[#allocation2 + $0x1c9] sm:$0xff]
    %v1423 = vld [vmem:[#allocation2 + $0x1d1] sm:$0xff]
    %v1424 = vld [vmem:[#allocation2 + $0x1e1] sm:$0xff]
    %v1425 = vld [vmem:[#allocation2 + $0x1e9] sm:$0xff]
    %v1426 = vld [vmem:[#allocation2 + $0x1f9] sm:$0xff]
    %v1427 = vld [vmem:[#allocation2 + $0x201] sm:$0xff]
    %v1428 = vld [vmem:[#allocation2 + $0x211] sm:$0xff]
    %v1429 = vld [vmem:[#allocation2 + $0x219] sm:$0xff]
    %v1430 = vld [vmem:[#allocation2 + $0x229] sm:$0xff]
    %v1431 = vld [vmem:[#allocation2 + $0x231] sm:$0xff]
    %v1432 = vld [vmem:[#allocation2 + $0x241] sm:$0xff]
    %v1433 = vld [vmem:[#allocation2 + $0x249] sm:$0xff]
    %v1434 = vld [vmem:[#allocation2 + $0x259] sm:$0xff]
    %v1435 = vld [vmem:[#allocation2 + $0x261] sm:$0xff]
    %v1436 = vld [vmem:[#allocation2 + $0x271] sm:$0xff]
    %v1437 = vld [vmem:[#allocation2 + $0x279] sm:$0xff]
    %v1438 = vld [vmem:[#allocation2 + $0x289] sm:$0xff]
    %v1439 = vld [vmem:[#allocation2 + $0x291] sm:$0xff]
    %v1440 = vld [vmem:[#allocation2 + $0x2a1] sm:$0xff]
    %v1441 = vld [vmem:[#allocation2 + $0x2a9] sm:$0xff]
    %v1442 = vld [vmem:[#allocation2 + $0x2b9] sm:$0xff]
    %v1443 = vld [vmem:[#allocation2 + $0x2c1] sm:$0xff]
    %v1444 = vld [vmem:[#allocation2 + $0x2d1] sm:$0xff]
    %v1445 = vld [vmem:[#allocation2 + $0x2d9] sm:$0xff]
    %v1446 = vld [vmem:[#allocation2 + $0x2e9] sm:$0xff]
    %v1447 = vld [vmem:[#allocation2 + $0x2f1] sm:$0xff]
    %v1448 = vld [vmem:[#allocation2 + $0x301] sm:$0xff]
    %v1449 = vld [vmem:[#allocation2 + $0x309] sm:$0xff]
    %v1450 = vld [vmem:[#allocation2 + $0x319] sm:$0xff]
    %v1451 = vld [vmem:[#allocation2 + $0x321] sm:$0xff]
    %v1452 = vld [vmem:[#allocation2 + $0x2] sm:$0xff]
    %v1453 = vld [vmem:[#allocation2 + $0xa] sm:$0xff]
    %v1454 = vld [vmem:[#allocation2 + $0x1a] sm:$0xff]
    %v1455 = vld [vmem:[#allocation2 + $0x22] sm:$0xff]
    %v1456 = vld [vmem:[#allocation2 + $0x32] sm:$0xff]
    %v1457 = vld [vmem:[#allocation2 + $0x3a] sm:$0xff]
    %v1458 = vld [vmem:[#allocation2 + $0x4a] sm:$0xff]
    %v1459 = vld [vmem:[#allocation2 + $0x52] sm:$0xff]
    %v1460 = vld [vmem:[#allocation2 + $0x62] sm:$0xff]
    %v1461 = vld [vmem:[#allocation2 + $0x6a] sm:$0xff]
    %v1462 = vld [vmem:[#allocation2 + $0x7a] sm:$0xff]
    %v1463 = vld [vmem:[#allocation2 + $0x82] sm:$0xff]
    %v1464 = vld [vmem:[#allocation2 + $0x92] sm:$0xff]
    %v1465 = vld [vmem:[#allocation2 + $0x9a] sm:$0xff]
    %v1466 = vld [vmem:[#allocation2 + $0xaa] sm:$0xff]
    %v1467 = vld [vmem:[#allocation2 + $0xb2] sm:$0xff]
    %v1468 = vld [vmem:[#allocation2 + $0xc2] sm:$0xff]
    %v1469 = vld [vmem:[#allocation2 + $0xca] sm:$0xff]
    %v1470 = vld [vmem:[#allocation2 + $0xda] sm:$0xff]
    %v1471 = vld [vmem:[#allocation2 + $0xe2] sm:$0xff]
    %v1472 = vld [vmem:[#allocation2 + $0xf2] sm:$0xff]
    %v1473 = vld [vmem:[#allocation2 + $0xfa] sm:$0xff]
    %v1474 = vld [vmem:[#allocation2 + $0x10a] sm:$0xff]
    %v1475 = vld [vmem:[#allocation2 + $0x112] sm:$0xff]
    %v1476 = vld [vmem:[#allocation2 + $0x122] sm:$0xff]
    %v1477 = vld [vmem:[#allocation2 + $0x12a] sm:$0xff]
    %v1478 = vld [vmem:[#allocation2 + $0x13a] sm:$0xff]
    %v1479 = vld [vmem:[#allocation2 + $0x142] sm:$0xff]
    %v1480 = vld [vmem:[#allocation2 + $0x152] sm:$0xff]
    %v1481 = vld [vmem:[#allocation2 + $0x15a] sm:$0xff]
    %v1482 = vld [vmem:[#allocation2 + $0x16a] sm:$0xff]
    %v1483 = vld [vmem:[#allocation2 + $0x172] sm:$0xff]
    %v1484 = vld [vmem:[#allocation2 + $0x1b2] sm:$0xff]
    %v1485 = vld [vmem:[#allocation2 + $0x1ba] sm:$0xff]
    %v1486 = vld [vmem:[#allocation2 + $0x1ca] sm:$0xff]
    %v1487 = vld [vmem:[#allocation2 + $0x1d2] sm:$0xff]
    %v1488 = vld [vmem:[#allocation2 + $0x1e2] sm:$0xff]
    %v1489 = vld [vmem:[#allocation2 + $0x1ea] sm:$0xff]
    %v1490 = vld [vmem:[#allocation2 + $0x1fa] sm:$0xff]
    %v1491 = vld [vmem:[#allocation2 + $0x202] sm:$0xff]
    %v1492 = vld [vmem:[#allocation2 + $0x212] sm:$0xff]
    %v1493 = vld [vmem:[#allocation2 + $0x21a] sm:$0xff]
    %v1494 = vld [vmem:[#allocation2 + $0x22a] sm:$0xff]
    %v1495 = vld [vmem:[#allocation2 + $0x232] sm:$0xff]
    %v1496 = vld [vmem:[#allocation2 + $0x242] sm:$0xff]
    %v1497 = vld [vmem:[#allocation2 + $0x24a] sm:$0xff]
    %v1498 = vld [vmem:[#allocation2 + $0x25a] sm:$0xff]
    %v1499 = vld [vmem:[#allocation2 + $0x262] sm:$0xff]
    %v1500 = vld [vmem:[#allocation2 + $0x272] sm:$0xff]
    %v1501 = vld [vmem:[#allocation2 + $0x27a] sm:$0xff]
    %v1502 = vld [vmem:[#allocation2 + $0x28a] sm:$0xff]
    %v1503 = vld [vmem:[#allocation2 + $0x292] sm:$0xff]
    %v1504 = vld [vmem:[#allocation2 + $0x2a2] sm:$0xff]
    %v1505 = vld [vmem:[#allocation2 + $0x2aa] sm:$0xff]
    %v1506 = vld [vmem:[#allocation2 + $0x2ba] sm:$0xff]
    %v1507 = vld [vmem:[#allocation2 + $0x2c2] sm:$0xff]
    %v1508 = vld [vmem:[#allocation2 + $0x2d2] sm:$0xff]
    %v1509 = vld [vmem:[#allocation2 + $0x2da] sm:$0xff]
    %v1510 = vld [vmem:[#allocation2 + $0x2ea] sm:$0xff]
    %v1511 = vld [vmem:[#allocation2 + $0x2f2] sm:$0xff]
    %v1512 = vld [vmem:[#allocation2 + $0x302] sm:$0xff]
    %v1513 = vld [vmem:[#allocation2 + $0x30a] sm:$0xff]
    %v1514 = vld [vmem:[#allocation2 + $0x31a] sm:$0xff]
    %v1515 = vld [vmem:[#allocation2 + $0x322] sm:$0xff]
    %v1516 = vld [vmem:[%s1259] sm:$0xff]
    %v1517 = vld [vmem:[%s1259 + $0x8] sm:$0xff]
    %v1518 = vld [vmem:[%s1259 + $0x18] sm:$0xff]
    %v1519 = vld [vmem:[%s1259 + $0x20] sm:$0xff]
    %v1520 = vld [vmem:[%s1259 + $0x30] sm:$0xff]
    %v1521 = vld [vmem:[%s1259 + $0x38] sm:$0xff]
    %v1522 = vld [vmem:[%s1259 + $0x48] sm:$0xff]
    %v1523 = vld [vmem:[%s1259 + $0x50] sm:$0xff]
    %v1524 = vld [vmem:[%s1259 + $0x60] sm:$0xff]
    %v1525 = vld [vmem:[%s1259 + $0x68] sm:$0xff]
    %v1526 = vld [vmem:[%s1259 + $0x78] sm:$0xff]
    %v1527 = vld [vmem:[%s1259 + $0x80] sm:$0xff]
    %v1528 = vld [vmem:[%s1259 + $0x90] sm:$0xff]
    %v1529 = vld [vmem:[%s1259 + $0x98] sm:$0xff]
    %v1530 = vld [vmem:[%s1259 + $0xa8] sm:$0xff]
    %v1531 = vld [vmem:[%s1259 + $0xb0] sm:$0xff]
    %v1532 = vld [vmem:[%s1259 + $0xc0] sm:$0xff]
    %v1533 = vld [vmem:[%s1259 + $0xc8] sm:$0xff]
    %v1534 = vld [vmem:[%s1259 + $0xd8] sm:$0xff]
    %v1535 = vld [vmem:[%s1259 + $0xe0] sm:$0xff]
    %v1536 = vld [vmem:[%s1259 + $0xf0] sm:$0xff]
    %v1537 = vld [vmem:[%s1259 + $0xf8] sm:$0xff]
    %v1538 = vld [vmem:[%s1259 + $0x108] sm:$0xff]
    %v1539 = vld [vmem:[%s1259 + $0x110] sm:$0xff]
    %v1540 = vld [vmem:[%s1259 + $0x120] sm:$0xff]
    %v1541 = vld [vmem:[%s1259 + $0x128] sm:$0xff]
    %v1542 = vld [vmem:[%s1259 + $0x138] sm:$0xff]
    %v1543 = vld [vmem:[%s1259 + $0x140] sm:$0xff]
    %v1544 = vld [vmem:[%s1259 + $0x150] sm:$0xff]
    %v1545 = vld [vmem:[%s1259 + $0x158] sm:$0xff]
    %v1546 = vld [vmem:[%s1259 + $0x168] sm:$0xff]
    %v1547 = vld [vmem:[%s1259 + $0x170] sm:$0xff]
    %v1548 = vld [vmem:[%s1259 + $0x1b0] sm:$0xff]
    %v1549 = vld [vmem:[%s1259 + $0x1b8] sm:$0xff]
    %v1550 = vld [vmem:[%s1259 + $0x1c8] sm:$0xff]
    %v1551 = vld [vmem:[%s1259 + $0x1d0] sm:$0xff]
    %v1552 = vld [vmem:[%s1259 + $0x1e0] sm:$0xff]
    %v1553 = vld [vmem:[%s1259 + $0x1e8] sm:$0xff]
    %v1554 = vld [vmem:[%s1259 + $0x1f8] sm:$0xff]
    %v1555 = vld [vmem:[%s1259 + $0x200] sm:$0xff]
    %v1556 = vld [vmem:[%s1259 + $0x210] sm:$0xff]
    %v1557 = vld [vmem:[%s1259 + $0x218] sm:$0xff]
    %v1558 = vld [vmem:[%s1259 + $0x228] sm:$0xff]
    %v1559 = vld [vmem:[%s1259 + $0x230] sm:$0xff]
    %v1560 = vld [vmem:[%s1259 + $0x240] sm:$0xff]
    %v1561 = vld [vmem:[%s1259 + $0x248] sm:$0xff]
    %v1562 = vld [vmem:[%s1259 + $0x258] sm:$0xff]
    %v1563 = vld [vmem:[%s1259 + $0x260] sm:$0xff]
    %v1564 = vld [vmem:[%s1259 + $0x270] sm:$0xff]
    %v1565 = vld [vmem:[%s1259 + $0x278] sm:$0xff]
    %v1566 = vld [vmem:[%s1259 + $0x288] sm:$0xff]
    %v1567 = vld [vmem:[%s1259 + $0x290] sm:$0xff]
    %v1568 = vld [vmem:[%s1259 + $0x2a0] sm:$0xff]
    %v1569 = vld [vmem:[%s1259 + $0x2a8] sm:$0xff]
    %v1570 = vld [vmem:[%s1259 + $0x2b8] sm:$0xff]
    %v1571 = vld [vmem:[%s1259 + $0x2c0] sm:$0xff]
    %v1572 = vld [vmem:[%s1259 + $0x2d0] sm:$0xff]
    %v1573 = vld [vmem:[%s1259 + $0x2d8] sm:$0xff]
    %v1574 = vld [vmem:[%s1259 + $0x2e8] sm:$0xff]
    %v1575 = vld [vmem:[%s1259 + $0x2f0] sm:$0xff]
    %v1576 = vld [vmem:[%s1259 + $0x300] sm:$0xff]
    %v1577 = vld [vmem:[%s1259 + $0x308] sm:$0xff]
    %v1578 = vld [vmem:[%s1259 + $0x318] sm:$0xff]
    %v1579 = vld [vmem:[%s1259 + $0x320] sm:$0xff]
    %v1580 = vld [vmem:[%s1259 + $0x1] sm:$0xff]
    %v1581 = vld [vmem:[%s1259 + $0x9] sm:$0xff]
    %v1582 = vld [vmem:[%s1259 + $0x19] sm:$0xff]
    %v1583 = vld [vmem:[%s1259 + $0x21] sm:$0xff]
    %v1584 = vld [vmem:[%s1259 + $0x31] sm:$0xff]
    %v1585 = vld [vmem:[%s1259 + $0x39] sm:$0xff]
    %v1586 = vld [vmem:[%s1259 + $0x49] sm:$0xff]
    %v1587 = vld [vmem:[%s1259 + $0x51] sm:$0xff]
    %v1588 = vld [vmem:[%s1259 + $0x61] sm:$0xff]
    %v1589 = vld [vmem:[%s1259 + $0x69] sm:$0xff]
    %v1590 = vld [vmem:[%s1259 + $0x79] sm:$0xff]
    %v1591 = vld [vmem:[%s1259 + $0x81] sm:$0xff]
    %v1592 = vld [vmem:[%s1259 + $0x91] sm:$0xff]
    %v1593 = vld [vmem:[%s1259 + $0x99] sm:$0xff]
    %v1594 = vld [vmem:[%s1259 + $0xa9] sm:$0xff]
    %v1595 = vld [vmem:[%s1259 + $0xb1] sm:$0xff]
    %v1596 = vld [vmem:[%s1259 + $0xc1] sm:$0xff]
    %v1597 = vld [vmem:[%s1259 + $0xc9] sm:$0xff]
    %v1598 = vld [vmem:[%s1259 + $0xd9] sm:$0xff]
    %v1599 = vld [vmem:[%s1259 + $0xe1] sm:$0xff]
    %v1600 = vld [vmem:[%s1259 + $0xf1] sm:$0xff]
    %v1601 = vld [vmem:[%s1259 + $0xf9] sm:$0xff]
    %v1602 = vld [vmem:[%s1259 + $0x109] sm:$0xff]
    %v1603 = vld [vmem:[%s1259 + $0x111] sm:$0xff]
    %v1604 = vld [vmem:[%s1259 + $0x121] sm:$0xff]
    %v1605 = vld [vmem:[%s1259 + $0x129] sm:$0xff]
    %v1606 = vld [vmem:[%s1259 + $0x139] sm:$0xff]
    %v1607 = vld [vmem:[%s1259 + $0x141] sm:$0xff]
    %v1608 = vld [vmem:[%s1259 + $0x151] sm:$0xff]
    %v1609 = vld [vmem:[%s1259 + $0x159] sm:$0xff]
    %v1610 = vld [vmem:[%s1259 + $0x169] sm:$0xff]
    %v1611 = vld [vmem:[%s1259 + $0x171] sm:$0xff]
    %v1612 = vld [vmem:[%s1259 + $0x1b1] sm:$0xff]
    %v1613 = vld [vmem:[%s1259 + $0x1b9] sm:$0xff]
    %v1614 = vld [vmem:[%s1259 + $0x1c9] sm:$0xff]
    %v1615 = vld [vmem:[%s1259 + $0x1d1] sm:$0xff]
    %v1616 = vld [vmem:[%s1259 + $0x1e1] sm:$0xff]
    %v1617 = vld [vmem:[%s1259 + $0x1e9] sm:$0xff]
    %v1618 = vld [vmem:[%s1259 + $0x1f9] sm:$0xff]
    %v1619 = vld [vmem:[%s1259 + $0x201] sm:$0xff]
    %v1620 = vld [vmem:[%s1259 + $0x211] sm:$0xff]
    %v1621 = vld [vmem:[%s1259 + $0x219] sm:$0xff]
    %v1622 = vld [vmem:[%s1259 + $0x229] sm:$0xff]
    %v1623 = vld [vmem:[%s1259 + $0x231] sm:$0xff]
    %v1624 = vld [vmem:[%s1259 + $0x241] sm:$0xff]
    %v1625 = vld [vmem:[%s1259 + $0x249] sm:$0xff]
    %v1626 = vld [vmem:[%s1259 + $0x259] sm:$0xff]
    %v1627 = vld [vmem:[%s1259 + $0x261] sm:$0xff]
    %v1628 = vld [vmem:[%s1259 + $0x271] sm:$0xff]
    %v1629 = vld [vmem:[%s1259 + $0x279] sm:$0xff]
    %v1630 = vld [vmem:[%s1259 + $0x289] sm:$0xff]
    %v1631 = vld [vmem:[%s1259 + $0x291] sm:$0xff]
    %v1632 = vld [vmem:[%s1259 + $0x2a1] sm:$0xff]
    %v1633 = vld [vmem:[%s1259 + $0x2a9] sm:$0xff]
    %v1634 = vld [vmem:[%s1259 + $0x2b9] sm:$0xff]
    %v1635 = vld [vmem:[%s1259 + $0x2c1] sm:$0xff]
    %v1636 = vld [vmem:[%s1259 + $0x2d1] sm:$0xff]
    %v1637 = vld [vmem:[%s1259 + $0x2d9] sm:$0xff]
    %v1638 = vld [vmem:[%s1259 + $0x2e9] sm:$0xff]
    %v1639 = vld [vmem:[%s1259 + $0x2f1] sm:$0xff]
    %v1640 = vld [vmem:[%s1259 + $0x301] sm:$0xff]
    %v1641 = vld [vmem:[%s1259 + $0x309] sm:$0xff]
    %v1642 = vld [vmem:[%s1259 + $0x319] sm:$0xff]
    %v1643 = vld [vmem:[%s1259 + $0x321] sm:$0xff]
    %v1644 = vld [vmem:[%s1259 + $0x2] sm:$0xff]
    %v1645 = vld [vmem:[%s1259 + $0xa] sm:$0xff]
    %v1646 = vld [vmem:[%s1259 + $0x1a] sm:$0xff]
    %v1647 = vld [vmem:[%s1259 + $0x22] sm:$0xff]
    %v1648 = vld [vmem:[%s1259 + $0x32] sm:$0xff]
    %v1649 = vld [vmem:[%s1259 + $0x3a] sm:$0xff]
    %v1650 = vld [vmem:[%s1259 + $0x4a] sm:$0xff]
    %v1651 = vld [vmem:[%s1259 + $0x52] sm:$0xff]
    %v1652 = vld [vmem:[%s1259 + $0x62] sm:$0xff]
    %v1653 = vld [vmem:[%s1259 + $0x6a] sm:$0xff]
    %v1654 = vld [vmem:[%s1259 + $0x7a] sm:$0xff]
    %v1655 = vld [vmem:[%s1259 + $0x82] sm:$0xff]
    %v1656 = vld [vmem:[%s1259 + $0x92] sm:$0xff]
    %v1657 = vld [vmem:[%s1259 + $0x9a] sm:$0xff]
    %v1658 = vld [vmem:[%s1259 + $0xaa] sm:$0xff]
    %v1659 = vld [vmem:[%s1259 + $0xb2] sm:$0xff]
    %v1660 = vld [vmem:[%s1259 + $0xc2] sm:$0xff]
    %v1661 = vld [vmem:[%s1259 + $0xca] sm:$0xff]
    %v1662 = vld [vmem:[%s1259 + $0xda] sm:$0xff]
    %v1663 = vld [vmem:[%s1259 + $0xe2] sm:$0xff]
    %v1664 = vld [vmem:[%s1259 + $0xf2] sm:$0xff]
    %v1665 = vld [vmem:[%s1259 + $0xfa] sm:$0xff]
    %v1666 = vld [vmem:[%s1259 + $0x10a] sm:$0xff]
    %v1667 = vld [vmem:[%s1259 + $0x112] sm:$0xff]
    %v1668 = vld [vmem:[%s1259 + $0x122] sm:$0xff]
    %v1669 = vld [vmem:[%s1259 + $0x12a] sm:$0xff]
    %v1670 = vld [vmem:[%s1259 + $0x13a] sm:$0xff]
    %v1671 = vld [vmem:[%s1259 + $0x142] sm:$0xff]
    %v1672 = vld [vmem:[%s1259 + $0x152] sm:$0xff]
    %v1673 = vld [vmem:[%s1259 + $0x15a] sm:$0xff]
    %v1674 = vld [vmem:[%s1259 + $0x16a] sm:$0xff]
    %v1675 = vld [vmem:[%s1259 + $0x172] sm:$0xff]
    %v1676 = vld [vmem:[%s1259 + $0x1b2] sm:$0xff]
    %v1677 = vld [vmem:[%s1259 + $0x1ba] sm:$0xff]
    %v1678 = vld [vmem:[%s1259 + $0x1ca] sm:$0xff]
    %v1679 = vld [vmem:[%s1259 + $0x1d2] sm:$0xff]
    %v1680 = vld [vmem:[%s1259 + $0x1e2] sm:$0xff]
    %v1681 = vld [vmem:[%s1259 + $0x1ea] sm:$0xff]
    %v1682 = vld [vmem:[%s1259 + $0x1fa] sm:$0xff]
    %v1683 = vld [vmem:[%s1259 + $0x202] sm:$0xff]
    %v1684 = vld [vmem:[%s1259 + $0x212] sm:$0xff]
    %v1685 = vld [vmem:[%s1259 + $0x21a] sm:$0xff]
    %v1686 = vld [vmem:[%s1259 + $0x22a] sm:$0xff]
    %v1687 = vld [vmem:[%s1259 + $0x232] sm:$0xff]
    %v1688 = vld [vmem:[%s1259 + $0x242] sm:$0xff]
    %v1689 = vld [vmem:[%s1259 + $0x24a] sm:$0xff]
    %v1690 = vld [vmem:[%s1259 + $0x25a] sm:$0xff]
    %v1691 = vld [vmem:[%s1259 + $0x262] sm:$0xff]
    %v1692 = vld [vmem:[%s1259 + $0x272] sm:$0xff]
    %v1693 = vld [vmem:[%s1259 + $0x27a] sm:$0xff]
    %v1694 = vld [vmem:[%s1259 + $0x28a] sm:$0xff]
    %v1695 = vld [vmem:[%s1259 + $0x292] sm:$0xff]
    %v1696 = vld [vmem:[%s1259 + $0x2a2] sm:$0xff]
    %v1697 = vld [vmem:[%s1259 + $0x2aa] sm:$0xff]
    %v1698 = vld [vmem:[%s1259 + $0x2ba] sm:$0xff]
    %v1699 = vld [vmem:[%s1259 + $0x2c2] sm:$0xff]
    %v1700 = vld [vmem:[%s1259 + $0x2d2] sm:$0xff]
    %v1701 = vld [vmem:[%s1259 + $0x2da] sm:$0xff]
    %v1702 = vld [vmem:[%s1259 + $0x2ea] sm:$0xff]
    %v1703 = vld [vmem:[%s1259 + $0x2f2] sm:$0xff]
    %v1704 = vld [vmem:[%s1259 + $0x302] sm:$0xff]
    %v1705 = vld [vmem:[%s1259 + $0x30a] sm:$0xff]
    %v1706 = vld [vmem:[%s1259 + $0x31a] sm:$0xff]
    %v1707 = vld [vmem:[%s1259 + $0x322] sm:$0xff]
    %s1708 = scalar_lea.vmem [#allocation2], 48
    %v1709 = vld [vmem:[%s1708] sm:$0xff]
    %v1710 = vld [vmem:[%s1708 + $0x8] sm:$0xff]
    %v1711 = vld [vmem:[%s1708 + $0x18] sm:$0xff]
    %v1712 = vld [vmem:[%s1708 + $0x20] sm:$0xff]
    %v1713 = vld [vmem:[%s1708 + $0x30] sm:$0xff]
    %v1714 = vld [vmem:[%s1708 + $0x38] sm:$0xff]
    %v1715 = vld [vmem:[%s1708 + $0x48] sm:$0xff]
    %v1716 = vld [vmem:[%s1708 + $0x50] sm:$0xff]
    %v1717 = vld [vmem:[%s1708 + $0x60] sm:$0xff]
    %v1718 = vld [vmem:[%s1708 + $0x68] sm:$0xff]
    %v1719 = vld [vmem:[%s1708 + $0x78] sm:$0xff]
    %v1720 = vld [vmem:[%s1708 + $0x80] sm:$0xff]
    %v1721 = vld [vmem:[%s1708 + $0x90] sm:$0xff]
    %v1722 = vld [vmem:[%s1708 + $0x98] sm:$0xff]
    %v1723 = vld [vmem:[%s1708 + $0xa8] sm:$0xff]
    %v1724 = vld [vmem:[%s1708 + $0xb0] sm:$0xff]
    %v1725 = vld [vmem:[%s1708 + $0xc0] sm:$0xff]
    %v1726 = vld [vmem:[%s1708 + $0xc8] sm:$0xff]
    %v1727 = vld [vmem:[%s1708 + $0xd8] sm:$0xff]
    %v1728 = vld [vmem:[%s1708 + $0xe0] sm:$0xff]
    %v1729 = vld [vmem:[%s1708 + $0xf0] sm:$0xff]
    %v1730 = vld [vmem:[%s1708 + $0xf8] sm:$0xff]
    %v1731 = vld [vmem:[%s1708 + $0x108] sm:$0xff]
    %v1732 = vld [vmem:[%s1708 + $0x110] sm:$0xff]
    %v1733 = vld [vmem:[%s1708 + $0x120] sm:$0xff]
    %v1734 = vld [vmem:[%s1708 + $0x128] sm:$0xff]
    %v1735 = vld [vmem:[%s1708 + $0x138] sm:$0xff]
    %v1736 = vld [vmem:[%s1708 + $0x140] sm:$0xff]
    %v1737 = vld [vmem:[%s1708 + $0x150] sm:$0xff]
    %v1738 = vld [vmem:[%s1708 + $0x158] sm:$0xff]
    %v1739 = vld [vmem:[%s1708 + $0x168] sm:$0xff]
    %v1740 = vld [vmem:[%s1708 + $0x170] sm:$0xff]
    %v1741 = vld [vmem:[%s1708 + $0x1b0] sm:$0xff]
    %v1742 = vld [vmem:[%s1708 + $0x1b8] sm:$0xff]
    %v1743 = vld [vmem:[%s1708 + $0x1c8] sm:$0xff]
    %v1744 = vld [vmem:[%s1708 + $0x1d0] sm:$0xff]
    %v1745 = vld [vmem:[%s1708 + $0x1e0] sm:$0xff]
    %v1746 = vld [vmem:[%s1708 + $0x1e8] sm:$0xff]
    %v1747 = vld [vmem:[%s1708 + $0x1f8] sm:$0xff]
    %v1748 = vld [vmem:[%s1708 + $0x200] sm:$0xff]
    %v1749 = vld [vmem:[%s1708 + $0x210] sm:$0xff]
    %v1750 = vld [vmem:[%s1708 + $0x218] sm:$0xff]
    %v1751 = vld [vmem:[%s1708 + $0x228] sm:$0xff]
    %v1752 = vld [vmem:[%s1708 + $0x230] sm:$0xff]
    %v1753 = vld [vmem:[%s1708 + $0x240] sm:$0xff]
    %v1754 = vld [vmem:[%s1708 + $0x248] sm:$0xff]
    %v1755 = vld [vmem:[%s1708 + $0x258] sm:$0xff]
    %v1756 = vld [vmem:[%s1708 + $0x260] sm:$0xff]
    %v1757 = vld [vmem:[%s1708 + $0x270] sm:$0xff]
    %v1758 = vld [vmem:[%s1708 + $0x278] sm:$0xff]
    %v1759 = vld [vmem:[%s1708 + $0x288] sm:$0xff]
    %v1760 = vld [vmem:[%s1708 + $0x290] sm:$0xff]
    %v1761 = vld [vmem:[%s1708 + $0x2a0] sm:$0xff]
    %v1762 = vld [vmem:[%s1708 + $0x2a8] sm:$0xff]
    %v1763 = vld [vmem:[%s1708 + $0x2b8] sm:$0xff]
    %v1764 = vld [vmem:[%s1708 + $0x2c0] sm:$0xff]
    %v1765 = vld [vmem:[%s1708 + $0x2d0] sm:$0xff]
    %v1766 = vld [vmem:[%s1708 + $0x2d8] sm:$0xff]
    %v1767 = vld [vmem:[%s1708 + $0x2e8] sm:$0xff]
    %v1768 = vld [vmem:[%s1708 + $0x2f0] sm:$0xff]
    %v1769 = vld [vmem:[%s1708 + $0x300] sm:$0xff]
    %v1770 = vld [vmem:[%s1708 + $0x308] sm:$0xff]
    %v1771 = vld [vmem:[%s1708 + $0x318] sm:$0xff]
    %v1772 = vld [vmem:[%s1708 + $0x320] sm:$0xff]
    %v1773 = vld [vmem:[%s1708 + $0x1] sm:$0xff]
    %v1774 = vld [vmem:[%s1708 + $0x9] sm:$0xff]
    %v1775 = vld [vmem:[%s1708 + $0x19] sm:$0xff]
    %v1776 = vld [vmem:[%s1708 + $0x21] sm:$0xff]
    %v1777 = vld [vmem:[%s1708 + $0x31] sm:$0xff]
    %v1778 = vld [vmem:[%s1708 + $0x39] sm:$0xff]
    %v1779 = vld [vmem:[%s1708 + $0x49] sm:$0xff]
    %v1780 = vld [vmem:[%s1708 + $0x51] sm:$0xff]
    %v1781 = vld [vmem:[%s1708 + $0x61] sm:$0xff]
    %v1782 = vld [vmem:[%s1708 + $0x69] sm:$0xff]
    %v1783 = vld [vmem:[%s1708 + $0x79] sm:$0xff]
    %v1784 = vld [vmem:[%s1708 + $0x81] sm:$0xff]
    %v1785 = vld [vmem:[%s1708 + $0x91] sm:$0xff]
    %v1786 = vld [vmem:[%s1708 + $0x99] sm:$0xff]
    %v1787 = vld [vmem:[%s1708 + $0xa9] sm:$0xff]
    %v1788 = vld [vmem:[%s1708 + $0xb1] sm:$0xff]
    %v1789 = vld [vmem:[%s1708 + $0xc1] sm:$0xff]
    %v1790 = vld [vmem:[%s1708 + $0xc9] sm:$0xff]
    %v1791 = vld [vmem:[%s1708 + $0xd9] sm:$0xff]
    %v1792 = vld [vmem:[%s1708 + $0xe1] sm:$0xff]
    %v1793 = vld [vmem:[%s1708 + $0xf1] sm:$0xff]
    %v1794 = vld [vmem:[%s1708 + $0xf9] sm:$0xff]
    %v1795 = vld [vmem:[%s1708 + $0x109] sm:$0xff]
    %v1796 = vld [vmem:[%s1708 + $0x111] sm:$0xff]
    %v1797 = vld [vmem:[%s1708 + $0x121] sm:$0xff]
    %v1798 = vld [vmem:[%s1708 + $0x129] sm:$0xff]
    %v1799 = vld [vmem:[%s1708 + $0x139] sm:$0xff]
    %v1800 = vld [vmem:[%s1708 + $0x141] sm:$0xff]
    %v1801 = vld [vmem:[%s1708 + $0x151] sm:$0xff]
    %v1802 = vld [vmem:[%s1708 + $0x159] sm:$0xff]
    %v1803 = vld [vmem:[%s1708 + $0x169] sm:$0xff]
    %v1804 = vld [vmem:[%s1708 + $0x171] sm:$0xff]
    %v1805 = vld [vmem:[%s1708 + $0x1b1] sm:$0xff]
    %v1806 = vld [vmem:[%s1708 + $0x1b9] sm:$0xff]
    %v1807 = vld [vmem:[%s1708 + $0x1c9] sm:$0xff]
    %v1808 = vld [vmem:[%s1708 + $0x1d1] sm:$0xff]
    %v1809 = vld [vmem:[%s1708 + $0x1e1] sm:$0xff]
    %v1810 = vld [vmem:[%s1708 + $0x1e9] sm:$0xff]
    %v1811 = vld [vmem:[%s1708 + $0x1f9] sm:$0xff]
    %v1812 = vld [vmem:[%s1708 + $0x201] sm:$0xff]
    %v1813 = vld [vmem:[%s1708 + $0x211] sm:$0xff]
    %v1814 = vld [vmem:[%s1708 + $0x219] sm:$0xff]
    %v1815 = vld [vmem:[%s1708 + $0x229] sm:$0xff]
    %v1816 = vld [vmem:[%s1708 + $0x231] sm:$0xff]
    %v1817 = vld [vmem:[%s1708 + $0x241] sm:$0xff]
    %v1818 = vld [vmem:[%s1708 + $0x249] sm:$0xff]
    %v1819 = vld [vmem:[%s1708 + $0x259] sm:$0xff]
    %v1820 = vld [vmem:[%s1708 + $0x261] sm:$0xff]
    %v1821 = vld [vmem:[%s1708 + $0x271] sm:$0xff]
    %v1822 = vld [vmem:[%s1708 + $0x279] sm:$0xff]
    %v1823 = vld [vmem:[%s1708 + $0x289] sm:$0xff]
    %v1824 = vld [vmem:[%s1708 + $0x291] sm:$0xff]
    %v1825 = vld [vmem:[%s1708 + $0x2a1] sm:$0xff]
    %v1826 = vld [vmem:[%s1708 + $0x2a9] sm:$0xff]
    %v1827 = vld [vmem:[%s1708 + $0x2b9] sm:$0xff]
    %v1828 = vld [vmem:[%s1708 + $0x2c1] sm:$0xff]
    %v1829 = vld [vmem:[%s1708 + $0x2d1] sm:$0xff]
    %v1830 = vld [vmem:[%s1708 + $0x2d9] sm:$0xff]
    %v1831 = vld [vmem:[%s1708 + $0x2e9] sm:$0xff]
    %v1832 = vld [vmem:[%s1708 + $0x2f1] sm:$0xff]
    %v1833 = vld [vmem:[%s1708 + $0x301] sm:$0xff]
    %v1834 = vld [vmem:[%s1708 + $0x309] sm:$0xff]
    %v1835 = vld [vmem:[%s1708 + $0x319] sm:$0xff]
    %v1836 = vld [vmem:[%s1708 + $0x321] sm:$0xff]
    %v1837 = vld [vmem:[%s1708 + $0x2] sm:$0xff]
    %v1838 = vld [vmem:[%s1708 + $0xa] sm:$0xff]
    %v1839 = vld [vmem:[%s1708 + $0x1a] sm:$0xff]
    %v1840 = vld [vmem:[%s1708 + $0x22] sm:$0xff]
    %v1841 = vld [vmem:[%s1708 + $0x32] sm:$0xff]
    %v1842 = vld [vmem:[%s1708 + $0x3a] sm:$0xff]
    %v1843 = vld [vmem:[%s1708 + $0x4a] sm:$0xff]
    %v1844 = vld [vmem:[%s1708 + $0x52] sm:$0xff]
    %v1845 = vld [vmem:[%s1708 + $0x62] sm:$0xff]
    %v1846 = vld [vmem:[%s1708 + $0x6a] sm:$0xff]
    %v1847 = vld [vmem:[%s1708 + $0x7a] sm:$0xff]
    %v1848 = vld [vmem:[%s1708 + $0x82] sm:$0xff]
    %v1849 = vld [vmem:[%s1708 + $0x92] sm:$0xff]
    %v1850 = vld [vmem:[%s1708 + $0x9a] sm:$0xff]
    %v1851 = vld [vmem:[%s1708 + $0xaa] sm:$0xff]
    %v1852 = vld [vmem:[%s1708 + $0xb2] sm:$0xff]
    %v1853 = vld [vmem:[%s1708 + $0xc2] sm:$0xff]
    %v1854 = vld [vmem:[%s1708 + $0xca] sm:$0xff]
    %v1855 = vld [vmem:[%s1708 + $0xda] sm:$0xff]
    %v1856 = vld [vmem:[%s1708 + $0xe2] sm:$0xff]
    %v1857 = vld [vmem:[%s1708 + $0xf2] sm:$0xff]
    %v1858 = vld [vmem:[%s1708 + $0xfa] sm:$0xff]
    %v1859 = vld [vmem:[%s1708 + $0x10a] sm:$0xff]
    %v1860 = vld [vmem:[%s1708 + $0x112] sm:$0xff]
    %v1861 = vld [vmem:[%s1708 + $0x122] sm:$0xff]
    %v1862 = vld [vmem:[%s1708 + $0x12a] sm:$0xff]
    %v1863 = vld [vmem:[%s1708 + $0x13a] sm:$0xff]
    %v1864 = vld [vmem:[%s1708 + $0x142] sm:$0xff]
    %v1865 = vld [vmem:[%s1708 + $0x152] sm:$0xff]
    %v1866 = vld [vmem:[%s1708 + $0x15a] sm:$0xff]
    %v1867 = vld [vmem:[%s1708 + $0x16a] sm:$0xff]
    %v1868 = vld [vmem:[%s1708 + $0x172] sm:$0xff]
    %v1869 = vld [vmem:[%s1708 + $0x1b2] sm:$0xff]
    %v1870 = vld [vmem:[%s1708 + $0x1ba] sm:$0xff]
    %v1871 = vld [vmem:[%s1708 + $0x1ca] sm:$0xff]
    %v1872 = vld [vmem:[%s1708 + $0x1d2] sm:$0xff]
    %v1873 = vld [vmem:[%s1708 + $0x1e2] sm:$0xff]
    %v1874 = vld [vmem:[%s1708 + $0x1ea] sm:$0xff]
    %v1875 = vld [vmem:[%s1708 + $0x1fa] sm:$0xff]
    %v1876 = vld [vmem:[%s1708 + $0x202] sm:$0xff]
    %v1877 = vld [vmem:[%s1708 + $0x212] sm:$0xff]
    %v1878 = vld [vmem:[%s1708 + $0x21a] sm:$0xff]
    %v1879 = vld [vmem:[%s1708 + $0x22a] sm:$0xff]
    %v1880 = vld [vmem:[%s1708 + $0x232] sm:$0xff]
    %v1881 = vld [vmem:[%s1708 + $0x242] sm:$0xff]
    %v1882 = vld [vmem:[%s1708 + $0x24a] sm:$0xff]
    %v1883 = vld [vmem:[%s1708 + $0x25a] sm:$0xff]
    %v1884 = vld [vmem:[%s1708 + $0x262] sm:$0xff]
    %v1885 = vld [vmem:[%s1708 + $0x272] sm:$0xff]
    %v1886 = vld [vmem:[%s1708 + $0x27a] sm:$0xff]
    %v1887 = vld [vmem:[%s1708 + $0x28a] sm:$0xff]
    %v1888 = vld [vmem:[%s1708 + $0x292] sm:$0xff]
    %v1889 = vld [vmem:[%s1708 + $0x2a2] sm:$0xff]
    %v1890 = vld [vmem:[%s1708 + $0x2aa] sm:$0xff]
    %v1891 = vld [vmem:[%s1708 + $0x2ba] sm:$0xff]
    %v1892 = vld [vmem:[%s1708 + $0x2c2] sm:$0xff]
    %v1893 = vld [vmem:[%s1708 + $0x2d2] sm:$0xff]
    %v1894 = vld [vmem:[%s1708 + $0x2da] sm:$0xff]
    %v1895 = vld [vmem:[%s1708 + $0x2ea] sm:$0xff]
    %v1896 = vld [vmem:[%s1708 + $0x2f2] sm:$0xff]
    %v1897 = vld [vmem:[%s1708 + $0x302] sm:$0xff]
    %v1898 = vld [vmem:[%s1708 + $0x30a] sm:$0xff]
    %v1899 = vld [vmem:[%s1708 + $0x31a] sm:$0xff]
    %v1900 = vld [vmem:[%s1708 + $0x322] sm:$0xff]
    %1965 = vrot.lane.b32.xlu0 %v1388, 32
    %v1966 = vpop.permute.xlu0 %1965
    %1967 = vrot.lane.b32.xlu0 %v1389, 32
    %v1968 = vpop.permute.xlu0 %1967
    %1969 = vrot.lane.b32.xlu0 %v1390, 32
    %v1970 = vpop.permute.xlu0 %1969
    %1971 = vrot.lane.b32.xlu0 %v1391, 32
    %v1972 = vpop.permute.xlu0 %1971
    %1973 = vrot.lane.b32.xlu0 %v1392, 32
    %v1974 = vpop.permute.xlu0 %1973
    %1975 = vrot.lane.b32.xlu0 %v1393, 32
    %v1976 = vpop.permute.xlu0 %1975
    %1977 = vrot.lane.b32.xlu0 %v1394, 32
    %v1978 = vpop.permute.xlu0 %1977
    %1979 = vrot.lane.b32.xlu0 %v1395, 32
    %v1980 = vpop.permute.xlu0 %1979
    %1981 = vrot.lane.b32.xlu0 %v1396, 32
    %v1982 = vpop.permute.xlu0 %1981
    %1983 = vrot.lane.b32.xlu0 %v1397, 32
    %v1984 = vpop.permute.xlu0 %1983
    %1985 = vrot.lane.b32.xlu0 %v1398, 32
    %v1986 = vpop.permute.xlu0 %1985
    %1987 = vrot.lane.b32.xlu0 %v1399, 32
    %v1988 = vpop.permute.xlu0 %1987
    %1989 = vrot.lane.b32.xlu0 %v1400, 32
    %v1990 = vpop.permute.xlu0 %1989
    %1991 = vrot.lane.b32.xlu0 %v1401, 32
    %v1992 = vpop.permute.xlu0 %1991
    %1993 = vrot.lane.b32.xlu0 %v1402, 32
    %v1994 = vpop.permute.xlu0 %1993
    %1995 = vrot.lane.b32.xlu0 %v1403, 32
    %v1996 = vpop.permute.xlu0 %1995
    %1997 = vrot.lane.b32.xlu0 %v1404, 32
    %v1998 = vpop.permute.xlu0 %1997
    %1999 = vrot.lane.b32.xlu0 %v1405, 32
    %v2000 = vpop.permute.xlu0 %1999
    %2001 = vrot.lane.b32.xlu0 %v1406, 32
    %v2002 = vpop.permute.xlu0 %2001
    %2003 = vrot.lane.b32.xlu0 %v1407, 32
    %v2004 = vpop.permute.xlu0 %2003
    %2005 = vrot.lane.b32.xlu0 %v1408, 32
    %v2006 = vpop.permute.xlu0 %2005
    %2007 = vrot.lane.b32.xlu0 %v1409, 32
    %v2008 = vpop.permute.xlu0 %2007
    %2009 = vrot.lane.b32.xlu0 %v1410, 32
    %v2010 = vpop.permute.xlu0 %2009
    %2011 = vrot.lane.b32.xlu0 %v1411, 32
    %v2012 = vpop.permute.xlu0 %2011
    %2013 = vrot.lane.b32.xlu0 %v1412, 32
    %v2014 = vpop.permute.xlu0 %2013
    %2015 = vrot.lane.b32.xlu0 %v1413, 32
    %v2016 = vpop.permute.xlu0 %2015
    %2017 = vrot.lane.b32.xlu0 %v1414, 32
    %v2018 = vpop.permute.xlu0 %2017
    %2019 = vrot.lane.b32.xlu0 %v1415, 32
    %v2020 = vpop.permute.xlu0 %2019
    %2021 = vrot.lane.b32.xlu0 %v1416, 32
    %v2022 = vpop.permute.xlu0 %2021
    %2023 = vrot.lane.b32.xlu0 %v1417, 32
    %v2024 = vpop.permute.xlu0 %2023
    %2025 = vrot.lane.b32.xlu0 %v1418, 32
    %v2026 = vpop.permute.xlu0 %2025
    %2027 = vrot.lane.b32.xlu0 %v1419, 32
    %v2028 = vpop.permute.xlu0 %2027
    %2029 = vrot.lane.b32.xlu0 %v1420, 32
    %v2030 = vpop.permute.xlu0 %2029
    %2031 = vrot.lane.b32.xlu0 %v1421, 32
    %v2032 = vpop.permute.xlu0 %2031
    %2033 = vrot.lane.b32.xlu0 %v1422, 32
    %v2034 = vpop.permute.xlu0 %2033
    %2035 = vrot.lane.b32.xlu0 %v1423, 32
    %v2036 = vpop.permute.xlu0 %2035
    %2037 = vrot.lane.b32.xlu0 %v1424, 32
    %v2038 = vpop.permute.xlu0 %2037
    %2039 = vrot.lane.b32.xlu0 %v1425, 32
    %v2040 = vpop.permute.xlu0 %2039
    %2041 = vrot.lane.b32.xlu0 %v1426, 32
    %v2042 = vpop.permute.xlu0 %2041
    %2043 = vrot.lane.b32.xlu0 %v1427, 32
    %v2044 = vpop.permute.xlu0 %2043
    %2045 = vrot.lane.b32.xlu0 %v1428, 32
    %v2046 = vpop.permute.xlu0 %2045
    %2047 = vrot.lane.b32.xlu0 %v1429, 32
    %v2048 = vpop.permute.xlu0 %2047
    %2049 = vrot.lane.b32.xlu0 %v1430, 32
    %v2050 = vpop.permute.xlu0 %2049
    %2051 = vrot.lane.b32.xlu0 %v1431, 32
    %v2052 = vpop.permute.xlu0 %2051
    %2053 = vrot.lane.b32.xlu0 %v1432, 32
    %v2054 = vpop.permute.xlu0 %2053
    %2055 = vrot.lane.b32.xlu0 %v1433, 32
    %v2056 = vpop.permute.xlu0 %2055
    %2057 = vrot.lane.b32.xlu0 %v1434, 32
    %v2058 = vpop.permute.xlu0 %2057
    %2059 = vrot.lane.b32.xlu0 %v1435, 32
    %v2060 = vpop.permute.xlu0 %2059
    %2061 = vrot.lane.b32.xlu0 %v1436, 32
    %v2062 = vpop.permute.xlu0 %2061
    %2063 = vrot.lane.b32.xlu0 %v1437, 32
    %v2064 = vpop.permute.xlu0 %2063
    %2065 = vrot.lane.b32.xlu0 %v1438, 32
    %v2066 = vpop.permute.xlu0 %2065
    %2067 = vrot.lane.b32.xlu0 %v1439, 32
    %v2068 = vpop.permute.xlu0 %2067
    %2069 = vrot.lane.b32.xlu0 %v1440, 32
    %v2070 = vpop.permute.xlu0 %2069
    %2071 = vrot.lane.b32.xlu0 %v1441, 32
    %v2072 = vpop.permute.xlu0 %2071
    %2073 = vrot.lane.b32.xlu0 %v1442, 32
    %v2074 = vpop.permute.xlu0 %2073
    %2075 = vrot.lane.b32.xlu0 %v1443, 32
    %v2076 = vpop.permute.xlu0 %2075
    %2077 = vrot.lane.b32.xlu0 %v1444, 32
    %v2078 = vpop.permute.xlu0 %2077
    %2079 = vrot.lane.b32.xlu0 %v1445, 32
    %v2080 = vpop.permute.xlu0 %2079
    %2081 = vrot.lane.b32.xlu0 %v1446, 32
    %v2082 = vpop.permute.xlu0 %2081
    %2083 = vrot.lane.b32.xlu0 %v1447, 32
    %v2084 = vpop.permute.xlu0 %2083
    %2085 = vrot.lane.b32.xlu0 %v1448, 32
    %v2086 = vpop.permute.xlu0 %2085
    %2087 = vrot.lane.b32.xlu0 %v1449, 32
    %v2088 = vpop.permute.xlu0 %2087
    %2089 = vrot.lane.b32.xlu0 %v1450, 32
    %v2090 = vpop.permute.xlu0 %2089
    %2091 = vrot.lane.b32.xlu0 %v1451, 32
    %v2092 = vpop.permute.xlu0 %2091
    %2221 = vrot.lane.b32.xlu0 %v1452, 64
    %v2222 = vpop.permute.xlu0 %2221
    %2223 = vrot.lane.b32.xlu0 %v1453, 64
    %v2224 = vpop.permute.xlu0 %2223
    %2225 = vrot.lane.b32.xlu0 %v1454, 64
    %v2226 = vpop.permute.xlu0 %2225
    %2227 = vrot.lane.b32.xlu0 %v1455, 64
    %v2228 = vpop.permute.xlu0 %2227
    %2229 = vrot.lane.b32.xlu0 %v1456, 64
    %v2230 = vpop.permute.xlu0 %2229
    %2231 = vrot.lane.b32.xlu0 %v1457, 64
    %v2232 = vpop.permute.xlu0 %2231
    %2233 = vrot.lane.b32.xlu0 %v1458, 64
    %v2234 = vpop.permute.xlu0 %2233
    %2235 = vrot.lane.b32.xlu0 %v1459, 64
    %v2236 = vpop.permute.xlu0 %2235
    %2237 = vrot.lane.b32.xlu0 %v1460, 64
    %v2238 = vpop.permute.xlu0 %2237
    %2239 = vrot.lane.b32.xlu0 %v1461, 64
    %v2240 = vpop.permute.xlu0 %2239
    %2241 = vrot.lane.b32.xlu0 %v1462, 64
    %v2242 = vpop.permute.xlu0 %2241
    %2243 = vrot.lane.b32.xlu0 %v1463, 64
    %v2244 = vpop.permute.xlu0 %2243
    %2245 = vrot.lane.b32.xlu0 %v1464, 64
    %v2246 = vpop.permute.xlu0 %2245
    %2247 = vrot.lane.b32.xlu0 %v1465, 64
    %v2248 = vpop.permute.xlu0 %2247
    %2249 = vrot.lane.b32.xlu0 %v1466, 64
    %v2250 = vpop.permute.xlu0 %2249
    %2251 = vrot.lane.b32.xlu0 %v1467, 64
    %v2252 = vpop.permute.xlu0 %2251
    %2253 = vrot.lane.b32.xlu0 %v1468, 64
    %v2254 = vpop.permute.xlu0 %2253
    %2255 = vrot.lane.b32.xlu0 %v1469, 64
    %v2256 = vpop.permute.xlu0 %2255
    %2257 = vrot.lane.b32.xlu0 %v1470, 64
    %v2258 = vpop.permute.xlu0 %2257
    %2259 = vrot.lane.b32.xlu0 %v1471, 64
    %v2260 = vpop.permute.xlu0 %2259
    %2261 = vrot.lane.b32.xlu0 %v1472, 64
    %v2262 = vpop.permute.xlu0 %2261
    %2263 = vrot.lane.b32.xlu0 %v1473, 64
    %v2264 = vpop.permute.xlu0 %2263
    %2265 = vrot.lane.b32.xlu0 %v1474, 64
    %v2266 = vpop.permute.xlu0 %2265
    %2267 = vrot.lane.b32.xlu0 %v1475, 64
    %v2268 = vpop.permute.xlu0 %2267
    %2269 = vrot.lane.b32.xlu0 %v1476, 64
    %v2270 = vpop.permute.xlu0 %2269
    %2271 = vrot.lane.b32.xlu0 %v1477, 64
    %v2272 = vpop.permute.xlu0 %2271
    %2273 = vrot.lane.b32.xlu0 %v1478, 64
    %v2274 = vpop.permute.xlu0 %2273
    %2275 = vrot.lane.b32.xlu0 %v1479, 64
    %v2276 = vpop.permute.xlu0 %2275
    %2277 = vrot.lane.b32.xlu0 %v1480, 64
    %v2278 = vpop.permute.xlu0 %2277
    %2279 = vrot.lane.b32.xlu0 %v1481, 64
    %v2280 = vpop.permute.xlu0 %2279
    %2281 = vrot.lane.b32.xlu0 %v1482, 64
    %v2282 = vpop.permute.xlu0 %2281
    %2283 = vrot.lane.b32.xlu0 %v1483, 64
    %v2284 = vpop.permute.xlu0 %2283
    %2285 = vrot.lane.b32.xlu0 %v1484, 64
    %v2286 = vpop.permute.xlu0 %2285
    %2287 = vrot.lane.b32.xlu0 %v1485, 64
    %v2288 = vpop.permute.xlu0 %2287
    %2289 = vrot.lane.b32.xlu0 %v1486, 64
    %v2290 = vpop.permute.xlu0 %2289
    %2291 = vrot.lane.b32.xlu0 %v1487, 64
    %v2292 = vpop.permute.xlu0 %2291
    %2293 = vrot.lane.b32.xlu0 %v1488, 64
    %v2294 = vpop.permute.xlu0 %2293
    %2295 = vrot.lane.b32.xlu0 %v1489, 64
    %v2296 = vpop.permute.xlu0 %2295
    %2297 = vrot.lane.b32.xlu0 %v1490, 64
    %v2298 = vpop.permute.xlu0 %2297
    %2299 = vrot.lane.b32.xlu0 %v1491, 64
    %v2300 = vpop.permute.xlu0 %2299
    %2301 = vrot.lane.b32.xlu0 %v1492, 64
    %v2302 = vpop.permute.xlu0 %2301
    %2303 = vrot.lane.b32.xlu0 %v1493, 64
    %v2304 = vpop.permute.xlu0 %2303
    %2305 = vrot.lane.b32.xlu0 %v1494, 64
    %v2306 = vpop.permute.xlu0 %2305
    %2307 = vrot.lane.b32.xlu0 %v1495, 64
    %v2308 = vpop.permute.xlu0 %2307
    %2309 = vrot.lane.b32.xlu0 %v1496, 64
    %v2310 = vpop.permute.xlu0 %2309
    %2311 = vrot.lane.b32.xlu0 %v1497, 64
    %v2312 = vpop.permute.xlu0 %2311
    %2313 = vrot.lane.b32.xlu0 %v1498, 64
    %v2314 = vpop.permute.xlu0 %2313
    %2315 = vrot.lane.b32.xlu0 %v1499, 64
    %v2316 = vpop.permute.xlu0 %2315
    %2317 = vrot.lane.b32.xlu0 %v1500, 64
    %v2318 = vpop.permute.xlu0 %2317
    %2319 = vrot.lane.b32.xlu0 %v1501, 64
    %v2320 = vpop.permute.xlu0 %2319
    %2321 = vrot.lane.b32.xlu0 %v1502, 64
    %v2322 = vpop.permute.xlu0 %2321
    %2323 = vrot.lane.b32.xlu0 %v1503, 64
    %v2324 = vpop.permute.xlu0 %2323
    %2325 = vrot.lane.b32.xlu0 %v1504, 64
    %v2326 = vpop.permute.xlu0 %2325
    %2327 = vrot.lane.b32.xlu0 %v1505, 64
    %v2328 = vpop.permute.xlu0 %2327
    %2329 = vrot.lane.b32.xlu0 %v1506, 64
    %v2330 = vpop.permute.xlu0 %2329
    %2331 = vrot.lane.b32.xlu0 %v1507, 64
    %v2332 = vpop.permute.xlu0 %2331
    %2333 = vrot.lane.b32.xlu0 %v1508, 64
    %v2334 = vpop.permute.xlu0 %2333
    %2335 = vrot.lane.b32.xlu0 %v1509, 64
    %v2336 = vpop.permute.xlu0 %2335
    %2337 = vrot.lane.b32.xlu0 %v1510, 64
    %v2338 = vpop.permute.xlu0 %2337
    %2339 = vrot.lane.b32.xlu0 %v1511, 64
    %v2340 = vpop.permute.xlu0 %2339
    %2341 = vrot.lane.b32.xlu0 %v1512, 64
    %v2342 = vpop.permute.xlu0 %2341
    %2343 = vrot.lane.b32.xlu0 %v1513, 64
    %v2344 = vpop.permute.xlu0 %2343
    %2345 = vrot.lane.b32.xlu0 %v1514, 64
    %v2346 = vpop.permute.xlu0 %2345
    %2347 = vrot.lane.b32.xlu0 %v1515, 64
    %v2348 = vpop.permute.xlu0 %2347
    %2477 = vrot.lane.b32.xlu0 %v1516, 96
    %v2478 = vpop.permute.xlu0 %2477
    %2479 = vrot.lane.b32.xlu0 %v1517, 96
    %v2480 = vpop.permute.xlu0 %2479
    %2481 = vrot.lane.b32.xlu0 %v1518, 96
    %v2482 = vpop.permute.xlu0 %2481
    %2483 = vrot.lane.b32.xlu0 %v1519, 96
    %v2484 = vpop.permute.xlu0 %2483
    %2485 = vrot.lane.b32.xlu0 %v1520, 96
    %v2486 = vpop.permute.xlu0 %2485
    %2487 = vrot.lane.b32.xlu0 %v1521, 96
    %v2488 = vpop.permute.xlu0 %2487
    %2489 = vrot.lane.b32.xlu0 %v1522, 96
    %v2490 = vpop.permute.xlu0 %2489
    %2491 = vrot.lane.b32.xlu0 %v1523, 96
    %v2492 = vpop.permute.xlu0 %2491
    %2493 = vrot.lane.b32.xlu0 %v1524, 96
    %v2494 = vpop.permute.xlu0 %2493
    %2495 = vrot.lane.b32.xlu0 %v1525, 96
    %v2496 = vpop.permute.xlu0 %2495
    %2497 = vrot.lane.b32.xlu0 %v1526, 96
    %v2498 = vpop.permute.xlu0 %2497
    %2499 = vrot.lane.b32.xlu0 %v1527, 96
    %v2500 = vpop.permute.xlu0 %2499
    %2501 = vrot.lane.b32.xlu0 %v1528, 96
    %v2502 = vpop.permute.xlu0 %2501
    %2503 = vrot.lane.b32.xlu0 %v1529, 96
    %v2504 = vpop.permute.xlu0 %2503
    %2505 = vrot.lane.b32.xlu0 %v1530, 96
    %v2506 = vpop.permute.xlu0 %2505
    %2507 = vrot.lane.b32.xlu0 %v1531, 96
    %v2508 = vpop.permute.xlu0 %2507
    %2509 = vrot.lane.b32.xlu0 %v1532, 96
    %v2510 = vpop.permute.xlu0 %2509
    %2511 = vrot.lane.b32.xlu0 %v1533, 96
    %v2512 = vpop.permute.xlu0 %2511
    %2513 = vrot.lane.b32.xlu0 %v1534, 96
    %v2514 = vpop.permute.xlu0 %2513
    %2515 = vrot.lane.b32.xlu0 %v1535, 96
    %v2516 = vpop.permute.xlu0 %2515
    %2517 = vrot.lane.b32.xlu0 %v1536, 96
    %v2518 = vpop.permute.xlu0 %2517
    %2519 = vrot.lane.b32.xlu0 %v1537, 96
    %v2520 = vpop.permute.xlu0 %2519
    %2521 = vrot.lane.b32.xlu0 %v1538, 96
    %v2522 = vpop.permute.xlu0 %2521
    %2523 = vrot.lane.b32.xlu0 %v1539, 96
    %v2524 = vpop.permute.xlu0 %2523
    %2525 = vrot.lane.b32.xlu0 %v1540, 96
    %v2526 = vpop.permute.xlu0 %2525
    %2527 = vrot.lane.b32.xlu0 %v1541, 96
    %v2528 = vpop.permute.xlu0 %2527
    %2529 = vrot.lane.b32.xlu0 %v1542, 96
    %v2530 = vpop.permute.xlu0 %2529
    %2531 = vrot.lane.b32.xlu0 %v1543, 96
    %v2532 = vpop.permute.xlu0 %2531
    %2533 = vrot.lane.b32.xlu0 %v1544, 96
    %v2534 = vpop.permute.xlu0 %2533
    %2535 = vrot.lane.b32.xlu0 %v1545, 96
    %v2536 = vpop.permute.xlu0 %2535
    %2537 = vrot.lane.b32.xlu0 %v1546, 96
    %v2538 = vpop.permute.xlu0 %2537
    %2539 = vrot.lane.b32.xlu0 %v1547, 96
    %v2540 = vpop.permute.xlu0 %2539
    %2541 = vrot.lane.b32.xlu0 %v1548, 96
    %v2542 = vpop.permute.xlu0 %2541
    %2543 = vrot.lane.b32.xlu0 %v1549, 96
    %v2544 = vpop.permute.xlu0 %2543
    %2545 = vrot.lane.b32.xlu0 %v1550, 96
    %v2546 = vpop.permute.xlu0 %2545
    %2547 = vrot.lane.b32.xlu0 %v1551, 96
    %v2548 = vpop.permute.xlu0 %2547
    %2549 = vrot.lane.b32.xlu0 %v1552, 96
    %v2550 = vpop.permute.xlu0 %2549
    %2551 = vrot.lane.b32.xlu0 %v1553, 96
    %v2552 = vpop.permute.xlu0 %2551
    %2553 = vrot.lane.b32.xlu0 %v1554, 96
    %v2554 = vpop.permute.xlu0 %2553
    %2555 = vrot.lane.b32.xlu0 %v1555, 96
    %v2556 = vpop.permute.xlu0 %2555
    %2557 = vrot.lane.b32.xlu0 %v1556, 96
    %v2558 = vpop.permute.xlu0 %2557
    %2559 = vrot.lane.b32.xlu0 %v1557, 96
    %v2560 = vpop.permute.xlu0 %2559
    %2561 = vrot.lane.b32.xlu0 %v1558, 96
    %v2562 = vpop.permute.xlu0 %2561
    %2563 = vrot.lane.b32.xlu0 %v1559, 96
    %v2564 = vpop.permute.xlu0 %2563
    %2565 = vrot.lane.b32.xlu0 %v1560, 96
    %v2566 = vpop.permute.xlu0 %2565
    %2567 = vrot.lane.b32.xlu0 %v1561, 96
    %v2568 = vpop.permute.xlu0 %2567
    %2569 = vrot.lane.b32.xlu0 %v1562, 96
    %v2570 = vpop.permute.xlu0 %2569
    %2571 = vrot.lane.b32.xlu0 %v1563, 96
    %v2572 = vpop.permute.xlu0 %2571
    %2573 = vrot.lane.b32.xlu0 %v1564, 96
    %v2574 = vpop.permute.xlu0 %2573
    %2575 = vrot.lane.b32.xlu0 %v1565, 96
    %v2576 = vpop.permute.xlu0 %2575
    %2577 = vrot.lane.b32.xlu0 %v1566, 96
    %v2578 = vpop.permute.xlu0 %2577
    %2579 = vrot.lane.b32.xlu0 %v1567, 96
    %v2580 = vpop.permute.xlu0 %2579
    %2581 = vrot.lane.b32.xlu0 %v1568, 96
    %v2582 = vpop.permute.xlu0 %2581
    %2583 = vrot.lane.b32.xlu0 %v1569, 96
    %v2584 = vpop.permute.xlu0 %2583
    %2585 = vrot.lane.b32.xlu0 %v1570, 96
    %v2586 = vpop.permute.xlu0 %2585
    %2587 = vrot.lane.b32.xlu0 %v1571, 96
    %v2588 = vpop.permute.xlu0 %2587
    %2589 = vrot.lane.b32.xlu0 %v1572, 96
    %v2590 = vpop.permute.xlu0 %2589
    %2591 = vrot.lane.b32.xlu0 %v1573, 96
    %v2592 = vpop.permute.xlu0 %2591
    %2593 = vrot.lane.b32.xlu0 %v1574, 96
    %v2594 = vpop.permute.xlu0 %2593
    %2595 = vrot.lane.b32.xlu0 %v1575, 96
    %v2596 = vpop.permute.xlu0 %2595
    %2597 = vrot.lane.b32.xlu0 %v1576, 96
    %v2598 = vpop.permute.xlu0 %2597
    %2599 = vrot.lane.b32.xlu0 %v1577, 96
    %v2600 = vpop.permute.xlu0 %2599
    %2601 = vrot.lane.b32.xlu0 %v1578, 96
    %v2602 = vpop.permute.xlu0 %2601
    %2603 = vrot.lane.b32.xlu0 %v1579, 96
    %v2604 = vpop.permute.xlu0 %2603
    %2733 = vrot.lane.b32.xlu0 %v1644, 32
    %v2734 = vpop.permute.xlu0 %2733
    %2735 = vrot.lane.b32.xlu0 %v1645, 32
    %v2736 = vpop.permute.xlu0 %2735
    %2737 = vrot.lane.b32.xlu0 %v1646, 32
    %v2738 = vpop.permute.xlu0 %2737
    %2739 = vrot.lane.b32.xlu0 %v1647, 32
    %v2740 = vpop.permute.xlu0 %2739
    %2741 = vrot.lane.b32.xlu0 %v1648, 32
    %v2742 = vpop.permute.xlu0 %2741
    %2743 = vrot.lane.b32.xlu0 %v1649, 32
    %v2744 = vpop.permute.xlu0 %2743
    %2745 = vrot.lane.b32.xlu0 %v1650, 32
    %v2746 = vpop.permute.xlu0 %2745
    %2747 = vrot.lane.b32.xlu0 %v1651, 32
    %v2748 = vpop.permute.xlu0 %2747
    %2749 = vrot.lane.b32.xlu0 %v1652, 32
    %v2750 = vpop.permute.xlu0 %2749
    %2751 = vrot.lane.b32.xlu0 %v1653, 32
    %v2752 = vpop.permute.xlu0 %2751
    %2753 = vrot.lane.b32.xlu0 %v1654, 32
    %v2754 = vpop.permute.xlu0 %2753
    %2755 = vrot.lane.b32.xlu0 %v1655, 32
    %v2756 = vpop.permute.xlu0 %2755
    %2757 = vrot.lane.b32.xlu0 %v1656, 32
    %v2758 = vpop.permute.xlu0 %2757
    %2759 = vrot.lane.b32.xlu0 %v1657, 32
    %v2760 = vpop.permute.xlu0 %2759
    %2761 = vrot.lane.b32.xlu0 %v1658, 32
    %v2762 = vpop.permute.xlu0 %2761
    %2763 = vrot.lane.b32.xlu0 %v1659, 32
    %v2764 = vpop.permute.xlu0 %2763
    %2765 = vrot.lane.b32.xlu0 %v1660, 32
    %v2766 = vpop.permute.xlu0 %2765
    %2767 = vrot.lane.b32.xlu0 %v1661, 32
    %v2768 = vpop.permute.xlu0 %2767
    %2769 = vrot.lane.b32.xlu0 %v1662, 32
    %v2770 = vpop.permute.xlu0 %2769
    %2771 = vrot.lane.b32.xlu0 %v1663, 32
    %v2772 = vpop.permute.xlu0 %2771
    %2773 = vrot.lane.b32.xlu0 %v1664, 32
    %v2774 = vpop.permute.xlu0 %2773
    %2775 = vrot.lane.b32.xlu0 %v1665, 32
    %v2776 = vpop.permute.xlu0 %2775
    %2777 = vrot.lane.b32.xlu0 %v1666, 32
    %v2778 = vpop.permute.xlu0 %2777
    %2779 = vrot.lane.b32.xlu0 %v1667, 32
    %v2780 = vpop.permute.xlu0 %2779
    %2781 = vrot.lane.b32.xlu0 %v1668, 32
    %v2782 = vpop.permute.xlu0 %2781
    %2783 = vrot.lane.b32.xlu0 %v1669, 32
    %v2784 = vpop.permute.xlu0 %2783
    %2785 = vrot.lane.b32.xlu0 %v1670, 32
    %v2786 = vpop.permute.xlu0 %2785
    %2787 = vrot.lane.b32.xlu0 %v1671, 32
    %v2788 = vpop.permute.xlu0 %2787
    %2789 = vrot.lane.b32.xlu0 %v1672, 32
    %v2790 = vpop.permute.xlu0 %2789
    %2791 = vrot.lane.b32.xlu0 %v1673, 32
    %v2792 = vpop.permute.xlu0 %2791
    %2793 = vrot.lane.b32.xlu0 %v1674, 32
    %v2794 = vpop.permute.xlu0 %2793
    %2795 = vrot.lane.b32.xlu0 %v1675, 32
    %v2796 = vpop.permute.xlu0 %2795
    %2797 = vrot.lane.b32.xlu0 %v1676, 32
    %v2798 = vpop.permute.xlu0 %2797
    %2799 = vrot.lane.b32.xlu0 %v1677, 32
    %v2800 = vpop.permute.xlu0 %2799
    %2801 = vrot.lane.b32.xlu0 %v1678, 32
    %v2802 = vpop.permute.xlu0 %2801
    %2803 = vrot.lane.b32.xlu0 %v1679, 32
    %v2804 = vpop.permute.xlu0 %2803
    %2805 = vrot.lane.b32.xlu0 %v1680, 32
    %v2806 = vpop.permute.xlu0 %2805
    %2807 = vrot.lane.b32.xlu0 %v1681, 32
    %v2808 = vpop.permute.xlu0 %2807
    %2809 = vrot.lane.b32.xlu0 %v1682, 32
    %v2810 = vpop.permute.xlu0 %2809
    %2811 = vrot.lane.b32.xlu0 %v1683, 32
    %v2812 = vpop.permute.xlu0 %2811
    %2813 = vrot.lane.b32.xlu0 %v1684, 32
    %v2814 = vpop.permute.xlu0 %2813
    %2815 = vrot.lane.b32.xlu0 %v1685, 32
    %v2816 = vpop.permute.xlu0 %2815
    %2817 = vrot.lane.b32.xlu0 %v1686, 32
    %v2818 = vpop.permute.xlu0 %2817
    %2819 = vrot.lane.b32.xlu0 %v1687, 32
    %v2820 = vpop.permute.xlu0 %2819
    %2821 = vrot.lane.b32.xlu0 %v1688, 32
    %v2822 = vpop.permute.xlu0 %2821
    %2823 = vrot.lane.b32.xlu0 %v1689, 32
    %v2824 = vpop.permute.xlu0 %2823
    %2825 = vrot.lane.b32.xlu0 %v1690, 32
    %v2826 = vpop.permute.xlu0 %2825
    %2827 = vrot.lane.b32.xlu0 %v1691, 32
    %v2828 = vpop.permute.xlu0 %2827
    %2829 = vrot.lane.b32.xlu0 %v1692, 32
    %v2830 = vpop.permute.xlu0 %2829
    %2831 = vrot.lane.b32.xlu0 %v1693, 32
    %v2832 = vpop.permute.xlu0 %2831
    %2833 = vrot.lane.b32.xlu0 %v1694, 32
    %v2834 = vpop.permute.xlu0 %2833
    %2835 = vrot.lane.b32.xlu0 %v1695, 32
    %v2836 = vpop.permute.xlu0 %2835
    %2837 = vrot.lane.b32.xlu0 %v1696, 32
    %v2838 = vpop.permute.xlu0 %2837
    %2839 = vrot.lane.b32.xlu0 %v1697, 32
    %v2840 = vpop.permute.xlu0 %2839
    %2841 = vrot.lane.b32.xlu0 %v1698, 32
    %v2842 = vpop.permute.xlu0 %2841
    %2843 = vrot.lane.b32.xlu0 %v1699, 32
    %v2844 = vpop.permute.xlu0 %2843
    %2845 = vrot.lane.b32.xlu0 %v1700, 32
    %v2846 = vpop.permute.xlu0 %2845
    %2847 = vrot.lane.b32.xlu0 %v1701, 32
    %v2848 = vpop.permute.xlu0 %2847
    %2849 = vrot.lane.b32.xlu0 %v1702, 32
    %v2850 = vpop.permute.xlu0 %2849
    %2851 = vrot.lane.b32.xlu0 %v1703, 32
    %v2852 = vpop.permute.xlu0 %2851
    %2853 = vrot.lane.b32.xlu0 %v1704, 32
    %v2854 = vpop.permute.xlu0 %2853
    %2855 = vrot.lane.b32.xlu0 %v1705, 32
    %v2856 = vpop.permute.xlu0 %2855
    %2857 = vrot.lane.b32.xlu0 %v1706, 32
    %v2858 = vpop.permute.xlu0 %2857
    %2859 = vrot.lane.b32.xlu0 %v1707, 32
    %v2860 = vpop.permute.xlu0 %2859
    %2989 = vrot.lane.b32.xlu0 %v1709, 64
    %v2990 = vpop.permute.xlu0 %2989
    %2991 = vrot.lane.b32.xlu0 %v1710, 64
    %v2992 = vpop.permute.xlu0 %2991
    %2993 = vrot.lane.b32.xlu0 %v1711, 64
    %v2994 = vpop.permute.xlu0 %2993
    %2995 = vrot.lane.b32.xlu0 %v1712, 64
    %v2996 = vpop.permute.xlu0 %2995
    %2997 = vrot.lane.b32.xlu0 %v1713, 64
    %v2998 = vpop.permute.xlu0 %2997
    %2999 = vrot.lane.b32.xlu0 %v1714, 64
    %v3000 = vpop.permute.xlu0 %2999
    %3001 = vrot.lane.b32.xlu0 %v1715, 64
    %v3002 = vpop.permute.xlu0 %3001
    %3003 = vrot.lane.b32.xlu0 %v1716, 64
    %v3004 = vpop.permute.xlu0 %3003
    %3005 = vrot.lane.b32.xlu0 %v1717, 64
    %v3006 = vpop.permute.xlu0 %3005
    %3007 = vrot.lane.b32.xlu0 %v1718, 64
    %v3008 = vpop.permute.xlu0 %3007
    %3009 = vrot.lane.b32.xlu0 %v1719, 64
    %v3010 = vpop.permute.xlu0 %3009
    %3011 = vrot.lane.b32.xlu0 %v1720, 64
    %v3012 = vpop.permute.xlu0 %3011
    %3013 = vrot.lane.b32.xlu0 %v1721, 64
    %v3014 = vpop.permute.xlu0 %3013
    %3015 = vrot.lane.b32.xlu0 %v1722, 64
    %v3016 = vpop.permute.xlu0 %3015
    %3017 = vrot.lane.b32.xlu0 %v1723, 64
    %v3018 = vpop.permute.xlu0 %3017
    %3019 = vrot.lane.b32.xlu0 %v1724, 64
    %v3020 = vpop.permute.xlu0 %3019
    %3021 = vrot.lane.b32.xlu0 %v1725, 64
    %v3022 = vpop.permute.xlu0 %3021
    %3023 = vrot.lane.b32.xlu0 %v1726, 64
    %v3024 = vpop.permute.xlu0 %3023
    %3025 = vrot.lane.b32.xlu0 %v1727, 64
    %v3026 = vpop.permute.xlu0 %3025
    %3027 = vrot.lane.b32.xlu0 %v1728, 64
    %v3028 = vpop.permute.xlu0 %3027
    %3029 = vrot.lane.b32.xlu0 %v1729, 64
    %v3030 = vpop.permute.xlu0 %3029
    %3031 = vrot.lane.b32.xlu0 %v1730, 64
    %v3032 = vpop.permute.xlu0 %3031
    %3033 = vrot.lane.b32.xlu0 %v1731, 64
    %v3034 = vpop.permute.xlu0 %3033
    %3035 = vrot.lane.b32.xlu0 %v1732, 64
    %v3036 = vpop.permute.xlu0 %3035
    %3037 = vrot.lane.b32.xlu0 %v1733, 64
    %v3038 = vpop.permute.xlu0 %3037
    %3039 = vrot.lane.b32.xlu0 %v1734, 64
    %v3040 = vpop.permute.xlu0 %3039
    %3041 = vrot.lane.b32.xlu0 %v1735, 64
    %v3042 = vpop.permute.xlu0 %3041
    %3043 = vrot.lane.b32.xlu0 %v1736, 64
    %v3044 = vpop.permute.xlu0 %3043
    %3045 = vrot.lane.b32.xlu0 %v1737, 64
    %v3046 = vpop.permute.xlu0 %3045
    %3047 = vrot.lane.b32.xlu0 %v1738, 64
    %v3048 = vpop.permute.xlu0 %3047
    %3049 = vrot.lane.b32.xlu0 %v1739, 64
    %v3050 = vpop.permute.xlu0 %3049
    %3051 = vrot.lane.b32.xlu0 %v1740, 64
    %v3052 = vpop.permute.xlu0 %3051
    %3053 = vrot.lane.b32.xlu0 %v1741, 64
    %v3054 = vpop.permute.xlu0 %3053
    %3055 = vrot.lane.b32.xlu0 %v1742, 64
    %v3056 = vpop.permute.xlu0 %3055
    %3057 = vrot.lane.b32.xlu0 %v1743, 64
    %v3058 = vpop.permute.xlu0 %3057
    %3059 = vrot.lane.b32.xlu0 %v1744, 64
    %v3060 = vpop.permute.xlu0 %3059
    %3061 = vrot.lane.b32.xlu0 %v1745, 64
    %v3062 = vpop.permute.xlu0 %3061
    %3063 = vrot.lane.b32.xlu0 %v1746, 64
    %v3064 = vpop.permute.xlu0 %3063
    %3065 = vrot.lane.b32.xlu0 %v1747, 64
    %v3066 = vpop.permute.xlu0 %3065
    %3067 = vrot.lane.b32.xlu0 %v1748, 64
    %v3068 = vpop.permute.xlu0 %3067
    %3069 = vrot.lane.b32.xlu0 %v1749, 64
    %v3070 = vpop.permute.xlu0 %3069
    %3071 = vrot.lane.b32.xlu0 %v1750, 64
    %v3072 = vpop.permute.xlu0 %3071
    %3073 = vrot.lane.b32.xlu0 %v1751, 64
    %v3074 = vpop.permute.xlu0 %3073
    %3075 = vrot.lane.b32.xlu0 %v1752, 64
    %v3076 = vpop.permute.xlu0 %3075
    %3077 = vrot.lane.b32.xlu0 %v1753, 64
    %v3078 = vpop.permute.xlu0 %3077
    %3079 = vrot.lane.b32.xlu0 %v1754, 64
    %v3080 = vpop.permute.xlu0 %3079
    %3081 = vrot.lane.b32.xlu0 %v1755, 64
    %v3082 = vpop.permute.xlu0 %3081
    %3083 = vrot.lane.b32.xlu0 %v1756, 64
    %v3084 = vpop.permute.xlu0 %3083
    %3085 = vrot.lane.b32.xlu0 %v1757, 64
    %v3086 = vpop.permute.xlu0 %3085
    %3087 = vrot.lane.b32.xlu0 %v1758, 64
    %v3088 = vpop.permute.xlu0 %3087
    %3089 = vrot.lane.b32.xlu0 %v1759, 64
    %v3090 = vpop.permute.xlu0 %3089
    %3091 = vrot.lane.b32.xlu0 %v1760, 64
    %v3092 = vpop.permute.xlu0 %3091
    %3093 = vrot.lane.b32.xlu0 %v1761, 64
    %v3094 = vpop.permute.xlu0 %3093
    %3095 = vrot.lane.b32.xlu0 %v1762, 64
    %v3096 = vpop.permute.xlu0 %3095
    %3097 = vrot.lane.b32.xlu0 %v1763, 64
    %v3098 = vpop.permute.xlu0 %3097
    %3099 = vrot.lane.b32.xlu0 %v1764, 64
    %v3100 = vpop.permute.xlu0 %3099
    %3101 = vrot.lane.b32.xlu0 %v1765, 64
    %v3102 = vpop.permute.xlu0 %3101
    %3103 = vrot.lane.b32.xlu0 %v1766, 64
    %v3104 = vpop.permute.xlu0 %3103
    %3105 = vrot.lane.b32.xlu0 %v1767, 64
    %v3106 = vpop.permute.xlu0 %3105
    %3107 = vrot.lane.b32.xlu0 %v1768, 64
    %v3108 = vpop.permute.xlu0 %3107
    %3109 = vrot.lane.b32.xlu0 %v1769, 64
    %v3110 = vpop.permute.xlu0 %3109
    %3111 = vrot.lane.b32.xlu0 %v1770, 64
    %v3112 = vpop.permute.xlu0 %3111
    %3113 = vrot.lane.b32.xlu0 %v1771, 64
    %v3114 = vpop.permute.xlu0 %3113
    %3115 = vrot.lane.b32.xlu0 %v1772, 64
    %v3116 = vpop.permute.xlu0 %3115
    %3245 = vrot.lane.b32.xlu0 %v1773, 96
    %v3246 = vpop.permute.xlu0 %3245
    %3247 = vrot.lane.b32.xlu0 %v1774, 96
    %v3248 = vpop.permute.xlu0 %3247
    %3249 = vrot.lane.b32.xlu0 %v1775, 96
    %v3250 = vpop.permute.xlu0 %3249
    %3251 = vrot.lane.b32.xlu0 %v1776, 96
    %v3252 = vpop.permute.xlu0 %3251
    %3253 = vrot.lane.b32.xlu0 %v1777, 96
    %v3254 = vpop.permute.xlu0 %3253
    %3255 = vrot.lane.b32.xlu0 %v1778, 96
    %v3256 = vpop.permute.xlu0 %3255
    %3257 = vrot.lane.b32.xlu0 %v1779, 96
    %v3258 = vpop.permute.xlu0 %3257
    %3259 = vrot.lane.b32.xlu0 %v1780, 96
    %v3260 = vpop.permute.xlu0 %3259
    %3261 = vrot.lane.b32.xlu0 %v1781, 96
    %v3262 = vpop.permute.xlu0 %3261
    %3263 = vrot.lane.b32.xlu0 %v1782, 96
    %v3264 = vpop.permute.xlu0 %3263
    %3265 = vrot.lane.b32.xlu0 %v1783, 96
    %v3266 = vpop.permute.xlu0 %3265
    %3267 = vrot.lane.b32.xlu0 %v1784, 96
    %v3268 = vpop.permute.xlu0 %3267
    %3269 = vrot.lane.b32.xlu0 %v1785, 96
    %v3270 = vpop.permute.xlu0 %3269
    %3271 = vrot.lane.b32.xlu0 %v1786, 96
    %v3272 = vpop.permute.xlu0 %3271
    %3273 = vrot.lane.b32.xlu0 %v1787, 96
    %v3274 = vpop.permute.xlu0 %3273
    %3275 = vrot.lane.b32.xlu0 %v1788, 96
    %v3276 = vpop.permute.xlu0 %3275
    %3277 = vrot.lane.b32.xlu0 %v1789, 96
    %v3278 = vpop.permute.xlu0 %3277
    %3279 = vrot.lane.b32.xlu0 %v1790, 96
    %v3280 = vpop.permute.xlu0 %3279
    %3281 = vrot.lane.b32.xlu0 %v1791, 96
    %v3282 = vpop.permute.xlu0 %3281
    %3283 = vrot.lane.b32.xlu0 %v1792, 96
    %v3284 = vpop.permute.xlu0 %3283
    %3285 = vrot.lane.b32.xlu0 %v1793, 96
    %v3286 = vpop.permute.xlu0 %3285
    %3287 = vrot.lane.b32.xlu0 %v1794, 96
    %v3288 = vpop.permute.xlu0 %3287
    %3289 = vrot.lane.b32.xlu0 %v1795, 96
    %v3290 = vpop.permute.xlu0 %3289
    %3291 = vrot.lane.b32.xlu0 %v1796, 96
    %v3292 = vpop.permute.xlu0 %3291
    %3293 = vrot.lane.b32.xlu0 %v1797, 96
    %v3294 = vpop.permute.xlu0 %3293
    %3295 = vrot.lane.b32.xlu0 %v1798, 96
    %v3296 = vpop.permute.xlu0 %3295
    %3297 = vrot.lane.b32.xlu0 %v1799, 96
    %v3298 = vpop.permute.xlu0 %3297
    %3299 = vrot.lane.b32.xlu0 %v1800, 96
    %v3300 = vpop.permute.xlu0 %3299
    %3301 = vrot.lane.b32.xlu0 %v1801, 96
    %v3302 = vpop.permute.xlu0 %3301
    %3303 = vrot.lane.b32.xlu0 %v1802, 96
    %v3304 = vpop.permute.xlu0 %3303
    %3305 = vrot.lane.b32.xlu0 %v1803, 96
    %v3306 = vpop.permute.xlu0 %3305
    %3307 = vrot.lane.b32.xlu0 %v1804, 96
    %v3308 = vpop.permute.xlu0 %3307
    %3309 = vrot.lane.b32.xlu0 %v1805, 96
    %v3310 = vpop.permute.xlu0 %3309
    %3311 = vrot.lane.b32.xlu0 %v1806, 96
    %v3312 = vpop.permute.xlu0 %3311
    %3313 = vrot.lane.b32.xlu0 %v1807, 96
    %v3314 = vpop.permute.xlu0 %3313
    %3315 = vrot.lane.b32.xlu0 %v1808, 96
    %v3316 = vpop.permute.xlu0 %3315
    %3317 = vrot.lane.b32.xlu0 %v1809, 96
    %v3318 = vpop.permute.xlu0 %3317
    %3319 = vrot.lane.b32.xlu0 %v1810, 96
    %v3320 = vpop.permute.xlu0 %3319
    %3321 = vrot.lane.b32.xlu0 %v1811, 96
    %v3322 = vpop.permute.xlu0 %3321
    %3323 = vrot.lane.b32.xlu0 %v1812, 96
    %v3324 = vpop.permute.xlu0 %3323
    %3325 = vrot.lane.b32.xlu0 %v1813, 96
    %v3326 = vpop.permute.xlu0 %3325
    %3327 = vrot.lane.b32.xlu0 %v1814, 96
    %v3328 = vpop.permute.xlu0 %3327
    %3329 = vrot.lane.b32.xlu0 %v1815, 96
    %v3330 = vpop.permute.xlu0 %3329
    %3331 = vrot.lane.b32.xlu0 %v1816, 96
    %v3332 = vpop.permute.xlu0 %3331
    %3333 = vrot.lane.b32.xlu0 %v1817, 96
    %v3334 = vpop.permute.xlu0 %3333
    %3335 = vrot.lane.b32.xlu0 %v1818, 96
    %v3336 = vpop.permute.xlu0 %3335
    %3337 = vrot.lane.b32.xlu0 %v1819, 96
    %v3338 = vpop.permute.xlu0 %3337
    %3339 = vrot.lane.b32.xlu0 %v1820, 96
    %v3340 = vpop.permute.xlu0 %3339
    %3341 = vrot.lane.b32.xlu0 %v1821, 96
    %v3342 = vpop.permute.xlu0 %3341
    %3343 = vrot.lane.b32.xlu0 %v1822, 96
    %v3344 = vpop.permute.xlu0 %3343
    %3345 = vrot.lane.b32.xlu0 %v1823, 96
    %v3346 = vpop.permute.xlu0 %3345
    %3347 = vrot.lane.b32.xlu0 %v1824, 96
    %v3348 = vpop.permute.xlu0 %3347
    %3349 = vrot.lane.b32.xlu0 %v1825, 96
    %v3350 = vpop.permute.xlu0 %3349
    %3351 = vrot.lane.b32.xlu0 %v1826, 96
    %v3352 = vpop.permute.xlu0 %3351
    %3353 = vrot.lane.b32.xlu0 %v1827, 96
    %v3354 = vpop.permute.xlu0 %3353
    %3355 = vrot.lane.b32.xlu0 %v1828, 96
    %v3356 = vpop.permute.xlu0 %3355
    %3357 = vrot.lane.b32.xlu0 %v1829, 96
    %v3358 = vpop.permute.xlu0 %3357
    %3359 = vrot.lane.b32.xlu0 %v1830, 96
    %v3360 = vpop.permute.xlu0 %3359
    %3361 = vrot.lane.b32.xlu0 %v1831, 96
    %v3362 = vpop.permute.xlu0 %3361
    %3363 = vrot.lane.b32.xlu0 %v1832, 96
    %v3364 = vpop.permute.xlu0 %3363
    %3365 = vrot.lane.b32.xlu0 %v1833, 96
    %v3366 = vpop.permute.xlu0 %3365
    %3367 = vrot.lane.b32.xlu0 %v1834, 96
    %v3368 = vpop.permute.xlu0 %3367
    %3369 = vrot.lane.b32.xlu0 %v1835, 96
    %v3370 = vpop.permute.xlu0 %3369
    %3371 = vrot.lane.b32.xlu0 %v1836, 96
    %v3372 = vpop.permute.xlu0 %3371
    %v3437 = vsel %vm495, %v1324, %v1966
    %v3438 = vsel %vm495, %v1325, %v1968
    %v3439 = vsel %vm495, %v1326, %v1970
    %v3440 = vsel %vm495, %v1327, %v1972
    %v3441 = vsel %vm495, %v1328, %v1974
    %v3442 = vsel %vm495, %v1329, %v1976
    %v3443 = vsel %vm495, %v1330, %v1978
    %v3444 = vsel %vm495, %v1331, %v1980
    %v3445 = vsel %vm495, %v1332, %v1982
    %v3446 = vsel %vm495, %v1333, %v1984
    %v3447 = vsel %vm495, %v1334, %v1986
    %v3448 = vsel %vm495, %v1335, %v1988
    %v3449 = vsel %vm495, %v1336, %v1990
    %v3450 = vsel %vm495, %v1337, %v1992
    %v3451 = vsel %vm495, %v1338, %v1994
    %v3452 = vsel %vm495, %v1339, %v1996
    %v3453 = vsel %vm495, %v1340, %v1998
    %v3454 = vsel %vm495, %v1341, %v2000
    %v3455 = vsel %vm495, %v1342, %v2002
    %v3456 = vsel %vm495, %v1343, %v2004
    %v3457 = vsel %vm495, %v1344, %v2006
    %v3458 = vsel %vm495, %v1345, %v2008
    %v3459 = vsel %vm495, %v1346, %v2010
    %v3460 = vsel %vm495, %v1347, %v2012
    %v3461 = vsel %vm495, %v1348, %v2014
    %v3462 = vsel %vm495, %v1349, %v2016
    %v3463 = vsel %vm495, %v1350, %v2018
    %v3464 = vsel %vm495, %v1351, %v2020
    %v3465 = vsel %vm495, %v1352, %v2022
    %v3466 = vsel %vm495, %v1353, %v2024
    %v3467 = vsel %vm495, %v1354, %v2026
    %v3468 = vsel %vm495, %v1355, %v2028
    %v3469 = vsel %vm495, %v1356, %v2030
    %v3470 = vsel %vm495, %v1357, %v2032
    %v3471 = vsel %vm495, %v1358, %v2034
    %v3472 = vsel %vm495, %v1359, %v2036
    %v3473 = vsel %vm495, %v1360, %v2038
    %v3474 = vsel %vm495, %v1361, %v2040
    %v3475 = vsel %vm495, %v1362, %v2042
    %v3476 = vsel %vm495, %v1363, %v2044
    %v3477 = vsel %vm495, %v1364, %v2046
    %v3478 = vsel %vm495, %v1365, %v2048
    %v3479 = vsel %vm495, %v1366, %v2050
    %v3480 = vsel %vm495, %v1367, %v2052
    %v3481 = vsel %vm495, %v1368, %v2054
    %v3482 = vsel %vm495, %v1369, %v2056
    %v3483 = vsel %vm495, %v1370, %v2058
    %v3484 = vsel %vm495, %v1371, %v2060
    %v3485 = vsel %vm495, %v1372, %v2062
    %v3486 = vsel %vm495, %v1373, %v2064
    %v3487 = vsel %vm495, %v1374, %v2066
    %v3488 = vsel %vm495, %v1375, %v2068
    %v3489 = vsel %vm495, %v1376, %v2070
    %v3490 = vsel %vm495, %v1377, %v2072
    %v3491 = vsel %vm495, %v1378, %v2074
    %v3492 = vsel %vm495, %v1379, %v2076
    %v3493 = vsel %vm495, %v1380, %v2078
    %v3494 = vsel %vm495, %v1381, %v2080
    %v3495 = vsel %vm495, %v1382, %v2082
    %v3496 = vsel %vm495, %v1383, %v2084
    %v3497 = vsel %vm495, %v1384, %v2086
    %v3498 = vsel %vm495, %v1385, %v2088
    %v3499 = vsel %vm495, %v1386, %v2090
    %v3500 = vsel %vm495, %v1387, %v2092
    %vm3501 = vcmask 523264
    %v3502 = vsel %vm3501, %v3437, %v2222
    %v3503 = vsel %vm3501, %v3438, %v2224
    %v3504 = vsel %vm3501, %v3439, %v2226
    %v3505 = vsel %vm3501, %v3440, %v2228
    %v3506 = vsel %vm3501, %v3441, %v2230
    %v3507 = vsel %vm3501, %v3442, %v2232
    %v3508 = vsel %vm3501, %v3443, %v2234
    %v3509 = vsel %vm3501, %v3444, %v2236
    %v3510 = vsel %vm3501, %v3445, %v2238
    %v3511 = vsel %vm3501, %v3446, %v2240
    %v3512 = vsel %vm3501, %v3447, %v2242
    %v3513 = vsel %vm3501, %v3448, %v2244
    %v3514 = vsel %vm3501, %v3449, %v2246
    %v3515 = vsel %vm3501, %v3450, %v2248
    %v3516 = vsel %vm3501, %v3451, %v2250
    %v3517 = vsel %vm3501, %v3452, %v2252
    %v3518 = vsel %vm3501, %v3453, %v2254
    %v3519 = vsel %vm3501, %v3454, %v2256
    %v3520 = vsel %vm3501, %v3455, %v2258
    %v3521 = vsel %vm3501, %v3456, %v2260
    %v3522 = vsel %vm3501, %v3457, %v2262
    %v3523 = vsel %vm3501, %v3458, %v2264
    %v3524 = vsel %vm3501, %v3459, %v2266
    %v3525 = vsel %vm3501, %v3460, %v2268
    %v3526 = vsel %vm3501, %v3461, %v2270
    %v3527 = vsel %vm3501, %v3462, %v2272
    %v3528 = vsel %vm3501, %v3463, %v2274
    %v3529 = vsel %vm3501, %v3464, %v2276
    %v3530 = vsel %vm3501, %v3465, %v2278
    %v3531 = vsel %vm3501, %v3466, %v2280
    %v3532 = vsel %vm3501, %v3467, %v2282
    %v3533 = vsel %vm3501, %v3468, %v2284
    %v3534 = vsel %vm3501, %v3469, %v2286
    %v3535 = vsel %vm3501, %v3470, %v2288
    %v3536 = vsel %vm3501, %v3471, %v2290
    %v3537 = vsel %vm3501, %v3472, %v2292
    %v3538 = vsel %vm3501, %v3473, %v2294
    %v3539 = vsel %vm3501, %v3474, %v2296
    %v3540 = vsel %vm3501, %v3475, %v2298
    %v3541 = vsel %vm3501, %v3476, %v2300
    %v3542 = vsel %vm3501, %v3477, %v2302
    %v3543 = vsel %vm3501, %v3478, %v2304
    %v3544 = vsel %vm3501, %v3479, %v2306
    %v3545 = vsel %vm3501, %v3480, %v2308
    %v3546 = vsel %vm3501, %v3481, %v2310
    %v3547 = vsel %vm3501, %v3482, %v2312
    %v3548 = vsel %vm3501, %v3483, %v2314
    %v3549 = vsel %vm3501, %v3484, %v2316
    %v3550 = vsel %vm3501, %v3485, %v2318
    %v3551 = vsel %vm3501, %v3486, %v2320
    %v3552 = vsel %vm3501, %v3487, %v2322
    %v3553 = vsel %vm3501, %v3488, %v2324
    %v3554 = vsel %vm3501, %v3489, %v2326
    %v3555 = vsel %vm3501, %v3490, %v2328
    %v3556 = vsel %vm3501, %v3491, %v2330
    %v3557 = vsel %vm3501, %v3492, %v2332
    %v3558 = vsel %vm3501, %v3493, %v2334
    %v3559 = vsel %vm3501, %v3494, %v2336
    %v3560 = vsel %vm3501, %v3495, %v2338
    %v3561 = vsel %vm3501, %v3496, %v2340
    %v3562 = vsel %vm3501, %v3497, %v2342
    %v3563 = vsel %vm3501, %v3498, %v2344
    %v3564 = vsel %vm3501, %v3499, %v2346
    %v3565 = vsel %vm3501, %v3500, %v2348
    %vm3566 = vcmask 785408
    %v3567 = vsel %vm3566, %v3502, %v2478
    %v3568 = vsel %vm3566, %v3503, %v2480
    %v3569 = vsel %vm3566, %v3504, %v2482
    %v3570 = vsel %vm3566, %v3505, %v2484
    %v3571 = vsel %vm3566, %v3506, %v2486
    %v3572 = vsel %vm3566, %v3507, %v2488
    %v3573 = vsel %vm3566, %v3508, %v2490
    %v3574 = vsel %vm3566, %v3509, %v2492
    %v3575 = vsel %vm3566, %v3510, %v2494
    %v3576 = vsel %vm3566, %v3511, %v2496
    %v3577 = vsel %vm3566, %v3512, %v2498
    %v3578 = vsel %vm3566, %v3513, %v2500
    %v3579 = vsel %vm3566, %v3514, %v2502
    %v3580 = vsel %vm3566, %v3515, %v2504
    %v3581 = vsel %vm3566, %v3516, %v2506
    %v3582 = vsel %vm3566, %v3517, %v2508
    %v3583 = vsel %vm3566, %v3518, %v2510
    %v3584 = vsel %vm3566, %v3519, %v2512
    %v3585 = vsel %vm3566, %v3520, %v2514
    %v3586 = vsel %vm3566, %v3521, %v2516
    %v3587 = vsel %vm3566, %v3522, %v2518
    %v3588 = vsel %vm3566, %v3523, %v2520
    %v3589 = vsel %vm3566, %v3524, %v2522
    %v3590 = vsel %vm3566, %v3525, %v2524
    %v3591 = vsel %vm3566, %v3526, %v2526
    %v3592 = vsel %vm3566, %v3527, %v2528
    %v3593 = vsel %vm3566, %v3528, %v2530
    %v3594 = vsel %vm3566, %v3529, %v2532
    %v3595 = vsel %vm3566, %v3530, %v2534
    %v3596 = vsel %vm3566, %v3531, %v2536
    %v3597 = vsel %vm3566, %v3532, %v2538
    %v3598 = vsel %vm3566, %v3533, %v2540
    %v3599 = vsel %vm3566, %v3534, %v2542
    %v3600 = vsel %vm3566, %v3535, %v2544
    %v3601 = vsel %vm3566, %v3536, %v2546
    %v3602 = vsel %vm3566, %v3537, %v2548
    %v3603 = vsel %vm3566, %v3538, %v2550
    %v3604 = vsel %vm3566, %v3539, %v2552
    %v3605 = vsel %vm3566, %v3540, %v2554
    %v3606 = vsel %vm3566, %v3541, %v2556
    %v3607 = vsel %vm3566, %v3542, %v2558
    %v3608 = vsel %vm3566, %v3543, %v2560
    %v3609 = vsel %vm3566, %v3544, %v2562
    %v3610 = vsel %vm3566, %v3545, %v2564
    %v3611 = vsel %vm3566, %v3546, %v2566
    %v3612 = vsel %vm3566, %v3547, %v2568
    %v3613 = vsel %vm3566, %v3548, %v2570
    %v3614 = vsel %vm3566, %v3549, %v2572
    %v3615 = vsel %vm3566, %v3550, %v2574
    %v3616 = vsel %vm3566, %v3551, %v2576
    %v3617 = vsel %vm3566, %v3552, %v2578
    %v3618 = vsel %vm3566, %v3553, %v2580
    %v3619 = vsel %vm3566, %v3554, %v2582
    %v3620 = vsel %vm3566, %v3555, %v2584
    %v3621 = vsel %vm3566, %v3556, %v2586
    %v3622 = vsel %vm3566, %v3557, %v2588
    %v3623 = vsel %vm3566, %v3558, %v2590
    %v3624 = vsel %vm3566, %v3559, %v2592
    %v3625 = vsel %vm3566, %v3560, %v2594
    %v3626 = vsel %vm3566, %v3561, %v2596
    %v3627 = vsel %vm3566, %v3562, %v2598
    %v3628 = vsel %vm3566, %v3563, %v2600
    %v3629 = vsel %vm3566, %v3564, %v2602
    %v3630 = vsel %vm3566, %v3565, %v2604
    %v3631 = vsel %vm495, %v1580, %v2734
    %v3632 = vsel %vm495, %v1581, %v2736
    %v3633 = vsel %vm495, %v1582, %v2738
    %v3634 = vsel %vm495, %v1583, %v2740
    %v3635 = vsel %vm495, %v1584, %v2742
    %v3636 = vsel %vm495, %v1585, %v2744
    %v3637 = vsel %vm495, %v1586, %v2746
    %v3638 = vsel %vm495, %v1587, %v2748
    %v3639 = vsel %vm495, %v1588, %v2750
    %v3640 = vsel %vm495, %v1589, %v2752
    %v3641 = vsel %vm495, %v1590, %v2754
    %v3642 = vsel %vm495, %v1591, %v2756
    %v3643 = vsel %vm495, %v1592, %v2758
    %v3644 = vsel %vm495, %v1593, %v2760
    %v3645 = vsel %vm495, %v1594, %v2762
    %v3646 = vsel %vm495, %v1595, %v2764
    %v3647 = vsel %vm495, %v1596, %v2766
    %v3648 = vsel %vm495, %v1597, %v2768
    %v3649 = vsel %vm495, %v1598, %v2770
    %v3650 = vsel %vm495, %v1599, %v2772
    %v3651 = vsel %vm495, %v1600, %v2774
    %v3652 = vsel %vm495, %v1601, %v2776
    %v3653 = vsel %vm495, %v1602, %v2778
    %v3654 = vsel %vm495, %v1603, %v2780
    %v3655 = vsel %vm495, %v1604, %v2782
    %v3656 = vsel %vm495, %v1605, %v2784
    %v3657 = vsel %vm495, %v1606, %v2786
    %v3658 = vsel %vm495, %v1607, %v2788
    %v3659 = vsel %vm495, %v1608, %v2790
    %v3660 = vsel %vm495, %v1609, %v2792
    %v3661 = vsel %vm495, %v1610, %v2794
    %v3662 = vsel %vm495, %v1611, %v2796
    %v3663 = vsel %vm495, %v1612, %v2798
    %v3664 = vsel %vm495, %v1613, %v2800
    %v3665 = vsel %vm495, %v1614, %v2802
    %v3666 = vsel %vm495, %v1615, %v2804
    %v3667 = vsel %vm495, %v1616, %v2806
    %v3668 = vsel %vm495, %v1617, %v2808
    %v3669 = vsel %vm495, %v1618, %v2810
    %v3670 = vsel %vm495, %v1619, %v2812
    %v3671 = vsel %vm495, %v1620, %v2814
    %v3672 = vsel %vm495, %v1621, %v2816
    %v3673 = vsel %vm495, %v1622, %v2818
    %v3674 = vsel %vm495, %v1623, %v2820
    %v3675 = vsel %vm495, %v1624, %v2822
    %v3676 = vsel %vm495, %v1625, %v2824
    %v3677 = vsel %vm495, %v1626, %v2826
    %v3678 = vsel %vm495, %v1627, %v2828
    %v3679 = vsel %vm495, %v1628, %v2830
    %v3680 = vsel %vm495, %v1629, %v2832
    %v3681 = vsel %vm495, %v1630, %v2834
    %v3682 = vsel %vm495, %v1631, %v2836
    %v3683 = vsel %vm495, %v1632, %v2838
    %v3684 = vsel %vm495, %v1633, %v2840
    %v3685 = vsel %vm495, %v1634, %v2842
    %v3686 = vsel %vm495, %v1635, %v2844
    %v3687 = vsel %vm495, %v1636, %v2846
    %v3688 = vsel %vm495, %v1637, %v2848
    %v3689 = vsel %vm495, %v1638, %v2850
    %v3690 = vsel %vm495, %v1639, %v2852
    %v3691 = vsel %vm495, %v1640, %v2854
    %v3692 = vsel %vm495, %v1641, %v2856
    %v3693 = vsel %vm495, %v1642, %v2858
    %v3694 = vsel %vm495, %v1643, %v2860
    %v3695 = vsel %vm3501, %v3631, %v2990
    %v3696 = vsel %vm3501, %v3632, %v2992
    %v3697 = vsel %vm3501, %v3633, %v2994
    %v3698 = vsel %vm3501, %v3634, %v2996
    %v3699 = vsel %vm3501, %v3635, %v2998
    %v3700 = vsel %vm3501, %v3636, %v3000
    %v3701 = vsel %vm3501, %v3637, %v3002
    %v3702 = vsel %vm3501, %v3638, %v3004
    %v3703 = vsel %vm3501, %v3639, %v3006
    %v3704 = vsel %vm3501, %v3640, %v3008
    %v3705 = vsel %vm3501, %v3641, %v3010
    %v3706 = vsel %vm3501, %v3642, %v3012
    %v3707 = vsel %vm3501, %v3643, %v3014
    %v3708 = vsel %vm3501, %v3644, %v3016
    %v3709 = vsel %vm3501, %v3645, %v3018
    %v3710 = vsel %vm3501, %v3646, %v3020
    %v3711 = vsel %vm3501, %v3647, %v3022
    %v3712 = vsel %vm3501, %v3648, %v3024
    %v3713 = vsel %vm3501, %v3649, %v3026
    %v3714 = vsel %vm3501, %v3650, %v3028
    %v3715 = vsel %vm3501, %v3651, %v3030
    %v3716 = vsel %vm3501, %v3652, %v3032
    %v3717 = vsel %vm3501, %v3653, %v3034
    %v3718 = vsel %vm3501, %v3654, %v3036
    %v3719 = vsel %vm3501, %v3655, %v3038
    %v3720 = vsel %vm3501, %v3656, %v3040
    %v3721 = vsel %vm3501, %v3657, %v3042
    %v3722 = vsel %vm3501, %v3658, %v3044
    %v3723 = vsel %vm3501, %v3659, %v3046
    %v3724 = vsel %vm3501, %v3660, %v3048
    %v3725 = vsel %vm3501, %v3661, %v3050
    %v3726 = vsel %vm3501, %v3662, %v3052
    %v3727 = vsel %vm3501, %v3663, %v3054
    %v3728 = vsel %vm3501, %v3664, %v3056
    %v3729 = vsel %vm3501, %v3665, %v3058
    %v3730 = vsel %vm3501, %v3666, %v3060
    %v3731 = vsel %vm3501, %v3667, %v3062
    %v3732 = vsel %vm3501, %v3668, %v3064
    %v3733 = vsel %vm3501, %v3669, %v3066
    %v3734 = vsel %vm3501, %v3670, %v3068
    %v3735 = vsel %vm3501, %v3671, %v3070
    %v3736 = vsel %vm3501, %v3672, %v3072
    %v3737 = vsel %vm3501, %v3673, %v3074
    %v3738 = vsel %vm3501, %v3674, %v3076
    %v3739 = vsel %vm3501, %v3675, %v3078
    %v3740 = vsel %vm3501, %v3676, %v3080
    %v3741 = vsel %vm3501, %v3677, %v3082
    %v3742 = vsel %vm3501, %v3678, %v3084
    %v3743 = vsel %vm3501, %v3679, %v3086
    %v3744 = vsel %vm3501, %v3680, %v3088
    %v3745 = vsel %vm3501, %v3681, %v3090
    %v3746 = vsel %vm3501, %v3682, %v3092
    %v3747 = vsel %vm3501, %v3683, %v3094
    %v3748 = vsel %vm3501, %v3684, %v3096
    %v3749 = vsel %vm3501, %v3685, %v3098
    %v3750 = vsel %vm3501, %v3686, %v3100
    %v3751 = vsel %vm3501, %v3687, %v3102
    %v3752 = vsel %vm3501, %v3688, %v3104
    %v3753 = vsel %vm3501, %v3689, %v3106
    %v3754 = vsel %vm3501, %v3690, %v3108
    %v3755 = vsel %vm3501, %v3691, %v3110
    %v3756 = vsel %vm3501, %v3692, %v3112
    %v3757 = vsel %vm3501, %v3693, %v3114
    %v3758 = vsel %vm3501, %v3694, %v3116
    %v3759 = vsel %vm3566, %v3695, %v3246
    %v3760 = vsel %vm3566, %v3696, %v3248
    %v3761 = vsel %vm3566, %v3697, %v3250
    %v3762 = vsel %vm3566, %v3698, %v3252
    %v3763 = vsel %vm3566, %v3699, %v3254
    %v3764 = vsel %vm3566, %v3700, %v3256
    %v3765 = vsel %vm3566, %v3701, %v3258
    %v3766 = vsel %vm3566, %v3702, %v3260
    %v3767 = vsel %vm3566, %v3703, %v3262
    %v3768 = vsel %vm3566, %v3704, %v3264
    %v3769 = vsel %vm3566, %v3705, %v3266
    %v3770 = vsel %vm3566, %v3706, %v3268
    %v3771 = vsel %vm3566, %v3707, %v3270
    %v3772 = vsel %vm3566, %v3708, %v3272
    %v3773 = vsel %vm3566, %v3709, %v3274
    %v3774 = vsel %vm3566, %v3710, %v3276
    %v3775 = vsel %vm3566, %v3711, %v3278
    %v3776 = vsel %vm3566, %v3712, %v3280
    %v3777 = vsel %vm3566, %v3713, %v3282
    %v3778 = vsel %vm3566, %v3714, %v3284
    %v3779 = vsel %vm3566, %v3715, %v3286
    %v3780 = vsel %vm3566, %v3716, %v3288
    %v3781 = vsel %vm3566, %v3717, %v3290
    %v3782 = vsel %vm3566, %v3718, %v3292
    %v3783 = vsel %vm3566, %v3719, %v3294
    %v3784 = vsel %vm3566, %v3720, %v3296
    %v3785 = vsel %vm3566, %v3721, %v3298
    %v3786 = vsel %vm3566, %v3722, %v3300
    %v3787 = vsel %vm3566, %v3723, %v3302
    %v3788 = vsel %vm3566, %v3724, %v3304
    %v3789 = vsel %vm3566, %v3725, %v3306
    %v3790 = vsel %vm3566, %v3726, %v3308
    %v3791 = vsel %vm3566, %v3727, %v3310
    %v3792 = vsel %vm3566, %v3728, %v3312
    %v3793 = vsel %vm3566, %v3729, %v3314
    %v3794 = vsel %vm3566, %v3730, %v3316
    %v3795 = vsel %vm3566, %v3731, %v3318
    %v3796 = vsel %vm3566, %v3732, %v3320
    %v3797 = vsel %vm3566, %v3733, %v3322
    %v3798 = vsel %vm3566, %v3734, %v3324
    %v3799 = vsel %vm3566, %v3735, %v3326
    %v3800 = vsel %vm3566, %v3736, %v3328
    %v3801 = vsel %vm3566, %v3737, %v3330
    %v3802 = vsel %vm3566, %v3738, %v3332
    %v3803 = vsel %vm3566, %v3739, %v3334
    %v3804 = vsel %vm3566, %v3740, %v3336
    %v3805 = vsel %vm3566, %v3741, %v3338
    %v3806 = vsel %vm3566, %v3742, %v3340
    %v3807 = vsel %vm3566, %v3743, %v3342
    %v3808 = vsel %vm3566, %v3744, %v3344
    %v3809 = vsel %vm3566, %v3745, %v3346
    %v3810 = vsel %vm3566, %v3746, %v3348
    %v3811 = vsel %vm3566, %v3747, %v3350
    %v3812 = vsel %vm3566, %v3748, %v3352
    %v3813 = vsel %vm3566, %v3749, %v3354
    %v3814 = vsel %vm3566, %v3750, %v3356
    %v3815 = vsel %vm3566, %v3751, %v3358
    %v3816 = vsel %vm3566, %v3752, %v3360
    %v3817 = vsel %vm3566, %v3753, %v3362
    %v3818 = vsel %vm3566, %v3754, %v3364
    %v3819 = vsel %vm3566, %v3755, %v3366
    %v3820 = vsel %vm3566, %v3756, %v3368
    %v3821 = vsel %vm3566, %v3757, %v3370
    %v3822 = vsel %vm3566, %v3758, %v3372
    %v3823 = vld [vmem:[%s4] sm:$0xff]
    %v3824 = vld [vmem:[%s4 + $0x8] sm:$0xff]
    %v3825 = vld [vmem:[%s4 + $0x10] sm:$0xff]
    %v3826 = vld [vmem:[%s4 + $0x18] sm:$0xff]
    %v3827 = vld [vmem:[%s4 + $0x20] sm:$0xff]
    %v3828 = vld [vmem:[%s4 + $0x28] sm:$0xff]
    %v3829 = vld [vmem:[%s4 + $0x30] sm:$0xff]
    %v3830 = vld [vmem:[%s4 + $0x38] sm:$0xff]
    %v3831 = vld [vmem:[%s4 + $0x40] sm:$0xff]
    %v3832 = vld [vmem:[%s4 + $0x48] sm:$0xff]
    %v3833 = vld [vmem:[%s4 + $0x50] sm:$0xff]
    %v3834 = vld [vmem:[%s4 + $0x58] sm:$0xff]
    %v3835 = vld [vmem:[%s4 + $0x60] sm:$0xff]
    %v3836 = vld [vmem:[%s4 + $0x68] sm:$0xff]
    %v3837 = vld [vmem:[%s4 + $0x70] sm:$0xff]
    %v3838 = vld [vmem:[%s4 + $0x78] sm:$0xff]
    %v3839 = vld [vmem:[%s4 + $0x80] sm:$0xff]
    %v3840 = vld [vmem:[%s4 + $0x88] sm:$0xff]
    %v3841 = vld [vmem:[%s4 + $0x90] sm:$0xff]
    %v3842 = vld [vmem:[%s4 + $0x98] sm:$0xff]
    %v3843 = vld [vmem:[%s4 + $0xa0] sm:$0xff]
    %v3844 = vld [vmem:[%s4 + $0xa8] sm:$0xff]
    %v3845 = vld [vmem:[%s4 + $0xb0] sm:$0xff]
    %v3846 = vld [vmem:[%s4 + $0xb8] sm:$0xff]
    %v3847 = vld [vmem:[%s4 + $0xc0] sm:$0xff]
    %v3848 = vld [vmem:[%s4 + $0xc8] sm:$0xff]
    %v3849 = vld [vmem:[%s4 + $0xd0] sm:$0xff]
    %v3850 = vld [vmem:[%s4 + $0xd8] sm:$0xff]
    %v3851 = vld [vmem:[%s4 + $0xe0] sm:$0xff]
    %v3852 = vld [vmem:[%s4 + $0xe8] sm:$0xff]
    %v3853 = vld [vmem:[%s4 + $0xf0] sm:$0xff]
    %v3854 = vld [vmem:[%s4 + $0xf8] sm:$0xff]
    %v3855 = vld [vmem:[%s4 + $0x100] sm:$0xff]
    %v3856 = vld [vmem:[%s4 + $0x108] sm:$0xff]
    %v3857 = vld [vmem:[%s4 + $0x110] sm:$0xff]
    %v3858 = vld [vmem:[%s4 + $0x118] sm:$0xff]
    %v3860 = vsel %vm495, %v1837, 0
    %v3863 = vsel %vm495, %v1838, 0
    %v3866 = vsel %vm495, %v1839, 0
    %v3869 = vsel %vm495, %v1840, 0
    %v3872 = vsel %vm495, %v1841, 0
    %v3875 = vsel %vm495, %v1842, 0
    %v3878 = vsel %vm495, %v1843, 0
    %v3881 = vsel %vm495, %v1844, 0
    %v3884 = vsel %vm495, %v1845, 0
    %v3887 = vsel %vm495, %v1846, 0
    %v3890 = vsel %vm495, %v1847, 0
    %v3893 = vsel %vm495, %v1848, 0
    %v3896 = vsel %vm495, %v1849, 0
    %v3899 = vsel %vm495, %v1850, 0
    %v3902 = vsel %vm495, %v1851, 0
    %v3905 = vsel %vm495, %v1852, 0
    %v3908 = vsel %vm495, %v1853, 0
    %v3911 = vsel %vm495, %v1854, 0
    %v3914 = vsel %vm495, %v1855, 0
    %v3917 = vsel %vm495, %v1856, 0
    %v3920 = vsel %vm495, %v1857, 0
    %v3923 = vsel %vm495, %v1858, 0
    %v3926 = vsel %vm495, %v1859, 0
    %v3929 = vsel %vm495, %v1860, 0
    %v3932 = vsel %vm495, %v1861, 0
    %v3935 = vsel %vm495, %v1862, 0
    %v3938 = vsel %vm495, %v1863, 0
    %v3941 = vsel %vm495, %v1864, 0
    %v3944 = vsel %vm495, %v1865, 0
    %v3947 = vsel %vm495, %v1866, 0
    %v3950 = vsel %vm495, %v1867, 0
    %v3953 = vsel %vm495, %v1868, 0
    %v3956 = vsel %vm495, %v1869, 0
    %v3959 = vsel %vm495, %v1870, 0
    %v3962 = vsel %vm495, %v1871, 0
    %v3965 = vsel %vm495, %v1872, 0
    %v3968 = vsel %vm495, %v1873, 0
    %v3971 = vsel %vm495, %v1874, 0
    %v3974 = vsel %vm495, %v1875, 0
    %v3977 = vsel %vm495, %v1876, 0
    %v3980 = vsel %vm495, %v1877, 0
    %v3983 = vsel %vm495, %v1878, 0
    %v3986 = vsel %vm495, %v1879, 0
    %v3989 = vsel %vm495, %v1880, 0
    %v3992 = vsel %vm495, %v1881, 0
    %v3995 = vsel %vm495, %v1882, 0
    %v3998 = vsel %vm495, %v1883, 0
    %v4001 = vsel %vm495, %v1884, 0
    %v4004 = vsel %vm495, %v1885, 0
    %v4007 = vsel %vm495, %v1886, 0
    %v4010 = vsel %vm495, %v1887, 0
    %v4013 = vsel %vm495, %v1888, 0
    %v4016 = vsel %vm495, %v1889, 0
    %v4019 = vsel %vm495, %v1890, 0
    %v4022 = vsel %vm495, %v1891, 0
    %v4025 = vsel %vm495, %v1892, 0
    %v4028 = vsel %vm495, %v1893, 0
    %v4031 = vsel %vm495, %v1894, 0
    %v4034 = vsel %vm495, %v1895, 0
    %v4037 = vsel %vm495, %v1896, 0
    %v4040 = vsel %vm495, %v1897, 0
    %v4043 = vsel %vm495, %v1898, 0
    %v4046 = vsel %vm495, %v1899, 0
    %v4049 = vsel %vm495, %v1900, 0
    %4051 = vmatpush.msra.mxu0 %v3838
    %4052 = vmatpush.msra.mxu0 %v3837
    %4053 = vmatpush.msra.mxu0 %v3836
    %4054 = vmatpush.msra.mxu0 %v3835
    %4055 = vmatpush.msra.mxu0 %v3834
    %4056 = vmatpush.msra.mxu0 %v3833
    %4057 = vmatpush.msra.mxu0 %v3832
    %4058 = vmatpush.msra.mxu0 %v3831
    %4059 = vmatpush.msra.mxu0 %v3830
    %4060 = vmatpush.msra.mxu0 %v3829
    %4061 = vmatpush.msra.mxu0 %v3828
    %4062 = vmatpush.msra.mxu0 %v3827
    %4063 = vmatpush.msra.mxu0 %v3826
    %4064 = vmatpush.msra.mxu0 %v3825
    %4065 = vmatpush.msra.mxu0 %v3824
    %4066 = vmatpush.msra.mxu0 %v3823
    %4067 = vmatmul.f32.gmra.mxu0 %v3567
    %v4068 = vpop.f32.mrf.mxu0
    %v4069 = vadd.f32 0.0, %v4068
    %4070 = vmatmul.f32.gmra.mxu0 %v3568
    %v4071 = vpop.f32.mrf.mxu0
    %v4072 = vadd.f32 0.0, %v4071
    %4073 = vmatmul.f32.gmra.mxu0 %v3569
    %v4074 = vpop.f32.mrf.mxu0
    %v4075 = vadd.f32 0.0, %v4074
    %4076 = vmatmul.f32.gmra.mxu0 %v3570
    %v4077 = vpop.f32.mrf.mxu0
    %v4078 = vadd.f32 0.0, %v4077
    %4079 = vmatmul.f32.gmra.mxu0 %v3571
    %v4080 = vpop.f32.mrf.mxu0
    %v4081 = vadd.f32 0.0, %v4080
    %4082 = vmatmul.f32.gmra.mxu0 %v3572
    %v4083 = vpop.f32.mrf.mxu0
    %v4084 = vadd.f32 0.0, %v4083
    %4085 = vmatmul.f32.gmra.mxu0 %v3573
    %v4086 = vpop.f32.mrf.mxu0
    %v4087 = vadd.f32 0.0, %v4086
    %4088 = vmatmul.f32.gmra.mxu0 %v3574
    %v4089 = vpop.f32.mrf.mxu0
    %v4090 = vadd.f32 0.0, %v4089
    %4091 = vmatmul.f32.gmra.mxu0 %v3575
    %v4092 = vpop.f32.mrf.mxu0
    %v4093 = vadd.f32 0.0, %v4092
    %4094 = vmatmul.f32.gmra.mxu0 %v3576
    %v4095 = vpop.f32.mrf.mxu0
    %v4096 = vadd.f32 0.0, %v4095
    %4097 = vmatmul.f32.gmra.mxu0 %v3577
    %v4098 = vpop.f32.mrf.mxu0
    %v4099 = vadd.f32 0.0, %v4098
    %4100 = vmatmul.f32.gmra.mxu0 %v3578
    %v4101 = vpop.f32.mrf.mxu0
    %v4102 = vadd.f32 0.0, %v4101
    %4103 = vmatmul.f32.gmra.mxu0 %v3579
    %v4104 = vpop.f32.mrf.mxu0
    %v4105 = vadd.f32 0.0, %v4104
    %4106 = vmatmul.f32.gmra.mxu0 %v3580
    %v4107 = vpop.f32.mrf.mxu0
    %v4108 = vadd.f32 0.0, %v4107
    %4109 = vmatmul.f32.gmra.mxu0 %v3581
    %v4110 = vpop.f32.mrf.mxu0
    %v4111 = vadd.f32 0.0, %v4110
    %4112 = vmatmul.f32.gmra.mxu0 %v3582
    %v4113 = vpop.f32.mrf.mxu0
    %v4114 = vadd.f32 0.0, %v4113
    %4115 = vmatmul.f32.gmra.mxu0 %v3583
    %v4116 = vpop.f32.mrf.mxu0
    %v4117 = vadd.f32 0.0, %v4116
    %4118 = vmatmul.f32.gmra.mxu0 %v3584
    %v4119 = vpop.f32.mrf.mxu0
    %v4120 = vadd.f32 0.0, %v4119
    %4121 = vmatmul.f32.gmra.mxu0 %v3585
    %v4122 = vpop.f32.mrf.mxu0
    %v4123 = vadd.f32 0.0, %v4122
    %4124 = vmatmul.f32.gmra.mxu0 %v3586
    %v4125 = vpop.f32.mrf.mxu0
    %v4126 = vadd.f32 0.0, %v4125
    %4127 = vmatmul.f32.gmra.mxu0 %v3587
    %v4128 = vpop.f32.mrf.mxu0
    %v4129 = vadd.f32 0.0, %v4128
    %4130 = vmatmul.f32.gmra.mxu0 %v3588
    %v4131 = vpop.f32.mrf.mxu0
    %v4132 = vadd.f32 0.0, %v4131
    %4133 = vmatmul.f32.gmra.mxu0 %v3589
    %v4134 = vpop.f32.mrf.mxu0
    %v4135 = vadd.f32 0.0, %v4134
    %4136 = vmatmul.f32.gmra.mxu0 %v3590
    %v4137 = vpop.f32.mrf.mxu0
    %v4138 = vadd.f32 0.0, %v4137
    %4139 = vmatmul.f32.gmra.mxu0 %v3591
    %v4140 = vpop.f32.mrf.mxu0
    %v4141 = vadd.f32 0.0, %v4140
    %4142 = vmatmul.f32.gmra.mxu0 %v3592
    %v4143 = vpop.f32.mrf.mxu0
    %v4144 = vadd.f32 0.0, %v4143
    %4145 = vmatmul.f32.gmra.mxu0 %v3593
    %v4146 = vpop.f32.mrf.mxu0
    %v4147 = vadd.f32 0.0, %v4146
    %4148 = vmatmul.f32.gmra.mxu0 %v3594
    %v4149 = vpop.f32.mrf.mxu0
    %v4150 = vadd.f32 0.0, %v4149
    %4151 = vmatmul.f32.gmra.mxu0 %v3595
    %v4152 = vpop.f32.mrf.mxu0
    %v4153 = vadd.f32 0.0, %v4152
    %4154 = vmatmul.f32.gmra.mxu0 %v3596
    %v4155 = vpop.f32.mrf.mxu0
    %v4156 = vadd.f32 0.0, %v4155
    %4157 = vmatmul.f32.gmra.mxu0 %v3597
    %v4158 = vpop.f32.mrf.mxu0
    %v4159 = vadd.f32 0.0, %v4158
    %4160 = vmatmul.f32.gmra.mxu0 %v3598
    %v4161 = vpop.f32.mrf.mxu0
    %v4162 = vadd.f32 0.0, %v4161
    %4163 = vmatmul.f32.gmra.mxu0 %v3599
    %v4164 = vpop.f32.mrf.mxu0
    %v4165 = vadd.f32 0.0, %v4164
    %4166 = vmatmul.f32.gmra.mxu0 %v3600
    %v4167 = vpop.f32.mrf.mxu0
    %v4168 = vadd.f32 0.0, %v4167
    %4169 = vmatmul.f32.gmra.mxu0 %v3601
    %v4170 = vpop.f32.mrf.mxu0
    %v4171 = vadd.f32 0.0, %v4170
    %4172 = vmatmul.f32.gmra.mxu0 %v3602
    %v4173 = vpop.f32.mrf.mxu0
    %v4174 = vadd.f32 0.0, %v4173
    %4175 = vmatmul.f32.gmra.mxu0 %v3603
    %v4176 = vpop.f32.mrf.mxu0
    %v4177 = vadd.f32 0.0, %v4176
    %4178 = vmatmul.f32.gmra.mxu0 %v3604
    %v4179 = vpop.f32.mrf.mxu0
    %v4180 = vadd.f32 0.0, %v4179
    %4181 = vmatmul.f32.gmra.mxu0 %v3605
    %v4182 = vpop.f32.mrf.mxu0
    %v4183 = vadd.f32 0.0, %v4182
    %4184 = vmatmul.f32.gmra.mxu0 %v3606
    %v4185 = vpop.f32.mrf.mxu0
    %v4186 = vadd.f32 0.0, %v4185
    %4187 = vmatmul.f32.gmra.mxu0 %v3607
    %v4188 = vpop.f32.mrf.mxu0
    %v4189 = vadd.f32 0.0, %v4188
    %4190 = vmatmul.f32.gmra.mxu0 %v3608
    %v4191 = vpop.f32.mrf.mxu0
    %v4192 = vadd.f32 0.0, %v4191
    %4193 = vmatmul.f32.gmra.mxu0 %v3609
    %v4194 = vpop.f32.mrf.mxu0
    %v4195 = vadd.f32 0.0, %v4194
    %4196 = vmatmul.f32.gmra.mxu0 %v3610
    %v4197 = vpop.f32.mrf.mxu0
    %v4198 = vadd.f32 0.0, %v4197
    %4199 = vmatmul.f32.gmra.mxu0 %v3611
    %v4200 = vpop.f32.mrf.mxu0
    %v4201 = vadd.f32 0.0, %v4200
    %4202 = vmatmul.f32.gmra.mxu0 %v3612
    %v4203 = vpop.f32.mrf.mxu0
    %v4204 = vadd.f32 0.0, %v4203
    %4205 = vmatmul.f32.gmra.mxu0 %v3613
    %v4206 = vpop.f32.mrf.mxu0
    %v4207 = vadd.f32 0.0, %v4206
    %4208 = vmatmul.f32.gmra.mxu0 %v3614
    %v4209 = vpop.f32.mrf.mxu0
    %v4210 = vadd.f32 0.0, %v4209
    %4211 = vmatmul.f32.gmra.mxu0 %v3615
    %v4212 = vpop.f32.mrf.mxu0
    %v4213 = vadd.f32 0.0, %v4212
    %4214 = vmatmul.f32.gmra.mxu0 %v3616
    %v4215 = vpop.f32.mrf.mxu0
    %v4216 = vadd.f32 0.0, %v4215
    %4217 = vmatmul.f32.gmra.mxu0 %v3617
    %v4218 = vpop.f32.mrf.mxu0
    %v4219 = vadd.f32 0.0, %v4218
    %4220 = vmatmul.f32.gmra.mxu0 %v3618
    %v4221 = vpop.f32.mrf.mxu0
    %v4222 = vadd.f32 0.0, %v4221
    %4223 = vmatmul.f32.gmra.mxu0 %v3619
    %v4224 = vpop.f32.mrf.mxu0
    %v4225 = vadd.f32 0.0, %v4224
    %4226 = vmatmul.f32.gmra.mxu0 %v3620
    %v4227 = vpop.f32.mrf.mxu0
    %v4228 = vadd.f32 0.0, %v4227
    %4229 = vmatmul.f32.gmra.mxu0 %v3621
    %v4230 = vpop.f32.mrf.mxu0
    %v4231 = vadd.f32 0.0, %v4230
    %4232 = vmatmul.f32.gmra.mxu0 %v3622
    %v4233 = vpop.f32.mrf.mxu0
    %v4234 = vadd.f32 0.0, %v4233
    %4235 = vmatmul.f32.gmra.mxu0 %v3623
    %v4236 = vpop.f32.mrf.mxu0
    %v4237 = vadd.f32 0.0, %v4236
    %4238 = vmatmul.f32.gmra.mxu0 %v3624
    %v4239 = vpop.f32.mrf.mxu0
    %v4240 = vadd.f32 0.0, %v4239
    %4241 = vmatmul.f32.gmra.mxu0 %v3625
    %v4242 = vpop.f32.mrf.mxu0
    %v4243 = vadd.f32 0.0, %v4242
    %4244 = vmatmul.f32.gmra.mxu0 %v3626
    %v4245 = vpop.f32.mrf.mxu0
    %v4246 = vadd.f32 0.0, %v4245
    %4247 = vmatmul.f32.gmra.mxu0 %v3627
    %v4248 = vpop.f32.mrf.mxu0
    %v4249 = vadd.f32 0.0, %v4248
    %4250 = vmatmul.f32.gmra.mxu0 %v3628
    %v4251 = vpop.f32.mrf.mxu0
    %v4252 = vadd.f32 0.0, %v4251
    %4253 = vmatmul.f32.gmra.mxu0 %v3629
    %v4254 = vpop.f32.mrf.mxu0
    %v4255 = vadd.f32 0.0, %v4254
    %4256 = vmatmul.f32.gmra.mxu0 %v3630
    %v4257 = vpop.f32.mrf.mxu0
    %v4258 = vadd.f32 0.0, %v4257
    %4259 = vdwg.mxu0
    %4260 = vmatpush.msra.mxu0 %v3854
    %4261 = vmatpush.msra.mxu0 %v3853
    %4262 = vmatpush.msra.mxu0 %v3852
    %4263 = vmatpush.msra.mxu0 %v3851
    %4264 = vmatpush.msra.mxu0 %v3850
    %4265 = vmatpush.msra.mxu0 %v3849
    %4266 = vmatpush.msra.mxu0 %v3848
    %4267 = vmatpush.msra.mxu0 %v3847
    %4268 = vmatpush.msra.mxu0 %v3846
    %4269 = vmatpush.msra.mxu0 %v3845
    %4270 = vmatpush.msra.mxu0 %v3844
    %4271 = vmatpush.msra.mxu0 %v3843
    %4272 = vmatpush.msra.mxu0 %v3842
    %4273 = vmatpush.msra.mxu0 %v3841
    %4274 = vmatpush.msra.mxu0 %v3840
    %4275 = vmatpush.msra.mxu0 %v3839
    %4276 = vmatmul.f32.gmra.mxu0 %v3759
    %v4277 = vpop.f32.mrf.mxu0
    %v4278 = vadd.f32 %v4069, %v4277
    %4279 = vmatmul.f32.gmra.mxu0 %v3760
    %v4280 = vpop.f32.mrf.mxu0
    %v4281 = vadd.f32 %v4072, %v4280
    %4282 = vmatmul.f32.gmra.mxu0 %v3761
    %v4283 = vpop.f32.mrf.mxu0
    %v4284 = vadd.f32 %v4075, %v4283
    %4285 = vmatmul.f32.gmra.mxu0 %v3762
    %v4286 = vpop.f32.mrf.mxu0
    %v4287 = vadd.f32 %v4078, %v4286
    %4288 = vmatmul.f32.gmra.mxu0 %v3763
    %v4289 = vpop.f32.mrf.mxu0
    %v4290 = vadd.f32 %v4081, %v4289
    %4291 = vmatmul.f32.gmra.mxu0 %v3764
    %v4292 = vpop.f32.mrf.mxu0
    %v4293 = vadd.f32 %v4084, %v4292
    %4294 = vmatmul.f32.gmra.mxu0 %v3765
    %v4295 = vpop.f32.mrf.mxu0
    %v4296 = vadd.f32 %v4087, %v4295
    %4297 = vmatmul.f32.gmra.mxu0 %v3766
    %v4298 = vpop.f32.mrf.mxu0
    %v4299 = vadd.f32 %v4090, %v4298
    %4300 = vmatmul.f32.gmra.mxu0 %v3767
    %v4301 = vpop.f32.mrf.mxu0
    %v4302 = vadd.f32 %v4093, %v4301
    %4303 = vmatmul.f32.gmra.mxu0 %v3768
    %v4304 = vpop.f32.mrf.mxu0
    %v4305 = vadd.f32 %v4096, %v4304
    %4306 = vmatmul.f32.gmra.mxu0 %v3769
    %v4307 = vpop.f32.mrf.mxu0
    %v4308 = vadd.f32 %v4099, %v4307
    %4309 = vmatmul.f32.gmra.mxu0 %v3770
    %v4310 = vpop.f32.mrf.mxu0
    %v4311 = vadd.f32 %v4102, %v4310
    %4312 = vmatmul.f32.gmra.mxu0 %v3771
    %v4313 = vpop.f32.mrf.mxu0
    %v4314 = vadd.f32 %v4105, %v4313
    %4315 = vmatmul.f32.gmra.mxu0 %v3772
    %v4316 = vpop.f32.mrf.mxu0
    %v4317 = vadd.f32 %v4108, %v4316
    %4318 = vmatmul.f32.gmra.mxu0 %v3773
    %v4319 = vpop.f32.mrf.mxu0
    %v4320 = vadd.f32 %v4111, %v4319
    %4321 = vmatmul.f32.gmra.mxu0 %v3774
    %v4322 = vpop.f32.mrf.mxu0
    %v4323 = vadd.f32 %v4114, %v4322
    %4324 = vmatmul.f32.gmra.mxu0 %v3775
    %v4325 = vpop.f32.mrf.mxu0
    %v4326 = vadd.f32 %v4117, %v4325
    %4327 = vmatmul.f32.gmra.mxu0 %v3776
    %v4328 = vpop.f32.mrf.mxu0
    %v4329 = vadd.f32 %v4120, %v4328
    %4330 = vmatmul.f32.gmra.mxu0 %v3777
    %v4331 = vpop.f32.mrf.mxu0
    %v4332 = vadd.f32 %v4123, %v4331
    %4333 = vmatmul.f32.gmra.mxu0 %v3778
    %v4334 = vpop.f32.mrf.mxu0
    %v4335 = vadd.f32 %v4126, %v4334
    %4336 = vmatmul.f32.gmra.mxu0 %v3779
    %v4337 = vpop.f32.mrf.mxu0
    %v4338 = vadd.f32 %v4129, %v4337
    %4339 = vmatmul.f32.gmra.mxu0 %v3780
    %v4340 = vpop.f32.mrf.mxu0
    %v4341 = vadd.f32 %v4132, %v4340
    %4342 = vmatmul.f32.gmra.mxu0 %v3781
    %v4343 = vpop.f32.mrf.mxu0
    %v4344 = vadd.f32 %v4135, %v4343
    %4345 = vmatmul.f32.gmra.mxu0 %v3782
    %v4346 = vpop.f32.mrf.mxu0
    %v4347 = vadd.f32 %v4138, %v4346
    %4348 = vmatmul.f32.gmra.mxu0 %v3783
    %v4349 = vpop.f32.mrf.mxu0
    %v4350 = vadd.f32 %v4141, %v4349
    %4351 = vmatmul.f32.gmra.mxu0 %v3784
    %v4352 = vpop.f32.mrf.mxu0
    %v4353 = vadd.f32 %v4144, %v4352
    %4354 = vmatmul.f32.gmra.mxu0 %v3785
    %v4355 = vpop.f32.mrf.mxu0
    %v4356 = vadd.f32 %v4147, %v4355
    %4357 = vmatmul.f32.gmra.mxu0 %v3786
    %v4358 = vpop.f32.mrf.mxu0
    %v4359 = vadd.f32 %v4150, %v4358
    %4360 = vmatmul.f32.gmra.mxu0 %v3787
    %v4361 = vpop.f32.mrf.mxu0
    %v4362 = vadd.f32 %v4153, %v4361
    %4363 = vmatmul.f32.gmra.mxu0 %v3788
    %v4364 = vpop.f32.mrf.mxu0
    %v4365 = vadd.f32 %v4156, %v4364
    %4366 = vmatmul.f32.gmra.mxu0 %v3789
    %v4367 = vpop.f32.mrf.mxu0
    %v4368 = vadd.f32 %v4159, %v4367
    %4369 = vmatmul.f32.gmra.mxu0 %v3790
    %v4370 = vpop.f32.mrf.mxu0
    %v4371 = vadd.f32 %v4162, %v4370
    %4372 = vmatmul.f32.gmra.mxu0 %v3791
    %v4373 = vpop.f32.mrf.mxu0
    %v4374 = vadd.f32 %v4165, %v4373
    %4375 = vmatmul.f32.gmra.mxu0 %v3792
    %v4376 = vpop.f32.mrf.mxu0
    %v4377 = vadd.f32 %v4168, %v4376
    %4378 = vmatmul.f32.gmra.mxu0 %v3793
    %v4379 = vpop.f32.mrf.mxu0
    %v4380 = vadd.f32 %v4171, %v4379
    %4381 = vmatmul.f32.gmra.mxu0 %v3794
    %v4382 = vpop.f32.mrf.mxu0
    %v4383 = vadd.f32 %v4174, %v4382
    %4384 = vmatmul.f32.gmra.mxu0 %v3795
    %v4385 = vpop.f32.mrf.mxu0
    %v4386 = vadd.f32 %v4177, %v4385
    %4387 = vmatmul.f32.gmra.mxu0 %v3796
    %v4388 = vpop.f32.mrf.mxu0
    %v4389 = vadd.f32 %v4180, %v4388
    %4390 = vmatmul.f32.gmra.mxu0 %v3797
    %v4391 = vpop.f32.mrf.mxu0
    %v4392 = vadd.f32 %v4183, %v4391
    %4393 = vmatmul.f32.gmra.mxu0 %v3798
    %v4394 = vpop.f32.mrf.mxu0
    %v4395 = vadd.f32 %v4186, %v4394
    %4396 = vmatmul.f32.gmra.mxu0 %v3799
    %v4397 = vpop.f32.mrf.mxu0
    %v4398 = vadd.f32 %v4189, %v4397
    %4399 = vmatmul.f32.gmra.mxu0 %v3800
    %v4400 = vpop.f32.mrf.mxu0
    %v4401 = vadd.f32 %v4192, %v4400
    %4402 = vmatmul.f32.gmra.mxu0 %v3801
    %v4403 = vpop.f32.mrf.mxu0
    %v4404 = vadd.f32 %v4195, %v4403
    %4405 = vmatmul.f32.gmra.mxu0 %v3802
    %v4406 = vpop.f32.mrf.mxu0
    %v4407 = vadd.f32 %v4198, %v4406
    %4408 = vmatmul.f32.gmra.mxu0 %v3803
    %v4409 = vpop.f32.mrf.mxu0
    %v4410 = vadd.f32 %v4201, %v4409
    %4411 = vmatmul.f32.gmra.mxu0 %v3804
    %v4412 = vpop.f32.mrf.mxu0
    %v4413 = vadd.f32 %v4204, %v4412
    %4414 = vmatmul.f32.gmra.mxu0 %v3805
    %v4415 = vpop.f32.mrf.mxu0
    %v4416 = vadd.f32 %v4207, %v4415
    %4417 = vmatmul.f32.gmra.mxu0 %v3806
    %v4418 = vpop.f32.mrf.mxu0
    %v4419 = vadd.f32 %v4210, %v4418
    %4420 = vmatmul.f32.gmra.mxu0 %v3807
    %v4421 = vpop.f32.mrf.mxu0
    %v4422 = vadd.f32 %v4213, %v4421
    %4423 = vmatmul.f32.gmra.mxu0 %v3808
    %v4424 = vpop.f32.mrf.mxu0
    %v4425 = vadd.f32 %v4216, %v4424
    %4426 = vmatmul.f32.gmra.mxu0 %v3809
    %v4427 = vpop.f32.mrf.mxu0
    %v4428 = vadd.f32 %v4219, %v4427
    %4429 = vmatmul.f32.gmra.mxu0 %v3810
    %v4430 = vpop.f32.mrf.mxu0
    %v4431 = vadd.f32 %v4222, %v4430
    %4432 = vmatmul.f32.gmra.mxu0 %v3811
    %v4433 = vpop.f32.mrf.mxu0
    %v4434 = vadd.f32 %v4225, %v4433
    %4435 = vmatmul.f32.gmra.mxu0 %v3812
    %v4436 = vpop.f32.mrf.mxu0
    %v4437 = vadd.f32 %v4228, %v4436
    %4438 = vmatmul.f32.gmra.mxu0 %v3813
    %v4439 = vpop.f32.mrf.mxu0
    %v4440 = vadd.f32 %v4231, %v4439
    %4441 = vmatmul.f32.gmra.mxu0 %v3814
    %v4442 = vpop.f32.mrf.mxu0
    %v4443 = vadd.f32 %v4234, %v4442
    %4444 = vmatmul.f32.gmra.mxu0 %v3815
    %v4445 = vpop.f32.mrf.mxu0
    %v4446 = vadd.f32 %v4237, %v4445
    %4447 = vmatmul.f32.gmra.mxu0 %v3816
    %v4448 = vpop.f32.mrf.mxu0
    %v4449 = vadd.f32 %v4240, %v4448
    %4450 = vmatmul.f32.gmra.mxu0 %v3817
    %v4451 = vpop.f32.mrf.mxu0
    %v4452 = vadd.f32 %v4243, %v4451
    %4453 = vmatmul.f32.gmra.mxu0 %v3818
    %v4454 = vpop.f32.mrf.mxu0
    %v4455 = vadd.f32 %v4246, %v4454
    %4456 = vmatmul.f32.gmra.mxu0 %v3819
    %v4457 = vpop.f32.mrf.mxu0
    %v4458 = vadd.f32 %v4249, %v4457
    %4459 = vmatmul.f32.gmra.mxu0 %v3820
    %v4460 = vpop.f32.mrf.mxu0
    %v4461 = vadd.f32 %v4252, %v4460
    %4462 = vmatmul.f32.gmra.mxu0 %v3821
    %v4463 = vpop.f32.mrf.mxu0
    %v4464 = vadd.f32 %v4255, %v4463
    %4465 = vmatmul.f32.gmra.mxu0 %v3822
    %v4466 = vpop.f32.mrf.mxu0
    %v4467 = vadd.f32 %v4258, %v4466
    %4468 = vdwg.mxu0
    %4469 = vmatpush.msra.mxu0 0.0
    %4470 = vmatpush.msra.mxu0 0.0
    %4471 = vmatpush.msra.mxu0 0.0
    %4472 = vmatpush.msra.mxu0 0.0
    %4473 = vmatpush.msra.mxu0 0.0
    %4474 = vmatpush.msra.mxu0 0.0
    %4475 = vmatpush.msra.mxu0 0.0
    %4476 = vmatpush.msra.mxu0 0.0
    %4477 = vmatpush.msra.mxu0 0.0
    %4478 = vmatpush.msra.mxu0 0.0
    %4479 = vmatpush.msra.mxu0 0.0
    %4480 = vmatpush.msra.mxu0 0.0
    %4481 = vmatpush.msra.mxu0 %v3858
    %4482 = vmatpush.msra.mxu0 %v3857
    %4483 = vmatpush.msra.mxu0 %v3856
    %4484 = vmatpush.msra.mxu0 %v3855
    %4485 = vmatmul.f32.gmra.mxu0 %v3860
    %v4486 = vpop.f32.mrf.mxu0
    %v4487 = vadd.f32 %v4278, %v4486
    %4488 = vmatmul.f32.gmra.mxu0 %v3863
    %v4489 = vpop.f32.mrf.mxu0
    %v4490 = vadd.f32 %v4281, %v4489
    %4491 = vmatmul.f32.gmra.mxu0 %v3866
    %v4492 = vpop.f32.mrf.mxu0
    %v4493 = vadd.f32 %v4284, %v4492
    %4494 = vmatmul.f32.gmra.mxu0 %v3869
    %v4495 = vpop.f32.mrf.mxu0
    %v4496 = vadd.f32 %v4287, %v4495
    %4497 = vmatmul.f32.gmra.mxu0 %v3872
    %v4498 = vpop.f32.mrf.mxu0
    %v4499 = vadd.f32 %v4290, %v4498
    %4500 = vmatmul.f32.gmra.mxu0 %v3875
    %v4501 = vpop.f32.mrf.mxu0
    %v4502 = vadd.f32 %v4293, %v4501
    %4503 = vmatmul.f32.gmra.mxu0 %v3878
    %v4504 = vpop.f32.mrf.mxu0
    %v4505 = vadd.f32 %v4296, %v4504
    %4506 = vmatmul.f32.gmra.mxu0 %v3881
    %v4507 = vpop.f32.mrf.mxu0
    %v4508 = vadd.f32 %v4299, %v4507
    %4509 = vmatmul.f32.gmra.mxu0 %v3884
    %v4510 = vpop.f32.mrf.mxu0
    %v4511 = vadd.f32 %v4302, %v4510
    %4512 = vmatmul.f32.gmra.mxu0 %v3887
    %v4513 = vpop.f32.mrf.mxu0
    %v4514 = vadd.f32 %v4305, %v4513
    %4515 = vmatmul.f32.gmra.mxu0 %v3890
    %v4516 = vpop.f32.mrf.mxu0
    %v4517 = vadd.f32 %v4308, %v4516
    %4518 = vmatmul.f32.gmra.mxu0 %v3893
    %v4519 = vpop.f32.mrf.mxu0
    %v4520 = vadd.f32 %v4311, %v4519
    %4521 = vmatmul.f32.gmra.mxu0 %v3896
    %v4522 = vpop.f32.mrf.mxu0
    %v4523 = vadd.f32 %v4314, %v4522
    %4524 = vmatmul.f32.gmra.mxu0 %v3899
    %v4525 = vpop.f32.mrf.mxu0
    %v4526 = vadd.f32 %v4317, %v4525
    %4527 = vmatmul.f32.gmra.mxu0 %v3902
    %v4528 = vpop.f32.mrf.mxu0
    %v4529 = vadd.f32 %v4320, %v4528
    %4530 = vmatmul.f32.gmra.mxu0 %v3905
    %v4531 = vpop.f32.mrf.mxu0
    %v4532 = vadd.f32 %v4323, %v4531
    %4533 = vmatmul.f32.gmra.mxu0 %v3908
    %v4534 = vpop.f32.mrf.mxu0
    %v4535 = vadd.f32 %v4326, %v4534
    %4536 = vmatmul.f32.gmra.mxu0 %v3911
    %v4537 = vpop.f32.mrf.mxu0
    %v4538 = vadd.f32 %v4329, %v4537
    %4539 = vmatmul.f32.gmra.mxu0 %v3914
    %v4540 = vpop.f32.mrf.mxu0
    %v4541 = vadd.f32 %v4332, %v4540
    %4542 = vmatmul.f32.gmra.mxu0 %v3917
    %v4543 = vpop.f32.mrf.mxu0
    %v4544 = vadd.f32 %v4335, %v4543
    %4545 = vmatmul.f32.gmra.mxu0 %v3920
    %v4546 = vpop.f32.mrf.mxu0
    %v4547 = vadd.f32 %v4338, %v4546
    %4548 = vmatmul.f32.gmra.mxu0 %v3923
    %v4549 = vpop.f32.mrf.mxu0
    %v4550 = vadd.f32 %v4341, %v4549
    %4551 = vmatmul.f32.gmra.mxu0 %v3926
    %v4552 = vpop.f32.mrf.mxu0
    %v4553 = vadd.f32 %v4344, %v4552
    %4554 = vmatmul.f32.gmra.mxu0 %v3929
    %v4555 = vpop.f32.mrf.mxu0
    %v4556 = vadd.f32 %v4347, %v4555
    %4557 = vmatmul.f32.gmra.mxu0 %v3932
    %v4558 = vpop.f32.mrf.mxu0
    %v4559 = vadd.f32 %v4350, %v4558
    %4560 = vmatmul.f32.gmra.mxu0 %v3935
    %v4561 = vpop.f32.mrf.mxu0
    %v4562 = vadd.f32 %v4353, %v4561
    %4563 = vmatmul.f32.gmra.mxu0 %v3938
    %v4564 = vpop.f32.mrf.mxu0
    %v4565 = vadd.f32 %v4356, %v4564
    %4566 = vmatmul.f32.gmra.mxu0 %v3941
    %v4567 = vpop.f32.mrf.mxu0
    %v4568 = vadd.f32 %v4359, %v4567
    %4569 = vmatmul.f32.gmra.mxu0 %v3944
    %v4570 = vpop.f32.mrf.mxu0
    %v4571 = vadd.f32 %v4362, %v4570
    %4572 = vmatmul.f32.gmra.mxu0 %v3947
    %v4573 = vpop.f32.mrf.mxu0
    %v4574 = vadd.f32 %v4365, %v4573
    %4575 = vmatmul.f32.gmra.mxu0 %v3950
    %v4576 = vpop.f32.mrf.mxu0
    %v4577 = vadd.f32 %v4368, %v4576
    %4578 = vmatmul.f32.gmra.mxu0 %v3953
    %v4579 = vpop.f32.mrf.mxu0
    %v4580 = vadd.f32 %v4371, %v4579
    %4581 = vmatmul.f32.gmra.mxu0 %v3956
    %v4582 = vpop.f32.mrf.mxu0
    %v4583 = vadd.f32 %v4374, %v4582
    %4584 = vmatmul.f32.gmra.mxu0 %v3959
    %v4585 = vpop.f32.mrf.mxu0
    %v4586 = vadd.f32 %v4377, %v4585
    %4587 = vmatmul.f32.gmra.mxu0 %v3962
    %v4588 = vpop.f32.mrf.mxu0
    %v4589 = vadd.f32 %v4380, %v4588
    %4590 = vmatmul.f32.gmra.mxu0 %v3965
    %v4591 = vpop.f32.mrf.mxu0
    %v4592 = vadd.f32 %v4383, %v4591
    %4593 = vmatmul.f32.gmra.mxu0 %v3968
    %v4594 = vpop.f32.mrf.mxu0
    %v4595 = vadd.f32 %v4386, %v4594
    %4596 = vmatmul.f32.gmra.mxu0 %v3971
    %v4597 = vpop.f32.mrf.mxu0
    %v4598 = vadd.f32 %v4389, %v4597
    %4599 = vmatmul.f32.gmra.mxu0 %v3974
    %v4600 = vpop.f32.mrf.mxu0
    %v4601 = vadd.f32 %v4392, %v4600
    %4602 = vmatmul.f32.gmra.mxu0 %v3977
    %v4603 = vpop.f32.mrf.mxu0
    %v4604 = vadd.f32 %v4395, %v4603
    %4605 = vmatmul.f32.gmra.mxu0 %v3980
    %v4606 = vpop.f32.mrf.mxu0
    %v4607 = vadd.f32 %v4398, %v4606
    %4608 = vmatmul.f32.gmra.mxu0 %v3983
    %v4609 = vpop.f32.mrf.mxu0
    %v4610 = vadd.f32 %v4401, %v4609
    %4611 = vmatmul.f32.gmra.mxu0 %v3986
    %v4612 = vpop.f32.mrf.mxu0
    %v4613 = vadd.f32 %v4404, %v4612
    %4614 = vmatmul.f32.gmra.mxu0 %v3989
    %v4615 = vpop.f32.mrf.mxu0
    %v4616 = vadd.f32 %v4407, %v4615
    %4617 = vmatmul.f32.gmra.mxu0 %v3992
    %v4618 = vpop.f32.mrf.mxu0
    %v4619 = vadd.f32 %v4410, %v4618
    %4620 = vmatmul.f32.gmra.mxu0 %v3995
    %v4621 = vpop.f32.mrf.mxu0
    %v4622 = vadd.f32 %v4413, %v4621
    %4623 = vmatmul.f32.gmra.mxu0 %v3998
    %v4624 = vpop.f32.mrf.mxu0
    %v4625 = vadd.f32 %v4416, %v4624
    %4626 = vmatmul.f32.gmra.mxu0 %v4001
    %v4627 = vpop.f32.mrf.mxu0
    %v4628 = vadd.f32 %v4419, %v4627
    %4629 = vmatmul.f32.gmra.mxu0 %v4004
    %v4630 = vpop.f32.mrf.mxu0
    %v4631 = vadd.f32 %v4422, %v4630
    %4632 = vmatmul.f32.gmra.mxu0 %v4007
    %v4633 = vpop.f32.mrf.mxu0
    %v4634 = vadd.f32 %v4425, %v4633
    %4635 = vmatmul.f32.gmra.mxu0 %v4010
    %v4636 = vpop.f32.mrf.mxu0
    %v4637 = vadd.f32 %v4428, %v4636
    %4638 = vmatmul.f32.gmra.mxu0 %v4013
    %v4639 = vpop.f32.mrf.mxu0
    %v4640 = vadd.f32 %v4431, %v4639
    %4641 = vmatmul.f32.gmra.mxu0 %v4016
    %v4642 = vpop.f32.mrf.mxu0
    %v4643 = vadd.f32 %v4434, %v4642
    %4644 = vmatmul.f32.gmra.mxu0 %v4019
    %v4645 = vpop.f32.mrf.mxu0
    %v4646 = vadd.f32 %v4437, %v4645
    %4647 = vmatmul.f32.gmra.mxu0 %v4022
    %v4648 = vpop.f32.mrf.mxu0
    %v4649 = vadd.f32 %v4440, %v4648
    %4650 = vmatmul.f32.gmra.mxu0 %v4025
    %v4651 = vpop.f32.mrf.mxu0
    %v4652 = vadd.f32 %v4443, %v4651
    %4653 = vmatmul.f32.gmra.mxu0 %v4028
    %v4654 = vpop.f32.mrf.mxu0
    %v4655 = vadd.f32 %v4446, %v4654
    %4656 = vmatmul.f32.gmra.mxu0 %v4031
    %v4657 = vpop.f32.mrf.mxu0
    %v4658 = vadd.f32 %v4449, %v4657
    %4659 = vmatmul.f32.gmra.mxu0 %v4034
    %v4660 = vpop.f32.mrf.mxu0
    %v4661 = vadd.f32 %v4452, %v4660
    %4662 = vmatmul.f32.gmra.mxu0 %v4037
    %v4663 = vpop.f32.mrf.mxu0
    %v4664 = vadd.f32 %v4455, %v4663
    %4665 = vmatmul.f32.gmra.mxu0 %v4040
    %v4666 = vpop.f32.mrf.mxu0
    %v4667 = vadd.f32 %v4458, %v4666
    %4668 = vmatmul.f32.gmra.mxu0 %v4043
    %v4669 = vpop.f32.mrf.mxu0
    %v4670 = vadd.f32 %v4461, %v4669
    %4671 = vmatmul.f32.gmra.mxu0 %v4046
    %v4672 = vpop.f32.mrf.mxu0
    %v4673 = vadd.f32 %v4464, %v4672
    %4674 = vmatmul.f32.gmra.mxu0 %v4049
    %v4675 = vpop.f32.mrf.mxu0
    %v4676 = vadd.f32 %v4467, %v4675
    %4677 = vdwg.mxu0
    %v4678 = vsel %vm495, %v4487, 0.0
    %v4679 = vsel %vm495, %v4490, 0.0
    %v4680 = vadd.f32 %v4678, %v4679
    %v4681 = vsel %vm495, %v4493, 0.0
    %v4682 = vadd.f32 %v4680, %v4681
    %v4683 = vsel %vm495, %v4496, 0.0
    %v4684 = vadd.f32 %v4682, %v4683
    %v4685 = vsel %vm495, %v4499, 0.0
    %v4686 = vadd.f32 %v4684, %v4685
    %v4687 = vsel %vm495, %v4502, 0.0
    %v4688 = vadd.f32 %v4686, %v4687
    %v4689 = vsel %vm495, %v4505, 0.0
    %v4690 = vadd.f32 %v4688, %v4689
    %v4691 = vsel %vm495, %v4508, 0.0
    %v4692 = vadd.f32 %v4690, %v4691
    %v4693 = vsel %vm495, %v4511, 0.0
    %v4694 = vadd.f32 %v4692, %v4693
    %v4695 = vsel %vm495, %v4514, 0.0
    %v4696 = vadd.f32 %v4694, %v4695
    %v4697 = vsel %vm495, %v4517, 0.0
    %v4698 = vadd.f32 %v4696, %v4697
    %v4699 = vsel %vm495, %v4520, 0.0
    %v4700 = vadd.f32 %v4698, %v4699
    %v4701 = vsel %vm495, %v4523, 0.0
    %v4702 = vadd.f32 %v4700, %v4701
    %v4703 = vsel %vm495, %v4526, 0.0
    %v4704 = vadd.f32 %v4702, %v4703
    %v4705 = vsel %vm495, %v4529, 0.0
    %v4706 = vadd.f32 %v4704, %v4705
    %v4707 = vsel %vm495, %v4532, 0.0
    %v4708 = vadd.f32 %v4706, %v4707
    %v4709 = vsel %vm495, %v4535, 0.0
    %v4710 = vadd.f32 %v4708, %v4709
    %v4711 = vsel %vm495, %v4538, 0.0
    %v4712 = vadd.f32 %v4710, %v4711
    %v4713 = vsel %vm495, %v4541, 0.0
    %v4714 = vadd.f32 %v4712, %v4713
    %v4715 = vsel %vm495, %v4544, 0.0
    %v4716 = vadd.f32 %v4714, %v4715
    %v4717 = vsel %vm495, %v4547, 0.0
    %v4718 = vadd.f32 %v4716, %v4717
    %v4719 = vsel %vm495, %v4550, 0.0
    %v4720 = vadd.f32 %v4718, %v4719
    %v4721 = vsel %vm495, %v4553, 0.0
    %v4722 = vadd.f32 %v4720, %v4721
    %v4723 = vsel %vm495, %v4556, 0.0
    %v4724 = vadd.f32 %v4722, %v4723
    %v4725 = vsel %vm495, %v4559, 0.0
    %v4726 = vadd.f32 %v4724, %v4725
    %v4727 = vsel %vm495, %v4562, 0.0
    %v4728 = vadd.f32 %v4726, %v4727
    %v4729 = vsel %vm495, %v4565, 0.0
    %v4730 = vadd.f32 %v4728, %v4729
    %v4731 = vsel %vm495, %v4568, 0.0
    %v4732 = vadd.f32 %v4730, %v4731
    %v4733 = vsel %vm495, %v4571, 0.0
    %v4734 = vadd.f32 %v4732, %v4733
    %v4735 = vsel %vm495, %v4574, 0.0
    %v4736 = vadd.f32 %v4734, %v4735
    %v4737 = vsel %vm495, %v4577, 0.0
    %v4738 = vadd.f32 %v4736, %v4737
    %v4739 = vsel %vm495, %v4580, 0.0
    %v4740 = vadd.f32 %v4738, %v4739
    %v4741 = vsel %vm495, %v4583, 0.0
    %v4742 = vadd.f32 %v4740, %v4741
    %v4743 = vsel %vm495, %v4586, 0.0
    %v4744 = vadd.f32 %v4742, %v4743
    %v4745 = vsel %vm495, %v4589, 0.0
    %v4746 = vadd.f32 %v4744, %v4745
    %v4747 = vsel %vm495, %v4592, 0.0
    %v4748 = vadd.f32 %v4746, %v4747
    %v4749 = vsel %vm495, %v4595, 0.0
    %v4750 = vadd.f32 %v4748, %v4749
    %v4751 = vsel %vm495, %v4598, 0.0
    %v4752 = vadd.f32 %v4750, %v4751
    %v4753 = vsel %vm495, %v4601, 0.0
    %v4754 = vadd.f32 %v4752, %v4753
    %v4755 = vsel %vm495, %v4604, 0.0
    %v4756 = vadd.f32 %v4754, %v4755
    %v4757 = vsel %vm495, %v4607, 0.0
    %v4758 = vadd.f32 %v4756, %v4757
    %v4759 = vsel %vm495, %v4610, 0.0
    %v4760 = vadd.f32 %v4758, %v4759
    %v4761 = vsel %vm495, %v4613, 0.0
    %v4762 = vadd.f32 %v4760, %v4761
    %v4763 = vsel %vm495, %v4616, 0.0
    %v4764 = vadd.f32 %v4762, %v4763
    %v4765 = vsel %vm495, %v4619, 0.0
    %v4766 = vadd.f32 %v4764, %v4765
    %v4767 = vsel %vm495, %v4622, 0.0
    %v4768 = vadd.f32 %v4766, %v4767
    %v4769 = vsel %vm495, %v4625, 0.0
    %v4770 = vadd.f32 %v4768, %v4769
    %v4771 = vsel %vm495, %v4628, 0.0
    %v4772 = vadd.f32 %v4770, %v4771
    %v4773 = vsel %vm495, %v4631, 0.0
    %v4774 = vadd.f32 %v4772, %v4773
    %v4775 = vsel %vm495, %v4634, 0.0
    %v4776 = vadd.f32 %v4774, %v4775
    %v4777 = vsel %vm495, %v4637, 0.0
    %v4778 = vadd.f32 %v4776, %v4777
    %v4779 = vsel %vm495, %v4640, 0.0
    %v4780 = vadd.f32 %v4778, %v4779
    %v4781 = vsel %vm495, %v4643, 0.0
    %v4782 = vadd.f32 %v4780, %v4781
    %v4783 = vsel %vm495, %v4646, 0.0
    %v4784 = vadd.f32 %v4782, %v4783
    %v4785 = vsel %vm495, %v4649, 0.0
    %v4786 = vadd.f32 %v4784, %v4785
    %v4787 = vsel %vm495, %v4652, 0.0
    %v4788 = vadd.f32 %v4786, %v4787
    %v4789 = vsel %vm495, %v4655, 0.0
    %v4790 = vadd.f32 %v4788, %v4789
    %v4791 = vsel %vm495, %v4658, 0.0
    %v4792 = vadd.f32 %v4790, %v4791
    %v4793 = vsel %vm495, %v4661, 0.0
    %v4794 = vadd.f32 %v4792, %v4793
    %v4795 = vsel %vm495, %v4664, 0.0
    %v4796 = vadd.f32 %v4794, %v4795
    %v4797 = vsel %vm495, %v4667, 0.0
    %v4798 = vadd.f32 %v4796, %v4797
    %v4799 = vsel %vm495, %v4670, 0.0
    %v4800 = vadd.f32 %v4798, %v4799
    %v4801 = vsel %vm495, %v4673, 0.0
    %v4802 = vadd.f32 %v4800, %v4801
    %v4803 = vsel %vm495, %v4676, 0.0
    %v4804 = vadd.f32 %v4802, %v4803
    %v4805 = vrot.slane %v4804, 4
    %v4806 = vadd.f32 %v4804, %v4805
    %v4807 = vrot.slane %v4806, 2
    %v4808 = vadd.f32 %v4806, %v4807
    %v4809 = vrot.slane %v4808, 1
    %v4810 = vadd.f32 %v4808, %v4809
    %v4811 = vmul.f32 %v4487, %v4487
    %v4812 = vmul.f32 %v4490, %v4490
    %v4813 = vmul.f32 %v4493, %v4493
    %v4814 = vmul.f32 %v4496, %v4496
    %v4815 = vmul.f32 %v4499, %v4499
    %v4816 = vmul.f32 %v4502, %v4502
    %v4817 = vmul.f32 %v4505, %v4505
    %v4818 = vmul.f32 %v4508, %v4508
    %v4819 = vmul.f32 %v4511, %v4511
    %v4820 = vmul.f32 %v4514, %v4514
    %v4821 = vmul.f32 %v4517, %v4517
    %v4822 = vmul.f32 %v4520, %v4520
    %v4823 = vmul.f32 %v4523, %v4523
    %v4824 = vmul.f32 %v4526, %v4526
    %v4825 = vmul.f32 %v4529, %v4529
    %v4826 = vmul.f32 %v4532, %v4532
    %v4827 = vmul.f32 %v4535, %v4535
    %v4828 = vmul.f32 %v4538, %v4538
    %v4829 = vmul.f32 %v4541, %v4541
    %v4830 = vmul.f32 %v4544, %v4544
    %v4831 = vmul.f32 %v4547, %v4547
    %v4832 = vmul.f32 %v4550, %v4550
    %v4833 = vmul.f32 %v4553, %v4553
    %v4834 = vmul.f32 %v4556, %v4556
    %v4835 = vmul.f32 %v4559, %v4559
    %v4836 = vmul.f32 %v4562, %v4562
    %v4837 = vmul.f32 %v4565, %v4565
    %v4838 = vmul.f32 %v4568, %v4568
    %v4839 = vmul.f32 %v4571, %v4571
    %v4840 = vmul.f32 %v4574, %v4574
    %v4841 = vmul.f32 %v4577, %v4577
    %v4842 = vmul.f32 %v4580, %v4580
    %v4843 = vmul.f32 %v4583, %v4583
    %v4844 = vmul.f32 %v4586, %v4586
    %v4845 = vmul.f32 %v4589, %v4589
    %v4846 = vmul.f32 %v4592, %v4592
    %v4847 = vmul.f32 %v4595, %v4595
    %v4848 = vmul.f32 %v4598, %v4598
    %v4849 = vmul.f32 %v4601, %v4601
    %v4850 = vmul.f32 %v4604, %v4604
    %v4851 = vmul.f32 %v4607, %v4607
    %v4852 = vmul.f32 %v4610, %v4610
    %v4853 = vmul.f32 %v4613, %v4613
    %v4854 = vmul.f32 %v4616, %v4616
    %v4855 = vmul.f32 %v4619, %v4619
    %v4856 = vmul.f32 %v4622, %v4622
    %v4857 = vmul.f32 %v4625, %v4625
    %v4858 = vmul.f32 %v4628, %v4628
    %v4859 = vmul.f32 %v4631, %v4631
    %v4860 = vmul.f32 %v4634, %v4634
    %v4861 = vmul.f32 %v4637, %v4637
    %v4862 = vmul.f32 %v4640, %v4640
    %v4863 = vmul.f32 %v4643, %v4643
    %v4864 = vmul.f32 %v4646, %v4646
    %v4865 = vmul.f32 %v4649, %v4649
    %v4866 = vmul.f32 %v4652, %v4652
    %v4867 = vmul.f32 %v4655, %v4655
    %v4868 = vmul.f32 %v4658, %v4658
    %v4869 = vmul.f32 %v4661, %v4661
    %v4870 = vmul.f32 %v4664, %v4664
    %v4871 = vmul.f32 %v4667, %v4667
    %v4872 = vmul.f32 %v4670, %v4670
    %v4873 = vmul.f32 %v4673, %v4673
    %v4874 = vmul.f32 %v4676, %v4676
    %v4875 = vsel %vm495, %v4811, 0.0
    %v4876 = vsel %vm495, %v4812, 0.0
    %v4877 = vadd.f32 %v4875, %v4876
    %v4878 = vsel %vm495, %v4813, 0.0
    %v4879 = vadd.f32 %v4877, %v4878
    %v4880 = vsel %vm495, %v4814, 0.0
    %v4881 = vadd.f32 %v4879, %v4880
    %v4882 = vsel %vm495, %v4815, 0.0
    %v4883 = vadd.f32 %v4881, %v4882
    %v4884 = vsel %vm495, %v4816, 0.0
    %v4885 = vadd.f32 %v4883, %v4884
    %v4886 = vsel %vm495, %v4817, 0.0
    %v4887 = vadd.f32 %v4885, %v4886
    %v4888 = vsel %vm495, %v4818, 0.0
    %v4889 = vadd.f32 %v4887, %v4888
    %v4890 = vsel %vm495, %v4819, 0.0
    %v4891 = vadd.f32 %v4889, %v4890
    %v4892 = vsel %vm495, %v4820, 0.0
    %v4893 = vadd.f32 %v4891, %v4892
    %v4894 = vsel %vm495, %v4821, 0.0
    %v4895 = vadd.f32 %v4893, %v4894
    %v4896 = vsel %vm495, %v4822, 0.0
    %v4897 = vadd.f32 %v4895, %v4896
    %v4898 = vsel %vm495, %v4823, 0.0
    %v4899 = vadd.f32 %v4897, %v4898
    %v4900 = vsel %vm495, %v4824, 0.0
    %v4901 = vadd.f32 %v4899, %v4900
    %v4902 = vsel %vm495, %v4825, 0.0
    %v4903 = vadd.f32 %v4901, %v4902
    %v4904 = vsel %vm495, %v4826, 0.0
    %v4905 = vadd.f32 %v4903, %v4904
    %v4906 = vsel %vm495, %v4827, 0.0
    %v4907 = vadd.f32 %v4905, %v4906
    %v4908 = vsel %vm495, %v4828, 0.0
    %v4909 = vadd.f32 %v4907, %v4908
    %v4910 = vsel %vm495, %v4829, 0.0
    %v4911 = vadd.f32 %v4909, %v4910
    %v4912 = vsel %vm495, %v4830, 0.0
    %v4913 = vadd.f32 %v4911, %v4912
    %v4914 = vsel %vm495, %v4831, 0.0
    %v4915 = vadd.f32 %v4913, %v4914
    %v4916 = vsel %vm495, %v4832, 0.0
    %v4917 = vadd.f32 %v4915, %v4916
    %v4918 = vsel %vm495, %v4833, 0.0
    %v4919 = vadd.f32 %v4917, %v4918
    %v4920 = vsel %vm495, %v4834, 0.0
    %v4921 = vadd.f32 %v4919, %v4920
    %v4922 = vsel %vm495, %v4835, 0.0
    %v4923 = vadd.f32 %v4921, %v4922
    %v4924 = vsel %vm495, %v4836, 0.0
    %v4925 = vadd.f32 %v4923, %v4924
    %v4926 = vsel %vm495, %v4837, 0.0
    %v4927 = vadd.f32 %v4925, %v4926
    %v4928 = vsel %vm495, %v4838, 0.0
    %v4929 = vadd.f32 %v4927, %v4928
    %v4930 = vsel %vm495, %v4839, 0.0
    %v4931 = vadd.f32 %v4929, %v4930
    %v4932 = vsel %vm495, %v4840, 0.0
    %v4933 = vadd.f32 %v4931, %v4932
    %v4934 = vsel %vm495, %v4841, 0.0
    %v4935 = vadd.f32 %v4933, %v4934
    %v4936 = vsel %vm495, %v4842, 0.0
    %v4937 = vadd.f32 %v4935, %v4936
    %v4938 = vsel %vm495, %v4843, 0.0
    %v4939 = vadd.f32 %v4937, %v4938
    %v4940 = vsel %vm495, %v4844, 0.0
    %v4941 = vadd.f32 %v4939, %v4940
    %v4942 = vsel %vm495, %v4845, 0.0
    %v4943 = vadd.f32 %v4941, %v4942
    %v4944 = vsel %vm495, %v4846, 0.0
    %v4945 = vadd.f32 %v4943, %v4944
    %v4946 = vsel %vm495, %v4847, 0.0
    %v4947 = vadd.f32 %v4945, %v4946
    %v4948 = vsel %vm495, %v4848, 0.0
    %v4949 = vadd.f32 %v4947, %v4948
    %v4950 = vsel %vm495, %v4849, 0.0
    %v4951 = vadd.f32 %v4949, %v4950
    %v4952 = vsel %vm495, %v4850, 0.0
    %v4953 = vadd.f32 %v4951, %v4952
    %v4954 = vsel %vm495, %v4851, 0.0
    %v4955 = vadd.f32 %v4953, %v4954
    %v4956 = vsel %vm495, %v4852, 0.0
    %v4957 = vadd.f32 %v4955, %v4956
    %v4958 = vsel %vm495, %v4853, 0.0
    %v4959 = vadd.f32 %v4957, %v4958
    %v4960 = vsel %vm495, %v4854, 0.0
    %v4961 = vadd.f32 %v4959, %v4960
    %v4962 = vsel %vm495, %v4855, 0.0
    %v4963 = vadd.f32 %v4961, %v4962
    %v4964 = vsel %vm495, %v4856, 0.0
    %v4965 = vadd.f32 %v4963, %v4964
    %v4966 = vsel %vm495, %v4857, 0.0
    %v4967 = vadd.f32 %v4965, %v4966
    %v4968 = vsel %vm495, %v4858, 0.0
    %v4969 = vadd.f32 %v4967, %v4968
    %v4970 = vsel %vm495, %v4859, 0.0
    %v4971 = vadd.f32 %v4969, %v4970
    %v4972 = vsel %vm495, %v4860, 0.0
    %v4973 = vadd.f32 %v4971, %v4972
    %v4974 = vsel %vm495, %v4861, 0.0
    %v4975 = vadd.f32 %v4973, %v4974
    %v4976 = vsel %vm495, %v4862, 0.0
    %v4977 = vadd.f32 %v4975, %v4976
    %v4978 = vsel %vm495, %v4863, 0.0
    %v4979 = vadd.f32 %v4977, %v4978
    %v4980 = vsel %vm495, %v4864, 0.0
    %v4981 = vadd.f32 %v4979, %v4980
    %v4982 = vsel %vm495, %v4865, 0.0
    %v4983 = vadd.f32 %v4981, %v4982
    %v4984 = vsel %vm495, %v4866, 0.0
    %v4985 = vadd.f32 %v4983, %v4984
    %v4986 = vsel %vm495, %v4867, 0.0
    %v4987 = vadd.f32 %v4985, %v4986
    %v4988 = vsel %vm495, %v4868, 0.0
    %v4989 = vadd.f32 %v4987, %v4988
    %v4990 = vsel %vm495, %v4869, 0.0
    %v4991 = vadd.f32 %v4989, %v4990
    %v4992 = vsel %vm495, %v4870, 0.0
    %v4993 = vadd.f32 %v4991, %v4992
    %v4994 = vsel %vm495, %v4871, 0.0
    %v4995 = vadd.f32 %v4993, %v4994
    %v4996 = vsel %vm495, %v4872, 0.0
    %v4997 = vadd.f32 %v4995, %v4996
    %v4998 = vsel %vm495, %v4873, 0.0
    %v4999 = vadd.f32 %v4997, %v4998
    %v5000 = vsel %vm495, %v4874, 0.0
    %v5001 = vadd.f32 %v4999, %v5000
    %v5002 = vrot.slane %v5001, 4
    %v5003 = vadd.f32 %v5001, %v5002
    %v5004 = vrot.slane %v5003, 2
    %v5005 = vadd.f32 %v5003, %v5004
    %v5006 = vrot.slane %v5005, 1
    %v5007 = vadd.f32 %v5005, %v5006
    %v5008 = vmul.f32 %v4810, 0.001953125
    %v5009 = vmul.f32 %v5007, 0.001953125
    %v5010 = vmul.f32 %v5008, %v5008
    %v5011 = vsub.f32 %v5009, %v5010
    %v5012 = vld [vmem:[%s5] sm:$0x1]
    %v5013 = vadd.f32 %v5011, 1e-05
    %v5014 = vrsqrt.pop %v5013
    %v5015 = vmul.f32 %v5014, %v5013
    %v5016 = vmul.f32 %v5015, %v5014
    %v5017 = vmul.f32 0.5, %v5016
    %v5018 = vsub.f32 1.5, %v5017
    %v5019 = vmul.f32 %v5014, %v5018
    %vm5020 = vweird.f32 %v5013
    %vm5021 = vweird.f32 %v5014
    %vm5022 = vmor %vm5020, %vm5021
    %v5023 = vsel %vm5022, %v5014, %v5019
    %v5024 = vmul.f32 %v5012, %v5023
    %v5025 = vld [vmem:[%s6] sm:$0x1]
    %v5026 = vmul.f32 %v5008, %v5024
    %v5027 = vsub.f32 %v5025, %v5026
    %v5029 = vperm.slane %v5024, 0
    %v5031 = vmul.f32 %v4487, %v5029
    %v5032 = vmul.f32 %v4490, %v5029
    %v5033 = vmul.f32 %v4493, %v5029
    %v5034 = vmul.f32 %v4496, %v5029
    %v5035 = vmul.f32 %v4499, %v5029
    %v5036 = vmul.f32 %v4502, %v5029
    %v5037 = vmul.f32 %v4505, %v5029
    %v5038 = vmul.f32 %v4508, %v5029
    %v5039 = vmul.f32 %v4511, %v5029
    %v5040 = vmul.f32 %v4514, %v5029
    %v5041 = vmul.f32 %v4517, %v5029
    %v5042 = vmul.f32 %v4520, %v5029
    %v5043 = vmul.f32 %v4523, %v5029
    %v5044 = vmul.f32 %v4526, %v5029
    %v5045 = vmul.f32 %v4529, %v5029
    %v5046 = vmul.f32 %v4532, %v5029
    %v5047 = vmul.f32 %v4535, %v5029
    %v5048 = vmul.f32 %v4538, %v5029
    %v5049 = vmul.f32 %v4541, %v5029
    %v5050 = vmul.f32 %v4544, %v5029
    %v5051 = vmul.f32 %v4547, %v5029
    %v5052 = vmul.f32 %v4550, %v5029
    %v5053 = vmul.f32 %v4553, %v5029
    %v5054 = vmul.f32 %v4556, %v5029
    %v5055 = vmul.f32 %v4559, %v5029
    %v5056 = vmul.f32 %v4562, %v5029
    %v5057 = vmul.f32 %v4565, %v5029
    %v5058 = vmul.f32 %v4568, %v5029
    %v5059 = vmul.f32 %v4571, %v5029
    %v5060 = vmul.f32 %v4574, %v5029
    %v5061 = vmul.f32 %v4577, %v5029
    %v5062 = vmul.f32 %v4580, %v5029
    %v5063 = vmul.f32 %v4583, %v5029
    %v5064 = vmul.f32 %v4586, %v5029
    %v5065 = vmul.f32 %v4589, %v5029
    %v5066 = vmul.f32 %v4592, %v5029
    %v5067 = vmul.f32 %v4595, %v5029
    %v5068 = vmul.f32 %v4598, %v5029
    %v5069 = vmul.f32 %v4601, %v5029
    %v5070 = vmul.f32 %v4604, %v5029
    %v5071 = vmul.f32 %v4607, %v5029
    %v5072 = vmul.f32 %v4610, %v5029
    %v5073 = vmul.f32 %v4613, %v5029
    %v5074 = vmul.f32 %v4616, %v5029
    %v5075 = vmul.f32 %v4619, %v5029
    %v5076 = vmul.f32 %v4622, %v5029
    %v5077 = vmul.f32 %v4625, %v5029
    %v5078 = vmul.f32 %v4628, %v5029
    %v5079 = vmul.f32 %v4631, %v5029
    %v5080 = vmul.f32 %v4634, %v5029
    %v5081 = vmul.f32 %v4637, %v5029
    %v5082 = vmul.f32 %v4640, %v5029
    %v5083 = vmul.f32 %v4643, %v5029
    %v5084 = vmul.f32 %v4646, %v5029
    %v5085 = vmul.f32 %v4649, %v5029
    %v5086 = vmul.f32 %v4652, %v5029
    %v5087 = vmul.f32 %v4655, %v5029
    %v5088 = vmul.f32 %v4658, %v5029
    %v5089 = vmul.f32 %v4661, %v5029
    %v5090 = vmul.f32 %v4664, %v5029
    %v5091 = vmul.f32 %v4667, %v5029
    %v5092 = vmul.f32 %v4670, %v5029
    %v5093 = vmul.f32 %v4673, %v5029
    %v5094 = vmul.f32 %v4676, %v5029
    %v5096 = vperm.slane %v5027, 0
    %v5098 = vadd.f32 %v5031, %v5096
    %v5099 = vadd.f32 %v5032, %v5096
    %v5100 = vadd.f32 %v5033, %v5096
    %v5101 = vadd.f32 %v5034, %v5096
    %v5102 = vadd.f32 %v5035, %v5096
    %v5103 = vadd.f32 %v5036, %v5096
    %v5104 = vadd.f32 %v5037, %v5096
    %v5105 = vadd.f32 %v5038, %v5096
    %v5106 = vadd.f32 %v5039, %v5096
    %v5107 = vadd.f32 %v5040, %v5096
    %v5108 = vadd.f32 %v5041, %v5096
    %v5109 = vadd.f32 %v5042, %v5096
    %v5110 = vadd.f32 %v5043, %v5096
    %v5111 = vadd.f32 %v5044, %v5096
    %v5112 = vadd.f32 %v5045, %v5096
    %v5113 = vadd.f32 %v5046, %v5096
    %v5114 = vadd.f32 %v5047, %v5096
    %v5115 = vadd.f32 %v5048, %v5096
    %v5116 = vadd.f32 %v5049, %v5096
    %v5117 = vadd.f32 %v5050, %v5096
    %v5118 = vadd.f32 %v5051, %v5096
    %v5119 = vadd.f32 %v5052, %v5096
    %v5120 = vadd.f32 %v5053, %v5096
    %v5121 = vadd.f32 %v5054, %v5096
    %v5122 = vadd.f32 %v5055, %v5096
    %v5123 = vadd.f32 %v5056, %v5096
    %v5124 = vadd.f32 %v5057, %v5096
    %v5125 = vadd.f32 %v5058, %v5096
    %v5126 = vadd.f32 %v5059, %v5096
    %v5127 = vadd.f32 %v5060, %v5096
    %v5128 = vadd.f32 %v5061, %v5096
    %v5129 = vadd.f32 %v5062, %v5096
    %v5130 = vadd.f32 %v5063, %v5096
    %v5131 = vadd.f32 %v5064, %v5096
    %v5132 = vadd.f32 %v5065, %v5096
    %v5133 = vadd.f32 %v5066, %v5096
    %v5134 = vadd.f32 %v5067, %v5096
    %v5135 = vadd.f32 %v5068, %v5096
    %v5136 = vadd.f32 %v5069, %v5096
    %v5137 = vadd.f32 %v5070, %v5096
    %v5138 = vadd.f32 %v5071, %v5096
    %v5139 = vadd.f32 %v5072, %v5096
    %v5140 = vadd.f32 %v5073, %v5096
    %v5141 = vadd.f32 %v5074, %v5096
    %v5142 = vadd.f32 %v5075, %v5096
    %v5143 = vadd.f32 %v5076, %v5096
    %v5144 = vadd.f32 %v5077, %v5096
    %v5145 = vadd.f32 %v5078, %v5096
    %v5146 = vadd.f32 %v5079, %v5096
    %v5147 = vadd.f32 %v5080, %v5096
    %v5148 = vadd.f32 %v5081, %v5096
    %v5149 = vadd.f32 %v5082, %v5096
    %v5150 = vadd.f32 %v5083, %v5096
    %v5151 = vadd.f32 %v5084, %v5096
    %v5152 = vadd.f32 %v5085, %v5096
    %v5153 = vadd.f32 %v5086, %v5096
    %v5154 = vadd.f32 %v5087, %v5096
    %v5155 = vadd.f32 %v5088, %v5096
    %v5156 = vadd.f32 %v5089, %v5096
    %v5157 = vadd.f32 %v5090, %v5096
    %v5158 = vadd.f32 %v5091, %v5096
    %v5159 = vadd.f32 %v5092, %v5096
    %v5160 = vadd.f32 %v5093, %v5096
    %v5161 = vadd.f32 %v5094, %v5096
    %5162 = vxpose.xlu0.b32.start [1/16] %v5098, 128
    %5163 = vxpose.xlu0.b32.cont [2/16] %v5099, 128
    %5164 = vxpose.xlu0.b32.cont [3/16] %v5100, 128
    %5165 = vxpose.xlu0.b32.cont [4/16] %v5101, 128
    %5166 = vxpose.xlu0.b32.cont [5/16] %v5102, 128
    %5167 = vxpose.xlu0.b32.cont [6/16] %v5103, 128
    %5168 = vxpose.xlu0.b32.cont [7/16] %v5104, 128
    %5169 = vxpose.xlu0.b32.cont [8/16] %v5105, 128
    %5170 = vxpose.xlu0.b32.cont [9/16] %v5106, 128
    %5171 = vxpose.xlu0.b32.cont [10/16] %v5107, 128
    %5172 = vxpose.xlu0.b32.cont [11/16] %v5108, 128
    %5173 = vxpose.xlu0.b32.cont [12/16] %v5109, 128
    %5174 = vxpose.xlu0.b32.cont [13/16] %v5110, 128
    %5175 = vxpose.xlu0.b32.cont [14/16] %v5111, 128
    %5176 = vxpose.xlu0.b32.cont [15/16] %v5112, 128
    %5177 = vxpose.xlu0.b32.end [16/16] %v5113, 128
    %v5178 = vpop.trf.xlu0
    %v5179 = vpop.trf.xlu0
    %v5180 = vpop.trf.xlu0
    %v5181 = vpop.trf.xlu0
    %v5182 = vpop.trf.xlu0
    %v5183 = vpop.trf.xlu0
    %v5184 = vpop.trf.xlu0
    %v5185 = vpop.trf.xlu0
    %v5186 = vpop.trf.xlu0
    %v5187 = vpop.trf.xlu0
    %v5188 = vpop.trf.xlu0
    %v5189 = vpop.trf.xlu0
    %v5190 = vpop.trf.xlu0
    %v5191 = vpop.trf.xlu0
    %v5192 = vpop.trf.xlu0
    %v5193 = vpop.trf.xlu0
    %5194 = vxpose.xlu0.b32.start [1/16] %v5114, 128
    %5195 = vxpose.xlu0.b32.cont [2/16] %v5115, 128
    %5196 = vxpose.xlu0.b32.cont [3/16] %v5116, 128
    %5197 = vxpose.xlu0.b32.cont [4/16] %v5117, 128
    %5198 = vxpose.xlu0.b32.cont [5/16] %v5118, 128
    %5199 = vxpose.xlu0.b32.cont [6/16] %v5119, 128
    %5200 = vxpose.xlu0.b32.cont [7/16] %v5120, 128
    %5201 = vxpose.xlu0.b32.cont [8/16] %v5121, 128
    %5202 = vxpose.xlu0.b32.cont [9/16] %v5122, 128
    %5203 = vxpose.xlu0.b32.cont [10/16] %v5123, 128
    %5204 = vxpose.xlu0.b32.cont [11/16] %v5124, 128
    %5205 = vxpose.xlu0.b32.cont [12/16] %v5125, 128
    %5206 = vxpose.xlu0.b32.cont [13/16] %v5126, 128
    %5207 = vxpose.xlu0.b32.cont [14/16] %v5127, 128
    %5208 = vxpose.xlu0.b32.cont [15/16] %v5128, 128
    %5209 = vxpose.xlu0.b32.end [16/16] %v5129, 128
    %v5210 = vpop.trf.xlu0
    %v5211 = vpop.trf.xlu0
    %v5212 = vpop.trf.xlu0
    %v5213 = vpop.trf.xlu0
    %v5214 = vpop.trf.xlu0
    %v5215 = vpop.trf.xlu0
    %v5216 = vpop.trf.xlu0
    %v5217 = vpop.trf.xlu0
    %v5218 = vpop.trf.xlu0
    %v5219 = vpop.trf.xlu0
    %v5220 = vpop.trf.xlu0
    %v5221 = vpop.trf.xlu0
    %v5222 = vpop.trf.xlu0
    %v5223 = vpop.trf.xlu0
    %v5224 = vpop.trf.xlu0
    %v5225 = vpop.trf.xlu0
    %5226 = vst [vmem:[#allocation3] sm:$0xff] %v5178
    %5227 = vst [vmem:[#allocation3 + $0x8] sm:$0xff] %v5210
    %5228 = vst [vmem:[#allocation3 + $0x10] sm:$0xff] %v5179
    %5229 = vst [vmem:[#allocation3 + $0x18] sm:$0xff] %v5211
    %5230 = vst [vmem:[#allocation3 + $0x20] sm:$0xff] %v5180
    %5231 = vst [vmem:[#allocation3 + $0x28] sm:$0xff] %v5212
    %5232 = vst [vmem:[#allocation3 + $0x30] sm:$0xff] %v5181
    %5233 = vst [vmem:[#allocation3 + $0x38] sm:$0xff] %v5213
    %5234 = vxpose.xlu0.b32.start [1/16] %v5130, 128
    %5235 = vxpose.xlu0.b32.cont [2/16] %v5131, 128
    %5236 = vxpose.xlu0.b32.cont [3/16] %v5132, 128
    %5237 = vxpose.xlu0.b32.cont [4/16] %v5133, 128
    %5238 = vxpose.xlu0.b32.cont [5/16] %v5134, 128
    %5239 = vxpose.xlu0.b32.cont [6/16] %v5135, 128
    %5240 = vxpose.xlu0.b32.cont [7/16] %v5136, 128
    %5241 = vxpose.xlu0.b32.cont [8/16] %v5137, 128
    %5242 = vxpose.xlu0.b32.cont [9/16] %v5138, 128
    %5243 = vxpose.xlu0.b32.cont [10/16] %v5139, 128
    %5244 = vxpose.xlu0.b32.cont [11/16] %v5140, 128
    %5245 = vxpose.xlu0.b32.cont [12/16] %v5141, 128
    %5246 = vxpose.xlu0.b32.cont [13/16] %v5142, 128
    %5247 = vxpose.xlu0.b32.cont [14/16] %v5143, 128
    %5248 = vxpose.xlu0.b32.cont [15/16] %v5144, 128
    %5249 = vxpose.xlu0.b32.end [16/16] %v5145, 128
    %v5250 = vpop.trf.xlu0
    %v5251 = vpop.trf.xlu0
    %v5252 = vpop.trf.xlu0
    %v5253 = vpop.trf.xlu0
    %v5254 = vpop.trf.xlu0
    %v5255 = vpop.trf.xlu0
    %v5256 = vpop.trf.xlu0
    %v5257 = vpop.trf.xlu0
    %v5258 = vpop.trf.xlu0
    %v5259 = vpop.trf.xlu0
    %v5260 = vpop.trf.xlu0
    %v5261 = vpop.trf.xlu0
    %v5262 = vpop.trf.xlu0
    %v5263 = vpop.trf.xlu0
    %v5264 = vpop.trf.xlu0
    %v5265 = vpop.trf.xlu0
    %5266 = vxpose.xlu0.b32.start [1/16] %v5146, 128
    %5267 = vxpose.xlu0.b32.cont [2/16] %v5147, 128
    %5268 = vxpose.xlu0.b32.cont [3/16] %v5148, 128
    %5269 = vxpose.xlu0.b32.cont [4/16] %v5149, 128
    %5270 = vxpose.xlu0.b32.cont [5/16] %v5150, 128
    %5271 = vxpose.xlu0.b32.cont [6/16] %v5151, 128
    %5272 = vxpose.xlu0.b32.cont [7/16] %v5152, 128
    %5273 = vxpose.xlu0.b32.cont [8/16] %v5153, 128
    %5274 = vxpose.xlu0.b32.cont [9/16] %v5154, 128
    %5275 = vxpose.xlu0.b32.cont [10/16] %v5155, 128
    %5276 = vxpose.xlu0.b32.cont [11/16] %v5156, 128
    %5277 = vxpose.xlu0.b32.cont [12/16] %v5157, 128
    %5278 = vxpose.xlu0.b32.cont [13/16] %v5158, 128
    %5279 = vxpose.xlu0.b32.cont [14/16] %v5159, 128
    %5280 = vxpose.xlu0.b32.cont [15/16] %v5160, 128
    %5281 = vxpose.xlu0.b32.end [16/16] %v5161, 128
    %v5282 = vpop.trf.xlu0
    %v5283 = vpop.trf.xlu0
    %v5284 = vpop.trf.xlu0
    %v5285 = vpop.trf.xlu0
    %v5286 = vpop.trf.xlu0
    %v5287 = vpop.trf.xlu0
    %v5288 = vpop.trf.xlu0
    %v5289 = vpop.trf.xlu0
    %v5290 = vpop.trf.xlu0
    %v5291 = vpop.trf.xlu0
    %v5292 = vpop.trf.xlu0
    %v5293 = vpop.trf.xlu0
    %v5294 = vpop.trf.xlu0
    %v5295 = vpop.trf.xlu0
    %v5296 = vpop.trf.xlu0
    %v5297 = vpop.trf.xlu0
    %s5298 = scalar_lea.vmem [#allocation3], 64
    %5299 = vst [vmem:[%s5298] sm:$0xff] %v5250
    %5300 = vst [vmem:[%s5298 + $0x8] sm:$0xff] %v5282
    %5301 = vst [vmem:[%s5298 + $0x10] sm:$0xff] %v5251
    %5302 = vst [vmem:[%s5298 + $0x18] sm:$0xff] %v5283
    %5303 = vst [vmem:[%s5298 + $0x20] sm:$0xff] %v5252
    %5304 = vst [vmem:[%s5298 + $0x28] sm:$0xff] %v5284
    %5305 = vst [vmem:[%s5298 + $0x30] sm:$0xff] %v5253
    %5306 = vst [vmem:[%s5298 + $0x38] sm:$0xff] %v5285
    // Predicated region
    $region30: #{tpu_custom_call.1} parent=1 // pred_check
      _
    $region31: #{tpu_custom_call.1} parent=1 // pred_check_branch
      %5308 = sbr.rel (0) target = $region33
    $region32: #{tpu_custom_call.1} parent=1 // pred_region
      %5310 = vsyncadd [#allocation4], 0
      %s5311 = sshll.u32 [#allocation3], 4
      %s5312 = int_to_ptr.vmem [resolvable:$true] %s5311
      %s5313 = sshll.u32 %s7, 4
      %s5314 = int_to_ptr.hbm [resolvable:$true] %s5313
      %5319 = dma.vmem_to_hbm [thread:$0]  %s5312, 2048, %s5314, [#allocation4], 256, 256, 16
    $region33: #{tpu_custom_call.1} parent=1 // pred_fallthru
      _
    // Predicated region
    $region34: #{tpu_custom_call.1} parent=1 // pred_check
      _
    $region35: #{tpu_custom_call.1} parent=1 // pred_check_branch
      %5321 = sbr.rel (0) target = $region37
    $region36: #{tpu_custom_call.1} parent=1 // pred_region
      %5323 = dma.done [#allocation4], 2048
    $region37: #{tpu_custom_call.1} parent=1 // pred_fallthru
      _
    %5324 = vsyncpa [#allocation4], 1

// kernel: tpu_custom_call.1
$region0: #{tpu_custom_call.1}
  #allocation0 [shape = 'u32[]', space=smem, size = 0x4, offset = 0x4, fixed_abs, tag = 'smem constant byte address 0x4 - core index']
  #allocation1 [shape = 'u32[72,128]{1,0:T(1,128)}', space=vmem, size = 0x9000, scoped, tag = 'internal scratch']
  #allocation2 [shape = 'f32[2,18,18,32]{3,2,1,0:T(8,128)}', space=vmem, size = 0x6c000, scoped, tag = 'scratch operand']
  %s0 = inlined_call_operand.vmem [shape: f32[512,16], index: 0, kind: input, shape index: {}]
  %s1 = inlined_call_operand.vmem [shape: f32[16,32], index: 1, kind: input, shape index: {}]
  %s2 = inlined_call_operand.vmem [shape: f32[1,32], index: 2, kind: input, shape index: {}]
  %s3 = inlined_call_operand.vmem [shape: f32[1,32], index: 3, kind: input, shape index: {}]
  %s4 = inlined_call_operand.vmem [shape: f32[288,32], index: 4, kind: input, shape index: {}]
  %s5 = inlined_call_operand.vmem [shape: f32[1,32], index: 5, kind: input, shape index: {}]
  %s6 = inlined_call_operand.vmem [shape: f32[1,32], index: 6, kind: input, shape index: {}]
  %s7 = inlined_call_operand.vmem [shape: f32[2,256,32], index: 7, kind: output, shape index: {}]
  %s8 = sld [smem:[#allocation0]]
  $region38: #{tpu_custom_call.1} parent=0
    _
  %s10 = ssub.s32 1, %s8
  %s11 = scalar_select 0, %s10, %s8
  // Predicated region
  $region2: #{tpu_custom_call.1} parent=0 // pred_check
    _
  $region3: #{tpu_custom_call.1} parent=0 // pred_check_branch
    %13 = sbr.rel (0) target = $region5
  $region4: #{tpu_custom_call.1} parent=0 // pred_region
    _
  $region5: #{tpu_custom_call.1} parent=0 // pred_fallthru
    _
  // Predicated region
  $region6: #{tpu_custom_call.1} parent=0 // pred_check
    _
  $region7: #{tpu_custom_call.1} parent=0 // pred_check_branch
    %15 = sbr.rel (0) target = $region9
  $region8: #{tpu_custom_call.1} parent=0 // pred_region
    _
  $region9: #{tpu_custom_call.1} parent=0 // pred_fallthru
    _
  // Predicated region
  $region10: #{tpu_custom_call.1} parent=0 // pred_check
    _
  $region11: #{tpu_custom_call.1} parent=0 // pred_check_branch
    %17 = sbr.rel (0) target = $region13
  $region12: #{tpu_custom_call.1} parent=0 // pred_region
    _
  $region13: #{tpu_custom_call.1} parent=0 // pred_fallthru
    _
  // Predicated region
  $region14: #{tpu_custom_call.1} parent=0 // pred_check
    _
  $region15: #{tpu_custom_call.1} parent=0 // pred_check_branch
    %19 = sbr.rel (0) target = $region17
  $region16: #{tpu_custom_call.1} parent=0 // pred_region
    _
  $region17: #{tpu_custom_call.1} parent=0 // pred_fallthru
    _
  // Predicated region
  $region18: #{tpu_custom_call.1} parent=0 // pred_check
    _
  $region19: #{tpu_custom_call.1} parent=0 // pred_check_branch
    %21 = sbr.rel (0) target = $region21
  $region20: #{tpu_custom_call.1} parent=0 // pred_region
    _
  $region21: #{tpu_custom_call.1} parent=0 // pred_fallthru
    _
  // Predicated region
  $region22: #{tpu_custom_call.1} parent=0 // pred_check
    _
  $region23: #{tpu_custom_call.1} parent=0 // pred_check_branch
    %23 = sbr.rel (0) target = $region25
  $region24: #{tpu_custom_call.1} parent=0 // pred_region
    _
  $region25: #{tpu_custom_call.1} parent=0 // pred_fallthru
    _
  // Predicated region
  $region26: #{tpu_custom_call.1} parent=0 // pred_check
    _
  $region27: #{tpu_custom_call.1} parent=0 // pred_check_branch
    %25 = sbr.rel (0) target = $region29
  $region28: #{tpu_custom_call.1} parent=0 // pred_region
    _
  $region29: #{tpu_custom_call.1} parent=0 // pred_fallthru
    _
  %v26 = vld [vmem:[%s0] sm:$0xff]
  %v27 = vld [vmem:[%s0 + $0x8] sm:$0xff]
  %v28 = vld [vmem:[%s0 + $0x10] sm:$0xff]
  %v29 = vld [vmem:[%s0 + $0x18] sm:$0xff]
  %v30 = vld [vmem:[%s0 + $0x20] sm:$0xff]
  %v31 = vld [vmem:[%s0 + $0x28] sm:$0xff]
  %v32 = vld [vmem:[%s0 + $0x30] sm:$0xff]
  %v33 = vld [vmem:[%s0 + $0x38] sm:$0xff]
  %v34 = vld [vmem:[%s0 + $0x40] sm:$0xff]
  %v35 = vld [vmem:[%s0 + $0x48] sm:$0xff]
  %v36 = vld [vmem:[%s0 + $0x50] sm:$0xff]
  %v37 = vld [vmem:[%s0 + $0x58] sm:$0xff]
  %v38 = vld [vmem:[%s0 + $0x60] sm:$0xff]
  %v39 = vld [vmem:[%s0 + $0x68] sm:$0xff]
  %v40 = vld [vmem:[%s0 + $0x70] sm:$0xff]
  %v41 = vld [vmem:[%s0 + $0x78] sm:$0xff]
  %v42 = vld [vmem:[%s0 + $0x80] sm:$0xff]
  %v43 = vld [vmem:[%s0 + $0x88] sm:$0xff]
  %v44 = vld [vmem:[%s0 + $0x90] sm:$0xff]
  %v45 = vld [vmem:[%s0 + $0x98] sm:$0xff]
  %v46 = vld [vmem:[%s0 + $0xa0] sm:$0xff]
  %v47 = vld [vmem:[%s0 + $0xa8] sm:$0xff]
  %v48 = vld [vmem:[%s0 + $0xb0] sm:$0xff]
  %v49 = vld [vmem:[%s0 + $0xb8] sm:$0xff]
  %v50 = vld [vmem:[%s0 + $0xc0] sm:$0xff]
  %v51 = vld [vmem:[%s0 + $0xc8] sm:$0xff]
  %v52 = vld [vmem:[%s0 + $0xd0] sm:$0xff]
  %v53 = vld [vmem:[%s0 + $0xd8] sm:$0xff]
  %v54 = vld [vmem:[%s0 + $0xe0] sm:$0xff]
  %v55 = vld [vmem:[%s0 + $0xe8] sm:$0xff]
  %v56 = vld [vmem:[%s0 + $0xf0] sm:$0xff]
  %v57 = vld [vmem:[%s0 + $0xf8] sm:$0xff]
  %v58 = vld [vmem:[%s0 + $0x100] sm:$0xff]
  %v59 = vld [vmem:[%s0 + $0x108] sm:$0xff]
  %v60 = vld [vmem:[%s0 + $0x110] sm:$0xff]
  %v61 = vld [vmem:[%s0 + $0x118] sm:$0xff]
  %v62 = vld [vmem:[%s0 + $0x120] sm:$0xff]
  %v63 = vld [vmem:[%s0 + $0x128] sm:$0xff]
  %v64 = vld [vmem:[%s0 + $0x130] sm:$0xff]
  %v65 = vld [vmem:[%s0 + $0x138] sm:$0xff]
  %v66 = vld [vmem:[%s0 + $0x140] sm:$0xff]
  %v67 = vld [vmem:[%s0 + $0x148] sm:$0xff]
  %v68 = vld [vmem:[%s0 + $0x150] sm:$0xff]
  %v69 = vld [vmem:[%s0 + $0x158] sm:$0xff]
  %v70 = vld [vmem:[%s0 + $0x160] sm:$0xff]
  %v71 = vld [vmem:[%s0 + $0x168] sm:$0xff]
  %v72 = vld [vmem:[%s0 + $0x170] sm:$0xff]
  %v73 = vld [vmem:[%s0 + $0x178] sm:$0xff]
  %v74 = vld [vmem:[%s0 + $0x180] sm:$0xff]
  %v75 = vld [vmem:[%s0 + $0x188] sm:$0xff]
  %v76 = vld [vmem:[%s0 + $0x190] sm:$0xff]
  %v77 = vld [vmem:[%s0 + $0x198] sm:$0xff]
  %v78 = vld [vmem:[%s0 + $0x1a0] sm:$0xff]
  %v79 = vld [vmem:[%s0 + $0x1a8] sm:$0xff]
  %v80 = vld [vmem:[%s0 + $0x1b0] sm:$0xff]
  %v81 = vld [vmem:[%s0 + $0x1b8] sm:$0xff]
  %v82 = vld [vmem:[%s0 + $0x1c0] sm:$0xff]
  %v83 = vld [vmem:[%s0 + $0x1c8] sm:$0xff]
  %v84 = vld [vmem:[%s0 + $0x1d0] sm:$0xff]
  %v85 = vld [vmem:[%s0 + $0x1d8] sm:$0xff]
  %v86 = vld [vmem:[%s0 + $0x1e0] sm:$0xff]
  %v87 = vld [vmem:[%s0 + $0x1e8] sm:$0xff]
  %v88 = vld [vmem:[%s0 + $0x1f0] sm:$0xff]
  %v89 = vld [vmem:[%s0 + $0x1f8] sm:$0xff]
  %v90 = vld [vmem:[%s1] sm:$0xff]
  %v91 = vld [vmem:[%s1 + $0x8] sm:$0xff]
  %vm92 = vcmask 130048
  %v94 = vsel %vm92, %v26, 0
  %v97 = vsel %vm92, %v27, 0
  %v100 = vsel %vm92, %v28, 0
  %v103 = vsel %vm92, %v29, 0
  %v106 = vsel %vm92, %v30, 0
  %v109 = vsel %vm92, %v31, 0
  %v112 = vsel %vm92, %v32, 0
  %v115 = vsel %vm92, %v33, 0
  %v118 = vsel %vm92, %v34, 0
  %v121 = vsel %vm92, %v35, 0
  %v124 = vsel %vm92, %v36, 0
  %v127 = vsel %vm92, %v37, 0
  %v130 = vsel %vm92, %v38, 0
  %v133 = vsel %vm92, %v39, 0
  %v136 = vsel %vm92, %v40, 0
  %v139 = vsel %vm92, %v41, 0
  %v142 = vsel %vm92, %v42, 0
  %v145 = vsel %vm92, %v43, 0
  %v148 = vsel %vm92, %v44, 0
  %v151 = vsel %vm92, %v45, 0
  %v154 = vsel %vm92, %v46, 0
  %v157 = vsel %vm92, %v47, 0
  %v160 = vsel %vm92, %v48, 0
  %v163 = vsel %vm92, %v49, 0
  %v166 = vsel %vm92, %v50, 0
  %v169 = vsel %vm92, %v51, 0
  %v172 = vsel %vm92, %v52, 0
  %v175 = vsel %vm92, %v53, 0
  %v178 = vsel %vm92, %v54, 0
  %v181 = vsel %vm92, %v55, 0
  %v184 = vsel %vm92, %v56, 0
  %v187 = vsel %vm92, %v57, 0
  %v190 = vsel %vm92, %v58, 0
  %v193 = vsel %vm92, %v59, 0
  %v196 = vsel %vm92, %v60, 0
  %v199 = vsel %vm92, %v61, 0
  %v202 = vsel %vm92, %v62, 0
  %v205 = vsel %vm92, %v63, 0
  %v208 = vsel %vm92, %v64, 0
  %v211 = vsel %vm92, %v65, 0
  %v214 = vsel %vm92, %v66, 0
  %v217 = vsel %vm92, %v67, 0
  %v220 = vsel %vm92, %v68, 0
  %v223 = vsel %vm92, %v69, 0
  %v226 = vsel %vm92, %v70, 0
  %v229 = vsel %vm92, %v71, 0
  %v232 = vsel %vm92, %v72, 0
  %v235 = vsel %vm92, %v73, 0
  %v238 = vsel %vm92, %v74, 0
  %v241 = vsel %vm92, %v75, 0
  %v244 = vsel %vm92, %v76, 0
  %v247 = vsel %vm92, %v77, 0
  %v250 = vsel %vm92, %v78, 0
  %v253 = vsel %vm92, %v79, 0
  %v256 = vsel %vm92, %v80, 0
  %v259 = vsel %vm92, %v81, 0
  %v262 = vsel %vm92, %v82, 0
  %v265 = vsel %vm92, %v83, 0
  %v268 = vsel %vm92, %v84, 0
  %v271 = vsel %vm92, %v85, 0
  %v274 = vsel %vm92, %v86, 0
  %v277 = vsel %vm92, %v87, 0
  %v280 = vsel %vm92, %v88, 0
  %v283 = vsel %vm92, %v89, 0
  %285 = vmatpush.msra.mxu0 0.0
  %286 = vmatpush.msra.mxu0 0.0
  %287 = vmatpush.msra.mxu0 0.0
  %288 = vmatpush.msra.mxu0 0.0
  %289 = vmatpush.msra.mxu0 0.0
  %290 = vmatpush.msra.mxu0 0.0
  %291 = vmatpush.msra.mxu0 0.0
  %292 = vmatpush.msra.mxu0 0.0
  %293 = vmatpush.msra.mxu0 0.0
  %294 = vmatpush.msra.mxu0 0.0
  %295 = vmatpush.msra.mxu0 0.0
  %296 = vmatpush.msra.mxu0 0.0
  %297 = vmatpush.msra.mxu0 0.0
  %298 = vmatpush.msra.mxu0 0.0
  %299 = vmatpush.msra.mxu0 %v91
  %300 = vmatpush.msra.mxu0 %v90
  %301 = vmatmul.f32.gmra.mxu0 %v94
  %v302 = vpop.f32.mrf.mxu0
  %v303 = vadd.f32 0.0, %v302
  %304 = vmatmul.f32.gmra.mxu0 %v97
  %v305 = vpop.f32.mrf.mxu0
  %v306 = vadd.f32 0.0, %v305
  %307 = vmatmul.f32.gmra.mxu0 %v100
  %v308 = vpop.f32.mrf.mxu0
  %v309 = vadd.f32 0.0, %v308
  %310 = vmatmul.f32.gmra.mxu0 %v103
  %v311 = vpop.f32.mrf.mxu0
  %v312 = vadd.f32 0.0, %v311
  %313 = vmatmul.f32.gmra.mxu0 %v106
  %v314 = vpop.f32.mrf.mxu0
  %v315 = vadd.f32 0.0, %v314
  %316 = vmatmul.f32.gmra.mxu0 %v109
  %v317 = vpop.f32.mrf.mxu0
  %v318 = vadd.f32 0.0, %v317
  %319 = vmatmul.f32.gmra.mxu0 %v112
  %v320 = vpop.f32.mrf.mxu0
  %v321 = vadd.f32 0.0, %v320
  %322 = vmatmul.f32.gmra.mxu0 %v115
  %v323 = vpop.f32.mrf.mxu0
  %v324 = vadd.f32 0.0, %v323
  %325 = vmatmul.f32.gmra.mxu0 %v118
  %v326 = vpop.f32.mrf.mxu0
  %v327 = vadd.f32 0.0, %v326
  %328 = vmatmul.f32.gmra.mxu0 %v121
  %v329 = vpop.f32.mrf.mxu0
  %v330 = vadd.f32 0.0, %v329
  %331 = vmatmul.f32.gmra.mxu0 %v124
  %v332 = vpop.f32.mrf.mxu0
  %v333 = vadd.f32 0.0, %v332
  %334 = vmatmul.f32.gmra.mxu0 %v127
  %v335 = vpop.f32.mrf.mxu0
  %v336 = vadd.f32 0.0, %v335
  %337 = vmatmul.f32.gmra.mxu0 %v130
  %v338 = vpop.f32.mrf.mxu0
  %v339 = vadd.f32 0.0, %v338
  %340 = vmatmul.f32.gmra.mxu0 %v133
  %v341 = vpop.f32.mrf.mxu0
  %v342 = vadd.f32 0.0, %v341
  %343 = vmatmul.f32.gmra.mxu0 %v136
  %v344 = vpop.f32.mrf.mxu0
  %v345 = vadd.f32 0.0, %v344
  %346 = vmatmul.f32.gmra.mxu0 %v139
  %v347 = vpop.f32.mrf.mxu0
  %v348 = vadd.f32 0.0, %v347
  %349 = vmatmul.f32.gmra.mxu0 %v142
  %v350 = vpop.f32.mrf.mxu0
  %v351 = vadd.f32 0.0, %v350
  %352 = vmatmul.f32.gmra.mxu0 %v145
  %v353 = vpop.f32.mrf.mxu0
  %v354 = vadd.f32 0.0, %v353
  %355 = vmatmul.f32.gmra.mxu0 %v148
  %v356 = vpop.f32.mrf.mxu0
  %v357 = vadd.f32 0.0, %v356
  %358 = vmatmul.f32.gmra.mxu0 %v151
  %v359 = vpop.f32.mrf.mxu0
  %v360 = vadd.f32 0.0, %v359
  %361 = vmatmul.f32.gmra.mxu0 %v154
  %v362 = vpop.f32.mrf.mxu0
  %v363 = vadd.f32 0.0, %v362
  %364 = vmatmul.f32.gmra.mxu0 %v157
  %v365 = vpop.f32.mrf.mxu0
  %v366 = vadd.f32 0.0, %v365
  %367 = vmatmul.f32.gmra.mxu0 %v160
  %v368 = vpop.f32.mrf.mxu0
  %v369 = vadd.f32 0.0, %v368
  %370 = vmatmul.f32.gmra.mxu0 %v163
  %v371 = vpop.f32.mrf.mxu0
  %v372 = vadd.f32 0.0, %v371
  %373 = vmatmul.f32.gmra.mxu0 %v166
  %v374 = vpop.f32.mrf.mxu0
  %v375 = vadd.f32 0.0, %v374
  %376 = vmatmul.f32.gmra.mxu0 %v169
  %v377 = vpop.f32.mrf.mxu0
  %v378 = vadd.f32 0.0, %v377
  %379 = vmatmul.f32.gmra.mxu0 %v172
  %v380 = vpop.f32.mrf.mxu0
  %v381 = vadd.f32 0.0, %v380
  %382 = vmatmul.f32.gmra.mxu0 %v175
  %v383 = vpop.f32.mrf.mxu0
  %v384 = vadd.f32 0.0, %v383
  %385 = vmatmul.f32.gmra.mxu0 %v178
  %v386 = vpop.f32.mrf.mxu0
  %v387 = vadd.f32 0.0, %v386
  %388 = vmatmul.f32.gmra.mxu0 %v181
  %v389 = vpop.f32.mrf.mxu0
  %v390 = vadd.f32 0.0, %v389
  %391 = vmatmul.f32.gmra.mxu0 %v184
  %v392 = vpop.f32.mrf.mxu0
  %v393 = vadd.f32 0.0, %v392
  %394 = vmatmul.f32.gmra.mxu0 %v187
  %v395 = vpop.f32.mrf.mxu0
  %v396 = vadd.f32 0.0, %v395
  %397 = vmatmul.f32.gmra.mxu0 %v190
  %v398 = vpop.f32.mrf.mxu0
  %v399 = vadd.f32 0.0, %v398
  %400 = vmatmul.f32.gmra.mxu0 %v193
  %v401 = vpop.f32.mrf.mxu0
  %v402 = vadd.f32 0.0, %v401
  %403 = vmatmul.f32.gmra.mxu0 %v196
  %v404 = vpop.f32.mrf.mxu0
  %v405 = vadd.f32 0.0, %v404
  %406 = vmatmul.f32.gmra.mxu0 %v199
  %v407 = vpop.f32.mrf.mxu0
  %v408 = vadd.f32 0.0, %v407
  %409 = vmatmul.f32.gmra.mxu0 %v202
  %v410 = vpop.f32.mrf.mxu0
  %v411 = vadd.f32 0.0, %v410
  %412 = vmatmul.f32.gmra.mxu0 %v205
  %v413 = vpop.f32.mrf.mxu0
  %v414 = vadd.f32 0.0, %v413
  %415 = vmatmul.f32.gmra.mxu0 %v208
  %v416 = vpop.f32.mrf.mxu0
  %v417 = vadd.f32 0.0, %v416
  %418 = vmatmul.f32.gmra.mxu0 %v211
  %v419 = vpop.f32.mrf.mxu0
  %v420 = vadd.f32 0.0, %v419
  %421 = vmatmul.f32.gmra.mxu0 %v214
  %v422 = vpop.f32.mrf.mxu0
  %v423 = vadd.f32 0.0, %v422
  %424 = vmatmul.f32.gmra.mxu0 %v217
  %v425 = vpop.f32.mrf.mxu0
  %v426 = vadd.f32 0.0, %v425
  %427 = vmatmul.f32.gmra.mxu0 %v220
  %v428 = vpop.f32.mrf.mxu0
  %v429 = vadd.f32 0.0, %v428
  %430 = vmatmul.f32.gmra.mxu0 %v223
  %v431 = vpop.f32.mrf.mxu0
  %v432 = vadd.f32 0.0, %v431
  %433 = vmatmul.f32.gmra.mxu0 %v226
  %v434 = vpop.f32.mrf.mxu0
  %v435 = vadd.f32 0.0, %v434
  %436 = vmatmul.f32.gmra.mxu0 %v229
  %v437 = vpop.f32.mrf.mxu0
  %v438 = vadd.f32 0.0, %v437
  %439 = vmatmul.f32.gmra.mxu0 %v232
  %v440 = vpop.f32.mrf.mxu0
  %v441 = vadd.f32 0.0, %v440
  %442 = vmatmul.f32.gmra.mxu0 %v235
  %v443 = vpop.f32.mrf.mxu0
  %v444 = vadd.f32 0.0, %v443
  %445 = vmatmul.f32.gmra.mxu0 %v238
  %v446 = vpop.f32.mrf.mxu0
  %v447 = vadd.f32 0.0, %v446
  %448 = vmatmul.f32.gmra.mxu0 %v241
  %v449 = vpop.f32.mrf.mxu0
  %v450 = vadd.f32 0.0, %v449
  %451 = vmatmul.f32.gmra.mxu0 %v244
  %v452 = vpop.f32.mrf.mxu0
  %v453 = vadd.f32 0.0, %v452
  %454 = vmatmul.f32.gmra.mxu0 %v247
  %v455 = vpop.f32.mrf.mxu0
  %v456 = vadd.f32 0.0, %v455
  %457 = vmatmul.f32.gmra.mxu0 %v250
  %v458 = vpop.f32.mrf.mxu0
  %v459 = vadd.f32 0.0, %v458
  %460 = vmatmul.f32.gmra.mxu0 %v253
  %v461 = vpop.f32.mrf.mxu0
  %v462 = vadd.f32 0.0, %v461
  %463 = vmatmul.f32.gmra.mxu0 %v256
  %v464 = vpop.f32.mrf.mxu0
  %v465 = vadd.f32 0.0, %v464
  %466 = vmatmul.f32.gmra.mxu0 %v259
  %v467 = vpop.f32.mrf.mxu0
  %v468 = vadd.f32 0.0, %v467
  %469 = vmatmul.f32.gmra.mxu0 %v262
  %v470 = vpop.f32.mrf.mxu0
  %v471 = vadd.f32 0.0, %v470
  %472 = vmatmul.f32.gmra.mxu0 %v265
  %v473 = vpop.f32.mrf.mxu0
  %v474 = vadd.f32 0.0, %v473
  %475 = vmatmul.f32.gmra.mxu0 %v268
  %v476 = vpop.f32.mrf.mxu0
  %v477 = vadd.f32 0.0, %v476
  %478 = vmatmul.f32.gmra.mxu0 %v271
  %v479 = vpop.f32.mrf.mxu0
  %v480 = vadd.f32 0.0, %v479
  %481 = vmatmul.f32.gmra.mxu0 %v274
  %v482 = vpop.f32.mrf.mxu0
  %v483 = vadd.f32 0.0, %v482
  %484 = vmatmul.f32.gmra.mxu0 %v277
  %v485 = vpop.f32.mrf.mxu0
  %v486 = vadd.f32 0.0, %v485
  %487 = vmatmul.f32.gmra.mxu0 %v280
  %v488 = vpop.f32.mrf.mxu0
  %v489 = vadd.f32 0.0, %v488
  %490 = vmatmul.f32.gmra.mxu0 %v283
  %v491 = vpop.f32.mrf.mxu0
  %v492 = vadd.f32 0.0, %v491
  %493 = vdwg.mxu0
  %vm494 = vcmask 261120
  %v495 = vsel %vm494, %v303, 0.0
  %v496 = vsel %vm494, %v306, 0.0
  %v497 = vadd.f32 %v495, %v496
  %v498 = vsel %vm494, %v309, 0.0
  %v499 = vadd.f32 %v497, %v498
  %v500 = vsel %vm494, %v312, 0.0
  %v501 = vadd.f32 %v499, %v500
  %v502 = vsel %vm494, %v315, 0.0
  %v503 = vadd.f32 %v501, %v502
  %v504 = vsel %vm494, %v318, 0.0
  %v505 = vadd.f32 %v503, %v504
  %v506 = vsel %vm494, %v321, 0.0
  %v507 = vadd.f32 %v505, %v506
  %v508 = vsel %vm494, %v324, 0.0
  %v509 = vadd.f32 %v507, %v508
  %v510 = vsel %vm494, %v327, 0.0
  %v511 = vadd.f32 %v509, %v510
  %v512 = vsel %vm494, %v330, 0.0
  %v513 = vadd.f32 %v511, %v512
  %v514 = vsel %vm494, %v333, 0.0
  %v515 = vadd.f32 %v513, %v514
  %v516 = vsel %vm494, %v336, 0.0
  %v517 = vadd.f32 %v515, %v516
  %v518 = vsel %vm494, %v339, 0.0
  %v519 = vadd.f32 %v517, %v518
  %v520 = vsel %vm494, %v342, 0.0
  %v521 = vadd.f32 %v519, %v520
  %v522 = vsel %vm494, %v345, 0.0
  %v523 = vadd.f32 %v521, %v522
  %v524 = vsel %vm494, %v348, 0.0
  %v525 = vadd.f32 %v523, %v524
  %v526 = vsel %vm494, %v351, 0.0
  %v527 = vadd.f32 %v525, %v526
  %v528 = vsel %vm494, %v354, 0.0
  %v529 = vadd.f32 %v527, %v528
  %v530 = vsel %vm494, %v357, 0.0
  %v531 = vadd.f32 %v529, %v530
  %v532 = vsel %vm494, %v360, 0.0
  %v533 = vadd.f32 %v531, %v532
  %v534 = vsel %vm494, %v363, 0.0
  %v535 = vadd.f32 %v533, %v534
  %v536 = vsel %vm494, %v366, 0.0
  %v537 = vadd.f32 %v535, %v536
  %v538 = vsel %vm494, %v369, 0.0
  %v539 = vadd.f32 %v537, %v538
  %v540 = vsel %vm494, %v372, 0.0
  %v541 = vadd.f32 %v539, %v540
  %v542 = vsel %vm494, %v375, 0.0
  %v543 = vadd.f32 %v541, %v542
  %v544 = vsel %vm494, %v378, 0.0
  %v545 = vadd.f32 %v543, %v544
  %v546 = vsel %vm494, %v381, 0.0
  %v547 = vadd.f32 %v545, %v546
  %v548 = vsel %vm494, %v384, 0.0
  %v549 = vadd.f32 %v547, %v548
  %v550 = vsel %vm494, %v387, 0.0
  %v551 = vadd.f32 %v549, %v550
  %v552 = vsel %vm494, %v390, 0.0
  %v553 = vadd.f32 %v551, %v552
  %v554 = vsel %vm494, %v393, 0.0
  %v555 = vadd.f32 %v553, %v554
  %v556 = vsel %vm494, %v396, 0.0
  %v557 = vadd.f32 %v555, %v556
  %v558 = vsel %vm494, %v399, 0.0
  %v559 = vadd.f32 %v557, %v558
  %v560 = vsel %vm494, %v402, 0.0
  %v561 = vadd.f32 %v559, %v560
  %v562 = vsel %vm494, %v405, 0.0
  %v563 = vadd.f32 %v561, %v562
  %v564 = vsel %vm494, %v408, 0.0
  %v565 = vadd.f32 %v563, %v564
  %v566 = vsel %vm494, %v411, 0.0
  %v567 = vadd.f32 %v565, %v566
  %v568 = vsel %vm494, %v414, 0.0
  %v569 = vadd.f32 %v567, %v568
  %v570 = vsel %vm494, %v417, 0.0
  %v571 = vadd.f32 %v569, %v570
  %v572 = vsel %vm494, %v420, 0.0
  %v573 = vadd.f32 %v571, %v572
  %v574 = vsel %vm494, %v423, 0.0
  %v575 = vadd.f32 %v573, %v574
  %v576 = vsel %vm494, %v426, 0.0
  %v577 = vadd.f32 %v575, %v576
  %v578 = vsel %vm494, %v429, 0.0
  %v579 = vadd.f32 %v577, %v578
  %v580 = vsel %vm494, %v432, 0.0
  %v581 = vadd.f32 %v579, %v580
  %v582 = vsel %vm494, %v435, 0.0
  %v583 = vadd.f32 %v581, %v582
  %v584 = vsel %vm494, %v438, 0.0
  %v585 = vadd.f32 %v583, %v584
  %v586 = vsel %vm494, %v441, 0.0
  %v587 = vadd.f32 %v585, %v586
  %v588 = vsel %vm494, %v444, 0.0
  %v589 = vadd.f32 %v587, %v588
  %v590 = vsel %vm494, %v447, 0.0
  %v591 = vadd.f32 %v589, %v590
  %v592 = vsel %vm494, %v450, 0.0
  %v593 = vadd.f32 %v591, %v592
  %v594 = vsel %vm494, %v453, 0.0
  %v595 = vadd.f32 %v593, %v594
  %v596 = vsel %vm494, %v456, 0.0
  %v597 = vadd.f32 %v595, %v596
  %v598 = vsel %vm494, %v459, 0.0
  %v599 = vadd.f32 %v597, %v598
  %v600 = vsel %vm494, %v462, 0.0
  %v601 = vadd.f32 %v599, %v600
  %v602 = vsel %vm494, %v465, 0.0
  %v603 = vadd.f32 %v601, %v602
  %v604 = vsel %vm494, %v468, 0.0
  %v605 = vadd.f32 %v603, %v604
  %v606 = vsel %vm494, %v471, 0.0
  %v607 = vadd.f32 %v605, %v606
  %v608 = vsel %vm494, %v474, 0.0
  %v609 = vadd.f32 %v607, %v608
  %v610 = vsel %vm494, %v477, 0.0
  %v611 = vadd.f32 %v609, %v610
  %v612 = vsel %vm494, %v480, 0.0
  %v613 = vadd.f32 %v611, %v612
  %v614 = vsel %vm494, %v483, 0.0
  %v615 = vadd.f32 %v613, %v614
  %v616 = vsel %vm494, %v486, 0.0
  %v617 = vadd.f32 %v615, %v616
  %v618 = vsel %vm494, %v489, 0.0
  %v619 = vadd.f32 %v617, %v618
  %v620 = vsel %vm494, %v492, 0.0
  %v621 = vadd.f32 %v619, %v620
  %v622 = vrot.slane %v621, 4
  %v623 = vadd.f32 %v621, %v622
  %v624 = vrot.slane %v623, 2
  %v625 = vadd.f32 %v623, %v624
  %v626 = vrot.slane %v625, 1
  %v627 = vadd.f32 %v625, %v626
  %v628 = vmul.f32 %v303, %v303
  %v629 = vmul.f32 %v306, %v306
  %v630 = vmul.f32 %v309, %v309
  %v631 = vmul.f32 %v312, %v312
  %v632 = vmul.f32 %v315, %v315
  %v633 = vmul.f32 %v318, %v318
  %v634 = vmul.f32 %v321, %v321
  %v635 = vmul.f32 %v324, %v324
  %v636 = vmul.f32 %v327, %v327
  %v637 = vmul.f32 %v330, %v330
  %v638 = vmul.f32 %v333, %v333
  %v639 = vmul.f32 %v336, %v336
  %v640 = vmul.f32 %v339, %v339
  %v641 = vmul.f32 %v342, %v342
  %v642 = vmul.f32 %v345, %v345
  %v643 = vmul.f32 %v348, %v348
  %v644 = vmul.f32 %v351, %v351
  %v645 = vmul.f32 %v354, %v354
  %v646 = vmul.f32 %v357, %v357
  %v647 = vmul.f32 %v360, %v360
  %v648 = vmul.f32 %v363, %v363
  %v649 = vmul.f32 %v366, %v366
  %v650 = vmul.f32 %v369, %v369
  %v651 = vmul.f32 %v372, %v372
  %v652 = vmul.f32 %v375, %v375
  %v653 = vmul.f32 %v378, %v378
  %v654 = vmul.f32 %v381, %v381
  %v655 = vmul.f32 %v384, %v384
  %v656 = vmul.f32 %v387, %v387
  %v657 = vmul.f32 %v390, %v390
  %v658 = vmul.f32 %v393, %v393
  %v659 = vmul.f32 %v396, %v396
  %v660 = vmul.f32 %v399, %v399
  %v661 = vmul.f32 %v402, %v402
  %v662 = vmul.f32 %v405, %v405
  %v663 = vmul.f32 %v408, %v408
  %v664 = vmul.f32 %v411, %v411
  %v665 = vmul.f32 %v414, %v414
  %v666 = vmul.f32 %v417, %v417
  %v667 = vmul.f32 %v420, %v420
  %v668 = vmul.f32 %v423, %v423
  %v669 = vmul.f32 %v426, %v426
  %v670 = vmul.f32 %v429, %v429
  %v671 = vmul.f32 %v432, %v432
  %v672 = vmul.f32 %v435, %v435
  %v673 = vmul.f32 %v438, %v438
  %v674 = vmul.f32 %v441, %v441
  %v675 = vmul.f32 %v444, %v444
  %v676 = vmul.f32 %v447, %v447
  %v677 = vmul.f32 %v450, %v450
  %v678 = vmul.f32 %v453, %v453
  %v679 = vmul.f32 %v456, %v456
  %v680 = vmul.f32 %v459, %v459
  %v681 = vmul.f32 %v462, %v462
  %v682 = vmul.f32 %v465, %v465
  %v683 = vmul.f32 %v468, %v468
  %v684 = vmul.f32 %v471, %v471
  %v685 = vmul.f32 %v474, %v474
  %v686 = vmul.f32 %v477, %v477
  %v687 = vmul.f32 %v480, %v480
  %v688 = vmul.f32 %v483, %v483
  %v689 = vmul.f32 %v486, %v486
  %v690 = vmul.f32 %v489, %v489
  %v691 = vmul.f32 %v492, %v492
  %v692 = vsel %vm494, %v628, 0.0
  %v693 = vsel %vm494, %v629, 0.0
  %v694 = vadd.f32 %v692, %v693
  %v695 = vsel %vm494, %v630, 0.0
  %v696 = vadd.f32 %v694, %v695
  %v697 = vsel %vm494, %v631, 0.0
  %v698 = vadd.f32 %v696, %v697
  %v699 = vsel %vm494, %v632, 0.0
  %v700 = vadd.f32 %v698, %v699
  %v701 = vsel %vm494, %v633, 0.0
  %v702 = vadd.f32 %v700, %v701
  %v703 = vsel %vm494, %v634, 0.0
  %v704 = vadd.f32 %v702, %v703
  %v705 = vsel %vm494, %v635, 0.0
  %v706 = vadd.f32 %v704, %v705
  %v707 = vsel %vm494, %v636, 0.0
  %v708 = vadd.f32 %v706, %v707
  %v709 = vsel %vm494, %v637, 0.0
  %v710 = vadd.f32 %v708, %v709
  %v711 = vsel %vm494, %v638, 0.0
  %v712 = vadd.f32 %v710, %v711
  %v713 = vsel %vm494, %v639, 0.0
  %v714 = vadd.f32 %v712, %v713
  %v715 = vsel %vm494, %v640, 0.0
  %v716 = vadd.f32 %v714, %v715
  %v717 = vsel %vm494, %v641, 0.0
  %v718 = vadd.f32 %v716, %v717
  %v719 = vsel %vm494, %v642, 0.0
  %v720 = vadd.f32 %v718, %v719
  %v721 = vsel %vm494, %v643, 0.0
  %v722 = vadd.f32 %v720, %v721
  %v723 = vsel %vm494, %v644, 0.0
  %v724 = vadd.f32 %v722, %v723
  %v725 = vsel %vm494, %v645, 0.0
  %v726 = vadd.f32 %v724, %v725
  %v727 = vsel %vm494, %v646, 0.0
  %v728 = vadd.f32 %v726, %v727
  %v729 = vsel %vm494, %v647, 0.0
  %v730 = vadd.f32 %v728, %v729
  %v731 = vsel %vm494, %v648, 0.0
  %v732 = vadd.f32 %v730, %v731
  %v733 = vsel %vm494, %v649, 0.0
  %v734 = vadd.f32 %v732, %v733
  %v735 = vsel %vm494, %v650, 0.0
  %v736 = vadd.f32 %v734, %v735
  %v737 = vsel %vm494, %v651, 0.0
  %v738 = vadd.f32 %v736, %v737
  %v739 = vsel %vm494, %v652, 0.0
  %v740 = vadd.f32 %v738, %v739
  %v741 = vsel %vm494, %v653, 0.0
  %v742 = vadd.f32 %v740, %v741
  %v743 = vsel %vm494, %v654, 0.0
  %v744 = vadd.f32 %v742, %v743
  %v745 = vsel %vm494, %v655, 0.0
  %v746 = vadd.f32 %v744, %v745
  %v747 = vsel %vm494, %v656, 0.0
  %v748 = vadd.f32 %v746, %v747
  %v749 = vsel %vm494, %v657, 0.0
  %v750 = vadd.f32 %v748, %v749
  %v751 = vsel %vm494, %v658, 0.0
  %v752 = vadd.f32 %v750, %v751
  %v753 = vsel %vm494, %v659, 0.0
  %v754 = vadd.f32 %v752, %v753
  %v755 = vsel %vm494, %v660, 0.0
  %v756 = vadd.f32 %v754, %v755
  %v757 = vsel %vm494, %v661, 0.0
  %v758 = vadd.f32 %v756, %v757
  %v759 = vsel %vm494, %v662, 0.0
  %v760 = vadd.f32 %v758, %v759
  %v761 = vsel %vm494, %v663, 0.0
  %v762 = vadd.f32 %v760, %v761
  %v763 = vsel %vm494, %v664, 0.0
  %v764 = vadd.f32 %v762, %v763
  %v765 = vsel %vm494, %v665, 0.0
  %v766 = vadd.f32 %v764, %v765
  %v767 = vsel %vm494, %v666, 0.0
  %v768 = vadd.f32 %v766, %v767
  %v769 = vsel %vm494, %v667, 0.0
  %v770 = vadd.f32 %v768, %v769
  %v771 = vsel %vm494, %v668, 0.0
  %v772 = vadd.f32 %v770, %v771
  %v773 = vsel %vm494, %v669, 0.0
  %v774 = vadd.f32 %v772, %v773
  %v775 = vsel %vm494, %v670, 0.0
  %v776 = vadd.f32 %v774, %v775
  %v777 = vsel %vm494, %v671, 0.0
  %v778 = vadd.f32 %v776, %v777
  %v779 = vsel %vm494, %v672, 0.0
  %v780 = vadd.f32 %v778, %v779
  %v781 = vsel %vm494, %v673, 0.0
  %v782 = vadd.f32 %v780, %v781
  %v783 = vsel %vm494, %v674, 0.0
  %v784 = vadd.f32 %v782, %v783
  %v785 = vsel %vm494, %v675, 0.0
  %v786 = vadd.f32 %v784, %v785
  %v787 = vsel %vm494, %v676, 0.0
  %v788 = vadd.f32 %v786, %v787
  %v789 = vsel %vm494, %v677, 0.0
  %v790 = vadd.f32 %v788, %v789
  %v791 = vsel %vm494, %v678, 0.0
  %v792 = vadd.f32 %v790, %v791
  %v793 = vsel %vm494, %v679, 0.0
  %v794 = vadd.f32 %v792, %v793
  %v795 = vsel %vm494, %v680, 0.0
  %v796 = vadd.f32 %v794, %v795
  %v797 = vsel %vm494, %v681, 0.0
  %v798 = vadd.f32 %v796, %v797
  %v799 = vsel %vm494, %v682, 0.0
  %v800 = vadd.f32 %v798, %v799
  %v801 = vsel %vm494, %v683, 0.0
  %v802 = vadd.f32 %v800, %v801
  %v803 = vsel %vm494, %v684, 0.0
  %v804 = vadd.f32 %v802, %v803
  %v805 = vsel %vm494, %v685, 0.0
  %v806 = vadd.f32 %v804, %v805
  %v807 = vsel %vm494, %v686, 0.0
  %v808 = vadd.f32 %v806, %v807
  %v809 = vsel %vm494, %v687, 0.0
  %v810 = vadd.f32 %v808, %v809
  %v811 = vsel %vm494, %v688, 0.0
  %v812 = vadd.f32 %v810, %v811
  %v813 = vsel %vm494, %v689, 0.0
  %v814 = vadd.f32 %v812, %v813
  %v815 = vsel %vm494, %v690, 0.0
  %v816 = vadd.f32 %v814, %v815
  %v817 = vsel %vm494, %v691, 0.0
  %v818 = vadd.f32 %v816, %v817
  %v819 = vrot.slane %v818, 4
  %v820 = vadd.f32 %v818, %v819
  %v821 = vrot.slane %v820, 2
  %v822 = vadd.f32 %v820, %v821
  %v823 = vrot.slane %v822, 1
  %v824 = vadd.f32 %v822, %v823
  %v825 = vmul.f32 %v627, 0.001953125
  %v826 = vmul.f32 %v824, 0.001953125
  %v827 = vmul.f32 %v825, %v825
  %v828 = vsub.f32 %v826, %v827
  %v829 = vld [vmem:[%s2] sm:$0x1]
  %v830 = vadd.f32 %v828, 1e-05
  %v831 = vrsqrt.pop %v830
  %v832 = vmul.f32 %v831, %v830
  %v833 = vmul.f32 %v832, %v831
  %v834 = vmul.f32 0.5, %v833
  %v835 = vsub.f32 1.5, %v834
  %v836 = vmul.f32 %v831, %v835
  %vm837 = vweird.f32 %v830
  %vm838 = vweird.f32 %v831
  %vm839 = vmor %vm837, %vm838
  %v840 = vsel %vm839, %v831, %v836
  %v841 = vmul.f32 %v829, %v840
  %v842 = vld [vmem:[%s3] sm:$0x1]
  %v843 = vmul.f32 %v825, %v841
  %v844 = vsub.f32 %v842, %v843
  %v846 = vperm.slane %v841, 0
  %v848 = vmul.f32 %v303, %v846
  %v849 = vmul.f32 %v306, %v846
  %v850 = vmul.f32 %v309, %v846
  %v851 = vmul.f32 %v312, %v846
  %v852 = vmul.f32 %v315, %v846
  %v853 = vmul.f32 %v318, %v846
  %v854 = vmul.f32 %v321, %v846
  %v855 = vmul.f32 %v324, %v846
  %v856 = vmul.f32 %v327, %v846
  %v857 = vmul.f32 %v330, %v846
  %v858 = vmul.f32 %v333, %v846
  %v859 = vmul.f32 %v336, %v846
  %v860 = vmul.f32 %v339, %v846
  %v861 = vmul.f32 %v342, %v846
  %v862 = vmul.f32 %v345, %v846
  %v863 = vmul.f32 %v348, %v846
  %v864 = vmul.f32 %v351, %v846
  %v865 = vmul.f32 %v354, %v846
  %v866 = vmul.f32 %v357, %v846
  %v867 = vmul.f32 %v360, %v846
  %v868 = vmul.f32 %v363, %v846
  %v869 = vmul.f32 %v366, %v846
  %v870 = vmul.f32 %v369, %v846
  %v871 = vmul.f32 %v372, %v846
  %v872 = vmul.f32 %v375, %v846
  %v873 = vmul.f32 %v378, %v846
  %v874 = vmul.f32 %v381, %v846
  %v875 = vmul.f32 %v384, %v846
  %v876 = vmul.f32 %v387, %v846
  %v877 = vmul.f32 %v390, %v846
  %v878 = vmul.f32 %v393, %v846
  %v879 = vmul.f32 %v396, %v846
  %v880 = vmul.f32 %v399, %v846
  %v881 = vmul.f32 %v402, %v846
  %v882 = vmul.f32 %v405, %v846
  %v883 = vmul.f32 %v408, %v846
  %v884 = vmul.f32 %v411, %v846
  %v885 = vmul.f32 %v414, %v846
  %v886 = vmul.f32 %v417, %v846
  %v887 = vmul.f32 %v420, %v846
  %v888 = vmul.f32 %v423, %v846
  %v889 = vmul.f32 %v426, %v846
  %v890 = vmul.f32 %v429, %v846
  %v891 = vmul.f32 %v432, %v846
  %v892 = vmul.f32 %v435, %v846
  %v893 = vmul.f32 %v438, %v846
  %v894 = vmul.f32 %v441, %v846
  %v895 = vmul.f32 %v444, %v846
  %v896 = vmul.f32 %v447, %v846
  %v897 = vmul.f32 %v450, %v846
  %v898 = vmul.f32 %v453, %v846
  %v899 = vmul.f32 %v456, %v846
  %v900 = vmul.f32 %v459, %v846
  %v901 = vmul.f32 %v462, %v846
  %v902 = vmul.f32 %v465, %v846
  %v903 = vmul.f32 %v468, %v846
  %v904 = vmul.f32 %v471, %v846
  %v905 = vmul.f32 %v474, %v846
  %v906 = vmul.f32 %v477, %v846
  %v907 = vmul.f32 %v480, %v846
  %v908 = vmul.f32 %v483, %v846
  %v909 = vmul.f32 %v486, %v846
  %v910 = vmul.f32 %v489, %v846
  %v911 = vmul.f32 %v492, %v846
  %v913 = vperm.slane %v844, 0
  %v915 = vadd.f32 %v848, %v913
  %v916 = vadd.f32 %v849, %v913
  %v917 = vadd.f32 %v850, %v913
  %v918 = vadd.f32 %v851, %v913
  %v919 = vadd.f32 %v852, %v913
  %v920 = vadd.f32 %v853, %v913
  %v921 = vadd.f32 %v854, %v913
  %v922 = vadd.f32 %v855, %v913
  %v923 = vadd.f32 %v856, %v913
  %v924 = vadd.f32 %v857, %v913
  %v925 = vadd.f32 %v858, %v913
  %v926 = vadd.f32 %v859, %v913
  %v927 = vadd.f32 %v860, %v913
  %v928 = vadd.f32 %v861, %v913
  %v929 = vadd.f32 %v862, %v913
  %v930 = vadd.f32 %v863, %v913
  %v931 = vadd.f32 %v864, %v913
  %v932 = vadd.f32 %v865, %v913
  %v933 = vadd.f32 %v866, %v913
  %v934 = vadd.f32 %v867, %v913
  %v935 = vadd.f32 %v868, %v913
  %v936 = vadd.f32 %v869, %v913
  %v937 = vadd.f32 %v870, %v913
  %v938 = vadd.f32 %v871, %v913
  %v939 = vadd.f32 %v872, %v913
  %v940 = vadd.f32 %v873, %v913
  %v941 = vadd.f32 %v874, %v913
  %v942 = vadd.f32 %v875, %v913
  %v943 = vadd.f32 %v876, %v913
  %v944 = vadd.f32 %v877, %v913
  %v945 = vadd.f32 %v878, %v913
  %v946 = vadd.f32 %v879, %v913
  %v947 = vadd.f32 %v880, %v913
  %v948 = vadd.f32 %v881, %v913
  %v949 = vadd.f32 %v882, %v913
  %v950 = vadd.f32 %v883, %v913
  %v951 = vadd.f32 %v884, %v913
  %v952 = vadd.f32 %v885, %v913
  %v953 = vadd.f32 %v886, %v913
  %v954 = vadd.f32 %v887, %v913
  %v955 = vadd.f32 %v888, %v913
  %v956 = vadd.f32 %v889, %v913
  %v957 = vadd.f32 %v890, %v913
  %v958 = vadd.f32 %v891, %v913
  %v959 = vadd.f32 %v892, %v913
  %v960 = vadd.f32 %v893, %v913
  %v961 = vadd.f32 %v894, %v913
  %v962 = vadd.f32 %v895, %v913
  %v963 = vadd.f32 %v896, %v913
  %v964 = vadd.f32 %v897, %v913
  %v965 = vadd.f32 %v898, %v913
  %v966 = vadd.f32 %v899, %v913
  %v967 = vadd.f32 %v900, %v913
  %v968 = vadd.f32 %v901, %v913
  %v969 = vadd.f32 %v902, %v913
  %v970 = vadd.f32 %v903, %v913
  %v971 = vadd.f32 %v904, %v913
  %v972 = vadd.f32 %v905, %v913
  %v973 = vadd.f32 %v906, %v913
  %v974 = vadd.f32 %v907, %v913
  %v975 = vadd.f32 %v908, %v913
  %v976 = vadd.f32 %v909, %v913
  %v977 = vadd.f32 %v910, %v913
  %v978 = vadd.f32 %v911, %v913
  %vm979 = vcmp.ge.f32.partialorder %v915, 0.0
  %vm980 = vcmp.ge.f32.partialorder %v916, 0.0
  %vm981 = vcmp.ge.f32.partialorder %v917, 0.0
  %vm982 = vcmp.ge.f32.partialorder %v918, 0.0
  %vm983 = vcmp.ge.f32.partialorder %v919, 0.0
  %vm984 = vcmp.ge.f32.partialorder %v920, 0.0
  %vm985 = vcmp.ge.f32.partialorder %v921, 0.0
  %vm986 = vcmp.ge.f32.partialorder %v922, 0.0
  %vm987 = vcmp.ge.f32.partialorder %v923, 0.0
  %vm988 = vcmp.ge.f32.partialorder %v924, 0.0
  %vm989 = vcmp.ge.f32.partialorder %v925, 0.0
  %vm990 = vcmp.ge.f32.partialorder %v926, 0.0
  %vm991 = vcmp.ge.f32.partialorder %v927, 0.0
  %vm992 = vcmp.ge.f32.partialorder %v928, 0.0
  %vm993 = vcmp.ge.f32.partialorder %v929, 0.0
  %vm994 = vcmp.ge.f32.partialorder %v930, 0.0
  %vm995 = vcmp.ge.f32.partialorder %v931, 0.0
  %vm996 = vcmp.ge.f32.partialorder %v932, 0.0
  %vm997 = vcmp.ge.f32.partialorder %v933, 0.0
  %vm998 = vcmp.ge.f32.partialorder %v934, 0.0
  %vm999 = vcmp.ge.f32.partialorder %v935, 0.0
  %vm1000 = vcmp.ge.f32.partialorder %v936, 0.0
  %vm1001 = vcmp.ge.f32.partialorder %v937, 0.0
  %vm1002 = vcmp.ge.f32.partialorder %v938, 0.0
  %vm1003 = vcmp.ge.f32.partialorder %v939, 0.0
  %vm1004 = vcmp.ge.f32.partialorder %v940, 0.0
  %vm1005 = vcmp.ge.f32.partialorder %v941, 0.0
  %vm1006 = vcmp.ge.f32.partialorder %v942, 0.0
  %vm1007 = vcmp.ge.f32.partialorder %v943, 0.0
  %vm1008 = vcmp.ge.f32.partialorder %v944, 0.0
  %vm1009 = vcmp.ge.f32.partialorder %v945, 0.0
  %vm1010 = vcmp.ge.f32.partialorder %v946, 0.0
  %vm1011 = vcmp.ge.f32.partialorder %v947, 0.0
  %vm1012 = vcmp.ge.f32.partialorder %v948, 0.0
  %vm1013 = vcmp.ge.f32.partialorder %v949, 0.0
  %vm1014 = vcmp.ge.f32.partialorder %v950, 0.0
  %vm1015 = vcmp.ge.f32.partialorder %v951, 0.0
  %vm1016 = vcmp.ge.f32.partialorder %v952, 0.0
  %vm1017 = vcmp.ge.f32.partialorder %v953, 0.0
  %vm1018 = vcmp.ge.f32.partialorder %v954, 0.0
  %vm1019 = vcmp.ge.f32.partialorder %v955, 0.0
  %vm1020 = vcmp.ge.f32.partialorder %v956, 0.0
  %vm1021 = vcmp.ge.f32.partialorder %v957, 0.0
  %vm1022 = vcmp.ge.f32.partialorder %v958, 0.0
  %vm1023 = vcmp.ge.f32.partialorder %v959, 0.0
  %vm1024 = vcmp.ge.f32.partialorder %v960, 0.0
  %vm1025 = vcmp.ge.f32.partialorder %v961, 0.0
  %vm1026 = vcmp.ge.f32.partialorder %v962, 0.0
  %vm1027 = vcmp.ge.f32.partialorder %v963, 0.0
  %vm1028 = vcmp.ge.f32.partialorder %v964, 0.0
  %vm1029 = vcmp.ge.f32.partialorder %v965, 0.0
  %vm1030 = vcmp.ge.f32.partialorder %v966, 0.0
  %vm1031 = vcmp.ge.f32.partialorder %v967, 0.0
  %vm1032 = vcmp.ge.f32.partialorder %v968, 0.0
  %vm1033 = vcmp.ge.f32.partialorder %v969, 0.0
  %vm1034 = vcmp.ge.f32.partialorder %v970, 0.0
  %vm1035 = vcmp.ge.f32.partialorder %v971, 0.0
  %vm1036 = vcmp.ge.f32.partialorder %v972, 0.0
  %vm1037 = vcmp.ge.f32.partialorder %v973, 0.0
  %vm1038 = vcmp.ge.f32.partialorder %v974, 0.0
  %vm1039 = vcmp.ge.f32.partialorder %v975, 0.0
  %vm1040 = vcmp.ge.f32.partialorder %v976, 0.0
  %vm1041 = vcmp.ge.f32.partialorder %v977, 0.0
  %vm1042 = vcmp.ge.f32.partialorder %v978, 0.0
  %v1043 = vmul.f32 %v915, 0.01
  %v1044 = vmul.f32 %v916, 0.01
  %v1045 = vmul.f32 %v917, 0.01
  %v1046 = vmul.f32 %v918, 0.01
  %v1047 = vmul.f32 %v919, 0.01
  %v1048 = vmul.f32 %v920, 0.01
  %v1049 = vmul.f32 %v921, 0.01
  %v1050 = vmul.f32 %v922, 0.01
  %v1051 = vmul.f32 %v923, 0.01
  %v1052 = vmul.f32 %v924, 0.01
  %v1053 = vmul.f32 %v925, 0.01
  %v1054 = vmul.f32 %v926, 0.01
  %v1055 = vmul.f32 %v927, 0.01
  %v1056 = vmul.f32 %v928, 0.01
  %v1057 = vmul.f32 %v929, 0.01
  %v1058 = vmul.f32 %v930, 0.01
  %v1059 = vmul.f32 %v931, 0.01
  %v1060 = vmul.f32 %v932, 0.01
  %v1061 = vmul.f32 %v933, 0.01
  %v1062 = vmul.f32 %v934, 0.01
  %v1063 = vmul.f32 %v935, 0.01
  %v1064 = vmul.f32 %v936, 0.01
  %v1065 = vmul.f32 %v937, 0.01
  %v1066 = vmul.f32 %v938, 0.01
  %v1067 = vmul.f32 %v939, 0.01
  %v1068 = vmul.f32 %v940, 0.01
  %v1069 = vmul.f32 %v941, 0.01
  %v1070 = vmul.f32 %v942, 0.01
  %v1071 = vmul.f32 %v943, 0.01
  %v1072 = vmul.f32 %v944, 0.01
  %v1073 = vmul.f32 %v945, 0.01
  %v1074 = vmul.f32 %v946, 0.01
  %v1075 = vmul.f32 %v947, 0.01
  %v1076 = vmul.f32 %v948, 0.01
  %v1077 = vmul.f32 %v949, 0.01
  %v1078 = vmul.f32 %v950, 0.01
  %v1079 = vmul.f32 %v951, 0.01
  %v1080 = vmul.f32 %v952, 0.01
  %v1081 = vmul.f32 %v953, 0.01
  %v1082 = vmul.f32 %v954, 0.01
  %v1083 = vmul.f32 %v955, 0.01
  %v1084 = vmul.f32 %v956, 0.01
  %v1085 = vmul.f32 %v957, 0.01
  %v1086 = vmul.f32 %v958, 0.01
  %v1087 = vmul.f32 %v959, 0.01
  %v1088 = vmul.f32 %v960, 0.01
  %v1089 = vmul.f32 %v961, 0.01
  %v1090 = vmul.f32 %v962, 0.01
  %v1091 = vmul.f32 %v963, 0.01
  %v1092 = vmul.f32 %v964, 0.01
  %v1093 = vmul.f32 %v965, 0.01
  %v1094 = vmul.f32 %v966, 0.01
  %v1095 = vmul.f32 %v967, 0.01
  %v1096 = vmul.f32 %v968, 0.01
  %v1097 = vmul.f32 %v969, 0.01
  %v1098 = vmul.f32 %v970, 0.01
  %v1099 = vmul.f32 %v971, 0.01
  %v1100 = vmul.f32 %v972, 0.01
  %v1101 = vmul.f32 %v973, 0.01
  %v1102 = vmul.f32 %v974, 0.01
  %v1103 = vmul.f32 %v975, 0.01
  %v1104 = vmul.f32 %v976, 0.01
  %v1105 = vmul.f32 %v977, 0.01
  %v1106 = vmul.f32 %v978, 0.01
  %v1107 = vsel %vm979, %v915, %v1043
  %v1108 = vsel %vm980, %v916, %v1044
  %v1109 = vsel %vm981, %v917, %v1045
  %v1110 = vsel %vm982, %v918, %v1046
  %v1111 = vsel %vm983, %v919, %v1047
  %v1112 = vsel %vm984, %v920, %v1048
  %v1113 = vsel %vm985, %v921, %v1049
  %v1114 = vsel %vm986, %v922, %v1050
  %v1115 = vsel %vm987, %v923, %v1051
  %v1116 = vsel %vm988, %v924, %v1052
  %v1117 = vsel %vm989, %v925, %v1053
  %v1118 = vsel %vm990, %v926, %v1054
  %v1119 = vsel %vm991, %v927, %v1055
  %v1120 = vsel %vm992, %v928, %v1056
  %v1121 = vsel %vm993, %v929, %v1057
  %v1122 = vsel %vm994, %v930, %v1058
  %v1123 = vsel %vm995, %v931, %v1059
  %v1124 = vsel %vm996, %v932, %v1060
  %v1125 = vsel %vm997, %v933, %v1061
  %v1126 = vsel %vm998, %v934, %v1062
  %v1127 = vsel %vm999, %v935, %v1063
  %v1128 = vsel %vm1000, %v936, %v1064
  %v1129 = vsel %vm1001, %v937, %v1065
  %v1130 = vsel %vm1002, %v938, %v1066
  %v1131 = vsel %vm1003, %v939, %v1067
  %v1132 = vsel %vm1004, %v940, %v1068
  %v1133 = vsel %vm1005, %v941, %v1069
  %v1134 = vsel %vm1006, %v942, %v1070
  %v1135 = vsel %vm1007, %v943, %v1071
  %v1136 = vsel %vm1008, %v944, %v1072
  %v1137 = vsel %vm1009, %v945, %v1073
  %v1138 = vsel %vm1010, %v946, %v1074
  %v1139 = vsel %vm1011, %v947, %v1075
  %v1140 = vsel %vm1012, %v948, %v1076
  %v1141 = vsel %vm1013, %v949, %v1077
  %v1142 = vsel %vm1014, %v950, %v1078
  %v1143 = vsel %vm1015, %v951, %v1079
  %v1144 = vsel %vm1016, %v952, %v1080
  %v1145 = vsel %vm1017, %v953, %v1081
  %v1146 = vsel %vm1018, %v954, %v1082
  %v1147 = vsel %vm1019, %v955, %v1083
  %v1148 = vsel %vm1020, %v956, %v1084
  %v1149 = vsel %vm1021, %v957, %v1085
  %v1150 = vsel %vm1022, %v958, %v1086
  %v1151 = vsel %vm1023, %v959, %v1087
  %v1152 = vsel %vm1024, %v960, %v1088
  %v1153 = vsel %vm1025, %v961, %v1089
  %v1154 = vsel %vm1026, %v962, %v1090
  %v1155 = vsel %vm1027, %v963, %v1091
  %v1156 = vsel %vm1028, %v964, %v1092
  %v1157 = vsel %vm1029, %v965, %v1093
  %v1158 = vsel %vm1030, %v966, %v1094
  %v1159 = vsel %vm1031, %v967, %v1095
  %v1160 = vsel %vm1032, %v968, %v1096
  %v1161 = vsel %vm1033, %v969, %v1097
  %v1162 = vsel %vm1034, %v970, %v1098
  %v1163 = vsel %vm1035, %v971, %v1099
  %v1164 = vsel %vm1036, %v972, %v1100
  %v1165 = vsel %vm1037, %v973, %v1101
  %v1166 = vsel %vm1038, %v974, %v1102
  %v1167 = vsel %vm1039, %v975, %v1103
  %v1168 = vsel %vm1040, %v976, %v1104
  %v1169 = vsel %vm1041, %v977, %v1105
  %v1170 = vsel %vm1042, %v978, %v1106
  %1171 = vst.msk [vmem:[#allocation2] sm:$0xff] %vm494, 0.0
  %1172 = vst.msk [vmem:[#allocation2 + $0x8] sm:$0xff] %vm494, 0.0
  %vm1173 = vcmask 254976
  %1174 = vst.msk [vmem:[#allocation2 + $0x10] sm:$0x3] %vm1173, 0.0
  %1175 = vst.msk [vmem:[#allocation2 + $0x1b0] sm:$0xff] %vm494, 0.0
  %1176 = vst.msk [vmem:[#allocation2 + $0x1b8] sm:$0xff] %vm494, 0.0
  %1177 = vst.msk [vmem:[#allocation2 + $0x1c0] sm:$0x3] %vm1173, 0.0
  %s1178 = scalar_lea.vmem [#allocation2], 408
  %1179 = vst.msk [vmem:[%s1178] sm:$0xff] %vm494, 0.0
  %1180 = vst.msk [vmem:[%s1178 + $0x8] sm:$0xff] %vm494, 0.0
  %1181 = vst.msk [vmem:[%s1178 + $0x10] sm:$0x3] %vm1173, 0.0
  %1182 = vst.msk [vmem:[%s1178 + $0x1b0] sm:$0xff] %vm494, 0.0
  %1183 = vst.msk [vmem:[%s1178 + $0x1b8] sm:$0xff] %vm494, 0.0
  %1184 = vst.msk [vmem:[%s1178 + $0x1c0] sm:$0x3] %vm1173, 0.0
  %vm1185 = vcmask 253952
  %1186 = vst.msk [vmem:[#allocation2] sm:$0x1] %vm1185, 0.0
  %1187 = vst.msk [vmem:[#allocation2 + $0x18] sm:$0x1] %vm1185, 0.0
  %1188 = vst.msk [vmem:[#allocation2 + $0x30] sm:$0x1] %vm1185, 0.0
  %1189 = vst.msk [vmem:[#allocation2 + $0x48] sm:$0x1] %vm1185, 0.0
  %1190 = vst.msk [vmem:[#allocation2 + $0x60] sm:$0x1] %vm1185, 0.0
  %1191 = vst.msk [vmem:[#allocation2 + $0x78] sm:$0x1] %vm1185, 0.0
  %1192 = vst.msk [vmem:[#allocation2 + $0x90] sm:$0x1] %vm1185, 0.0
  %1193 = vst.msk [vmem:[#allocation2 + $0xa8] sm:$0x1] %vm1185, 0.0
  %1194 = vst.msk [vmem:[#allocation2 + $0xc0] sm:$0x1] %vm1185, 0.0
  %1195 = vst.msk [vmem:[#allocation2 + $0xd8] sm:$0x1] %vm1185, 0.0
  %1196 = vst.msk [vmem:[#allocation2 + $0xf0] sm:$0x1] %vm1185, 0.0
  %1197 = vst.msk [vmem:[#allocation2 + $0x108] sm:$0x1] %vm1185, 0.0
  %1198 = vst.msk [vmem:[#allocation2 + $0x120] sm:$0x1] %vm1185, 0.0
  %1199 = vst.msk [vmem:[#allocation2 + $0x138] sm:$0x1] %vm1185, 0.0
  %1200 = vst.msk [vmem:[#allocation2 + $0x150] sm:$0x1] %vm1185, 0.0
  %1201 = vst.msk [vmem:[#allocation2 + $0x168] sm:$0x1] %vm1185, 0.0
  %1202 = vst.msk [vmem:[#allocation2 + $0x180] sm:$0x1] %vm1185, 0.0
  %1203 = vst.msk [vmem:[#allocation2 + $0x198] sm:$0x1] %vm1185, 0.0
  %1204 = vst.msk [vmem:[#allocation2 + $0x1b0] sm:$0x1] %vm1185, 0.0
  %1205 = vst.msk [vmem:[#allocation2 + $0x1c8] sm:$0x1] %vm1185, 0.0
  %1206 = vst.msk [vmem:[#allocation2 + $0x1e0] sm:$0x1] %vm1185, 0.0
  %1207 = vst.msk [vmem:[#allocation2 + $0x1f8] sm:$0x1] %vm1185, 0.0
  %1208 = vst.msk [vmem:[#allocation2 + $0x210] sm:$0x1] %vm1185, 0.0
  %1209 = vst.msk [vmem:[#allocation2 + $0x228] sm:$0x1] %vm1185, 0.0
  %1210 = vst.msk [vmem:[#allocation2 + $0x240] sm:$0x1] %vm1185, 0.0
  %1211 = vst.msk [vmem:[#allocation2 + $0x258] sm:$0x1] %vm1185, 0.0
  %1212 = vst.msk [vmem:[#allocation2 + $0x270] sm:$0x1] %vm1185, 0.0
  %1213 = vst.msk [vmem:[#allocation2 + $0x288] sm:$0x1] %vm1185, 0.0
  %1214 = vst.msk [vmem:[#allocation2 + $0x2a0] sm:$0x1] %vm1185, 0.0
  %1215 = vst.msk [vmem:[#allocation2 + $0x2b8] sm:$0x1] %vm1185, 0.0
  %1216 = vst.msk [vmem:[#allocation2 + $0x2d0] sm:$0x1] %vm1185, 0.0
  %1217 = vst.msk [vmem:[#allocation2 + $0x2e8] sm:$0x1] %vm1185, 0.0
  %1218 = vst.msk [vmem:[#allocation2 + $0x300] sm:$0x1] %vm1185, 0.0
  %1219 = vst.msk [vmem:[#allocation2 + $0x318] sm:$0x1] %vm1185, 0.0
  %1220 = vst.msk [vmem:[#allocation2 + $0x330] sm:$0x1] %vm1185, 0.0
  %1221 = vst.msk [vmem:[#allocation2 + $0x348] sm:$0x1] %vm1185, 0.0
  %1222 = vst.msk [vmem:[#allocation2 + $0x11] sm:$0x1] %vm1185, 0.0
  %1223 = vst.msk [vmem:[#allocation2 + $0x29] sm:$0x1] %vm1185, 0.0
  %1224 = vst.msk [vmem:[#allocation2 + $0x41] sm:$0x1] %vm1185, 0.0
  %1225 = vst.msk [vmem:[#allocation2 + $0x59] sm:$0x1] %vm1185, 0.0
  %1226 = vst.msk [vmem:[#allocation2 + $0x71] sm:$0x1] %vm1185, 0.0
  %1227 = vst.msk [vmem:[#allocation2 + $0x89] sm:$0x1] %vm1185, 0.0
  %1228 = vst.msk [vmem:[#allocation2 + $0xa1] sm:$0x1] %vm1185, 0.0
  %1229 = vst.msk [vmem:[#allocation2 + $0xb9] sm:$0x1] %vm1185, 0.0
  %1230 = vst.msk [vmem:[#allocation2 + $0xd1] sm:$0x1] %vm1185, 0.0
  %1231 = vst.msk [vmem:[#allocation2 + $0xe9] sm:$0x1] %vm1185, 0.0
  %1232 = vst.msk [vmem:[#allocation2 + $0x101] sm:$0x1] %vm1185, 0.0
  %1233 = vst.msk [vmem:[#allocation2 + $0x119] sm:$0x1] %vm1185, 0.0
  %1234 = vst.msk [vmem:[#allocation2 + $0x131] sm:$0x1] %vm1185, 0.0
  %1235 = vst.msk [vmem:[#allocation2 + $0x149] sm:$0x1] %vm1185, 0.0
  %1236 = vst.msk [vmem:[#allocation2 + $0x161] sm:$0x1] %vm1185, 0.0
  %1237 = vst.msk [vmem:[#allocation2 + $0x179] sm:$0x1] %vm1185, 0.0
  %1238 = vst.msk [vmem:[#allocation2 + $0x191] sm:$0x1] %vm1185, 0.0
  %1239 = vst.msk [vmem:[#allocation2 + $0x1a9] sm:$0x1] %vm1185, 0.0
  %1240 = vst.msk [vmem:[#allocation2 + $0x1c1] sm:$0x1] %vm1185, 0.0
  %1241 = vst.msk [vmem:[#allocation2 + $0x1d9] sm:$0x1] %vm1185, 0.0
  %1242 = vst.msk [vmem:[#allocation2 + $0x1f1] sm:$0x1] %vm1185, 0.0
  %1243 = vst.msk [vmem:[#allocation2 + $0x209] sm:$0x1] %vm1185, 0.0
  %1244 = vst.msk [vmem:[#allocation2 + $0x221] sm:$0x1] %vm1185, 0.0
  %1245 = vst.msk [vmem:[#allocation2 + $0x239] sm:$0x1] %vm1185, 0.0
  %1246 = vst.msk [vmem:[#allocation2 + $0x251] sm:$0x1] %vm1185, 0.0
  %1247 = vst.msk [vmem:[#allocation2 + $0x269] sm:$0x1] %vm1185, 0.0
  %1248 = vst.msk [vmem:[#allocation2 + $0x281] sm:$0x1] %vm1185, 0.0
  %1249 = vst.msk [vmem:[#allocation2 + $0x299] sm:$0x1] %vm1185, 0.0
  %1250 = vst.msk [vmem:[#allocation2 + $0x2b1] sm:$0x1] %vm1185, 0.0
  %1251 = vst.msk [vmem:[#allocation2 + $0x2c9] sm:$0x1] %vm1185, 0.0
  %1252 = vst.msk [vmem:[#allocation2 + $0x2e1] sm:$0x1] %vm1185, 0.0
  %1253 = vst.msk [vmem:[#allocation2 + $0x2f9] sm:$0x1] %vm1185, 0.0
  %1254 = vst.msk [vmem:[#allocation2 + $0x311] sm:$0x1] %vm1185, 0.0
  %1255 = vst.msk [vmem:[#allocation2 + $0x329] sm:$0x1] %vm1185, 0.0
  %1256 = vst.msk [vmem:[#allocation2 + $0x341] sm:$0x1] %vm1185, 0.0
  %1257 = vst.msk [vmem:[#allocation2 + $0x359] sm:$0x1] %vm1185, 0.0
  %s1258 = scalar_lea.vmem [#allocation2], 24
  %1259 = vst.msk [vmem:[%s1258 + $0x1] sm:$0xff] %vm494, %v1107
  %1260 = vst.msk [vmem:[%s1258 + $0x9] sm:$0xff] %vm494, %v1108
  %1261 = vst.msk [vmem:[%s1258 + $0x19] sm:$0xff] %vm494, %v1109
  %1262 = vst.msk [vmem:[%s1258 + $0x21] sm:$0xff] %vm494, %v1110
  %1263 = vst.msk [vmem:[%s1258 + $0x31] sm:$0xff] %vm494, %v1111
  %1264 = vst.msk [vmem:[%s1258 + $0x39] sm:$0xff] %vm494, %v1112
  %1265 = vst.msk [vmem:[%s1258 + $0x49] sm:$0xff] %vm494, %v1113
  %1266 = vst.msk [vmem:[%s1258 + $0x51] sm:$0xff] %vm494, %v1114
  %1267 = vst.msk [vmem:[%s1258 + $0x61] sm:$0xff] %vm494, %v1115
  %1268 = vst.msk [vmem:[%s1258 + $0x69] sm:$0xff] %vm494, %v1116
  %1269 = vst.msk [vmem:[%s1258 + $0x79] sm:$0xff] %vm494, %v1117
  %1270 = vst.msk [vmem:[%s1258 + $0x81] sm:$0xff] %vm494, %v1118
  %1271 = vst.msk [vmem:[%s1258 + $0x91] sm:$0xff] %vm494, %v1119
  %1272 = vst.msk [vmem:[%s1258 + $0x99] sm:$0xff] %vm494, %v1120
  %1273 = vst.msk [vmem:[%s1258 + $0xa9] sm:$0xff] %vm494, %v1121
  %1274 = vst.msk [vmem:[%s1258 + $0xb1] sm:$0xff] %vm494, %v1122
  %1275 = vst.msk [vmem:[%s1258 + $0xc1] sm:$0xff] %vm494, %v1123
  %1276 = vst.msk [vmem:[%s1258 + $0xc9] sm:$0xff] %vm494, %v1124
  %1277 = vst.msk [vmem:[%s1258 + $0xd9] sm:$0xff] %vm494, %v1125
  %1278 = vst.msk [vmem:[%s1258 + $0xe1] sm:$0xff] %vm494, %v1126
  %1279 = vst.msk [vmem:[%s1258 + $0xf1] sm:$0xff] %vm494, %v1127
  %1280 = vst.msk [vmem:[%s1258 + $0xf9] sm:$0xff] %vm494, %v1128
  %1281 = vst.msk [vmem:[%s1258 + $0x109] sm:$0xff] %vm494, %v1129
  %1282 = vst.msk [vmem:[%s1258 + $0x111] sm:$0xff] %vm494, %v1130
  %1283 = vst.msk [vmem:[%s1258 + $0x121] sm:$0xff] %vm494, %v1131
  %1284 = vst.msk [vmem:[%s1258 + $0x129] sm:$0xff] %vm494, %v1132
  %1285 = vst.msk [vmem:[%s1258 + $0x139] sm:$0xff] %vm494, %v1133
  %1286 = vst.msk [vmem:[%s1258 + $0x141] sm:$0xff] %vm494, %v1134
  %1287 = vst.msk [vmem:[%s1258 + $0x151] sm:$0xff] %vm494, %v1135
  %1288 = vst.msk [vmem:[%s1258 + $0x159] sm:$0xff] %vm494, %v1136
  %1289 = vst.msk [vmem:[%s1258 + $0x169] sm:$0xff] %vm494, %v1137
  %1290 = vst.msk [vmem:[%s1258 + $0x171] sm:$0xff] %vm494, %v1138
  %1291 = vst.msk [vmem:[%s1258 + $0x1b1] sm:$0xff] %vm494, %v1139
  %1292 = vst.msk [vmem:[%s1258 + $0x1b9] sm:$0xff] %vm494, %v1140
  %1293 = vst.msk [vmem:[%s1258 + $0x1c9] sm:$0xff] %vm494, %v1141
  %1294 = vst.msk [vmem:[%s1258 + $0x1d1] sm:$0xff] %vm494, %v1142
  %1295 = vst.msk [vmem:[%s1258 + $0x1e1] sm:$0xff] %vm494, %v1143
  %1296 = vst.msk [vmem:[%s1258 + $0x1e9] sm:$0xff] %vm494, %v1144
  %1297 = vst.msk [vmem:[%s1258 + $0x1f9] sm:$0xff] %vm494, %v1145
  %1298 = vst.msk [vmem:[%s1258 + $0x201] sm:$0xff] %vm494, %v1146
  %1299 = vst.msk [vmem:[%s1258 + $0x211] sm:$0xff] %vm494, %v1147
  %1300 = vst.msk [vmem:[%s1258 + $0x219] sm:$0xff] %vm494, %v1148
  %1301 = vst.msk [vmem:[%s1258 + $0x229] sm:$0xff] %vm494, %v1149
  %1302 = vst.msk [vmem:[%s1258 + $0x231] sm:$0xff] %vm494, %v1150
  %1303 = vst.msk [vmem:[%s1258 + $0x241] sm:$0xff] %vm494, %v1151
  %1304 = vst.msk [vmem:[%s1258 + $0x249] sm:$0xff] %vm494, %v1152
  %1305 = vst.msk [vmem:[%s1258 + $0x259] sm:$0xff] %vm494, %v1153
  %1306 = vst.msk [vmem:[%s1258 + $0x261] sm:$0xff] %vm494, %v1154
  %1307 = vst.msk [vmem:[%s1258 + $0x271] sm:$0xff] %vm494, %v1155
  %1308 = vst.msk [vmem:[%s1258 + $0x279] sm:$0xff] %vm494, %v1156
  %1309 = vst.msk [vmem:[%s1258 + $0x289] sm:$0xff] %vm494, %v1157
  %1310 = vst.msk [vmem:[%s1258 + $0x291] sm:$0xff] %vm494, %v1158
  %1311 = vst.msk [vmem:[%s1258 + $0x2a1] sm:$0xff] %vm494, %v1159
  %1312 = vst.msk [vmem:[%s1258 + $0x2a9] sm:$0xff] %vm494, %v1160
  %1313 = vst.msk [vmem:[%s1258 + $0x2b9] sm:$0xff] %vm494, %v1161
  %1314 = vst.msk [vmem:[%s1258 + $0x2c1] sm:$0xff] %vm494, %v1162
  %1315 = vst.msk [vmem:[%s1258 + $0x2d1] sm:$0xff] %vm494, %v1163
  %1316 = vst.msk [vmem:[%s1258 + $0x2d9] sm:$0xff] %vm494, %v1164
  %1317 = vst.msk [vmem:[%s1258 + $0x2e9] sm:$0xff] %vm494, %v1165
  %1318 = vst.msk [vmem:[%s1258 + $0x2f1] sm:$0xff] %vm494, %v1166
  %1319 = vst.msk [vmem:[%s1258 + $0x301] sm:$0xff] %vm494, %v1167
  %1320 = vst.msk [vmem:[%s1258 + $0x309] sm:$0xff] %vm494, %v1168
  %1321 = vst.msk [vmem:[%s1258 + $0x319] sm:$0xff] %vm494, %v1169
  %1322 = vst.msk [vmem:[%s1258 + $0x321] sm:$0xff] %vm494, %v1170
  %v1323 = vld [vmem:[#allocation2] sm:$0xff]
  %v1324 = vld [vmem:[#allocation2 + $0x8] sm:$0xff]
  %v1325 = vld [vmem:[#allocation2 + $0x18] sm:$0xff]
  %v1326 = vld [vmem:[#allocation2 + $0x20] sm:$0xff]
  %v1327 = vld [vmem:[#allocation2 + $0x30] sm:$0xff]
  %v1328 = vld [vmem:[#allocation2 + $0x38] sm:$0xff]
  %v1329 = vld [vmem:[#allocation2 + $0x48] sm:$0xff]
  %v1330 = vld [vmem:[#allocation2 + $0x50] sm:$0xff]
  %v1331 = vld [vmem:[#allocation2 + $0x60] sm:$0xff]
  %v1332 = vld [vmem:[#allocation2 + $0x68] sm:$0xff]
  %v1333 = vld [vmem:[#allocation2 + $0x78] sm:$0xff]
  %v1334 = vld [vmem:[#allocation2 + $0x80] sm:$0xff]
  %v1335 = vld [vmem:[#allocation2 + $0x90] sm:$0xff]
  %v1336 = vld [vmem:[#allocation2 + $0x98] sm:$0xff]
  %v1337 = vld [vmem:[#allocation2 + $0xa8] sm:$0xff]
  %v1338 = vld [vmem:[#allocation2 + $0xb0] sm:$0xff]
  %v1339 = vld [vmem:[#allocation2 + $0xc0] sm:$0xff]
  %v1340 = vld [vmem:[#allocation2 + $0xc8] sm:$0xff]
  %v1341 = vld [vmem:[#allocation2 + $0xd8] sm:$0xff]
  %v1342 = vld [vmem:[#allocation2 + $0xe0] sm:$0xff]
  %v1343 = vld [vmem:[#allocation2 + $0xf0] sm:$0xff]
  %v1344 = vld [vmem:[#allocation2 + $0xf8] sm:$0xff]
  %v1345 = vld [vmem:[#allocation2 + $0x108] sm:$0xff]
  %v1346 = vld [vmem:[#allocation2 + $0x110] sm:$0xff]
  %v1347 = vld [vmem:[#allocation2 + $0x120] sm:$0xff]
  %v1348 = vld [vmem:[#allocation2 + $0x128] sm:$0xff]
  %v1349 = vld [vmem:[#allocation2 + $0x138] sm:$0xff]
  %v1350 = vld [vmem:[#allocation2 + $0x140] sm:$0xff]
  %v1351 = vld [vmem:[#allocation2 + $0x150] sm:$0xff]
  %v1352 = vld [vmem:[#allocation2 + $0x158] sm:$0xff]
  %v1353 = vld [vmem:[#allocation2 + $0x168] sm:$0xff]
  %v1354 = vld [vmem:[#allocation2 + $0x170] sm:$0xff]
  %v1355 = vld [vmem:[#allocation2 + $0x1b0] sm:$0xff]
  %v1356 = vld [vmem:[#allocation2 + $0x1b8] sm:$0xff]
  %v1357 = vld [vmem:[#allocation2 + $0x1c8] sm:$0xff]
  %v1358 = vld [vmem:[#allocation2 + $0x1d0] sm:$0xff]
  %v1359 = vld [vmem:[#allocation2 + $0x1e0] sm:$0xff]
  %v1360 = vld [vmem:[#allocation2 + $0x1e8] sm:$0xff]
  %v1361 = vld [vmem:[#allocation2 + $0x1f8] sm:$0xff]
  %v1362 = vld [vmem:[#allocation2 + $0x200] sm:$0xff]
  %v1363 = vld [vmem:[#allocation2 + $0x210] sm:$0xff]
  %v1364 = vld [vmem:[#allocation2 + $0x218] sm:$0xff]
  %v1365 = vld [vmem:[#allocation2 + $0x228] sm:$0xff]
  %v1366 = vld [vmem:[#allocation2 + $0x230] sm:$0xff]
  %v1367 = vld [vmem:[#allocation2 + $0x240] sm:$0xff]
  %v1368 = vld [vmem:[#allocation2 + $0x248] sm:$0xff]
  %v1369 = vld [vmem:[#allocation2 + $0x258] sm:$0xff]
  %v1370 = vld [vmem:[#allocation2 + $0x260] sm:$0xff]
  %v1371 = vld [vmem:[#allocation2 + $0x270] sm:$0xff]
  %v1372 = vld [vmem:[#allocation2 + $0x278] sm:$0xff]
  %v1373 = vld [vmem:[#allocation2 + $0x288] sm:$0xff]
  %v1374 = vld [vmem:[#allocation2 + $0x290] sm:$0xff]
  %v1375 = vld [vmem:[#allocation2 + $0x2a0] sm:$0xff]
  %v1376 = vld [vmem:[#allocation2 + $0x2a8] sm:$0xff]
  %v1377 = vld [vmem:[#allocation2 + $0x2b8] sm:$0xff]
  %v1378 = vld [vmem:[#allocation2 + $0x2c0] sm:$0xff]
  %v1379 = vld [vmem:[#allocation2 + $0x2d0] sm:$0xff]
  %v1380 = vld [vmem:[#allocation2 + $0x2d8] sm:$0xff]
  %v1381 = vld [vmem:[#allocation2 + $0x2e8] sm:$0xff]
  %v1382 = vld [vmem:[#allocation2 + $0x2f0] sm:$0xff]
  %v1383 = vld [vmem:[#allocation2 + $0x300] sm:$0xff]
  %v1384 = vld [vmem:[#allocation2 + $0x308] sm:$0xff]
  %v1385 = vld [vmem:[#allocation2 + $0x318] sm:$0xff]
  %v1386 = vld [vmem:[#allocation2 + $0x320] sm:$0xff]
  %v1387 = vld [vmem:[#allocation2 + $0x1] sm:$0xff]
  %v1388 = vld [vmem:[#allocation2 + $0x9] sm:$0xff]
  %v1389 = vld [vmem:[#allocation2 + $0x19] sm:$0xff]
  %v1390 = vld [vmem:[#allocation2 + $0x21] sm:$0xff]
  %v1391 = vld [vmem:[#allocation2 + $0x31] sm:$0xff]
  %v1392 = vld [vmem:[#allocation2 + $0x39] sm:$0xff]
  %v1393 = vld [vmem:[#allocation2 + $0x49] sm:$0xff]
  %v1394 = vld [vmem:[#allocation2 + $0x51] sm:$0xff]
  %v1395 = vld [vmem:[#allocation2 + $0x61] sm:$0xff]
  %v1396 = vld [vmem:[#allocation2 + $0x69] sm:$0xff]
  %v1397 = vld [vmem:[#allocation2 + $0x79] sm:$0xff]
  %v1398 = vld [vmem:[#allocation2 + $0x81] sm:$0xff]
  %v1399 = vld [vmem:[#allocation2 + $0x91] sm:$0xff]
  %v1400 = vld [vmem:[#allocation2 + $0x99] sm:$0xff]
  %v1401 = vld [vmem:[#allocation2 + $0xa9] sm:$0xff]
  %v1402 = vld [vmem:[#allocation2 + $0xb1] sm:$0xff]
  %v1403 = vld [vmem:[#allocation2 + $0xc1] sm:$0xff]
  %v1404 = vld [vmem:[#allocation2 + $0xc9] sm:$0xff]
  %v1405 = vld [vmem:[#allocation2 + $0xd9] sm:$0xff]
  %v1406 = vld [vmem:[#allocation2 + $0xe1] sm:$0xff]
  %v1407 = vld [vmem:[#allocation2 + $0xf1] sm:$0xff]
  %v1408 = vld [vmem:[#allocation2 + $0xf9] sm:$0xff]
  %v1409 = vld [vmem:[#allocation2 + $0x109] sm:$0xff]
  %v1410 = vld [vmem:[#allocation2 + $0x111] sm:$0xff]
  %v1411 = vld [vmem:[#allocation2 + $0x121] sm:$0xff]
  %v1412 = vld [vmem:[#allocation2 + $0x129] sm:$0xff]
  %v1413 = vld [vmem:[#allocation2 + $0x139] sm:$0xff]
  %v1414 = vld [vmem:[#allocation2 + $0x141] sm:$0xff]
  %v1415 = vld [vmem:[#allocation2 + $0x151] sm:$0xff]
  %v1416 = vld [vmem:[#allocation2 + $0x159] sm:$0xff]
  %v1417 = vld [vmem:[#allocation2 + $0x169] sm:$0xff]
  %v1418 = vld [vmem:[#allocation2 + $0x171] sm:$0xff]
  %v1419 = vld [vmem:[#allocation2 + $0x1b1] sm:$0xff]
  %v1420 = vld [vmem:[#allocation2 + $0x1b9] sm:$0xff]
  %v1421 = vld [vmem:[#allocation2 + $0x1c9] sm:$0xff]
  %v1422 = vld [vmem:[#allocation2 + $0x1d1] sm:$0xff]
  %v1423 = vld [vmem:[#allocation2 + $0x1e1] sm:$0xff]
  %v1424 = vld [vmem:[#allocation2 + $0x1e9] sm:$0xff]
  %v1425 = vld [vmem:[#allocation2 + $0x1f9] sm:$0xff]
  %v1426 = vld [vmem:[#allocation2 + $0x201] sm:$0xff]
  %v1427 = vld [vmem:[#allocation2 + $0x211] sm:$0xff]
  %v1428 = vld [vmem:[#allocation2 + $0x219] sm:$0xff]
  %v1429 = vld [vmem:[#allocation2 + $0x229] sm:$0xff]
  %v1430 = vld [vmem:[#allocation2 + $0x231] sm:$0xff]
  %v1431 = vld [vmem:[#allocation2 + $0x241] sm:$0xff]
  %v1432 = vld [vmem:[#allocation2 + $0x249] sm:$0xff]
  %v1433 = vld [vmem:[#allocation2 + $0x259] sm:$0xff]
  %v1434 = vld [vmem:[#allocation2 + $0x261] sm:$0xff]
  %v1435 = vld [vmem:[#allocation2 + $0x271] sm:$0xff]
  %v1436 = vld [vmem:[#allocation2 + $0x279] sm:$0xff]
  %v1437 = vld [vmem:[#allocation2 + $0x289] sm:$0xff]
  %v1438 = vld [vmem:[#allocation2 + $0x291] sm:$0xff]
  %v1439 = vld [vmem:[#allocation2 + $0x2a1] sm:$0xff]
  %v1440 = vld [vmem:[#allocation2 + $0x2a9] sm:$0xff]
  %v1441 = vld [vmem:[#allocation2 + $0x2b9] sm:$0xff]
  %v1442 = vld [vmem:[#allocation2 + $0x2c1] sm:$0xff]
  %v1443 = vld [vmem:[#allocation2 + $0x2d1] sm:$0xff]
  %v1444 = vld [vmem:[#allocation2 + $0x2d9] sm:$0xff]
  %v1445 = vld [vmem:[#allocation2 + $0x2e9] sm:$0xff]
  %v1446 = vld [vmem:[#allocation2 + $0x2f1] sm:$0xff]
  %v1447 = vld [vmem:[#allocation2 + $0x301] sm:$0xff]
  %v1448 = vld [vmem:[#allocation2 + $0x309] sm:$0xff]
  %v1449 = vld [vmem:[#allocation2 + $0x319] sm:$0xff]
  %v1450 = vld [vmem:[#allocation2 + $0x321] sm:$0xff]
  %v1451 = vld [vmem:[#allocation2 + $0x2] sm:$0xff]
  %v1452 = vld [vmem:[#allocation2 + $0xa] sm:$0xff]
  %v1453 = vld [vmem:[#allocation2 + $0x1a] sm:$0xff]
  %v1454 = vld [vmem:[#allocation2 + $0x22] sm:$0xff]
  %v1455 = vld [vmem:[#allocation2 + $0x32] sm:$0xff]
  %v1456 = vld [vmem:[#allocation2 + $0x3a] sm:$0xff]
  %v1457 = vld [vmem:[#allocation2 + $0x4a] sm:$0xff]
  %v1458 = vld [vmem:[#allocation2 + $0x52] sm:$0xff]
  %v1459 = vld [vmem:[#allocation2 + $0x62] sm:$0xff]
  %v1460 = vld [vmem:[#allocation2 + $0x6a] sm:$0xff]
  %v1461 = vld [vmem:[#allocation2 + $0x7a] sm:$0xff]
  %v1462 = vld [vmem:[#allocation2 + $0x82] sm:$0xff]
  %v1463 = vld [vmem:[#allocation2 + $0x92] sm:$0xff]
  %v1464 = vld [vmem:[#allocation2 + $0x9a] sm:$0xff]
  %v1465 = vld [vmem:[#allocation2 + $0xaa] sm:$0xff]
  %v1466 = vld [vmem:[#allocation2 + $0xb2] sm:$0xff]
  %v1467 = vld [vmem:[#allocation2 + $0xc2] sm:$0xff]
  %v1468 = vld [vmem:[#allocation2 + $0xca] sm:$0xff]
  %v1469 = vld [vmem:[#allocation2 + $0xda] sm:$0xff]
  %v1470 = vld [vmem:[#allocation2 + $0xe2] sm:$0xff]
  %v1471 = vld [vmem:[#allocation2 + $0xf2] sm:$0xff]
  %v1472 = vld [vmem:[#allocation2 + $0xfa] sm:$0xff]
  %v1473 = vld [vmem:[#allocation2 + $0x10a] sm:$0xff]
  %v1474 = vld [vmem:[#allocation2 + $0x112] sm:$0xff]
  %v1475 = vld [vmem:[#allocation2 + $0x122] sm:$0xff]
  %v1476 = vld [vmem:[#allocation2 + $0x12a] sm:$0xff]
  %v1477 = vld [vmem:[#allocation2 + $0x13a] sm:$0xff]
  %v1478 = vld [vmem:[#allocation2 + $0x142] sm:$0xff]
  %v1479 = vld [vmem:[#allocation2 + $0x152] sm:$0xff]
  %v1480 = vld [vmem:[#allocation2 + $0x15a] sm:$0xff]
  %v1481 = vld [vmem:[#allocation2 + $0x16a] sm:$0xff]
  %v1482 = vld [vmem:[#allocation2 + $0x172] sm:$0xff]
  %v1483 = vld [vmem:[#allocation2 + $0x1b2] sm:$0xff]
  %v1484 = vld [vmem:[#allocation2 + $0x1ba] sm:$0xff]
  %v1485 = vld [vmem:[#allocation2 + $0x1ca] sm:$0xff]
  %v1486 = vld [vmem:[#allocation2 + $0x1d2] sm:$0xff]
  %v1487 = vld [vmem:[#allocation2 + $0x1e2] sm:$0xff]
  %v1488 = vld [vmem:[#allocation2 + $0x1ea] sm:$0xff]
  %v1489 = vld [vmem:[#allocation2 + $0x1fa] sm:$0xff]
  %v1490 = vld [vmem:[#allocation2 + $0x202] sm:$0xff]
  %v1491 = vld [vmem:[#allocation2 + $0x212] sm:$0xff]
  %v1492 = vld [vmem:[#allocation2 + $0x21a] sm:$0xff]
  %v1493 = vld [vmem:[#allocation2 + $0x22a] sm:$0xff]
  %v1494 = vld [vmem:[#allocation2 + $0x232] sm:$0xff]
  %v1495 = vld [vmem:[#allocation2 + $0x242] sm:$0xff]
  %v1496 = vld [vmem:[#allocation2 + $0x24a] sm:$0xff]
  %v1497 = vld [vmem:[#allocation2 + $0x25a] sm:$0xff]
  %v1498 = vld [vmem:[#allocation2 + $0x262] sm:$0xff]
  %v1499 = vld [vmem:[#allocation2 + $0x272] sm:$0xff]
  %v1500 = vld [vmem:[#allocation2 + $0x27a] sm:$0xff]
  %v1501 = vld [vmem:[#allocation2 + $0x28a] sm:$0xff]
  %v1502 = vld [vmem:[#allocation2 + $0x292] sm:$0xff]
  %v1503 = vld [vmem:[#allocation2 + $0x2a2] sm:$0xff]
  %v1504 = vld [vmem:[#allocation2 + $0x2aa] sm:$0xff]
  %v1505 = vld [vmem:[#allocation2 + $0x2ba] sm:$0xff]
  %v1506 = vld [vmem:[#allocation2 + $0x2c2] sm:$0xff]
  %v1507 = vld [vmem:[#allocation2 + $0x2d2] sm:$0xff]
  %v1508 = vld [vmem:[#allocation2 + $0x2da] sm:$0xff]
  %v1509 = vld [vmem:[#allocation2 + $0x2ea] sm:$0xff]
  %v1510 = vld [vmem:[#allocation2 + $0x2f2] sm:$0xff]
  %v1511 = vld [vmem:[#allocation2 + $0x302] sm:$0xff]
  %v1512 = vld [vmem:[#allocation2 + $0x30a] sm:$0xff]
  %v1513 = vld [vmem:[#allocation2 + $0x31a] sm:$0xff]
  %v1514 = vld [vmem:[#allocation2 + $0x322] sm:$0xff]
  %v1515 = vld [vmem:[%s1258] sm:$0xff]
  %v1516 = vld [vmem:[%s1258 + $0x8] sm:$0xff]
  %v1517 = vld [vmem:[%s1258 + $0x18] sm:$0xff]
  %v1518 = vld [vmem:[%s1258 + $0x20] sm:$0xff]
  %v1519 = vld [vmem:[%s1258 + $0x30] sm:$0xff]
  %v1520 = vld [vmem:[%s1258 + $0x38] sm:$0xff]
  %v1521 = vld [vmem:[%s1258 + $0x48] sm:$0xff]
  %v1522 = vld [vmem:[%s1258 + $0x50] sm:$0xff]
  %v1523 = vld [vmem:[%s1258 + $0x60] sm:$0xff]
  %v1524 = vld [vmem:[%s1258 + $0x68] sm:$0xff]
  %v1525 = vld [vmem:[%s1258 + $0x78] sm:$0xff]
  %v1526 = vld [vmem:[%s1258 + $0x80] sm:$0xff]
  %v1527 = vld [vmem:[%s1258 + $0x90] sm:$0xff]
  %v1528 = vld [vmem:[%s1258 + $0x98] sm:$0xff]
  %v1529 = vld [vmem:[%s1258 + $0xa8] sm:$0xff]
  %v1530 = vld [vmem:[%s1258 + $0xb0] sm:$0xff]
  %v1531 = vld [vmem:[%s1258 + $0xc0] sm:$0xff]
  %v1532 = vld [vmem:[%s1258 + $0xc8] sm:$0xff]
  %v1533 = vld [vmem:[%s1258 + $0xd8] sm:$0xff]
  %v1534 = vld [vmem:[%s1258 + $0xe0] sm:$0xff]
  %v1535 = vld [vmem:[%s1258 + $0xf0] sm:$0xff]
  %v1536 = vld [vmem:[%s1258 + $0xf8] sm:$0xff]
  %v1537 = vld [vmem:[%s1258 + $0x108] sm:$0xff]
  %v1538 = vld [vmem:[%s1258 + $0x110] sm:$0xff]
  %v1539 = vld [vmem:[%s1258 + $0x120] sm:$0xff]
  %v1540 = vld [vmem:[%s1258 + $0x128] sm:$0xff]
  %v1541 = vld [vmem:[%s1258 + $0x138] sm:$0xff]
  %v1542 = vld [vmem:[%s1258 + $0x140] sm:$0xff]
  %v1543 = vld [vmem:[%s1258 + $0x150] sm:$0xff]
  %v1544 = vld [vmem:[%s1258 + $0x158] sm:$0xff]
  %v1545 = vld [vmem:[%s1258 + $0x168] sm:$0xff]
  %v1546 = vld [vmem:[%s1258 + $0x170] sm:$0xff]
  %v1547 = vld [vmem:[%s1258 + $0x1b0] sm:$0xff]
  %v1548 = vld [vmem:[%s1258 + $0x1b8] sm:$0xff]
  %v1549 = vld [vmem:[%s1258 + $0x1c8] sm:$0xff]
  %v1550 = vld [vmem:[%s1258 + $0x1d0] sm:$0xff]
  %v1551 = vld [vmem:[%s1258 + $0x1e0] sm:$0xff]
  %v1552 = vld [vmem:[%s1258 + $0x1e8] sm:$0xff]
  %v1553 = vld [vmem:[%s1258 + $0x1f8] sm:$0xff]
  %v1554 = vld [vmem:[%s1258 + $0x200] sm:$0xff]
  %v1555 = vld [vmem:[%s1258 + $0x210] sm:$0xff]
  %v1556 = vld [vmem:[%s1258 + $0x218] sm:$0xff]
  %v1557 = vld [vmem:[%s1258 + $0x228] sm:$0xff]
  %v1558 = vld [vmem:[%s1258 + $0x230] sm:$0xff]
  %v1559 = vld [vmem:[%s1258 + $0x240] sm:$0xff]
  %v1560 = vld [vmem:[%s1258 + $0x248] sm:$0xff]
  %v1561 = vld [vmem:[%s1258 + $0x258] sm:$0xff]
  %v1562 = vld [vmem:[%s1258 + $0x260] sm:$0xff]
  %v1563 = vld [vmem:[%s1258 + $0x270] sm:$0xff]
  %v1564 = vld [vmem:[%s1258 + $0x278] sm:$0xff]
  %v1565 = vld [vmem:[%s1258 + $0x288] sm:$0xff]
  %v1566 = vld [vmem:[%s1258 + $0x290] sm:$0xff]
  %v1567 = vld [vmem:[%s1258 + $0x2a0] sm:$0xff]
  %v1568 = vld [vmem:[%s1258 + $0x2a8] sm:$0xff]
  %v1569 = vld [vmem:[%s1258 + $0x2b8] sm:$0xff]
  %v1570 = vld [vmem:[%s1258 + $0x2c0] sm:$0xff]
  %v1571 = vld [vmem:[%s1258 + $0x2d0] sm:$0xff]
  %v1572 = vld [vmem:[%s1258 + $0x2d8] sm:$0xff]
  %v1573 = vld [vmem:[%s1258 + $0x2e8] sm:$0xff]
  %v1574 = vld [vmem:[%s1258 + $0x2f0] sm:$0xff]
  %v1575 = vld [vmem:[%s1258 + $0x300] sm:$0xff]
  %v1576 = vld [vmem:[%s1258 + $0x308] sm:$0xff]
  %v1577 = vld [vmem:[%s1258 + $0x318] sm:$0xff]
  %v1578 = vld [vmem:[%s1258 + $0x320] sm:$0xff]
  %v1579 = vld [vmem:[%s1258 + $0x1] sm:$0xff]
  %v1580 = vld [vmem:[%s1258 + $0x9] sm:$0xff]
  %v1581 = vld [vmem:[%s1258 + $0x19] sm:$0xff]
  %v1582 = vld [vmem:[%s1258 + $0x21] sm:$0xff]
  %v1583 = vld [vmem:[%s1258 + $0x31] sm:$0xff]
  %v1584 = vld [vmem:[%s1258 + $0x39] sm:$0xff]
  %v1585 = vld [vmem:[%s1258 + $0x49] sm:$0xff]
  %v1586 = vld [vmem:[%s1258 + $0x51] sm:$0xff]
  %v1587 = vld [vmem:[%s1258 + $0x61] sm:$0xff]
  %v1588 = vld [vmem:[%s1258 + $0x69] sm:$0xff]
  %v1589 = vld [vmem:[%s1258 + $0x79] sm:$0xff]
  %v1590 = vld [vmem:[%s1258 + $0x81] sm:$0xff]
  %v1591 = vld [vmem:[%s1258 + $0x91] sm:$0xff]
  %v1592 = vld [vmem:[%s1258 + $0x99] sm:$0xff]
  %v1593 = vld [vmem:[%s1258 + $0xa9] sm:$0xff]
  %v1594 = vld [vmem:[%s1258 + $0xb1] sm:$0xff]
  %v1595 = vld [vmem:[%s1258 + $0xc1] sm:$0xff]
  %v1596 = vld [vmem:[%s1258 + $0xc9] sm:$0xff]
  %v1597 = vld [vmem:[%s1258 + $0xd9] sm:$0xff]
  %v1598 = vld [vmem:[%s1258 + $0xe1] sm:$0xff]
  %v1599 = vld [vmem:[%s1258 + $0xf1] sm:$0xff]
  %v1600 = vld [vmem:[%s1258 + $0xf9] sm:$0xff]
  %v1601 = vld [vmem:[%s1258 + $0x109] sm:$0xff]
  %v1602 = vld [vmem:[%s1258 + $0x111] sm:$0xff]
  %v1603 = vld [vmem:[%s1258 + $0x121] sm:$0xff]
  %v1604 = vld [vmem:[%s1258 + $0x129] sm:$0xff]
  %v1605 = vld [vmem:[%s1258 + $0x139] sm:$0xff]
  %v1606 = vld [vmem:[%s1258 + $0x141] sm:$0xff]
  %v1607 = vld [vmem:[%s1258 + $0x151] sm:$0xff]
  %v1608 = vld [vmem:[%s1258 + $0x159] sm:$0xff]
  %v1609 = vld [vmem:[%s1258 + $0x169] sm:$0xff]
  %v1610 = vld [vmem:[%s1258 + $0x171] sm:$0xff]
  %v1611 = vld [vmem:[%s1258 + $0x1b1] sm:$0xff]
  %v1612 = vld [vmem:[%s1258 + $0x1b9] sm:$0xff]
  %v1613 = vld [vmem:[%s1258 + $0x1c9] sm:$0xff]
  %v1614 = vld [vmem:[%s1258 + $0x1d1] sm:$0xff]
  %v1615 = vld [vmem:[%s1258 + $0x1e1] sm:$0xff]
  %v1616 = vld [vmem:[%s1258 + $0x1e9] sm:$0xff]
  %v1617 = vld [vmem:[%s1258 + $0x1f9] sm:$0xff]
  %v1618 = vld [vmem:[%s1258 + $0x201] sm:$0xff]
  %v1619 = vld [vmem:[%s1258 + $0x211] sm:$0xff]
  %v1620 = vld [vmem:[%s1258 + $0x219] sm:$0xff]
  %v1621 = vld [vmem:[%s1258 + $0x229] sm:$0xff]
  %v1622 = vld [vmem:[%s1258 + $0x231] sm:$0xff]
  %v1623 = vld [vmem:[%s1258 + $0x241] sm:$0xff]
  %v1624 = vld [vmem:[%s1258 + $0x249] sm:$0xff]
  %v1625 = vld [vmem:[%s1258 + $0x259] sm:$0xff]
  %v1626 = vld [vmem:[%s1258 + $0x261] sm:$0xff]
  %v1627 = vld [vmem:[%s1258 + $0x271] sm:$0xff]
  %v1628 = vld [vmem:[%s1258 + $0x279] sm:$0xff]
  %v1629 = vld [vmem:[%s1258 + $0x289] sm:$0xff]
  %v1630 = vld [vmem:[%s1258 + $0x291] sm:$0xff]
  %v1631 = vld [vmem:[%s1258 + $0x2a1] sm:$0xff]
  %v1632 = vld [vmem:[%s1258 + $0x2a9] sm:$0xff]
  %v1633 = vld [vmem:[%s1258 + $0x2b9] sm:$0xff]
  %v1634 = vld [vmem:[%s1258 + $0x2c1] sm:$0xff]
  %v1635 = vld [vmem:[%s1258 + $0x2d1] sm:$0xff]
  %v1636 = vld [vmem:[%s1258 + $0x2d9] sm:$0xff]
  %v1637 = vld [vmem:[%s1258 + $0x2e9] sm:$0xff]
  %v1638 = vld [vmem:[%s1258 + $0x2f1] sm:$0xff]
  %v1639 = vld [vmem:[%s1258 + $0x301] sm:$0xff]
  %v1640 = vld [vmem:[%s1258 + $0x309] sm:$0xff]
  %v1641 = vld [vmem:[%s1258 + $0x319] sm:$0xff]
  %v1642 = vld [vmem:[%s1258 + $0x321] sm:$0xff]
  %v1643 = vld [vmem:[%s1258 + $0x2] sm:$0xff]
  %v1644 = vld [vmem:[%s1258 + $0xa] sm:$0xff]
  %v1645 = vld [vmem:[%s1258 + $0x1a] sm:$0xff]
  %v1646 = vld [vmem:[%s1258 + $0x22] sm:$0xff]
  %v1647 = vld [vmem:[%s1258 + $0x32] sm:$0xff]
  %v1648 = vld [vmem:[%s1258 + $0x3a] sm:$0xff]
  %v1649 = vld [vmem:[%s1258 + $0x4a] sm:$0xff]
  %v1650 = vld [vmem:[%s1258 + $0x52] sm:$0xff]
  %v1651 = vld [vmem:[%s1258 + $0x62] sm:$0xff]
  %v1652 = vld [vmem:[%s1258 + $0x6a] sm:$0xff]
  %v1653 = vld [vmem:[%s1258 + $0x7a] sm:$0xff]
  %v1654 = vld [vmem:[%s1258 + $0x82] sm:$0xff]
  %v1655 = vld [vmem:[%s1258 + $0x92] sm:$0xff]
  %v1656 = vld [vmem:[%s1258 + $0x9a] sm:$0xff]
  %v1657 = vld [vmem:[%s1258 + $0xaa] sm:$0xff]
  %v1658 = vld [vmem:[%s1258 + $0xb2] sm:$0xff]
  %v1659 = vld [vmem:[%s1258 + $0xc2] sm:$0xff]
  %v1660 = vld [vmem:[%s1258 + $0xca] sm:$0xff]
  %v1661 = vld [vmem:[%s1258 + $0xda] sm:$0xff]
  %v1662 = vld [vmem:[%s1258 + $0xe2] sm:$0xff]
  %v1663 = vld [vmem:[%s1258 + $0xf2] sm:$0xff]
  %v1664 = vld [vmem:[%s1258 + $0xfa] sm:$0xff]
  %v1665 = vld [vmem:[%s1258 + $0x10a] sm:$0xff]
  %v1666 = vld [vmem:[%s1258 + $0x112] sm:$0xff]
  %v1667 = vld [vmem:[%s1258 + $0x122] sm:$0xff]
  %v1668 = vld [vmem:[%s1258 + $0x12a] sm:$0xff]
  %v1669 = vld [vmem:[%s1258 + $0x13a] sm:$0xff]
  %v1670 = vld [vmem:[%s1258 + $0x142] sm:$0xff]
  %v1671 = vld [vmem:[%s1258 + $0x152] sm:$0xff]
  %v1672 = vld [vmem:[%s1258 + $0x15a] sm:$0xff]
  %v1673 = vld [vmem:[%s1258 + $0x16a] sm:$0xff]
  %v1674 = vld [vmem:[%s1258 + $0x172] sm:$0xff]
  %v1675 = vld [vmem:[%s1258 + $0x1b2] sm:$0xff]
  %v1676 = vld [vmem:[%s1258 + $0x1ba] sm:$0xff]
  %v1677 = vld [vmem:[%s1258 + $0x1ca] sm:$0xff]
  %v1678 = vld [vmem:[%s1258 + $0x1d2] sm:$0xff]
  %v1679 = vld [vmem:[%s1258 + $0x1e2] sm:$0xff]
  %v1680 = vld [vmem:[%s1258 + $0x1ea] sm:$0xff]
  %v1681 = vld [vmem:[%s1258 + $0x1fa] sm:$0xff]
  %v1682 = vld [vmem:[%s1258 + $0x202] sm:$0xff]
  %v1683 = vld [vmem:[%s1258 + $0x212] sm:$0xff]
  %v1684 = vld [vmem:[%s1258 + $0x21a] sm:$0xff]
  %v1685 = vld [vmem:[%s1258 + $0x22a] sm:$0xff]
  %v1686 = vld [vmem:[%s1258 + $0x232] sm:$0xff]
  %v1687 = vld [vmem:[%s1258 + $0x242] sm:$0xff]
  %v1688 = vld [vmem:[%s1258 + $0x24a] sm:$0xff]
  %v1689 = vld [vmem:[%s1258 + $0x25a] sm:$0xff]
  %v1690 = vld [vmem:[%s1258 + $0x262] sm:$0xff]
  %v1691 = vld [vmem:[%s1258 + $0x272] sm:$0xff]
  %v1692 = vld [vmem:[%s1258 + $0x27a] sm:$0xff]
  %v1693 = vld [vmem:[%s1258 + $0x28a] sm:$0xff]
  %v1694 = vld [vmem:[%s1258 + $0x292] sm:$0xff]
  %v1695 = vld [vmem:[%s1258 + $0x2a2] sm:$0xff]
  %v1696 = vld [vmem:[%s1258 + $0x2aa] sm:$0xff]
  %v1697 = vld [vmem:[%s1258 + $0x2ba] sm:$0xff]
  %v1698 = vld [vmem:[%s1258 + $0x2c2] sm:$0xff]
  %v1699 = vld [vmem:[%s1258 + $0x2d2] sm:$0xff]
  %v1700 = vld [vmem:[%s1258 + $0x2da] sm:$0xff]
  %v1701 = vld [vmem:[%s1258 + $0x2ea] sm:$0xff]
  %v1702 = vld [vmem:[%s1258 + $0x2f2] sm:$0xff]
  %v1703 = vld [vmem:[%s1258 + $0x302] sm:$0xff]
  %v1704 = vld [vmem:[%s1258 + $0x30a] sm:$0xff]
  %v1705 = vld [vmem:[%s1258 + $0x31a] sm:$0xff]
  %v1706 = vld [vmem:[%s1258 + $0x322] sm:$0xff]
  %s1707 = scalar_lea.vmem [#allocation2], 48
  %v1708 = vld [vmem:[%s1707] sm:$0xff]
  %v1709 = vld [vmem:[%s1707 + $0x8] sm:$0xff]
  %v1710 = vld [vmem:[%s1707 + $0x18] sm:$0xff]
  %v1711 = vld [vmem:[%s1707 + $0x20] sm:$0xff]
  %v1712 = vld [vmem:[%s1707 + $0x30] sm:$0xff]
  %v1713 = vld [vmem:[%s1707 + $0x38] sm:$0xff]
  %v1714 = vld [vmem:[%s1707 + $0x48] sm:$0xff]
  %v1715 = vld [vmem:[%s1707 + $0x50] sm:$0xff]
  %v1716 = vld [vmem:[%s1707 + $0x60] sm:$0xff]
  %v1717 = vld [vmem:[%s1707 + $0x68] sm:$0xff]
  %v1718 = vld [vmem:[%s1707 + $0x78] sm:$0xff]
  %v1719 = vld [vmem:[%s1707 + $0x80] sm:$0xff]
  %v1720 = vld [vmem:[%s1707 + $0x90] sm:$0xff]
  %v1721 = vld [vmem:[%s1707 + $0x98] sm:$0xff]
  %v1722 = vld [vmem:[%s1707 + $0xa8] sm:$0xff]
  %v1723 = vld [vmem:[%s1707 + $0xb0] sm:$0xff]
  %v1724 = vld [vmem:[%s1707 + $0xc0] sm:$0xff]
  %v1725 = vld [vmem:[%s1707 + $0xc8] sm:$0xff]
  %v1726 = vld [vmem:[%s1707 + $0xd8] sm:$0xff]
  %v1727 = vld [vmem:[%s1707 + $0xe0] sm:$0xff]
  %v1728 = vld [vmem:[%s1707 + $0xf0] sm:$0xff]
  %v1729 = vld [vmem:[%s1707 + $0xf8] sm:$0xff]
  %v1730 = vld [vmem:[%s1707 + $0x108] sm:$0xff]
  %v1731 = vld [vmem:[%s1707 + $0x110] sm:$0xff]
  %v1732 = vld [vmem:[%s1707 + $0x120] sm:$0xff]
  %v1733 = vld [vmem:[%s1707 + $0x128] sm:$0xff]
  %v1734 = vld [vmem:[%s1707 + $0x138] sm:$0xff]
  %v1735 = vld [vmem:[%s1707 + $0x140] sm:$0xff]
  %v1736 = vld [vmem:[%s1707 + $0x150] sm:$0xff]
  %v1737 = vld [vmem:[%s1707 + $0x158] sm:$0xff]
  %v1738 = vld [vmem:[%s1707 + $0x168] sm:$0xff]
  %v1739 = vld [vmem:[%s1707 + $0x170] sm:$0xff]
  %v1740 = vld [vmem:[%s1707 + $0x1b0] sm:$0xff]
  %v1741 = vld [vmem:[%s1707 + $0x1b8] sm:$0xff]
  %v1742 = vld [vmem:[%s1707 + $0x1c8] sm:$0xff]
  %v1743 = vld [vmem:[%s1707 + $0x1d0] sm:$0xff]
  %v1744 = vld [vmem:[%s1707 + $0x1e0] sm:$0xff]
  %v1745 = vld [vmem:[%s1707 + $0x1e8] sm:$0xff]
  %v1746 = vld [vmem:[%s1707 + $0x1f8] sm:$0xff]
  %v1747 = vld [vmem:[%s1707 + $0x200] sm:$0xff]
  %v1748 = vld [vmem:[%s1707 + $0x210] sm:$0xff]
  %v1749 = vld [vmem:[%s1707 + $0x218] sm:$0xff]
  %v1750 = vld [vmem:[%s1707 + $0x228] sm:$0xff]
  %v1751 = vld [vmem:[%s1707 + $0x230] sm:$0xff]
  %v1752 = vld [vmem:[%s1707 + $0x240] sm:$0xff]
  %v1753 = vld [vmem:[%s1707 + $0x248] sm:$0xff]
  %v1754 = vld [vmem:[%s1707 + $0x258] sm:$0xff]
  %v1755 = vld [vmem:[%s1707 + $0x260] sm:$0xff]
  %v1756 = vld [vmem:[%s1707 + $0x270] sm:$0xff]
  %v1757 = vld [vmem:[%s1707 + $0x278] sm:$0xff]
  %v1758 = vld [vmem:[%s1707 + $0x288] sm:$0xff]
  %v1759 = vld [vmem:[%s1707 + $0x290] sm:$0xff]
  %v1760 = vld [vmem:[%s1707 + $0x2a0] sm:$0xff]
  %v1761 = vld [vmem:[%s1707 + $0x2a8] sm:$0xff]
  %v1762 = vld [vmem:[%s1707 + $0x2b8] sm:$0xff]
  %v1763 = vld [vmem:[%s1707 + $0x2c0] sm:$0xff]
  %v1764 = vld [vmem:[%s1707 + $0x2d0] sm:$0xff]
  %v1765 = vld [vmem:[%s1707 + $0x2d8] sm:$0xff]
  %v1766 = vld [vmem:[%s1707 + $0x2e8] sm:$0xff]
  %v1767 = vld [vmem:[%s1707 + $0x2f0] sm:$0xff]
  %v1768 = vld [vmem:[%s1707 + $0x300] sm:$0xff]
  %v1769 = vld [vmem:[%s1707 + $0x308] sm:$0xff]
  %v1770 = vld [vmem:[%s1707 + $0x318] sm:$0xff]
  %v1771 = vld [vmem:[%s1707 + $0x320] sm:$0xff]
  %v1772 = vld [vmem:[%s1707 + $0x1] sm:$0xff]
  %v1773 = vld [vmem:[%s1707 + $0x9] sm:$0xff]
  %v1774 = vld [vmem:[%s1707 + $0x19] sm:$0xff]
  %v1775 = vld [vmem:[%s1707 + $0x21] sm:$0xff]
  %v1776 = vld [vmem:[%s1707 + $0x31] sm:$0xff]
  %v1777 = vld [vmem:[%s1707 + $0x39] sm:$0xff]
  %v1778 = vld [vmem:[%s1707 + $0x49] sm:$0xff]
  %v1779 = vld [vmem:[%s1707 + $0x51] sm:$0xff]
  %v1780 = vld [vmem:[%s1707 + $0x61] sm:$0xff]
  %v1781 = vld [vmem:[%s1707 + $0x69] sm:$0xff]
  %v1782 = vld [vmem:[%s1707 + $0x79] sm:$0xff]
  %v1783 = vld [vmem:[%s1707 + $0x81] sm:$0xff]
  %v1784 = vld [vmem:[%s1707 + $0x91] sm:$0xff]
  %v1785 = vld [vmem:[%s1707 + $0x99] sm:$0xff]
  %v1786 = vld [vmem:[%s1707 + $0xa9] sm:$0xff]
  %v1787 = vld [vmem:[%s1707 + $0xb1] sm:$0xff]
  %v1788 = vld [vmem:[%s1707 + $0xc1] sm:$0xff]
  %v1789 = vld [vmem:[%s1707 + $0xc9] sm:$0xff]
  %v1790 = vld [vmem:[%s1707 + $0xd9] sm:$0xff]
  %v1791 = vld [vmem:[%s1707 + $0xe1] sm:$0xff]
  %v1792 = vld [vmem:[%s1707 + $0xf1] sm:$0xff]
  %v1793 = vld [vmem:[%s1707 + $0xf9] sm:$0xff]
  %v1794 = vld [vmem:[%s1707 + $0x109] sm:$0xff]
  %v1795 = vld [vmem:[%s1707 + $0x111] sm:$0xff]
  %v1796 = vld [vmem:[%s1707 + $0x121] sm:$0xff]
  %v1797 = vld [vmem:[%s1707 + $0x129] sm:$0xff]
  %v1798 = vld [vmem:[%s1707 + $0x139] sm:$0xff]
  %v1799 = vld [vmem:[%s1707 + $0x141] sm:$0xff]
  %v1800 = vld [vmem:[%s1707 + $0x151] sm:$0xff]
  %v1801 = vld [vmem:[%s1707 + $0x159] sm:$0xff]
  %v1802 = vld [vmem:[%s1707 + $0x169] sm:$0xff]
  %v1803 = vld [vmem:[%s1707 + $0x171] sm:$0xff]
  %v1804 = vld [vmem:[%s1707 + $0x1b1] sm:$0xff]
  %v1805 = vld [vmem:[%s1707 + $0x1b9] sm:$0xff]
  %v1806 = vld [vmem:[%s1707 + $0x1c9] sm:$0xff]
  %v1807 = vld [vmem:[%s1707 + $0x1d1] sm:$0xff]
  %v1808 = vld [vmem:[%s1707 + $0x1e1] sm:$0xff]
  %v1809 = vld [vmem:[%s1707 + $0x1e9] sm:$0xff]
  %v1810 = vld [vmem:[%s1707 + $0x1f9] sm:$0xff]
  %v1811 = vld [vmem:[%s1707 + $0x201] sm:$0xff]
  %v1812 = vld [vmem:[%s1707 + $0x211] sm:$0xff]
  %v1813 = vld [vmem:[%s1707 + $0x219] sm:$0xff]
  %v1814 = vld [vmem:[%s1707 + $0x229] sm:$0xff]
  %v1815 = vld [vmem:[%s1707 + $0x231] sm:$0xff]
  %v1816 = vld [vmem:[%s1707 + $0x241] sm:$0xff]
  %v1817 = vld [vmem:[%s1707 + $0x249] sm:$0xff]
  %v1818 = vld [vmem:[%s1707 + $0x259] sm:$0xff]
  %v1819 = vld [vmem:[%s1707 + $0x261] sm:$0xff]
  %v1820 = vld [vmem:[%s1707 + $0x271] sm:$0xff]
  %v1821 = vld [vmem:[%s1707 + $0x279] sm:$0xff]
  %v1822 = vld [vmem:[%s1707 + $0x289] sm:$0xff]
  %v1823 = vld [vmem:[%s1707 + $0x291] sm:$0xff]
  %v1824 = vld [vmem:[%s1707 + $0x2a1] sm:$0xff]
  %v1825 = vld [vmem:[%s1707 + $0x2a9] sm:$0xff]
  %v1826 = vld [vmem:[%s1707 + $0x2b9] sm:$0xff]
  %v1827 = vld [vmem:[%s1707 + $0x2c1] sm:$0xff]
  %v1828 = vld [vmem:[%s1707 + $0x2d1] sm:$0xff]
  %v1829 = vld [vmem:[%s1707 + $0x2d9] sm:$0xff]
  %v1830 = vld [vmem:[%s1707 + $0x2e9] sm:$0xff]
  %v1831 = vld [vmem:[%s1707 + $0x2f1] sm:$0xff]
  %v1832 = vld [vmem:[%s1707 + $0x301] sm:$0xff]
  %v1833 = vld [vmem:[%s1707 + $0x309] sm:$0xff]
  %v1834 = vld [vmem:[%s1707 + $0x319] sm:$0xff]
  %v1835 = vld [vmem:[%s1707 + $0x321] sm:$0xff]
  %v1836 = vld [vmem:[%s1707 + $0x2] sm:$0xff]
  %v1837 = vld [vmem:[%s1707 + $0xa] sm:$0xff]
  %v1838 = vld [vmem:[%s1707 + $0x1a] sm:$0xff]
  %v1839 = vld [vmem:[%s1707 + $0x22] sm:$0xff]
  %v1840 = vld [vmem:[%s1707 + $0x32] sm:$0xff]
  %v1841 = vld [vmem:[%s1707 + $0x3a] sm:$0xff]
  %v1842 = vld [vmem:[%s1707 + $0x4a] sm:$0xff]
  %v1843 = vld [vmem:[%s1707 + $0x52] sm:$0xff]
  %v1844 = vld [vmem:[%s1707 + $0x62] sm:$0xff]
  %v1845 = vld [vmem:[%s1707 + $0x6a] sm:$0xff]
  %v1846 = vld [vmem:[%s1707 + $0x7a] sm:$0xff]
  %v1847 = vld [vmem:[%s1707 + $0x82] sm:$0xff]
  %v1848 = vld [vmem:[%s1707 + $0x92] sm:$0xff]
  %v1849 = vld [vmem:[%s1707 + $0x9a] sm:$0xff]
  %v1850 = vld [vmem:[%s1707 + $0xaa] sm:$0xff]
  %v1851 = vld [vmem:[%s1707 + $0xb2] sm:$0xff]
  %v1852 = vld [vmem:[%s1707 + $0xc2] sm:$0xff]
  %v1853 = vld [vmem:[%s1707 + $0xca] sm:$0xff]
  %v1854 = vld [vmem:[%s1707 + $0xda] sm:$0xff]
  %v1855 = vld [vmem:[%s1707 + $0xe2] sm:$0xff]
  %v1856 = vld [vmem:[%s1707 + $0xf2] sm:$0xff]
  %v1857 = vld [vmem:[%s1707 + $0xfa] sm:$0xff]
  %v1858 = vld [vmem:[%s1707 + $0x10a] sm:$0xff]
  %v1859 = vld [vmem:[%s1707 + $0x112] sm:$0xff]
  %v1860 = vld [vmem:[%s1707 + $0x122] sm:$0xff]
  %v1861 = vld [vmem:[%s1707 + $0x12a] sm:$0xff]
  %v1862 = vld [vmem:[%s1707 + $0x13a] sm:$0xff]
  %v1863 = vld [vmem:[%s1707 + $0x142] sm:$0xff]
  %v1864 = vld [vmem:[%s1707 + $0x152] sm:$0xff]
  %v1865 = vld [vmem:[%s1707 + $0x15a] sm:$0xff]
  %v1866 = vld [vmem:[%s1707 + $0x16a] sm:$0xff]
  %v1867 = vld [vmem:[%s1707 + $0x172] sm:$0xff]
  %v1868 = vld [vmem:[%s1707 + $0x1b2] sm:$0xff]
  %v1869 = vld [vmem:[%s1707 + $0x1ba] sm:$0xff]
  %v1870 = vld [vmem:[%s1707 + $0x1ca] sm:$0xff]
  %v1871 = vld [vmem:[%s1707 + $0x1d2] sm:$0xff]
  %v1872 = vld [vmem:[%s1707 + $0x1e2] sm:$0xff]
  %v1873 = vld [vmem:[%s1707 + $0x1ea] sm:$0xff]
  %v1874 = vld [vmem:[%s1707 + $0x1fa] sm:$0xff]
  %v1875 = vld [vmem:[%s1707 + $0x202] sm:$0xff]
  %v1876 = vld [vmem:[%s1707 + $0x212] sm:$0xff]
  %v1877 = vld [vmem:[%s1707 + $0x21a] sm:$0xff]
  %v1878 = vld [vmem:[%s1707 + $0x22a] sm:$0xff]
  %v1879 = vld [vmem:[%s1707 + $0x232] sm:$0xff]
  %v1880 = vld [vmem:[%s1707 + $0x242] sm:$0xff]
  %v1881 = vld [vmem:[%s1707 + $0x24a] sm:$0xff]
  %v1882 = vld [vmem:[%s1707 + $0x25a] sm:$0xff]
  %v1883 = vld [vmem:[%s1707 + $0x262] sm:$0xff]
  %v1884 = vld [vmem:[%s1707 + $0x272] sm:$0xff]
  %v1885 = vld [vmem:[%s1707 + $0x27a] sm:$0xff]
  %v1886 = vld [vmem:[%s1707 + $0x28a] sm:$0xff]
  %v1887 = vld [vmem:[%s1707 + $0x292] sm:$0xff]
  %v1888 = vld [vmem:[%s1707 + $0x2a2] sm:$0xff]
  %v1889 = vld [vmem:[%s1707 + $0x2aa] sm:$0xff]
  %v1890 = vld [vmem:[%s1707 + $0x2ba] sm:$0xff]
  %v1891 = vld [vmem:[%s1707 + $0x2c2] sm:$0xff]
  %v1892 = vld [vmem:[%s1707 + $0x2d2] sm:$0xff]
  %v1893 = vld [vmem:[%s1707 + $0x2da] sm:$0xff]
  %v1894 = vld [vmem:[%s1707 + $0x2ea] sm:$0xff]
  %v1895 = vld [vmem:[%s1707 + $0x2f2] sm:$0xff]
  %v1896 = vld [vmem:[%s1707 + $0x302] sm:$0xff]
  %v1897 = vld [vmem:[%s1707 + $0x30a] sm:$0xff]
  %v1898 = vld [vmem:[%s1707 + $0x31a] sm:$0xff]
  %v1899 = vld [vmem:[%s1707 + $0x322] sm:$0xff]
  %1964 = vrot.lane.b32.xlu0 %v1387, 32
  %v1965 = vpop.permute.xlu0 %1964
  %1966 = vrot.lane.b32.xlu0 %v1388, 32
  %v1967 = vpop.permute.xlu0 %1966
  %1968 = vrot.lane.b32.xlu0 %v1389, 32
  %v1969 = vpop.permute.xlu0 %1968
  %1970 = vrot.lane.b32.xlu0 %v1390, 32
  %v1971 = vpop.permute.xlu0 %1970
  %1972 = vrot.lane.b32.xlu0 %v1391, 32
  %v1973 = vpop.permute.xlu0 %1972
  %1974 = vrot.lane.b32.xlu0 %v1392, 32
  %v1975 = vpop.permute.xlu0 %1974
  %1976 = vrot.lane.b32.xlu0 %v1393, 32
  %v1977 = vpop.permute.xlu0 %1976
  %1978 = vrot.lane.b32.xlu0 %v1394, 32
  %v1979 = vpop.permute.xlu0 %1978
  %1980 = vrot.lane.b32.xlu0 %v1395, 32
  %v1981 = vpop.permute.xlu0 %1980
  %1982 = vrot.lane.b32.xlu0 %v1396, 32
  %v1983 = vpop.permute.xlu0 %1982
  %1984 = vrot.lane.b32.xlu0 %v1397, 32
  %v1985 = vpop.permute.xlu0 %1984
  %1986 = vrot.lane.b32.xlu0 %v1398, 32
  %v1987 = vpop.permute.xlu0 %1986
  %1988 = vrot.lane.b32.xlu0 %v1399, 32
  %v1989 = vpop.permute.xlu0 %1988
  %1990 = vrot.lane.b32.xlu0 %v1400, 32
  %v1991 = vpop.permute.xlu0 %1990
  %1992 = vrot.lane.b32.xlu0 %v1401, 32
  %v1993 = vpop.permute.xlu0 %1992
  %1994 = vrot.lane.b32.xlu0 %v1402, 32
  %v1995 = vpop.permute.xlu0 %1994
  %1996 = vrot.lane.b32.xlu0 %v1403, 32
  %v1997 = vpop.permute.xlu0 %1996
  %1998 = vrot.lane.b32.xlu0 %v1404, 32
  %v1999 = vpop.permute.xlu0 %1998
  %2000 = vrot.lane.b32.xlu0 %v1405, 32
  %v2001 = vpop.permute.xlu0 %2000
  %2002 = vrot.lane.b32.xlu0 %v1406, 32
  %v2003 = vpop.permute.xlu0 %2002
  %2004 = vrot.lane.b32.xlu0 %v1407, 32
  %v2005 = vpop.permute.xlu0 %2004
  %2006 = vrot.lane.b32.xlu0 %v1408, 32
  %v2007 = vpop.permute.xlu0 %2006
  %2008 = vrot.lane.b32.xlu0 %v1409, 32
  %v2009 = vpop.permute.xlu0 %2008
  %2010 = vrot.lane.b32.xlu0 %v1410, 32
  %v2011 = vpop.permute.xlu0 %2010
  %2012 = vrot.lane.b32.xlu0 %v1411, 32
  %v2013 = vpop.permute.xlu0 %2012
  %2014 = vrot.lane.b32.xlu0 %v1412, 32
  %v2015 = vpop.permute.xlu0 %2014
  %2016 = vrot.lane.b32.xlu0 %v1413, 32
  %v2017 = vpop.permute.xlu0 %2016
  %2018 = vrot.lane.b32.xlu0 %v1414, 32
  %v2019 = vpop.permute.xlu0 %2018
  %2020 = vrot.lane.b32.xlu0 %v1415, 32
  %v2021 = vpop.permute.xlu0 %2020
  %2022 = vrot.lane.b32.xlu0 %v1416, 32
  %v2023 = vpop.permute.xlu0 %2022
  %2024 = vrot.lane.b32.xlu0 %v1417, 32
  %v2025 = vpop.permute.xlu0 %2024
  %2026 = vrot.lane.b32.xlu0 %v1418, 32
  %v2027 = vpop.permute.xlu0 %2026
  %2028 = vrot.lane.b32.xlu0 %v1419, 32
  %v2029 = vpop.permute.xlu0 %2028
  %2030 = vrot.lane.b32.xlu0 %v1420, 32
  %v2031 = vpop.permute.xlu0 %2030
  %2032 = vrot.lane.b32.xlu0 %v1421, 32
  %v2033 = vpop.permute.xlu0 %2032
  %2034 = vrot.lane.b32.xlu0 %v1422, 32
  %v2035 = vpop.permute.xlu0 %2034
  %2036 = vrot.lane.b32.xlu0 %v1423, 32
  %v2037 = vpop.permute.xlu0 %2036
  %2038 = vrot.lane.b32.xlu0 %v1424, 32
  %v2039 = vpop.permute.xlu0 %2038
  %2040 = vrot.lane.b32.xlu0 %v1425, 32
  %v2041 = vpop.permute.xlu0 %2040
  %2042 = vrot.lane.b32.xlu0 %v1426, 32
  %v2043 = vpop.permute.xlu0 %2042
  %2044 = vrot.lane.b32.xlu0 %v1427, 32
  %v2045 = vpop.permute.xlu0 %2044
  %2046 = vrot.lane.b32.xlu0 %v1428, 32
  %v2047 = vpop.permute.xlu0 %2046
  %2048 = vrot.lane.b32.xlu0 %v1429, 32
  %v2049 = vpop.permute.xlu0 %2048
  %2050 = vrot.lane.b32.xlu0 %v1430, 32
  %v2051 = vpop.permute.xlu0 %2050
  %2052 = vrot.lane.b32.xlu0 %v1431, 32
  %v2053 = vpop.permute.xlu0 %2052
  %2054 = vrot.lane.b32.xlu0 %v1432, 32
  %v2055 = vpop.permute.xlu0 %2054
  %2056 = vrot.lane.b32.xlu0 %v1433, 32
  %v2057 = vpop.permute.xlu0 %2056
  %2058 = vrot.lane.b32.xlu0 %v1434, 32
  %v2059 = vpop.permute.xlu0 %2058
  %2060 = vrot.lane.b32.xlu0 %v1435, 32
  %v2061 = vpop.permute.xlu0 %2060
  %2062 = vrot.lane.b32.xlu0 %v1436, 32
  %v2063 = vpop.permute.xlu0 %2062
  %2064 = vrot.lane.b32.xlu0 %v1437, 32
  %v2065 = vpop.permute.xlu0 %2064
  %2066 = vrot.lane.b32.xlu0 %v1438, 32
  %v2067 = vpop.permute.xlu0 %2066
  %2068 = vrot.lane.b32.xlu0 %v1439, 32
  %v2069 = vpop.permute.xlu0 %2068
  %2070 = vrot.lane.b32.xlu0 %v1440, 32
  %v2071 = vpop.permute.xlu0 %2070
  %2072 = vrot.lane.b32.xlu0 %v1441, 32
  %v2073 = vpop.permute.xlu0 %2072
  %2074 = vrot.lane.b32.xlu0 %v1442, 32
  %v2075 = vpop.permute.xlu0 %2074
  %2076 = vrot.lane.b32.xlu0 %v1443, 32
  %v2077 = vpop.permute.xlu0 %2076
  %2078 = vrot.lane.b32.xlu0 %v1444, 32
  %v2079 = vpop.permute.xlu0 %2078
  %2080 = vrot.lane.b32.xlu0 %v1445, 32
  %v2081 = vpop.permute.xlu0 %2080
  %2082 = vrot.lane.b32.xlu0 %v1446, 32
  %v2083 = vpop.permute.xlu0 %2082
  %2084 = vrot.lane.b32.xlu0 %v1447, 32
  %v2085 = vpop.permute.xlu0 %2084
  %2086 = vrot.lane.b32.xlu0 %v1448, 32
  %v2087 = vpop.permute.xlu0 %2086
  %2088 = vrot.lane.b32.xlu0 %v1449, 32
  %v2089 = vpop.permute.xlu0 %2088
  %2090 = vrot.lane.b32.xlu0 %v1450, 32
  %v2091 = vpop.permute.xlu0 %2090
  %2220 = vrot.lane.b32.xlu0 %v1451, 64
  %v2221 = vpop.permute.xlu0 %2220
  %2222 = vrot.lane.b32.xlu0 %v1452, 64
  %v2223 = vpop.permute.xlu0 %2222
  %2224 = vrot.lane.b32.xlu0 %v1453, 64
  %v2225 = vpop.permute.xlu0 %2224
  %2226 = vrot.lane.b32.xlu0 %v1454, 64
  %v2227 = vpop.permute.xlu0 %2226
  %2228 = vrot.lane.b32.xlu0 %v1455, 64
  %v2229 = vpop.permute.xlu0 %2228
  %2230 = vrot.lane.b32.xlu0 %v1456, 64
  %v2231 = vpop.permute.xlu0 %2230
  %2232 = vrot.lane.b32.xlu0 %v1457, 64
  %v2233 = vpop.permute.xlu0 %2232
  %2234 = vrot.lane.b32.xlu0 %v1458, 64
  %v2235 = vpop.permute.xlu0 %2234
  %2236 = vrot.lane.b32.xlu0 %v1459, 64
  %v2237 = vpop.permute.xlu0 %2236
  %2238 = vrot.lane.b32.xlu0 %v1460, 64
  %v2239 = vpop.permute.xlu0 %2238
  %2240 = vrot.lane.b32.xlu0 %v1461, 64
  %v2241 = vpop.permute.xlu0 %2240
  %2242 = vrot.lane.b32.xlu0 %v1462, 64
  %v2243 = vpop.permute.xlu0 %2242
  %2244 = vrot.lane.b32.xlu0 %v1463, 64
  %v2245 = vpop.permute.xlu0 %2244
  %2246 = vrot.lane.b32.xlu0 %v1464, 64
  %v2247 = vpop.permute.xlu0 %2246
  %2248 = vrot.lane.b32.xlu0 %v1465, 64
  %v2249 = vpop.permute.xlu0 %2248
  %2250 = vrot.lane.b32.xlu0 %v1466, 64
  %v2251 = vpop.permute.xlu0 %2250
  %2252 = vrot.lane.b32.xlu0 %v1467, 64
  %v2253 = vpop.permute.xlu0 %2252
  %2254 = vrot.lane.b32.xlu0 %v1468, 64
  %v2255 = vpop.permute.xlu0 %2254
  %2256 = vrot.lane.b32.xlu0 %v1469, 64
  %v2257 = vpop.permute.xlu0 %2256
  %2258 = vrot.lane.b32.xlu0 %v1470, 64
  %v2259 = vpop.permute.xlu0 %2258
  %2260 = vrot.lane.b32.xlu0 %v1471, 64
  %v2261 = vpop.permute.xlu0 %2260
  %2262 = vrot.lane.b32.xlu0 %v1472, 64
  %v2263 = vpop.permute.xlu0 %2262
  %2264 = vrot.lane.b32.xlu0 %v1473, 64
  %v2265 = vpop.permute.xlu0 %2264
  %2266 = vrot.lane.b32.xlu0 %v1474, 64
  %v2267 = vpop.permute.xlu0 %2266
  %2268 = vrot.lane.b32.xlu0 %v1475, 64
  %v2269 = vpop.permute.xlu0 %2268
  %2270 = vrot.lane.b32.xlu0 %v1476, 64
  %v2271 = vpop.permute.xlu0 %2270
  %2272 = vrot.lane.b32.xlu0 %v1477, 64
  %v2273 = vpop.permute.xlu0 %2272
  %2274 = vrot.lane.b32.xlu0 %v1478, 64
  %v2275 = vpop.permute.xlu0 %2274
  %2276 = vrot.lane.b32.xlu0 %v1479, 64
  %v2277 = vpop.permute.xlu0 %2276
  %2278 = vrot.lane.b32.xlu0 %v1480, 64
  %v2279 = vpop.permute.xlu0 %2278
  %2280 = vrot.lane.b32.xlu0 %v1481, 64
  %v2281 = vpop.permute.xlu0 %2280
  %2282 = vrot.lane.b32.xlu0 %v1482, 64
  %v2283 = vpop.permute.xlu0 %2282
  %2284 = vrot.lane.b32.xlu0 %v1483, 64
  %v2285 = vpop.permute.xlu0 %2284
  %2286 = vrot.lane.b32.xlu0 %v1484, 64
  %v2287 = vpop.permute.xlu0 %2286
  %2288 = vrot.lane.b32.xlu0 %v1485, 64
  %v2289 = vpop.permute.xlu0 %2288
  %2290 = vrot.lane.b32.xlu0 %v1486, 64
  %v2291 = vpop.permute.xlu0 %2290
  %2292 = vrot.lane.b32.xlu0 %v1487, 64
  %v2293 = vpop.permute.xlu0 %2292
  %2294 = vrot.lane.b32.xlu0 %v1488, 64
  %v2295 = vpop.permute.xlu0 %2294
  %2296 = vrot.lane.b32.xlu0 %v1489, 64
  %v2297 = vpop.permute.xlu0 %2296
  %2298 = vrot.lane.b32.xlu0 %v1490, 64
  %v2299 = vpop.permute.xlu0 %2298
  %2300 = vrot.lane.b32.xlu0 %v1491, 64
  %v2301 = vpop.permute.xlu0 %2300
  %2302 = vrot.lane.b32.xlu0 %v1492, 64
  %v2303 = vpop.permute.xlu0 %2302
  %2304 = vrot.lane.b32.xlu0 %v1493, 64
  %v2305 = vpop.permute.xlu0 %2304
  %2306 = vrot.lane.b32.xlu0 %v1494, 64
  %v2307 = vpop.permute.xlu0 %2306
  %2308 = vrot.lane.b32.xlu0 %v1495, 64
  %v2309 = vpop.permute.xlu0 %2308
  %2310 = vrot.lane.b32.xlu0 %v1496, 64
  %v2311 = vpop.permute.xlu0 %2310
  %2312 = vrot.lane.b32.xlu0 %v1497, 64
  %v2313 = vpop.permute.xlu0 %2312
  %2314 = vrot.lane.b32.xlu0 %v1498, 64
  %v2315 = vpop.permute.xlu0 %2314
  %2316 = vrot.lane.b32.xlu0 %v1499, 64
  %v2317 = vpop.permute.xlu0 %2316
  %2318 = vrot.lane.b32.xlu0 %v1500, 64
  %v2319 = vpop.permute.xlu0 %2318
  %2320 = vrot.lane.b32.xlu0 %v1501, 64
  %v2321 = vpop.permute.xlu0 %2320
  %2322 = vrot.lane.b32.xlu0 %v1502, 64
  %v2323 = vpop.permute.xlu0 %2322
  %2324 = vrot.lane.b32.xlu0 %v1503, 64
  %v2325 = vpop.permute.xlu0 %2324
  %2326 = vrot.lane.b32.xlu0 %v1504, 64
  %v2327 = vpop.permute.xlu0 %2326
  %2328 = vrot.lane.b32.xlu0 %v1505, 64
  %v2329 = vpop.permute.xlu0 %2328
  %2330 = vrot.lane.b32.xlu0 %v1506, 64
  %v2331 = vpop.permute.xlu0 %2330
  %2332 = vrot.lane.b32.xlu0 %v1507, 64
  %v2333 = vpop.permute.xlu0 %2332
  %2334 = vrot.lane.b32.xlu0 %v1508, 64
  %v2335 = vpop.permute.xlu0 %2334
  %2336 = vrot.lane.b32.xlu0 %v1509, 64
  %v2337 = vpop.permute.xlu0 %2336
  %2338 = vrot.lane.b32.xlu0 %v1510, 64
  %v2339 = vpop.permute.xlu0 %2338
  %2340 = vrot.lane.b32.xlu0 %v1511, 64
  %v2341 = vpop.permute.xlu0 %2340
  %2342 = vrot.lane.b32.xlu0 %v1512, 64
  %v2343 = vpop.permute.xlu0 %2342
  %2344 = vrot.lane.b32.xlu0 %v1513, 64
  %v2345 = vpop.permute.xlu0 %2344
  %2346 = vrot.lane.b32.xlu0 %v1514, 64
  %v2347 = vpop.permute.xlu0 %2346
  %2476 = vrot.lane.b32.xlu0 %v1515, 96
  %v2477 = vpop.permute.xlu0 %2476
  %2478 = vrot.lane.b32.xlu0 %v1516, 96
  %v2479 = vpop.permute.xlu0 %2478
  %2480 = vrot.lane.b32.xlu0 %v1517, 96
  %v2481 = vpop.permute.xlu0 %2480
  %2482 = vrot.lane.b32.xlu0 %v1518, 96
  %v2483 = vpop.permute.xlu0 %2482
  %2484 = vrot.lane.b32.xlu0 %v1519, 96
  %v2485 = vpop.permute.xlu0 %2484
  %2486 = vrot.lane.b32.xlu0 %v1520, 96
  %v2487 = vpop.permute.xlu0 %2486
  %2488 = vrot.lane.b32.xlu0 %v1521, 96
  %v2489 = vpop.permute.xlu0 %2488
  %2490 = vrot.lane.b32.xlu0 %v1522, 96
  %v2491 = vpop.permute.xlu0 %2490
  %2492 = vrot.lane.b32.xlu0 %v1523, 96
  %v2493 = vpop.permute.xlu0 %2492
  %2494 = vrot.lane.b32.xlu0 %v1524, 96
  %v2495 = vpop.permute.xlu0 %2494
  %2496 = vrot.lane.b32.xlu0 %v1525, 96
  %v2497 = vpop.permute.xlu0 %2496
  %2498 = vrot.lane.b32.xlu0 %v1526, 96
  %v2499 = vpop.permute.xlu0 %2498
  %2500 = vrot.lane.b32.xlu0 %v1527, 96
  %v2501 = vpop.permute.xlu0 %2500
  %2502 = vrot.lane.b32.xlu0 %v1528, 96
  %v2503 = vpop.permute.xlu0 %2502
  %2504 = vrot.lane.b32.xlu0 %v1529, 96
  %v2505 = vpop.permute.xlu0 %2504
  %2506 = vrot.lane.b32.xlu0 %v1530, 96
  %v2507 = vpop.permute.xlu0 %2506
  %2508 = vrot.lane.b32.xlu0 %v1531, 96
  %v2509 = vpop.permute.xlu0 %2508
  %2510 = vrot.lane.b32.xlu0 %v1532, 96
  %v2511 = vpop.permute.xlu0 %2510
  %2512 = vrot.lane.b32.xlu0 %v1533, 96
  %v2513 = vpop.permute.xlu0 %2512
  %2514 = vrot.lane.b32.xlu0 %v1534, 96
  %v2515 = vpop.permute.xlu0 %2514
  %2516 = vrot.lane.b32.xlu0 %v1535, 96
  %v2517 = vpop.permute.xlu0 %2516
  %2518 = vrot.lane.b32.xlu0 %v1536, 96
  %v2519 = vpop.permute.xlu0 %2518
  %2520 = vrot.lane.b32.xlu0 %v1537, 96
  %v2521 = vpop.permute.xlu0 %2520
  %2522 = vrot.lane.b32.xlu0 %v1538, 96
  %v2523 = vpop.permute.xlu0 %2522
  %2524 = vrot.lane.b32.xlu0 %v1539, 96
  %v2525 = vpop.permute.xlu0 %2524
  %2526 = vrot.lane.b32.xlu0 %v1540, 96
  %v2527 = vpop.permute.xlu0 %2526
  %2528 = vrot.lane.b32.xlu0 %v1541, 96
  %v2529 = vpop.permute.xlu0 %2528
  %2530 = vrot.lane.b32.xlu0 %v1542, 96
  %v2531 = vpop.permute.xlu0 %2530
  %2532 = vrot.lane.b32.xlu0 %v1543, 96
  %v2533 = vpop.permute.xlu0 %2532
  %2534 = vrot.lane.b32.xlu0 %v1544, 96
  %v2535 = vpop.permute.xlu0 %2534
  %2536 = vrot.lane.b32.xlu0 %v1545, 96
  %v2537 = vpop.permute.xlu0 %2536
  %2538 = vrot.lane.b32.xlu0 %v1546, 96
  %v2539 = vpop.permute.xlu0 %2538
  %2540 = vrot.lane.b32.xlu0 %v1547, 96
  %v2541 = vpop.permute.xlu0 %2540
  %2542 = vrot.lane.b32.xlu0 %v1548, 96
  %v2543 = vpop.permute.xlu0 %2542
  %2544 = vrot.lane.b32.xlu0 %v1549, 96
  %v2545 = vpop.permute.xlu0 %2544
  %2546 = vrot.lane.b32.xlu0 %v1550, 96
  %v2547 = vpop.permute.xlu0 %2546
  %2548 = vrot.lane.b32.xlu0 %v1551, 96
  %v2549 = vpop.permute.xlu0 %2548
  %2550 = vrot.lane.b32.xlu0 %v1552, 96
  %v2551 = vpop.permute.xlu0 %2550
  %2552 = vrot.lane.b32.xlu0 %v1553, 96
  %v2553 = vpop.permute.xlu0 %2552
  %2554 = vrot.lane.b32.xlu0 %v1554, 96
  %v2555 = vpop.permute.xlu0 %2554
  %2556 = vrot.lane.b32.xlu0 %v1555, 96
  %v2557 = vpop.permute.xlu0 %2556
  %2558 = vrot.lane.b32.xlu0 %v1556, 96
  %v2559 = vpop.permute.xlu0 %2558
  %2560 = vrot.lane.b32.xlu0 %v1557, 96
  %v2561 = vpop.permute.xlu0 %2560
  %2562 = vrot.lane.b32.xlu0 %v1558, 96
  %v2563 = vpop.permute.xlu0 %2562
  %2564 = vrot.lane.b32.xlu0 %v1559, 96
  %v2565 = vpop.permute.xlu0 %2564
  %2566 = vrot.lane.b32.xlu0 %v1560, 96
  %v2567 = vpop.permute.xlu0 %2566
  %2568 = vrot.lane.b32.xlu0 %v1561, 96
  %v2569 = vpop.permute.xlu0 %2568
  %2570 = vrot.lane.b32.xlu0 %v1562, 96
  %v2571 = vpop.permute.xlu0 %2570
  %2572 = vrot.lane.b32.xlu0 %v1563, 96
  %v2573 = vpop.permute.xlu0 %2572
  %2574 = vrot.lane.b32.xlu0 %v1564, 96
  %v2575 = vpop.permute.xlu0 %2574
  %2576 = vrot.lane.b32.xlu0 %v1565, 96
  %v2577 = vpop.permute.xlu0 %2576
  %2578 = vrot.lane.b32.xlu0 %v1566, 96
  %v2579 = vpop.permute.xlu0 %2578
  %2580 = vrot.lane.b32.xlu0 %v1567, 96
  %v2581 = vpop.permute.xlu0 %2580
  %2582 = vrot.lane.b32.xlu0 %v1568, 96
  %v2583 = vpop.permute.xlu0 %2582
  %2584 = vrot.lane.b32.xlu0 %v1569, 96
  %v2585 = vpop.permute.xlu0 %2584
  %2586 = vrot.lane.b32.xlu0 %v1570, 96
  %v2587 = vpop.permute.xlu0 %2586
  %2588 = vrot.lane.b32.xlu0 %v1571, 96
  %v2589 = vpop.permute.xlu0 %2588
  %2590 = vrot.lane.b32.xlu0 %v1572, 96
  %v2591 = vpop.permute.xlu0 %2590
  %2592 = vrot.lane.b32.xlu0 %v1573, 96
  %v2593 = vpop.permute.xlu0 %2592
  %2594 = vrot.lane.b32.xlu0 %v1574, 96
  %v2595 = vpop.permute.xlu0 %2594
  %2596 = vrot.lane.b32.xlu0 %v1575, 96
  %v2597 = vpop.permute.xlu0 %2596
  %2598 = vrot.lane.b32.xlu0 %v1576, 96
  %v2599 = vpop.permute.xlu0 %2598
  %2600 = vrot.lane.b32.xlu0 %v1577, 96
  %v2601 = vpop.permute.xlu0 %2600
  %2602 = vrot.lane.b32.xlu0 %v1578, 96
  %v2603 = vpop.permute.xlu0 %2602
  %2732 = vrot.lane.b32.xlu0 %v1643, 32
  %v2733 = vpop.permute.xlu0 %2732
  %2734 = vrot.lane.b32.xlu0 %v1644, 32
  %v2735 = vpop.permute.xlu0 %2734
  %2736 = vrot.lane.b32.xlu0 %v1645, 32
  %v2737 = vpop.permute.xlu0 %2736
  %2738 = vrot.lane.b32.xlu0 %v1646, 32
  %v2739 = vpop.permute.xlu0 %2738
  %2740 = vrot.lane.b32.xlu0 %v1647, 32
  %v2741 = vpop.permute.xlu0 %2740
  %2742 = vrot.lane.b32.xlu0 %v1648, 32
  %v2743 = vpop.permute.xlu0 %2742
  %2744 = vrot.lane.b32.xlu0 %v1649, 32
  %v2745 = vpop.permute.xlu0 %2744
  %2746 = vrot.lane.b32.xlu0 %v1650, 32
  %v2747 = vpop.permute.xlu0 %2746
  %2748 = vrot.lane.b32.xlu0 %v1651, 32
  %v2749 = vpop.permute.xlu0 %2748
  %2750 = vrot.lane.b32.xlu0 %v1652, 32
  %v2751 = vpop.permute.xlu0 %2750
  %2752 = vrot.lane.b32.xlu0 %v1653, 32
  %v2753 = vpop.permute.xlu0 %2752
  %2754 = vrot.lane.b32.xlu0 %v1654, 32
  %v2755 = vpop.permute.xlu0 %2754
  %2756 = vrot.lane.b32.xlu0 %v1655, 32
  %v2757 = vpop.permute.xlu0 %2756
  %2758 = vrot.lane.b32.xlu0 %v1656, 32
  %v2759 = vpop.permute.xlu0 %2758
  %2760 = vrot.lane.b32.xlu0 %v1657, 32
  %v2761 = vpop.permute.xlu0 %2760
  %2762 = vrot.lane.b32.xlu0 %v1658, 32
  %v2763 = vpop.permute.xlu0 %2762
  %2764 = vrot.lane.b32.xlu0 %v1659, 32
  %v2765 = vpop.permute.xlu0 %2764
  %2766 = vrot.lane.b32.xlu0 %v1660, 32
  %v2767 = vpop.permute.xlu0 %2766
  %2768 = vrot.lane.b32.xlu0 %v1661, 32
  %v2769 = vpop.permute.xlu0 %2768
  %2770 = vrot.lane.b32.xlu0 %v1662, 32
  %v2771 = vpop.permute.xlu0 %2770
  %2772 = vrot.lane.b32.xlu0 %v1663, 32
  %v2773 = vpop.permute.xlu0 %2772
  %2774 = vrot.lane.b32.xlu0 %v1664, 32
  %v2775 = vpop.permute.xlu0 %2774
  %2776 = vrot.lane.b32.xlu0 %v1665, 32
  %v2777 = vpop.permute.xlu0 %2776
  %2778 = vrot.lane.b32.xlu0 %v1666, 32
  %v2779 = vpop.permute.xlu0 %2778
  %2780 = vrot.lane.b32.xlu0 %v1667, 32
  %v2781 = vpop.permute.xlu0 %2780
  %2782 = vrot.lane.b32.xlu0 %v1668, 32
  %v2783 = vpop.permute.xlu0 %2782
  %2784 = vrot.lane.b32.xlu0 %v1669, 32
  %v2785 = vpop.permute.xlu0 %2784
  %2786 = vrot.lane.b32.xlu0 %v1670, 32
  %v2787 = vpop.permute.xlu0 %2786
  %2788 = vrot.lane.b32.xlu0 %v1671, 32
  %v2789 = vpop.permute.xlu0 %2788
  %2790 = vrot.lane.b32.xlu0 %v1672, 32
  %v2791 = vpop.permute.xlu0 %2790
  %2792 = vrot.lane.b32.xlu0 %v1673, 32
  %v2793 = vpop.permute.xlu0 %2792
  %2794 = vrot.lane.b32.xlu0 %v1674, 32
  %v2795 = vpop.permute.xlu0 %2794
  %2796 = vrot.lane.b32.xlu0 %v1675, 32
  %v2797 = vpop.permute.xlu0 %2796
  %2798 = vrot.lane.b32.xlu0 %v1676, 32
  %v2799 = vpop.permute.xlu0 %2798
  %2800 = vrot.lane.b32.xlu0 %v1677, 32
  %v2801 = vpop.permute.xlu0 %2800
  %2802 = vrot.lane.b32.xlu0 %v1678, 32
  %v2803 = vpop.permute.xlu0 %2802
  %2804 = vrot.lane.b32.xlu0 %v1679, 32
  %v2805 = vpop.permute.xlu0 %2804
  %2806 = vrot.lane.b32.xlu0 %v1680, 32
  %v2807 = vpop.permute.xlu0 %2806
  %2808 = vrot.lane.b32.xlu0 %v1681, 32
  %v2809 = vpop.permute.xlu0 %2808
  %2810 = vrot.lane.b32.xlu0 %v1682, 32
  %v2811 = vpop.permute.xlu0 %2810
  %2812 = vrot.lane.b32.xlu0 %v1683, 32
  %v2813 = vpop.permute.xlu0 %2812
  %2814 = vrot.lane.b32.xlu0 %v1684, 32
  %v2815 = vpop.permute.xlu0 %2814
  %2816 = vrot.lane.b32.xlu0 %v1685, 32
  %v2817 = vpop.permute.xlu0 %2816
  %2818 = vrot.lane.b32.xlu0 %v1686, 32
  %v2819 = vpop.permute.xlu0 %2818
  %2820 = vrot.lane.b32.xlu0 %v1687, 32
  %v2821 = vpop.permute.xlu0 %2820
  %2822 = vrot.lane.b32.xlu0 %v1688, 32
  %v2823 = vpop.permute.xlu0 %2822
  %2824 = vrot.lane.b32.xlu0 %v1689, 32
  %v2825 = vpop.permute.xlu0 %2824
  %2826 = vrot.lane.b32.xlu0 %v1690, 32
  %v2827 = vpop.permute.xlu0 %2826
  %2828 = vrot.lane.b32.xlu0 %v1691, 32
  %v2829 = vpop.permute.xlu0 %2828
  %2830 = vrot.lane.b32.xlu0 %v1692, 32
  %v2831 = vpop.permute.xlu0 %2830
  %2832 = vrot.lane.b32.xlu0 %v1693, 32
  %v2833 = vpop.permute.xlu0 %2832
  %2834 = vrot.lane.b32.xlu0 %v1694, 32
  %v2835 = vpop.permute.xlu0 %2834
  %2836 = vrot.lane.b32.xlu0 %v1695, 32
  %v2837 = vpop.permute.xlu0 %2836
  %2838 = vrot.lane.b32.xlu0 %v1696, 32
  %v2839 = vpop.permute.xlu0 %2838
  %2840 = vrot.lane.b32.xlu0 %v1697, 32
  %v2841 = vpop.permute.xlu0 %2840
  %2842 = vrot.lane.b32.xlu0 %v1698, 32
  %v2843 = vpop.permute.xlu0 %2842
  %2844 = vrot.lane.b32.xlu0 %v1699, 32
  %v2845 = vpop.permute.xlu0 %2844
  %2846 = vrot.lane.b32.xlu0 %v1700, 32
  %v2847 = vpop.permute.xlu0 %2846
  %2848 = vrot.lane.b32.xlu0 %v1701, 32
  %v2849 = vpop.permute.xlu0 %2848
  %2850 = vrot.lane.b32.xlu0 %v1702, 32
  %v2851 = vpop.permute.xlu0 %2850
  %2852 = vrot.lane.b32.xlu0 %v1703, 32
  %v2853 = vpop.permute.xlu0 %2852
  %2854 = vrot.lane.b32.xlu0 %v1704, 32
  %v2855 = vpop.permute.xlu0 %2854
  %2856 = vrot.lane.b32.xlu0 %v1705, 32
  %v2857 = vpop.permute.xlu0 %2856
  %2858 = vrot.lane.b32.xlu0 %v1706, 32
  %v2859 = vpop.permute.xlu0 %2858
  %2988 = vrot.lane.b32.xlu0 %v1708, 64
  %v2989 = vpop.permute.xlu0 %2988
  %2990 = vrot.lane.b32.xlu0 %v1709, 64
  %v2991 = vpop.permute.xlu0 %2990
  %2992 = vrot.lane.b32.xlu0 %v1710, 64
  %v2993 = vpop.permute.xlu0 %2992
  %2994 = vrot.lane.b32.xlu0 %v1711, 64
  %v2995 = vpop.permute.xlu0 %2994
  %2996 = vrot.lane.b32.xlu0 %v1712, 64
  %v2997 = vpop.permute.xlu0 %2996
  %2998 = vrot.lane.b32.xlu0 %v1713, 64
  %v2999 = vpop.permute.xlu0 %2998
  %3000 = vrot.lane.b32.xlu0 %v1714, 64
  %v3001 = vpop.permute.xlu0 %3000
  %3002 = vrot.lane.b32.xlu0 %v1715, 64
  %v3003 = vpop.permute.xlu0 %3002
  %3004 = vrot.lane.b32.xlu0 %v1716, 64
  %v3005 = vpop.permute.xlu0 %3004
  %3006 = vrot.lane.b32.xlu0 %v1717, 64
  %v3007 = vpop.permute.xlu0 %3006
  %3008 = vrot.lane.b32.xlu0 %v1718, 64
  %v3009 = vpop.permute.xlu0 %3008
  %3010 = vrot.lane.b32.xlu0 %v1719, 64
  %v3011 = vpop.permute.xlu0 %3010
  %3012 = vrot.lane.b32.xlu0 %v1720, 64
  %v3013 = vpop.permute.xlu0 %3012
  %3014 = vrot.lane.b32.xlu0 %v1721, 64
  %v3015 = vpop.permute.xlu0 %3014
  %3016 = vrot.lane.b32.xlu0 %v1722, 64
  %v3017 = vpop.permute.xlu0 %3016
  %3018 = vrot.lane.b32.xlu0 %v1723, 64
  %v3019 = vpop.permute.xlu0 %3018
  %3020 = vrot.lane.b32.xlu0 %v1724, 64
  %v3021 = vpop.permute.xlu0 %3020
  %3022 = vrot.lane.b32.xlu0 %v1725, 64
  %v3023 = vpop.permute.xlu0 %3022
  %3024 = vrot.lane.b32.xlu0 %v1726, 64
  %v3025 = vpop.permute.xlu0 %3024
  %3026 = vrot.lane.b32.xlu0 %v1727, 64
  %v3027 = vpop.permute.xlu0 %3026
  %3028 = vrot.lane.b32.xlu0 %v1728, 64
  %v3029 = vpop.permute.xlu0 %3028
  %3030 = vrot.lane.b32.xlu0 %v1729, 64
  %v3031 = vpop.permute.xlu0 %3030
  %3032 = vrot.lane.b32.xlu0 %v1730, 64
  %v3033 = vpop.permute.xlu0 %3032
  %3034 = vrot.lane.b32.xlu0 %v1731, 64
  %v3035 = vpop.permute.xlu0 %3034
  %3036 = vrot.lane.b32.xlu0 %v1732, 64
  %v3037 = vpop.permute.xlu0 %3036
  %3038 = vrot.lane.b32.xlu0 %v1733, 64
  %v3039 = vpop.permute.xlu0 %3038
  %3040 = vrot.lane.b32.xlu0 %v1734, 64
  %v3041 = vpop.permute.xlu0 %3040
  %3042 = vrot.lane.b32.xlu0 %v1735, 64
  %v3043 = vpop.permute.xlu0 %3042
  %3044 = vrot.lane.b32.xlu0 %v1736, 64
  %v3045 = vpop.permute.xlu0 %3044
  %3046 = vrot.lane.b32.xlu0 %v1737, 64
  %v3047 = vpop.permute.xlu0 %3046
  %3048 = vrot.lane.b32.xlu0 %v1738, 64
  %v3049 = vpop.permute.xlu0 %3048
  %3050 = vrot.lane.b32.xlu0 %v1739, 64
  %v3051 = vpop.permute.xlu0 %3050
  %3052 = vrot.lane.b32.xlu0 %v1740, 64
  %v3053 = vpop.permute.xlu0 %3052
  %3054 = vrot.lane.b32.xlu0 %v1741, 64
  %v3055 = vpop.permute.xlu0 %3054
  %3056 = vrot.lane.b32.xlu0 %v1742, 64
  %v3057 = vpop.permute.xlu0 %3056
  %3058 = vrot.lane.b32.xlu0 %v1743, 64
  %v3059 = vpop.permute.xlu0 %3058
  %3060 = vrot.lane.b32.xlu0 %v1744, 64
  %v3061 = vpop.permute.xlu0 %3060
  %3062 = vrot.lane.b32.xlu0 %v1745, 64
  %v3063 = vpop.permute.xlu0 %3062
  %3064 = vrot.lane.b32.xlu0 %v1746, 64
  %v3065 = vpop.permute.xlu0 %3064
  %3066 = vrot.lane.b32.xlu0 %v1747, 64
  %v3067 = vpop.permute.xlu0 %3066
  %3068 = vrot.lane.b32.xlu0 %v1748, 64
  %v3069 = vpop.permute.xlu0 %3068
  %3070 = vrot.lane.b32.xlu0 %v1749, 64
  %v3071 = vpop.permute.xlu0 %3070
  %3072 = vrot.lane.b32.xlu0 %v1750, 64
  %v3073 = vpop.permute.xlu0 %3072
  %3074 = vrot.lane.b32.xlu0 %v1751, 64
  %v3075 = vpop.permute.xlu0 %3074
  %3076 = vrot.lane.b32.xlu0 %v1752, 64
  %v3077 = vpop.permute.xlu0 %3076
  %3078 = vrot.lane.b32.xlu0 %v1753, 64
  %v3079 = vpop.permute.xlu0 %3078
  %3080 = vrot.lane.b32.xlu0 %v1754, 64
  %v3081 = vpop.permute.xlu0 %3080
  %3082 = vrot.lane.b32.xlu0 %v1755, 64
  %v3083 = vpop.permute.xlu0 %3082
  %3084 = vrot.lane.b32.xlu0 %v1756, 64
  %v3085 = vpop.permute.xlu0 %3084
  %3086 = vrot.lane.b32.xlu0 %v1757, 64
  %v3087 = vpop.permute.xlu0 %3086
  %3088 = vrot.lane.b32.xlu0 %v1758, 64
  %v3089 = vpop.permute.xlu0 %3088
  %3090 = vrot.lane.b32.xlu0 %v1759, 64
  %v3091 = vpop.permute.xlu0 %3090
  %3092 = vrot.lane.b32.xlu0 %v1760, 64
  %v3093 = vpop.permute.xlu0 %3092
  %3094 = vrot.lane.b32.xlu0 %v1761, 64
  %v3095 = vpop.permute.xlu0 %3094
  %3096 = vrot.lane.b32.xlu0 %v1762, 64
  %v3097 = vpop.permute.xlu0 %3096
  %3098 = vrot.lane.b32.xlu0 %v1763, 64
  %v3099 = vpop.permute.xlu0 %3098
  %3100 = vrot.lane.b32.xlu0 %v1764, 64
  %v3101 = vpop.permute.xlu0 %3100
  %3102 = vrot.lane.b32.xlu0 %v1765, 64
  %v3103 = vpop.permute.xlu0 %3102
  %3104 = vrot.lane.b32.xlu0 %v1766, 64
  %v3105 = vpop.permute.xlu0 %3104
  %3106 = vrot.lane.b32.xlu0 %v1767, 64
  %v3107 = vpop.permute.xlu0 %3106
  %3108 = vrot.lane.b32.xlu0 %v1768, 64
  %v3109 = vpop.permute.xlu0 %3108
  %3110 = vrot.lane.b32.xlu0 %v1769, 64
  %v3111 = vpop.permute.xlu0 %3110
  %3112 = vrot.lane.b32.xlu0 %v1770, 64
  %v3113 = vpop.permute.xlu0 %3112
  %3114 = vrot.lane.b32.xlu0 %v1771, 64
  %v3115 = vpop.permute.xlu0 %3114
  %3244 = vrot.lane.b32.xlu0 %v1772, 96
  %v3245 = vpop.permute.xlu0 %3244
  %3246 = vrot.lane.b32.xlu0 %v1773, 96
  %v3247 = vpop.permute.xlu0 %3246
  %3248 = vrot.lane.b32.xlu0 %v1774, 96
  %v3249 = vpop.permute.xlu0 %3248
  %3250 = vrot.lane.b32.xlu0 %v1775, 96
  %v3251 = vpop.permute.xlu0 %3250
  %3252 = vrot.lane.b32.xlu0 %v1776, 96
  %v3253 = vpop.permute.xlu0 %3252
  %3254 = vrot.lane.b32.xlu0 %v1777, 96
  %v3255 = vpop.permute.xlu0 %3254
  %3256 = vrot.lane.b32.xlu0 %v1778, 96
  %v3257 = vpop.permute.xlu0 %3256
  %3258 = vrot.lane.b32.xlu0 %v1779, 96
  %v3259 = vpop.permute.xlu0 %3258
  %3260 = vrot.lane.b32.xlu0 %v1780, 96
  %v3261 = vpop.permute.xlu0 %3260
  %3262 = vrot.lane.b32.xlu0 %v1781, 96
  %v3263 = vpop.permute.xlu0 %3262
  %3264 = vrot.lane.b32.xlu0 %v1782, 96
  %v3265 = vpop.permute.xlu0 %3264
  %3266 = vrot.lane.b32.xlu0 %v1783, 96
  %v3267 = vpop.permute.xlu0 %3266
  %3268 = vrot.lane.b32.xlu0 %v1784, 96
  %v3269 = vpop.permute.xlu0 %3268
  %3270 = vrot.lane.b32.xlu0 %v1785, 96
  %v3271 = vpop.permute.xlu0 %3270
  %3272 = vrot.lane.b32.xlu0 %v1786, 96
  %v3273 = vpop.permute.xlu0 %3272
  %3274 = vrot.lane.b32.xlu0 %v1787, 96
  %v3275 = vpop.permute.xlu0 %3274
  %3276 = vrot.lane.b32.xlu0 %v1788, 96
  %v3277 = vpop.permute.xlu0 %3276
  %3278 = vrot.lane.b32.xlu0 %v1789, 96
  %v3279 = vpop.permute.xlu0 %3278
  %3280 = vrot.lane.b32.xlu0 %v1790, 96
  %v3281 = vpop.permute.xlu0 %3280
  %3282 = vrot.lane.b32.xlu0 %v1791, 96
  %v3283 = vpop.permute.xlu0 %3282
  %3284 = vrot.lane.b32.xlu0 %v1792, 96
  %v3285 = vpop.permute.xlu0 %3284
  %3286 = vrot.lane.b32.xlu0 %v1793, 96
  %v3287 = vpop.permute.xlu0 %3286
  %3288 = vrot.lane.b32.xlu0 %v1794, 96
  %v3289 = vpop.permute.xlu0 %3288
  %3290 = vrot.lane.b32.xlu0 %v1795, 96
  %v3291 = vpop.permute.xlu0 %3290
  %3292 = vrot.lane.b32.xlu0 %v1796, 96
  %v3293 = vpop.permute.xlu0 %3292
  %3294 = vrot.lane.b32.xlu0 %v1797, 96
  %v3295 = vpop.permute.xlu0 %3294
  %3296 = vrot.lane.b32.xlu0 %v1798, 96
  %v3297 = vpop.permute.xlu0 %3296
  %3298 = vrot.lane.b32.xlu0 %v1799, 96
  %v3299 = vpop.permute.xlu0 %3298
  %3300 = vrot.lane.b32.xlu0 %v1800, 96
  %v3301 = vpop.permute.xlu0 %3300
  %3302 = vrot.lane.b32.xlu0 %v1801, 96
  %v3303 = vpop.permute.xlu0 %3302
  %3304 = vrot.lane.b32.xlu0 %v1802, 96
  %v3305 = vpop.permute.xlu0 %3304
  %3306 = vrot.lane.b32.xlu0 %v1803, 96
  %v3307 = vpop.permute.xlu0 %3306
  %3308 = vrot.lane.b32.xlu0 %v1804, 96
  %v3309 = vpop.permute.xlu0 %3308
  %3310 = vrot.lane.b32.xlu0 %v1805, 96
  %v3311 = vpop.permute.xlu0 %3310
  %3312 = vrot.lane.b32.xlu0 %v1806, 96
  %v3313 = vpop.permute.xlu0 %3312
  %3314 = vrot.lane.b32.xlu0 %v1807, 96
  %v3315 = vpop.permute.xlu0 %3314
  %3316 = vrot.lane.b32.xlu0 %v1808, 96
  %v3317 = vpop.permute.xlu0 %3316
  %3318 = vrot.lane.b32.xlu0 %v1809, 96
  %v3319 = vpop.permute.xlu0 %3318
  %3320 = vrot.lane.b32.xlu0 %v1810, 96
  %v3321 = vpop.permute.xlu0 %3320
  %3322 = vrot.lane.b32.xlu0 %v1811, 96
  %v3323 = vpop.permute.xlu0 %3322
  %3324 = vrot.lane.b32.xlu0 %v1812, 96
  %v3325 = vpop.permute.xlu0 %3324
  %3326 = vrot.lane.b32.xlu0 %v1813, 96
  %v3327 = vpop.permute.xlu0 %3326
  %3328 = vrot.lane.b32.xlu0 %v1814, 96
  %v3329 = vpop.permute.xlu0 %3328
  %3330 = vrot.lane.b32.xlu0 %v1815, 96
  %v3331 = vpop.permute.xlu0 %3330
  %3332 = vrot.lane.b32.xlu0 %v1816, 96
  %v3333 = vpop.permute.xlu0 %3332
  %3334 = vrot.lane.b32.xlu0 %v1817, 96
  %v3335 = vpop.permute.xlu0 %3334
  %3336 = vrot.lane.b32.xlu0 %v1818, 96
  %v3337 = vpop.permute.xlu0 %3336
  %3338 = vrot.lane.b32.xlu0 %v1819, 96
  %v3339 = vpop.permute.xlu0 %3338
  %3340 = vrot.lane.b32.xlu0 %v1820, 96
  %v3341 = vpop.permute.xlu0 %3340
  %3342 = vrot.lane.b32.xlu0 %v1821, 96
  %v3343 = vpop.permute.xlu0 %3342
  %3344 = vrot.lane.b32.xlu0 %v1822, 96
  %v3345 = vpop.permute.xlu0 %3344
  %3346 = vrot.lane.b32.xlu0 %v1823, 96
  %v3347 = vpop.permute.xlu0 %3346
  %3348 = vrot.lane.b32.xlu0 %v1824, 96
  %v3349 = vpop.permute.xlu0 %3348
  %3350 = vrot.lane.b32.xlu0 %v1825, 96
  %v3351 = vpop.permute.xlu0 %3350
  %3352 = vrot.lane.b32.xlu0 %v1826, 96
  %v3353 = vpop.permute.xlu0 %3352
  %3354 = vrot.lane.b32.xlu0 %v1827, 96
  %v3355 = vpop.permute.xlu0 %3354
  %3356 = vrot.lane.b32.xlu0 %v1828, 96
  %v3357 = vpop.permute.xlu0 %3356
  %3358 = vrot.lane.b32.xlu0 %v1829, 96
  %v3359 = vpop.permute.xlu0 %3358
  %3360 = vrot.lane.b32.xlu0 %v1830, 96
  %v3361 = vpop.permute.xlu0 %3360
  %3362 = vrot.lane.b32.xlu0 %v1831, 96
  %v3363 = vpop.permute.xlu0 %3362
  %3364 = vrot.lane.b32.xlu0 %v1832, 96
  %v3365 = vpop.permute.xlu0 %3364
  %3366 = vrot.lane.b32.xlu0 %v1833, 96
  %v3367 = vpop.permute.xlu0 %3366
  %3368 = vrot.lane.b32.xlu0 %v1834, 96
  %v3369 = vpop.permute.xlu0 %3368
  %3370 = vrot.lane.b32.xlu0 %v1835, 96
  %v3371 = vpop.permute.xlu0 %3370
  %v3436 = vsel %vm494, %v1323, %v1965
  %v3437 = vsel %vm494, %v1324, %v1967
  %v3438 = vsel %vm494, %v1325, %v1969
  %v3439 = vsel %vm494, %v1326, %v1971
  %v3440 = vsel %vm494, %v1327, %v1973
  %v3441 = vsel %vm494, %v1328, %v1975
  %v3442 = vsel %vm494, %v1329, %v1977
  %v3443 = vsel %vm494, %v1330, %v1979
  %v3444 = vsel %vm494, %v1331, %v1981
  %v3445 = vsel %vm494, %v1332, %v1983
  %v3446 = vsel %vm494, %v1333, %v1985
  %v3447 = vsel %vm494, %v1334, %v1987
  %v3448 = vsel %vm494, %v1335, %v1989
  %v3449 = vsel %vm494, %v1336, %v1991
  %v3450 = vsel %vm494, %v1337, %v1993
  %v3451 = vsel %vm494, %v1338, %v1995
  %v3452 = vsel %vm494, %v1339, %v1997
  %v3453 = vsel %vm494, %v1340, %v1999
  %v3454 = vsel %vm494, %v1341, %v2001
  %v3455 = vsel %vm494, %v1342, %v2003
  %v3456 = vsel %vm494, %v1343, %v2005
  %v3457 = vsel %vm494, %v1344, %v2007
  %v3458 = vsel %vm494, %v1345, %v2009
  %v3459 = vsel %vm494, %v1346, %v2011
  %v3460 = vsel %vm494, %v1347, %v2013
  %v3461 = vsel %vm494, %v1348, %v2015
  %v3462 = vsel %vm494, %v1349, %v2017
  %v3463 = vsel %vm494, %v1350, %v2019
  %v3464 = vsel %vm494, %v1351, %v2021
  %v3465 = vsel %vm494, %v1352, %v2023
  %v3466 = vsel %vm494, %v1353, %v2025
  %v3467 = vsel %vm494, %v1354, %v2027
  %v3468 = vsel %vm494, %v1355, %v2029
  %v3469 = vsel %vm494, %v1356, %v2031
  %v3470 = vsel %vm494, %v1357, %v2033
  %v3471 = vsel %vm494, %v1358, %v2035
  %v3472 = vsel %vm494, %v1359, %v2037
  %v3473 = vsel %vm494, %v1360, %v2039
  %v3474 = vsel %vm494, %v1361, %v2041
  %v3475 = vsel %vm494, %v1362, %v2043
  %v3476 = vsel %vm494, %v1363, %v2045
  %v3477 = vsel %vm494, %v1364, %v2047
  %v3478 = vsel %vm494, %v1365, %v2049
  %v3479 = vsel %vm494, %v1366, %v2051
  %v3480 = vsel %vm494, %v1367, %v2053
  %v3481 = vsel %vm494, %v1368, %v2055
  %v3482 = vsel %vm494, %v1369, %v2057
  %v3483 = vsel %vm494, %v1370, %v2059
  %v3484 = vsel %vm494, %v1371, %v2061
  %v3485 = vsel %vm494, %v1372, %v2063
  %v3486 = vsel %vm494, %v1373, %v2065
  %v3487 = vsel %vm494, %v1374, %v2067
  %v3488 = vsel %vm494, %v1375, %v2069
  %v3489 = vsel %vm494, %v1376, %v2071
  %v3490 = vsel %vm494, %v1377, %v2073
  %v3491 = vsel %vm494, %v1378, %v2075
  %v3492 = vsel %vm494, %v1379, %v2077
  %v3493 = vsel %vm494, %v1380, %v2079
  %v3494 = vsel %vm494, %v1381, %v2081
  %v3495 = vsel %vm494, %v1382, %v2083
  %v3496 = vsel %vm494, %v1383, %v2085
  %v3497 = vsel %vm494, %v1384, %v2087
  %v3498 = vsel %vm494, %v1385, %v2089
  %v3499 = vsel %vm494, %v1386, %v2091
  %vm3500 = vcmask 523264
  %v3501 = vsel %vm3500, %v3436, %v2221
  %v3502 = vsel %vm3500, %v3437, %v2223
  %v3503 = vsel %vm3500, %v3438, %v2225
  %v3504 = vsel %vm3500, %v3439, %v2227
  %v3505 = vsel %vm3500, %v3440, %v2229
  %v3506 = vsel %vm3500, %v3441, %v2231
  %v3507 = vsel %vm3500, %v3442, %v2233
  %v3508 = vsel %vm3500, %v3443, %v2235
  %v3509 = vsel %vm3500, %v3444, %v2237
  %v3510 = vsel %vm3500, %v3445, %v2239
  %v3511 = vsel %vm3500, %v3446, %v2241
  %v3512 = vsel %vm3500, %v3447, %v2243
  %v3513 = vsel %vm3500, %v3448, %v2245
  %v3514 = vsel %vm3500, %v3449, %v2247
  %v3515 = vsel %vm3500, %v3450, %v2249
  %v3516 = vsel %vm3500, %v3451, %v2251
  %v3517 = vsel %vm3500, %v3452, %v2253
  %v3518 = vsel %vm3500, %v3453, %v2255
  %v3519 = vsel %vm3500, %v3454, %v2257
  %v3520 = vsel %vm3500, %v3455, %v2259
  %v3521 = vsel %vm3500, %v3456, %v2261
  %v3522 = vsel %vm3500, %v3457, %v2263
  %v3523 = vsel %vm3500, %v3458, %v2265
  %v3524 = vsel %vm3500, %v3459, %v2267
  %v3525 = vsel %vm3500, %v3460, %v2269
  %v3526 = vsel %vm3500, %v3461, %v2271
  %v3527 = vsel %vm3500, %v3462, %v2273
  %v3528 = vsel %vm3500, %v3463, %v2275
  %v3529 = vsel %vm3500, %v3464, %v2277
  %v3530 = vsel %vm3500, %v3465, %v2279
  %v3531 = vsel %vm3500, %v3466, %v2281
  %v3532 = vsel %vm3500, %v3467, %v2283
  %v3533 = vsel %vm3500, %v3468, %v2285
  %v3534 = vsel %vm3500, %v3469, %v2287
  %v3535 = vsel %vm3500, %v3470, %v2289
  %v3536 = vsel %vm3500, %v3471, %v2291
  %v3537 = vsel %vm3500, %v3472, %v2293
  %v3538 = vsel %vm3500, %v3473, %v2295
  %v3539 = vsel %vm3500, %v3474, %v2297
  %v3540 = vsel %vm3500, %v3475, %v2299
  %v3541 = vsel %vm3500, %v3476, %v2301
  %v3542 = vsel %vm3500, %v3477, %v2303
  %v3543 = vsel %vm3500, %v3478, %v2305
  %v3544 = vsel %vm3500, %v3479, %v2307
  %v3545 = vsel %vm3500, %v3480, %v2309
  %v3546 = vsel %vm3500, %v3481, %v2311
  %v3547 = vsel %vm3500, %v3482, %v2313
  %v3548 = vsel %vm3500, %v3483, %v2315
  %v3549 = vsel %vm3500, %v3484, %v2317
  %v3550 = vsel %vm3500, %v3485, %v2319
  %v3551 = vsel %vm3500, %v3486, %v2321
  %v3552 = vsel %vm3500, %v3487, %v2323
  %v3553 = vsel %vm3500, %v3488, %v2325
  %v3554 = vsel %vm3500, %v3489, %v2327
  %v3555 = vsel %vm3500, %v3490, %v2329
  %v3556 = vsel %vm3500, %v3491, %v2331
  %v3557 = vsel %vm3500, %v3492, %v2333
  %v3558 = vsel %vm3500, %v3493, %v2335
  %v3559 = vsel %vm3500, %v3494, %v2337
  %v3560 = vsel %vm3500, %v3495, %v2339
  %v3561 = vsel %vm3500, %v3496, %v2341
  %v3562 = vsel %vm3500, %v3497, %v2343
  %v3563 = vsel %vm3500, %v3498, %v2345
  %v3564 = vsel %vm3500, %v3499, %v2347
  %vm3565 = vcmask 785408
  %v3566 = vsel %vm3565, %v3501, %v2477
  %v3567 = vsel %vm3565, %v3502, %v2479
  %v3568 = vsel %vm3565, %v3503, %v2481
  %v3569 = vsel %vm3565, %v3504, %v2483
  %v3570 = vsel %vm3565, %v3505, %v2485
  %v3571 = vsel %vm3565, %v3506, %v2487
  %v3572 = vsel %vm3565, %v3507, %v2489
  %v3573 = vsel %vm3565, %v3508, %v2491
  %v3574 = vsel %vm3565, %v3509, %v2493
  %v3575 = vsel %vm3565, %v3510, %v2495
  %v3576 = vsel %vm3565, %v3511, %v2497
  %v3577 = vsel %vm3565, %v3512, %v2499
  %v3578 = vsel %vm3565, %v3513, %v2501
  %v3579 = vsel %vm3565, %v3514, %v2503
  %v3580 = vsel %vm3565, %v3515, %v2505
  %v3581 = vsel %vm3565, %v3516, %v2507
  %v3582 = vsel %vm3565, %v3517, %v2509
  %v3583 = vsel %vm3565, %v3518, %v2511
  %v3584 = vsel %vm3565, %v3519, %v2513
  %v3585 = vsel %vm3565, %v3520, %v2515
  %v3586 = vsel %vm3565, %v3521, %v2517
  %v3587 = vsel %vm3565, %v3522, %v2519
  %v3588 = vsel %vm3565, %v3523, %v2521
  %v3589 = vsel %vm3565, %v3524, %v2523
  %v3590 = vsel %vm3565, %v3525, %v2525
  %v3591 = vsel %vm3565, %v3526, %v2527
  %v3592 = vsel %vm3565, %v3527, %v2529
  %v3593 = vsel %vm3565, %v3528, %v2531
  %v3594 = vsel %vm3565, %v3529, %v2533
  %v3595 = vsel %vm3565, %v3530, %v2535
  %v3596 = vsel %vm3565, %v3531, %v2537
  %v3597 = vsel %vm3565, %v3532, %v2539
  %v3598 = vsel %vm3565, %v3533, %v2541
  %v3599 = vsel %vm3565, %v3534, %v2543
  %v3600 = vsel %vm3565, %v3535, %v2545
  %v3601 = vsel %vm3565, %v3536, %v2547
  %v3602 = vsel %vm3565, %v3537, %v2549
  %v3603 = vsel %vm3565, %v3538, %v2551
  %v3604 = vsel %vm3565, %v3539, %v2553
  %v3605 = vsel %vm3565, %v3540, %v2555
  %v3606 = vsel %vm3565, %v3541, %v2557
  %v3607 = vsel %vm3565, %v3542, %v2559
  %v3608 = vsel %vm3565, %v3543, %v2561
  %v3609 = vsel %vm3565, %v3544, %v2563
  %v3610 = vsel %vm3565, %v3545, %v2565
  %v3611 = vsel %vm3565, %v3546, %v2567
  %v3612 = vsel %vm3565, %v3547, %v2569
  %v3613 = vsel %vm3565, %v3548, %v2571
  %v3614 = vsel %vm3565, %v3549, %v2573
  %v3615 = vsel %vm3565, %v3550, %v2575
  %v3616 = vsel %vm3565, %v3551, %v2577
  %v3617 = vsel %vm3565, %v3552, %v2579
  %v3618 = vsel %vm3565, %v3553, %v2581
  %v3619 = vsel %vm3565, %v3554, %v2583
  %v3620 = vsel %vm3565, %v3555, %v2585
  %v3621 = vsel %vm3565, %v3556, %v2587
  %v3622 = vsel %vm3565, %v3557, %v2589
  %v3623 = vsel %vm3565, %v3558, %v2591
  %v3624 = vsel %vm3565, %v3559, %v2593
  %v3625 = vsel %vm3565, %v3560, %v2595
  %v3626 = vsel %vm3565, %v3561, %v2597
  %v3627 = vsel %vm3565, %v3562, %v2599
  %v3628 = vsel %vm3565, %v3563, %v2601
  %v3629 = vsel %vm3565, %v3564, %v2603
  %v3630 = vsel %vm494, %v1579, %v2733
  %v3631 = vsel %vm494, %v1580, %v2735
  %v3632 = vsel %vm494, %v1581, %v2737
  %v3633 = vsel %vm494, %v1582, %v2739
  %v3634 = vsel %vm494, %v1583, %v2741
  %v3635 = vsel %vm494, %v1584, %v2743
  %v3636 = vsel %vm494, %v1585, %v2745
  %v3637 = vsel %vm494, %v1586, %v2747
  %v3638 = vsel %vm494, %v1587, %v2749
  %v3639 = vsel %vm494, %v1588, %v2751
  %v3640 = vsel %vm494, %v1589, %v2753
  %v3641 = vsel %vm494, %v1590, %v2755
  %v3642 = vsel %vm494, %v1591, %v2757
  %v3643 = vsel %vm494, %v1592, %v2759
  %v3644 = vsel %vm494, %v1593, %v2761
  %v3645 = vsel %vm494, %v1594, %v2763
  %v3646 = vsel %vm494, %v1595, %v2765
  %v3647 = vsel %vm494, %v1596, %v2767
  %v3648 = vsel %vm494, %v1597, %v2769
  %v3649 = vsel %vm494, %v1598, %v2771
  %v3650 = vsel %vm494, %v1599, %v2773
  %v3651 = vsel %vm494, %v1600, %v2775
  %v3652 = vsel %vm494, %v1601, %v2777
  %v3653 = vsel %vm494, %v1602, %v2779
  %v3654 = vsel %vm494, %v1603, %v2781
  %v3655 = vsel %vm494, %v1604, %v2783
  %v3656 = vsel %vm494, %v1605, %v2785
  %v3657 = vsel %vm494, %v1606, %v2787
  %v3658 = vsel %vm494, %v1607, %v2789
  %v3659 = vsel %vm494, %v1608, %v2791
  %v3660 = vsel %vm494, %v1609, %v2793
  %v3661 = vsel %vm494, %v1610, %v2795
  %v3662 = vsel %vm494, %v1611, %v2797
  %v3663 = vsel %vm494, %v1612, %v2799
  %v3664 = vsel %vm494, %v1613, %v2801
  %v3665 = vsel %vm494, %v1614, %v2803
  %v3666 = vsel %vm494, %v1615, %v2805
  %v3667 = vsel %vm494, %v1616, %v2807
  %v3668 = vsel %vm494, %v1617, %v2809
  %v3669 = vsel %vm494, %v1618, %v2811
  %v3670 = vsel %vm494, %v1619, %v2813
  %v3671 = vsel %vm494, %v1620, %v2815
  %v3672 = vsel %vm494, %v1621, %v2817
  %v3673 = vsel %vm494, %v1622, %v2819
  %v3674 = vsel %vm494, %v1623, %v2821
  %v3675 = vsel %vm494, %v1624, %v2823
  %v3676 = vsel %vm494, %v1625, %v2825
  %v3677 = vsel %vm494, %v1626, %v2827
  %v3678 = vsel %vm494, %v1627, %v2829
  %v3679 = vsel %vm494, %v1628, %v2831
  %v3680 = vsel %vm494, %v1629, %v2833
  %v3681 = vsel %vm494, %v1630, %v2835
  %v3682 = vsel %vm494, %v1631, %v2837
  %v3683 = vsel %vm494, %v1632, %v2839
  %v3684 = vsel %vm494, %v1633, %v2841
  %v3685 = vsel %vm494, %v1634, %v2843
  %v3686 = vsel %vm494, %v1635, %v2845
  %v3687 = vsel %vm494, %v1636, %v2847
  %v3688 = vsel %vm494, %v1637, %v2849
  %v3689 = vsel %vm494, %v1638, %v2851
  %v3690 = vsel %vm494, %v1639, %v2853
  %v3691 = vsel %vm494, %v1640, %v2855
  %v3692 = vsel %vm494, %v1641, %v2857
  %v3693 = vsel %vm494, %v1642, %v2859
  %v3694 = vsel %vm3500, %v3630, %v2989
  %v3695 = vsel %vm3500, %v3631, %v2991
  %v3696 = vsel %vm3500, %v3632, %v2993
  %v3697 = vsel %vm3500, %v3633, %v2995
  %v3698 = vsel %vm3500, %v3634, %v2997
  %v3699 = vsel %vm3500, %v3635, %v2999
  %v3700 = vsel %vm3500, %v3636, %v3001
  %v3701 = vsel %vm3500, %v3637, %v3003
  %v3702 = vsel %vm3500, %v3638, %v3005
  %v3703 = vsel %vm3500, %v3639, %v3007
  %v3704 = vsel %vm3500, %v3640, %v3009
  %v3705 = vsel %vm3500, %v3641, %v3011
  %v3706 = vsel %vm3500, %v3642, %v3013
  %v3707 = vsel %vm3500, %v3643, %v3015
  %v3708 = vsel %vm3500, %v3644, %v3017
  %v3709 = vsel %vm3500, %v3645, %v3019
  %v3710 = vsel %vm3500, %v3646, %v3021
  %v3711 = vsel %vm3500, %v3647, %v3023
  %v3712 = vsel %vm3500, %v3648, %v3025
  %v3713 = vsel %vm3500, %v3649, %v3027
  %v3714 = vsel %vm3500, %v3650, %v3029
  %v3715 = vsel %vm3500, %v3651, %v3031
  %v3716 = vsel %vm3500, %v3652, %v3033
  %v3717 = vsel %vm3500, %v3653, %v3035
  %v3718 = vsel %vm3500, %v3654, %v3037
  %v3719 = vsel %vm3500, %v3655, %v3039
  %v3720 = vsel %vm3500, %v3656, %v3041
  %v3721 = vsel %vm3500, %v3657, %v3043
  %v3722 = vsel %vm3500, %v3658, %v3045
  %v3723 = vsel %vm3500, %v3659, %v3047
  %v3724 = vsel %vm3500, %v3660, %v3049
  %v3725 = vsel %vm3500, %v3661, %v3051
  %v3726 = vsel %vm3500, %v3662, %v3053
  %v3727 = vsel %vm3500, %v3663, %v3055
  %v3728 = vsel %vm3500, %v3664, %v3057
  %v3729 = vsel %vm3500, %v3665, %v3059
  %v3730 = vsel %vm3500, %v3666, %v3061
  %v3731 = vsel %vm3500, %v3667, %v3063
  %v3732 = vsel %vm3500, %v3668, %v3065
  %v3733 = vsel %vm3500, %v3669, %v3067
  %v3734 = vsel %vm3500, %v3670, %v3069
  %v3735 = vsel %vm3500, %v3671, %v3071
  %v3736 = vsel %vm3500, %v3672, %v3073
  %v3737 = vsel %vm3500, %v3673, %v3075
  %v3738 = vsel %vm3500, %v3674, %v3077
  %v3739 = vsel %vm3500, %v3675, %v3079
  %v3740 = vsel %vm3500, %v3676, %v3081
  %v3741 = vsel %vm3500, %v3677, %v3083
  %v3742 = vsel %vm3500, %v3678, %v3085
  %v3743 = vsel %vm3500, %v3679, %v3087
  %v3744 = vsel %vm3500, %v3680, %v3089
  %v3745 = vsel %vm3500, %v3681, %v3091
  %v3746 = vsel %vm3500, %v3682, %v3093
  %v3747 = vsel %vm3500, %v3683, %v3095
  %v3748 = vsel %vm3500, %v3684, %v3097
  %v3749 = vsel %vm3500, %v3685, %v3099
  %v3750 = vsel %vm3500, %v3686, %v3101
  %v3751 = vsel %vm3500, %v3687, %v3103
  %v3752 = vsel %vm3500, %v3688, %v3105
  %v3753 = vsel %vm3500, %v3689, %v3107
  %v3754 = vsel %vm3500, %v3690, %v3109
  %v3755 = vsel %vm3500, %v3691, %v3111
  %v3756 = vsel %vm3500, %v3692, %v3113
  %v3757 = vsel %vm3500, %v3693, %v3115
  %v3758 = vsel %vm3565, %v3694, %v3245
  %v3759 = vsel %vm3565, %v3695, %v3247
  %v3760 = vsel %vm3565, %v3696, %v3249
  %v3761 = vsel %vm3565, %v3697, %v3251
  %v3762 = vsel %vm3565, %v3698, %v3253
  %v3763 = vsel %vm3565, %v3699, %v3255
  %v3764 = vsel %vm3565, %v3700, %v3257
  %v3765 = vsel %vm3565, %v3701, %v3259
  %v3766 = vsel %vm3565, %v3702, %v3261
  %v3767 = vsel %vm3565, %v3703, %v3263
  %v3768 = vsel %vm3565, %v3704, %v3265
  %v3769 = vsel %vm3565, %v3705, %v3267
  %v3770 = vsel %vm3565, %v3706, %v3269
  %v3771 = vsel %vm3565, %v3707, %v3271
  %v3772 = vsel %vm3565, %v3708, %v3273
  %v3773 = vsel %vm3565, %v3709, %v3275
  %v3774 = vsel %vm3565, %v3710, %v3277
  %v3775 = vsel %vm3565, %v3711, %v3279
  %v3776 = vsel %vm3565, %v3712, %v3281
  %v3777 = vsel %vm3565, %v3713, %v3283
  %v3778 = vsel %vm3565, %v3714, %v3285
  %v3779 = vsel %vm3565, %v3715, %v3287
  %v3780 = vsel %vm3565, %v3716, %v3289
  %v3781 = vsel %vm3565, %v3717, %v3291
  %v3782 = vsel %vm3565, %v3718, %v3293
  %v3783 = vsel %vm3565, %v3719, %v3295
  %v3784 = vsel %vm3565, %v3720, %v3297
  %v3785 = vsel %vm3565, %v3721, %v3299
  %v3786 = vsel %vm3565, %v3722, %v3301
  %v3787 = vsel %vm3565, %v3723, %v3303
  %v3788 = vsel %vm3565, %v3724, %v3305
  %v3789 = vsel %vm3565, %v3725, %v3307
  %v3790 = vsel %vm3565, %v3726, %v3309
  %v3791 = vsel %vm3565, %v3727, %v3311
  %v3792 = vsel %vm3565, %v3728, %v3313
  %v3793 = vsel %vm3565, %v3729, %v3315
  %v3794 = vsel %vm3565, %v3730, %v3317
  %v3795 = vsel %vm3565, %v3731, %v3319
  %v3796 = vsel %vm3565, %v3732, %v3321
  %v3797 = vsel %vm3565, %v3733, %v3323
  %v3798 = vsel %vm3565, %v3734, %v3325
  %v3799 = vsel %vm3565, %v3735, %v3327
  %v3800 = vsel %vm3565, %v3736, %v3329
  %v3801 = vsel %vm3565, %v3737, %v3331
  %v3802 = vsel %vm3565, %v3738, %v3333
  %v3803 = vsel %vm3565, %v3739, %v3335
  %v3804 = vsel %vm3565, %v3740, %v3337
  %v3805 = vsel %vm3565, %v3741, %v3339
  %v3806 = vsel %vm3565, %v3742, %v3341
  %v3807 = vsel %vm3565, %v3743, %v3343
  %v3808 = vsel %vm3565, %v3744, %v3345
  %v3809 = vsel %vm3565, %v3745, %v3347
  %v3810 = vsel %vm3565, %v3746, %v3349
  %v3811 = vsel %vm3565, %v3747, %v3351
  %v3812 = vsel %vm3565, %v3748, %v3353
  %v3813 = vsel %vm3565, %v3749, %v3355
  %v3814 = vsel %vm3565, %v3750, %v3357
  %v3815 = vsel %vm3565, %v3751, %v3359
  %v3816 = vsel %vm3565, %v3752, %v3361
  %v3817 = vsel %vm3565, %v3753, %v3363
  %v3818 = vsel %vm3565, %v3754, %v3365
  %v3819 = vsel %vm3565, %v3755, %v3367
  %v3820 = vsel %vm3565, %v3756, %v3369
  %v3821 = vsel %vm3565, %v3757, %v3371
  %v3822 = vld [vmem:[%s4] sm:$0xff]
  %v3823 = vld [vmem:[%s4 + $0x8] sm:$0xff]
  %v3824 = vld [vmem:[%s4 + $0x10] sm:$0xff]
  %v3825 = vld [vmem:[%s4 + $0x18] sm:$0xff]
  %v3826 = vld [vmem:[%s4 + $0x20] sm:$0xff]
  %v3827 = vld [vmem:[%s4 + $0x28] sm:$0xff]
  %v3828 = vld [vmem:[%s4 + $0x30] sm:$0xff]
  %v3829 = vld [vmem:[%s4 + $0x38] sm:$0xff]
  %v3830 = vld [vmem:[%s4 + $0x40] sm:$0xff]
  %v3831 = vld [vmem:[%s4 + $0x48] sm:$0xff]
  %v3832 = vld [vmem:[%s4 + $0x50] sm:$0xff]
  %v3833 = vld [vmem:[%s4 + $0x58] sm:$0xff]
  %v3834 = vld [vmem:[%s4 + $0x60] sm:$0xff]
  %v3835 = vld [vmem:[%s4 + $0x68] sm:$0xff]
  %v3836 = vld [vmem:[%s4 + $0x70] sm:$0xff]
  %v3837 = vld [vmem:[%s4 + $0x78] sm:$0xff]
  %v3838 = vld [vmem:[%s4 + $0x80] sm:$0xff]
  %v3839 = vld [vmem:[%s4 + $0x88] sm:$0xff]
  %v3840 = vld [vmem:[%s4 + $0x90] sm:$0xff]
  %v3841 = vld [vmem:[%s4 + $0x98] sm:$0xff]
  %v3842 = vld [vmem:[%s4 + $0xa0] sm:$0xff]
  %v3843 = vld [vmem:[%s4 + $0xa8] sm:$0xff]
  %v3844 = vld [vmem:[%s4 + $0xb0] sm:$0xff]
  %v3845 = vld [vmem:[%s4 + $0xb8] sm:$0xff]
  %v3846 = vld [vmem:[%s4 + $0xc0] sm:$0xff]
  %v3847 = vld [vmem:[%s4 + $0xc8] sm:$0xff]
  %v3848 = vld [vmem:[%s4 + $0xd0] sm:$0xff]
  %v3849 = vld [vmem:[%s4 + $0xd8] sm:$0xff]
  %v3850 = vld [vmem:[%s4 + $0xe0] sm:$0xff]
  %v3851 = vld [vmem:[%s4 + $0xe8] sm:$0xff]
  %v3852 = vld [vmem:[%s4 + $0xf0] sm:$0xff]
  %v3853 = vld [vmem:[%s4 + $0xf8] sm:$0xff]
  %v3854 = vld [vmem:[%s4 + $0x100] sm:$0xff]
  %v3855 = vld [vmem:[%s4 + $0x108] sm:$0xff]
  %v3856 = vld [vmem:[%s4 + $0x110] sm:$0xff]
  %v3857 = vld [vmem:[%s4 + $0x118] sm:$0xff]
  %v3859 = vsel %vm494, %v1836, 0
  %v3862 = vsel %vm494, %v1837, 0
  %v3865 = vsel %vm494, %v1838, 0
  %v3868 = vsel %vm494, %v1839, 0
  %v3871 = vsel %vm494, %v1840, 0
  %v3874 = vsel %vm494, %v1841, 0
  %v3877 = vsel %vm494, %v1842, 0
  %v3880 = vsel %vm494, %v1843, 0
  %v3883 = vsel %vm494, %v1844, 0
  %v3886 = vsel %vm494, %v1845, 0
  %v3889 = vsel %vm494, %v1846, 0
  %v3892 = vsel %vm494, %v1847, 0
  %v3895 = vsel %vm494, %v1848, 0
  %v3898 = vsel %vm494, %v1849, 0
  %v3901 = vsel %vm494, %v1850, 0
  %v3904 = vsel %vm494, %v1851, 0
  %v3907 = vsel %vm494, %v1852, 0
  %v3910 = vsel %vm494, %v1853, 0
  %v3913 = vsel %vm494, %v1854, 0
  %v3916 = vsel %vm494, %v1855, 0
  %v3919 = vsel %vm494, %v1856, 0
  %v3922 = vsel %vm494, %v1857, 0
  %v3925 = vsel %vm494, %v1858, 0
  %v3928 = vsel %vm494, %v1859, 0
  %v3931 = vsel %vm494, %v1860, 0
  %v3934 = vsel %vm494, %v1861, 0
  %v3937 = vsel %vm494, %v1862, 0
  %v3940 = vsel %vm494, %v1863, 0
  %v3943 = vsel %vm494, %v1864, 0
  %v3946 = vsel %vm494, %v1865, 0
  %v3949 = vsel %vm494, %v1866, 0
  %v3952 = vsel %vm494, %v1867, 0
  %v3955 = vsel %vm494, %v1868, 0
  %v3958 = vsel %vm494, %v1869, 0
  %v3961 = vsel %vm494, %v1870, 0
  %v3964 = vsel %vm494, %v1871, 0
  %v3967 = vsel %vm494, %v1872, 0
  %v3970 = vsel %vm494, %v1873, 0
  %v3973 = vsel %vm494, %v1874, 0
  %v3976 = vsel %vm494, %v1875, 0
  %v3979 = vsel %vm494, %v1876, 0
  %v3982 = vsel %vm494, %v1877, 0
  %v3985 = vsel %vm494, %v1878, 0
  %v3988 = vsel %vm494, %v1879, 0
  %v3991 = vsel %vm494, %v1880, 0
  %v3994 = vsel %vm494, %v1881, 0
  %v3997 = vsel %vm494, %v1882, 0
  %v4000 = vsel %vm494, %v1883, 0
  %v4003 = vsel %vm494, %v1884, 0
  %v4006 = vsel %vm494, %v1885, 0
  %v4009 = vsel %vm494, %v1886, 0
  %v4012 = vsel %vm494, %v1887, 0
  %v4015 = vsel %vm494, %v1888, 0
  %v4018 = vsel %vm494, %v1889, 0
  %v4021 = vsel %vm494, %v1890, 0
  %v4024 = vsel %vm494, %v1891, 0
  %v4027 = vsel %vm494, %v1892, 0
  %v4030 = vsel %vm494, %v1893, 0
  %v4033 = vsel %vm494, %v1894, 0
  %v4036 = vsel %vm494, %v1895, 0
  %v4039 = vsel %vm494, %v1896, 0
  %v4042 = vsel %vm494, %v1897, 0
  %v4045 = vsel %vm494, %v1898, 0
  %v4048 = vsel %vm494, %v1899, 0
  %4050 = vmatpush.msra.mxu0 %v3837
  %4051 = vmatpush.msra.mxu0 %v3836
  %4052 = vmatpush.msra.mxu0 %v3835
  %4053 = vmatpush.msra.mxu0 %v3834
  %4054 = vmatpush.msra.mxu0 %v3833
  %4055 = vmatpush.msra.mxu0 %v3832
  %4056 = vmatpush.msra.mxu0 %v3831
  %4057 = vmatpush.msra.mxu0 %v3830
  %4058 = vmatpush.msra.mxu0 %v3829
  %4059 = vmatpush.msra.mxu0 %v3828
  %4060 = vmatpush.msra.mxu0 %v3827
  %4061 = vmatpush.msra.mxu0 %v3826
  %4062 = vmatpush.msra.mxu0 %v3825
  %4063 = vmatpush.msra.mxu0 %v3824
  %4064 = vmatpush.msra.mxu0 %v3823
  %4065 = vmatpush.msra.mxu0 %v3822
  %4066 = vmatmul.f32.gmra.mxu0 %v3566
  %v4067 = vpop.f32.mrf.mxu0
  %v4068 = vadd.f32 0.0, %v4067
  %4069 = vmatmul.f32.gmra.mxu0 %v3567
  %v4070 = vpop.f32.mrf.mxu0
  %v4071 = vadd.f32 0.0, %v4070
  %4072 = vmatmul.f32.gmra.mxu0 %v3568
  %v4073 = vpop.f32.mrf.mxu0
  %v4074 = vadd.f32 0.0, %v4073
  %4075 = vmatmul.f32.gmra.mxu0 %v3569
  %v4076 = vpop.f32.mrf.mxu0
  %v4077 = vadd.f32 0.0, %v4076
  %4078 = vmatmul.f32.gmra.mxu0 %v3570
  %v4079 = vpop.f32.mrf.mxu0
  %v4080 = vadd.f32 0.0, %v4079
  %4081 = vmatmul.f32.gmra.mxu0 %v3571
  %v4082 = vpop.f32.mrf.mxu0
  %v4083 = vadd.f32 0.0, %v4082
  %4084 = vmatmul.f32.gmra.mxu0 %v3572
  %v4085 = vpop.f32.mrf.mxu0
  %v4086 = vadd.f32 0.0, %v4085
  %4087 = vmatmul.f32.gmra.mxu0 %v3573
  %v4088 = vpop.f32.mrf.mxu0
  %v4089 = vadd.f32 0.0, %v4088
  %4090 = vmatmul.f32.gmra.mxu0 %v3574
  %v4091 = vpop.f32.mrf.mxu0
  %v4092 = vadd.f32 0.0, %v4091
  %4093 = vmatmul.f32.gmra.mxu0 %v3575
  %v4094 = vpop.f32.mrf.mxu0
  %v4095 = vadd.f32 0.0, %v4094
  %4096 = vmatmul.f32.gmra.mxu0 %v3576
  %v4097 = vpop.f32.mrf.mxu0
  %v4098 = vadd.f32 0.0, %v4097
  %4099 = vmatmul.f32.gmra.mxu0 %v3577
  %v4100 = vpop.f32.mrf.mxu0
  %v4101 = vadd.f32 0.0, %v4100
  %4102 = vmatmul.f32.gmra.mxu0 %v3578
  %v4103 = vpop.f32.mrf.mxu0
  %v4104 = vadd.f32 0.0, %v4103
  %4105 = vmatmul.f32.gmra.mxu0 %v3579
  %v4106 = vpop.f32.mrf.mxu0
  %v4107 = vadd.f32 0.0, %v4106
  %4108 = vmatmul.f32.gmra.mxu0 %v3580
  %v4109 = vpop.f32.mrf.mxu0
  %v4110 = vadd.f32 0.0, %v4109
  %4111 = vmatmul.f32.gmra.mxu0 %v3581
  %v4112 = vpop.f32.mrf.mxu0
  %v4113 = vadd.f32 0.0, %v4112
  %4114 = vmatmul.f32.gmra.mxu0 %v3582
  %v4115 = vpop.f32.mrf.mxu0
  %v4116 = vadd.f32 0.0, %v4115
  %4117 = vmatmul.f32.gmra.mxu0 %v3583
  %v4118 = vpop.f32.mrf.mxu0
  %v4119 = vadd.f32 0.0, %v4118
  %4120 = vmatmul.f32.gmra.mxu0 %v3584
  %v4121 = vpop.f32.mrf.mxu0
  %v4122 = vadd.f32 0.0, %v4121
  %4123 = vmatmul.f32.gmra.mxu0 %v3585
  %v4124 = vpop.f32.mrf.mxu0
  %v4125 = vadd.f32 0.0, %v4124
  %4126 = vmatmul.f32.gmra.mxu0 %v3586
  %v4127 = vpop.f32.mrf.mxu0
  %v4128 = vadd.f32 0.0, %v4127
  %4129 = vmatmul.f32.gmra.mxu0 %v3587
  %v4130 = vpop.f32.mrf.mxu0
  %v4131 = vadd.f32 0.0, %v4130
  %4132 = vmatmul.f32.gmra.mxu0 %v3588
  %v4133 = vpop.f32.mrf.mxu0
  %v4134 = vadd.f32 0.0, %v4133
  %4135 = vmatmul.f32.gmra.mxu0 %v3589
  %v4136 = vpop.f32.mrf.mxu0
  %v4137 = vadd.f32 0.0, %v4136
  %4138 = vmatmul.f32.gmra.mxu0 %v3590
  %v4139 = vpop.f32.mrf.mxu0
  %v4140 = vadd.f32 0.0, %v4139
  %4141 = vmatmul.f32.gmra.mxu0 %v3591
  %v4142 = vpop.f32.mrf.mxu0
  %v4143 = vadd.f32 0.0, %v4142
  %4144 = vmatmul.f32.gmra.mxu0 %v3592
  %v4145 = vpop.f32.mrf.mxu0
  %v4146 = vadd.f32 0.0, %v4145
  %4147 = vmatmul.f32.gmra.mxu0 %v3593
  %v4148 = vpop.f32.mrf.mxu0
  %v4149 = vadd.f32 0.0, %v4148
  %4150 = vmatmul.f32.gmra.mxu0 %v3594
  %v4151 = vpop.f32.mrf.mxu0
  %v4152 = vadd.f32 0.0, %v4151
  %4153 = vmatmul.f32.gmra.mxu0 %v3595
  %v4154 = vpop.f32.mrf.mxu0
  %v4155 = vadd.f32 0.0, %v4154
  %4156 = vmatmul.f32.gmra.mxu0 %v3596
  %v4157 = vpop.f32.mrf.mxu0
  %v4158 = vadd.f32 0.0, %v4157
  %4159 = vmatmul.f32.gmra.mxu0 %v3597
  %v4160 = vpop.f32.mrf.mxu0
  %v4161 = vadd.f32 0.0, %v4160
  %4162 = vmatmul.f32.gmra.mxu0 %v3598
  %v4163 = vpop.f32.mrf.mxu0
  %v4164 = vadd.f32 0.0, %v4163
  %4165 = vmatmul.f32.gmra.mxu0 %v3599
  %v4166 = vpop.f32.mrf.mxu0
  %v4167 = vadd.f32 0.0, %v4166
  %4168 = vmatmul.f32.gmra.mxu0 %v3600
  %v4169 = vpop.f32.mrf.mxu0
  %v4170 = vadd.f32 0.0, %v4169
  %4171 = vmatmul.f32.gmra.mxu0 %v3601
  %v4172 = vpop.f32.mrf.mxu0
  %v4173 = vadd.f32 0.0, %v4172
  %4174 = vmatmul.f32.gmra.mxu0 %v3602
  %v4175 = vpop.f32.mrf.mxu0
  %v4176 = vadd.f32 0.0, %v4175
  %4177 = vmatmul.f32.gmra.mxu0 %v3603
  %v4178 = vpop.f32.mrf.mxu0
  %v4179 = vadd.f32 0.0, %v4178
  %4180 = vmatmul.f32.gmra.mxu0 %v3604
  %v4181 = vpop.f32.mrf.mxu0
  %v4182 = vadd.f32 0.0, %v4181
  %4183 = vmatmul.f32.gmra.mxu0 %v3605
  %v4184 = vpop.f32.mrf.mxu0
  %v4185 = vadd.f32 0.0, %v4184
  %4186 = vmatmul.f32.gmra.mxu0 %v3606
  %v4187 = vpop.f32.mrf.mxu0
  %v4188 = vadd.f32 0.0, %v4187
  %4189 = vmatmul.f32.gmra.mxu0 %v3607
  %v4190 = vpop.f32.mrf.mxu0
  %v4191 = vadd.f32 0.0, %v4190
  %4192 = vmatmul.f32.gmra.mxu0 %v3608
  %v4193 = vpop.f32.mrf.mxu0
  %v4194 = vadd.f32 0.0, %v4193
  %4195 = vmatmul.f32.gmra.mxu0 %v3609
  %v4196 = vpop.f32.mrf.mxu0
  %v4197 = vadd.f32 0.0, %v4196
  %4198 = vmatmul.f32.gmra.mxu0 %v3610
  %v4199 = vpop.f32.mrf.mxu0
  %v4200 = vadd.f32 0.0, %v4199
  %4201 = vmatmul.f32.gmra.mxu0 %v3611
  %v4202 = vpop.f32.mrf.mxu0
  %v4203 = vadd.f32 0.0, %v4202
  %4204 = vmatmul.f32.gmra.mxu0 %v3612
  %v4205 = vpop.f32.mrf.mxu0
  %v4206 = vadd.f32 0.0, %v4205
  %4207 = vmatmul.f32.gmra.mxu0 %v3613
  %v4208 = vpop.f32.mrf.mxu0
  %v4209 = vadd.f32 0.0, %v4208
  %4210 = vmatmul.f32.gmra.mxu0 %v3614
  %v4211 = vpop.f32.mrf.mxu0
  %v4212 = vadd.f32 0.0, %v4211
  %4213 = vmatmul.f32.gmra.mxu0 %v3615
  %v4214 = vpop.f32.mrf.mxu0
  %v4215 = vadd.f32 0.0, %v4214
  %4216 = vmatmul.f32.gmra.mxu0 %v3616
  %v4217 = vpop.f32.mrf.mxu0
  %v4218 = vadd.f32 0.0, %v4217
  %4219 = vmatmul.f32.gmra.mxu0 %v3617
  %v4220 = vpop.f32.mrf.mxu0
  %v4221 = vadd.f32 0.0, %v4220
  %4222 = vmatmul.f32.gmra.mxu0 %v3618
  %v4223 = vpop.f32.mrf.mxu0
  %v4224 = vadd.f32 0.0, %v4223
  %4225 = vmatmul.f32.gmra.mxu0 %v3619
  %v4226 = vpop.f32.mrf.mxu0
  %v4227 = vadd.f32 0.0, %v4226
  %4228 = vmatmul.f32.gmra.mxu0 %v3620
  %v4229 = vpop.f32.mrf.mxu0
  %v4230 = vadd.f32 0.0, %v4229
  %4231 = vmatmul.f32.gmra.mxu0 %v3621
  %v4232 = vpop.f32.mrf.mxu0
  %v4233 = vadd.f32 0.0, %v4232
  %4234 = vmatmul.f32.gmra.mxu0 %v3622
  %v4235 = vpop.f32.mrf.mxu0
  %v4236 = vadd.f32 0.0, %v4235
  %4237 = vmatmul.f32.gmra.mxu0 %v3623
  %v4238 = vpop.f32.mrf.mxu0
  %v4239 = vadd.f32 0.0, %v4238
  %4240 = vmatmul.f32.gmra.mxu0 %v3624
  %v4241 = vpop.f32.mrf.mxu0
  %v4242 = vadd.f32 0.0, %v4241
  %4243 = vmatmul.f32.gmra.mxu0 %v3625
  %v4244 = vpop.f32.mrf.mxu0
  %v4245 = vadd.f32 0.0, %v4244
  %4246 = vmatmul.f32.gmra.mxu0 %v3626
  %v4247 = vpop.f32.mrf.mxu0
  %v4248 = vadd.f32 0.0, %v4247
  %4249 = vmatmul.f32.gmra.mxu0 %v3627
  %v4250 = vpop.f32.mrf.mxu0
  %v4251 = vadd.f32 0.0, %v4250
  %4252 = vmatmul.f32.gmra.mxu0 %v3628
  %v4253 = vpop.f32.mrf.mxu0
  %v4254 = vadd.f32 0.0, %v4253
  %4255 = vmatmul.f32.gmra.mxu0 %v3629
  %v4256 = vpop.f32.mrf.mxu0
  %v4257 = vadd.f32 0.0, %v4256
  %4258 = vdwg.mxu0
  %4259 = vmatpush.msra.mxu0 %v3853
  %4260 = vmatpush.msra.mxu0 %v3852
  %4261 = vmatpush.msra.mxu0 %v3851
  %4262 = vmatpush.msra.mxu0 %v3850
  %4263 = vmatpush.msra.mxu0 %v3849
  %4264 = vmatpush.msra.mxu0 %v3848
  %4265 = vmatpush.msra.mxu0 %v3847
  %4266 = vmatpush.msra.mxu0 %v3846
  %4267 = vmatpush.msra.mxu0 %v3845
  %4268 = vmatpush.msra.mxu0 %v3844
  %4269 = vmatpush.msra.mxu0 %v3843
  %4270 = vmatpush.msra.mxu0 %v3842
  %4271 = vmatpush.msra.mxu0 %v3841
  %4272 = vmatpush.msra.mxu0 %v3840
  %4273 = vmatpush.msra.mxu0 %v3839
  %4274 = vmatpush.msra.mxu0 %v3838
  %4275 = vmatmul.f32.gmra.mxu0 %v3758
  %v4276 = vpop.f32.mrf.mxu0
  %v4277 = vadd.f32 %v4068, %v4276
  %4278 = vmatmul.f32.gmra.mxu0 %v3759
  %v4279 = vpop.f32.mrf.mxu0
  %v4280 = vadd.f32 %v4071, %v4279
  %4281 = vmatmul.f32.gmra.mxu0 %v3760
  %v4282 = vpop.f32.mrf.mxu0
  %v4283 = vadd.f32 %v4074, %v4282
  %4284 = vmatmul.f32.gmra.mxu0 %v3761
  %v4285 = vpop.f32.mrf.mxu0
  %v4286 = vadd.f32 %v4077, %v4285
  %4287 = vmatmul.f32.gmra.mxu0 %v3762
  %v4288 = vpop.f32.mrf.mxu0
  %v4289 = vadd.f32 %v4080, %v4288
  %4290 = vmatmul.f32.gmra.mxu0 %v3763
  %v4291 = vpop.f32.mrf.mxu0
  %v4292 = vadd.f32 %v4083, %v4291
  %4293 = vmatmul.f32.gmra.mxu0 %v3764
  %v4294 = vpop.f32.mrf.mxu0
  %v4295 = vadd.f32 %v4086, %v4294
  %4296 = vmatmul.f32.gmra.mxu0 %v3765
  %v4297 = vpop.f32.mrf.mxu0
  %v4298 = vadd.f32 %v4089, %v4297
  %4299 = vmatmul.f32.gmra.mxu0 %v3766
  %v4300 = vpop.f32.mrf.mxu0
  %v4301 = vadd.f32 %v4092, %v4300
  %4302 = vmatmul.f32.gmra.mxu0 %v3767
  %v4303 = vpop.f32.mrf.mxu0
  %v4304 = vadd.f32 %v4095, %v4303
  %4305 = vmatmul.f32.gmra.mxu0 %v3768
  %v4306 = vpop.f32.mrf.mxu0
  %v4307 = vadd.f32 %v4098, %v4306
  %4308 = vmatmul.f32.gmra.mxu0 %v3769
  %v4309 = vpop.f32.mrf.mxu0
  %v4310 = vadd.f32 %v4101, %v4309
  %4311 = vmatmul.f32.gmra.mxu0 %v3770
  %v4312 = vpop.f32.mrf.mxu0
  %v4313 = vadd.f32 %v4104, %v4312
  %4314 = vmatmul.f32.gmra.mxu0 %v3771
  %v4315 = vpop.f32.mrf.mxu0
  %v4316 = vadd.f32 %v4107, %v4315
  %4317 = vmatmul.f32.gmra.mxu0 %v3772
  %v4318 = vpop.f32.mrf.mxu0
  %v4319 = vadd.f32 %v4110, %v4318
  %4320 = vmatmul.f32.gmra.mxu0 %v3773
  %v4321 = vpop.f32.mrf.mxu0
  %v4322 = vadd.f32 %v4113, %v4321
  %4323 = vmatmul.f32.gmra.mxu0 %v3774
  %v4324 = vpop.f32.mrf.mxu0
  %v4325 = vadd.f32 %v4116, %v4324
  %4326 = vmatmul.f32.gmra.mxu0 %v3775
  %v4327 = vpop.f32.mrf.mxu0
  %v4328 = vadd.f32 %v4119, %v4327
  %4329 = vmatmul.f32.gmra.mxu0 %v3776
  %v4330 = vpop.f32.mrf.mxu0
  %v4331 = vadd.f32 %v4122, %v4330
  %4332 = vmatmul.f32.gmra.mxu0 %v3777
  %v4333 = vpop.f32.mrf.mxu0
  %v4334 = vadd.f32 %v4125, %v4333
  %4335 = vmatmul.f32.gmra.mxu0 %v3778
  %v4336 = vpop.f32.mrf.mxu0
  %v4337 = vadd.f32 %v4128, %v4336
  %4338 = vmatmul.f32.gmra.mxu0 %v3779
  %v4339 = vpop.f32.mrf.mxu0
  %v4340 = vadd.f32 %v4131, %v4339
  %4341 = vmatmul.f32.gmra.mxu0 %v3780
  %v4342 = vpop.f32.mrf.mxu0
  %v4343 = vadd.f32 %v4134, %v4342
  %4344 = vmatmul.f32.gmra.mxu0 %v3781
  %v4345 = vpop.f32.mrf.mxu0
  %v4346 = vadd.f32 %v4137, %v4345
  %4347 = vmatmul.f32.gmra.mxu0 %v3782
  %v4348 = vpop.f32.mrf.mxu0
  %v4349 = vadd.f32 %v4140, %v4348
  %4350 = vmatmul.f32.gmra.mxu0 %v3783
  %v4351 = vpop.f32.mrf.mxu0
  %v4352 = vadd.f32 %v4143, %v4351
  %4353 = vmatmul.f32.gmra.mxu0 %v3784
  %v4354 = vpop.f32.mrf.mxu0
  %v4355 = vadd.f32 %v4146, %v4354
  %4356 = vmatmul.f32.gmra.mxu0 %v3785
  %v4357 = vpop.f32.mrf.mxu0
  %v4358 = vadd.f32 %v4149, %v4357
  %4359 = vmatmul.f32.gmra.mxu0 %v3786
  %v4360 = vpop.f32.mrf.mxu0
  %v4361 = vadd.f32 %v4152, %v4360
  %4362 = vmatmul.f32.gmra.mxu0 %v3787
  %v4363 = vpop.f32.mrf.mxu0
  %v4364 = vadd.f32 %v4155, %v4363
  %4365 = vmatmul.f32.gmra.mxu0 %v3788
  %v4366 = vpop.f32.mrf.mxu0
  %v4367 = vadd.f32 %v4158, %v4366
  %4368 = vmatmul.f32.gmra.mxu0 %v3789
  %v4369 = vpop.f32.mrf.mxu0
  %v4370 = vadd.f32 %v4161, %v4369
  %4371 = vmatmul.f32.gmra.mxu0 %v3790
  %v4372 = vpop.f32.mrf.mxu0
  %v4373 = vadd.f32 %v4164, %v4372
  %4374 = vmatmul.f32.gmra.mxu0 %v3791
  %v4375 = vpop.f32.mrf.mxu0
  %v4376 = vadd.f32 %v4167, %v4375
  %4377 = vmatmul.f32.gmra.mxu0 %v3792
  %v4378 = vpop.f32.mrf.mxu0
  %v4379 = vadd.f32 %v4170, %v4378
  %4380 = vmatmul.f32.gmra.mxu0 %v3793
  %v4381 = vpop.f32.mrf.mxu0
  %v4382 = vadd.f32 %v4173, %v4381
  %4383 = vmatmul.f32.gmra.mxu0 %v3794
  %v4384 = vpop.f32.mrf.mxu0
  %v4385 = vadd.f32 %v4176, %v4384
  %4386 = vmatmul.f32.gmra.mxu0 %v3795
  %v4387 = vpop.f32.mrf.mxu0
  %v4388 = vadd.f32 %v4179, %v4387
  %4389 = vmatmul.f32.gmra.mxu0 %v3796
  %v4390 = vpop.f32.mrf.mxu0
  %v4391 = vadd.f32 %v4182, %v4390
  %4392 = vmatmul.f32.gmra.mxu0 %v3797
  %v4393 = vpop.f32.mrf.mxu0
  %v4394 = vadd.f32 %v4185, %v4393
  %4395 = vmatmul.f32.gmra.mxu0 %v3798
  %v4396 = vpop.f32.mrf.mxu0
  %v4397 = vadd.f32 %v4188, %v4396
  %4398 = vmatmul.f32.gmra.mxu0 %v3799
  %v4399 = vpop.f32.mrf.mxu0
  %v4400 = vadd.f32 %v4191, %v4399
  %4401 = vmatmul.f32.gmra.mxu0 %v3800
  %v4402 = vpop.f32.mrf.mxu0
  %v4403 = vadd.f32 %v4194, %v4402
  %4404 = vmatmul.f32.gmra.mxu0 %v3801
  %v4405 = vpop.f32.mrf.mxu0
  %v4406 = vadd.f32 %v4197, %v4405
  %4407 = vmatmul.f32.gmra.mxu0 %v3802
  %v4408 = vpop.f32.mrf.mxu0
  %v4409 = vadd.f32 %v4200, %v4408
  %4410 = vmatmul.f32.gmra.mxu0 %v3803
  %v4411 = vpop.f32.mrf.mxu0
  %v4412 = vadd.f32 %v4203, %v4411
  %4413 = vmatmul.f32.gmra.mxu0 %v3804
  %v4414 = vpop.f32.mrf.mxu0
  %v4415 = vadd.f32 %v4206, %v4414
  %4416 = vmatmul.f32.gmra.mxu0 %v3805
  %v4417 = vpop.f32.mrf.mxu0
  %v4418 = vadd.f32 %v4209, %v4417
  %4419 = vmatmul.f32.gmra.mxu0 %v3806
  %v4420 = vpop.f32.mrf.mxu0
  %v4421 = vadd.f32 %v4212, %v4420
  %4422 = vmatmul.f32.gmra.mxu0 %v3807
  %v4423 = vpop.f32.mrf.mxu0
  %v4424 = vadd.f32 %v4215, %v4423
  %4425 = vmatmul.f32.gmra.mxu0 %v3808
  %v4426 = vpop.f32.mrf.mxu0
  %v4427 = vadd.f32 %v4218, %v4426
  %4428 = vmatmul.f32.gmra.mxu0 %v3809
  %v4429 = vpop.f32.mrf.mxu0
  %v4430 = vadd.f32 %v4221, %v4429
  %4431 = vmatmul.f32.gmra.mxu0 %v3810
  %v4432 = vpop.f32.mrf.mxu0
  %v4433 = vadd.f32 %v4224, %v4432
  %4434 = vmatmul.f32.gmra.mxu0 %v3811
  %v4435 = vpop.f32.mrf.mxu0
  %v4436 = vadd.f32 %v4227, %v4435
  %4437 = vmatmul.f32.gmra.mxu0 %v3812
  %v4438 = vpop.f32.mrf.mxu0
  %v4439 = vadd.f32 %v4230, %v4438
  %4440 = vmatmul.f32.gmra.mxu0 %v3813
  %v4441 = vpop.f32.mrf.mxu0
  %v4442 = vadd.f32 %v4233, %v4441
  %4443 = vmatmul.f32.gmra.mxu0 %v3814
  %v4444 = vpop.f32.mrf.mxu0
  %v4445 = vadd.f32 %v4236, %v4444
  %4446 = vmatmul.f32.gmra.mxu0 %v3815
  %v4447 = vpop.f32.mrf.mxu0
  %v4448 = vadd.f32 %v4239, %v4447
  %4449 = vmatmul.f32.gmra.mxu0 %v3816
  %v4450 = vpop.f32.mrf.mxu0
  %v4451 = vadd.f32 %v4242, %v4450
  %4452 = vmatmul.f32.gmra.mxu0 %v3817
  %v4453 = vpop.f32.mrf.mxu0
  %v4454 = vadd.f32 %v4245, %v4453
  %4455 = vmatmul.f32.gmra.mxu0 %v3818
  %v4456 = vpop.f32.mrf.mxu0
  %v4457 = vadd.f32 %v4248, %v4456
  %4458 = vmatmul.f32.gmra.mxu0 %v3819
  %v4459 = vpop.f32.mrf.mxu0
  %v4460 = vadd.f32 %v4251, %v4459
  %4461 = vmatmul.f32.gmra.mxu0 %v3820
  %v4462 = vpop.f32.mrf.mxu0
  %v4463 = vadd.f32 %v4254, %v4462
  %4464 = vmatmul.f32.gmra.mxu0 %v3821
  %v4465 = vpop.f32.mrf.mxu0
  %v4466 = vadd.f32 %v4257, %v4465
  %4467 = vdwg.mxu0
  %4468 = vmatpush.msra.mxu0 0.0
  %4469 = vmatpush.msra.mxu0 0.0
  %4470 = vmatpush.msra.mxu0 0.0
  %4471 = vmatpush.msra.mxu0 0.0
  %4472 = vmatpush.msra.mxu0 0.0
  %4473 = vmatpush.msra.mxu0 0.0
  %4474 = vmatpush.msra.mxu0 0.0
  %4475 = vmatpush.msra.mxu0 0.0
  %4476 = vmatpush.msra.mxu0 0.0
  %4477 = vmatpush.msra.mxu0 0.0
  %4478 = vmatpush.msra.mxu0 0.0
  %4479 = vmatpush.msra.mxu0 0.0
  %4480 = vmatpush.msra.mxu0 %v3857
  %4481 = vmatpush.msra.mxu0 %v3856
  %4482 = vmatpush.msra.mxu0 %v3855
  %4483 = vmatpush.msra.mxu0 %v3854
  %4484 = vmatmul.f32.gmra.mxu0 %v3859
  %v4485 = vpop.f32.mrf.mxu0
  %v4486 = vadd.f32 %v4277, %v4485
  %4487 = vmatmul.f32.gmra.mxu0 %v3862
  %v4488 = vpop.f32.mrf.mxu0
  %v4489 = vadd.f32 %v4280, %v4488
  %4490 = vmatmul.f32.gmra.mxu0 %v3865
  %v4491 = vpop.f32.mrf.mxu0
  %v4492 = vadd.f32 %v4283, %v4491
  %4493 = vmatmul.f32.gmra.mxu0 %v3868
  %v4494 = vpop.f32.mrf.mxu0
  %v4495 = vadd.f32 %v4286, %v4494
  %4496 = vmatmul.f32.gmra.mxu0 %v3871
  %v4497 = vpop.f32.mrf.mxu0
  %v4498 = vadd.f32 %v4289, %v4497
  %4499 = vmatmul.f32.gmra.mxu0 %v3874
  %v4500 = vpop.f32.mrf.mxu0
  %v4501 = vadd.f32 %v4292, %v4500
  %4502 = vmatmul.f32.gmra.mxu0 %v3877
  %v4503 = vpop.f32.mrf.mxu0
  %v4504 = vadd.f32 %v4295, %v4503
  %4505 = vmatmul.f32.gmra.mxu0 %v3880
  %v4506 = vpop.f32.mrf.mxu0
  %v4507 = vadd.f32 %v4298, %v4506
  %4508 = vmatmul.f32.gmra.mxu0 %v3883
  %v4509 = vpop.f32.mrf.mxu0
  %v4510 = vadd.f32 %v4301, %v4509
  %4511 = vmatmul.f32.gmra.mxu0 %v3886
  %v4512 = vpop.f32.mrf.mxu0
  %v4513 = vadd.f32 %v4304, %v4512
  %4514 = vmatmul.f32.gmra.mxu0 %v3889
  %v4515 = vpop.f32.mrf.mxu0
  %v4516 = vadd.f32 %v4307, %v4515
  %4517 = vmatmul.f32.gmra.mxu0 %v3892
  %v4518 = vpop.f32.mrf.mxu0
  %v4519 = vadd.f32 %v4310, %v4518
  %4520 = vmatmul.f32.gmra.mxu0 %v3895
  %v4521 = vpop.f32.mrf.mxu0
  %v4522 = vadd.f32 %v4313, %v4521
  %4523 = vmatmul.f32.gmra.mxu0 %v3898
  %v4524 = vpop.f32.mrf.mxu0
  %v4525 = vadd.f32 %v4316, %v4524
  %4526 = vmatmul.f32.gmra.mxu0 %v3901
  %v4527 = vpop.f32.mrf.mxu0
  %v4528 = vadd.f32 %v4319, %v4527
  %4529 = vmatmul.f32.gmra.mxu0 %v3904
  %v4530 = vpop.f32.mrf.mxu0
  %v4531 = vadd.f32 %v4322, %v4530
  %4532 = vmatmul.f32.gmra.mxu0 %v3907
  %v4533 = vpop.f32.mrf.mxu0
  %v4534 = vadd.f32 %v4325, %v4533
  %4535 = vmatmul.f32.gmra.mxu0 %v3910
  %v4536 = vpop.f32.mrf.mxu0
  %v4537 = vadd.f32 %v4328, %v4536
  %4538 = vmatmul.f32.gmra.mxu0 %v3913
  %v4539 = vpop.f32.mrf.mxu0
  %v4540 = vadd.f32 %v4331, %v4539
  %4541 = vmatmul.f32.gmra.mxu0 %v3916
  %v4542 = vpop.f32.mrf.mxu0
  %v4543 = vadd.f32 %v4334, %v4542
  %4544 = vmatmul.f32.gmra.mxu0 %v3919
  %v4545 = vpop.f32.mrf.mxu0
  %v4546 = vadd.f32 %v4337, %v4545
  %4547 = vmatmul.f32.gmra.mxu0 %v3922
  %v4548 = vpop.f32.mrf.mxu0
  %v4549 = vadd.f32 %v4340, %v4548
  %4550 = vmatmul.f32.gmra.mxu0 %v3925
  %v4551 = vpop.f32.mrf.mxu0
  %v4552 = vadd.f32 %v4343, %v4551
  %4553 = vmatmul.f32.gmra.mxu0 %v3928
  %v4554 = vpop.f32.mrf.mxu0
  %v4555 = vadd.f32 %v4346, %v4554
  %4556 = vmatmul.f32.gmra.mxu0 %v3931
  %v4557 = vpop.f32.mrf.mxu0
  %v4558 = vadd.f32 %v4349, %v4557
  %4559 = vmatmul.f32.gmra.mxu0 %v3934
  %v4560 = vpop.f32.mrf.mxu0
  %v4561 = vadd.f32 %v4352, %v4560
  %4562 = vmatmul.f32.gmra.mxu0 %v3937
  %v4563 = vpop.f32.mrf.mxu0
  %v4564 = vadd.f32 %v4355, %v4563
  %4565 = vmatmul.f32.gmra.mxu0 %v3940
  %v4566 = vpop.f32.mrf.mxu0
  %v4567 = vadd.f32 %v4358, %v4566
  %4568 = vmatmul.f32.gmra.mxu0 %v3943
  %v4569 = vpop.f32.mrf.mxu0
  %v4570 = vadd.f32 %v4361, %v4569
  %4571 = vmatmul.f32.gmra.mxu0 %v3946
  %v4572 = vpop.f32.mrf.mxu0
  %v4573 = vadd.f32 %v4364, %v4572
  %4574 = vmatmul.f32.gmra.mxu0 %v3949
  %v4575 = vpop.f32.mrf.mxu0
  %v4576 = vadd.f32 %v4367, %v4575
  %4577 = vmatmul.f32.gmra.mxu0 %v3952
  %v4578 = vpop.f32.mrf.mxu0
  %v4579 = vadd.f32 %v4370, %v4578
  %4580 = vmatmul.f32.gmra.mxu0 %v3955
  %v4581 = vpop.f32.mrf.mxu0
  %v4582 = vadd.f32 %v4373, %v4581
  %4583 = vmatmul.f32.gmra.mxu0 %v3958
  %v4584 = vpop.f32.mrf.mxu0
  %v4585 = vadd.f32 %v4376, %v4584
  %4586 = vmatmul.f32.gmra.mxu0 %v3961
  %v4587 = vpop.f32.mrf.mxu0
  %v4588 = vadd.f32 %v4379, %v4587
  %4589 = vmatmul.f32.gmra.mxu0 %v3964
  %v4590 = vpop.f32.mrf.mxu0
  %v4591 = vadd.f32 %v4382, %v4590
  %4592 = vmatmul.f32.gmra.mxu0 %v3967
  %v4593 = vpop.f32.mrf.mxu0
  %v4594 = vadd.f32 %v4385, %v4593
  %4595 = vmatmul.f32.gmra.mxu0 %v3970
  %v4596 = vpop.f32.mrf.mxu0
  %v4597 = vadd.f32 %v4388, %v4596
  %4598 = vmatmul.f32.gmra.mxu0 %v3973
  %v4599 = vpop.f32.mrf.mxu0
  %v4600 = vadd.f32 %v4391, %v4599
  %4601 = vmatmul.f32.gmra.mxu0 %v3976
  %v4602 = vpop.f32.mrf.mxu0
  %v4603 = vadd.f32 %v4394, %v4602
  %4604 = vmatmul.f32.gmra.mxu0 %v3979
  %v4605 = vpop.f32.mrf.mxu0
  %v4606 = vadd.f32 %v4397, %v4605
  %4607 = vmatmul.f32.gmra.mxu0 %v3982
  %v4608 = vpop.f32.mrf.mxu0
  %v4609 = vadd.f32 %v4400, %v4608
  %4610 = vmatmul.f32.gmra.mxu0 %v3985
  %v4611 = vpop.f32.mrf.mxu0
  %v4612 = vadd.f32 %v4403, %v4611
  %4613 = vmatmul.f32.gmra.mxu0 %v3988
  %v4614 = vpop.f32.mrf.mxu0
  %v4615 = vadd.f32 %v4406, %v4614
  %4616 = vmatmul.f32.gmra.mxu0 %v3991
  %v4617 = vpop.f32.mrf.mxu0
  %v4618 = vadd.f32 %v4409, %v4617
  %4619 = vmatmul.f32.gmra.mxu0 %v3994
  %v4620 = vpop.f32.mrf.mxu0
  %v4621 = vadd.f32 %v4412, %v4620
  %4622 = vmatmul.f32.gmra.mxu0 %v3997
  %v4623 = vpop.f32.mrf.mxu0
  %v4624 = vadd.f32 %v4415, %v4623
  %4625 = vmatmul.f32.gmra.mxu0 %v4000
  %v4626 = vpop.f32.mrf.mxu0
  %v4627 = vadd.f32 %v4418, %v4626
  %4628 = vmatmul.f32.gmra.mxu0 %v4003
  %v4629 = vpop.f32.mrf.mxu0
  %v4630 = vadd.f32 %v4421, %v4629
  %4631 = vmatmul.f32.gmra.mxu0 %v4006
  %v4632 = vpop.f32.mrf.mxu0
  %v4633 = vadd.f32 %v4424, %v4632
  %4634 = vmatmul.f32.gmra.mxu0 %v4009
  %v4635 = vpop.f32.mrf.mxu0
  %v4636 = vadd.f32 %v4427, %v4635
  %4637 = vmatmul.f32.gmra.mxu0 %v4012
  %v4638 = vpop.f32.mrf.mxu0
  %v4639 = vadd.f32 %v4430, %v4638
  %4640 = vmatmul.f32.gmra.mxu0 %v4015
  %v4641 = vpop.f32.mrf.mxu0
  %v4642 = vadd.f32 %v4433, %v4641
  %4643 = vmatmul.f32.gmra.mxu0 %v4018
  %v4644 = vpop.f32.mrf.mxu0
  %v4645 = vadd.f32 %v4436, %v4644
  %4646 = vmatmul.f32.gmra.mxu0 %v4021
  %v4647 = vpop.f32.mrf.mxu0
  %v4648 = vadd.f32 %v4439, %v4647
  %4649 = vmatmul.f32.gmra.mxu0 %v4024
  %v4650 = vpop.f32.mrf.mxu0
  %v4651 = vadd.f32 %v4442, %v4650
  %4652 = vmatmul.f32.gmra.mxu0 %v4027
  %v4653 = vpop.f32.mrf.mxu0
  %v4654 = vadd.f32 %v4445, %v4653
  %4655 = vmatmul.f32.gmra.mxu0 %v4030
  %v4656 = vpop.f32.mrf.mxu0
  %v4657 = vadd.f32 %v4448, %v4656
  %4658 = vmatmul.f32.gmra.mxu0 %v4033
  %v4659 = vpop.f32.mrf.mxu0
  %v4660 = vadd.f32 %v4451, %v4659
  %4661 = vmatmul.f32.gmra.mxu0 %v4036
  %v4662 = vpop.f32.mrf.mxu0
  %v4663 = vadd.f32 %v4454, %v4662
  %4664 = vmatmul.f32.gmra.mxu0 %v4039
  %v4665 = vpop.f32.mrf.mxu0
  %v4666 = vadd.f32 %v4457, %v4665
  %4667 = vmatmul.f32.gmra.mxu0 %v4042
  %v4668 = vpop.f32.mrf.mxu0
  %v4669 = vadd.f32 %v4460, %v4668
  %4670 = vmatmul.f32.gmra.mxu0 %v4045
  %v4671 = vpop.f32.mrf.mxu0
  %v4672 = vadd.f32 %v4463, %v4671
  %4673 = vmatmul.f32.gmra.mxu0 %v4048
  %v4674 = vpop.f32.mrf.mxu0
  %v4675 = vadd.f32 %v4466, %v4674
  %4676 = vdwg.mxu0
  %v4677 = vsel %vm494, %v4486, 0.0
  %v4678 = vsel %vm494, %v4489, 0.0
  %v4679 = vadd.f32 %v4677, %v4678
  %v4680 = vsel %vm494, %v4492, 0.0
  %v4681 = vadd.f32 %v4679, %v4680
  %v4682 = vsel %vm494, %v4495, 0.0
  %v4683 = vadd.f32 %v4681, %v4682
  %v4684 = vsel %vm494, %v4498, 0.0
  %v4685 = vadd.f32 %v4683, %v4684
  %v4686 = vsel %vm494, %v4501, 0.0
  %v4687 = vadd.f32 %v4685, %v4686
  %v4688 = vsel %vm494, %v4504, 0.0
  %v4689 = vadd.f32 %v4687, %v4688
  %v4690 = vsel %vm494, %v4507, 0.0
  %v4691 = vadd.f32 %v4689, %v4690
  %v4692 = vsel %vm494, %v4510, 0.0
  %v4693 = vadd.f32 %v4691, %v4692
  %v4694 = vsel %vm494, %v4513, 0.0
  %v4695 = vadd.f32 %v4693, %v4694
  %v4696 = vsel %vm494, %v4516, 0.0
  %v4697 = vadd.f32 %v4695, %v4696
  %v4698 = vsel %vm494, %v4519, 0.0
  %v4699 = vadd.f32 %v4697, %v4698
  %v4700 = vsel %vm494, %v4522, 0.0
  %v4701 = vadd.f32 %v4699, %v4700
  %v4702 = vsel %vm494, %v4525, 0.0
  %v4703 = vadd.f32 %v4701, %v4702
  %v4704 = vsel %vm494, %v4528, 0.0
  %v4705 = vadd.f32 %v4703, %v4704
  %v4706 = vsel %vm494, %v4531, 0.0
  %v4707 = vadd.f32 %v4705, %v4706
  %v4708 = vsel %vm494, %v4534, 0.0
  %v4709 = vadd.f32 %v4707, %v4708
  %v4710 = vsel %vm494, %v4537, 0.0
  %v4711 = vadd.f32 %v4709, %v4710
  %v4712 = vsel %vm494, %v4540, 0.0
  %v4713 = vadd.f32 %v4711, %v4712
  %v4714 = vsel %vm494, %v4543, 0.0
  %v4715 = vadd.f32 %v4713, %v4714
  %v4716 = vsel %vm494, %v4546, 0.0
  %v4717 = vadd.f32 %v4715, %v4716
  %v4718 = vsel %vm494, %v4549, 0.0
  %v4719 = vadd.f32 %v4717, %v4718
  %v4720 = vsel %vm494, %v4552, 0.0
  %v4721 = vadd.f32 %v4719, %v4720
  %v4722 = vsel %vm494, %v4555, 0.0
  %v4723 = vadd.f32 %v4721, %v4722
  %v4724 = vsel %vm494, %v4558, 0.0
  %v4725 = vadd.f32 %v4723, %v4724
  %v4726 = vsel %vm494, %v4561, 0.0
  %v4727 = vadd.f32 %v4725, %v4726
  %v4728 = vsel %vm494, %v4564, 0.0
  %v4729 = vadd.f32 %v4727, %v4728
  %v4730 = vsel %vm494, %v4567, 0.0
  %v4731 = vadd.f32 %v4729, %v4730
  %v4732 = vsel %vm494, %v4570, 0.0
  %v4733 = vadd.f32 %v4731, %v4732
  %v4734 = vsel %vm494, %v4573, 0.0
  %v4735 = vadd.f32 %v4733, %v4734
  %v4736 = vsel %vm494, %v4576, 0.0
  %v4737 = vadd.f32 %v4735, %v4736
  %v4738 = vsel %vm494, %v4579, 0.0
  %v4739 = vadd.f32 %v4737, %v4738
  %v4740 = vsel %vm494, %v4582, 0.0
  %v4741 = vadd.f32 %v4739, %v4740
  %v4742 = vsel %vm494, %v4585, 0.0
  %v4743 = vadd.f32 %v4741, %v4742
  %v4744 = vsel %vm494, %v4588, 0.0
  %v4745 = vadd.f32 %v4743, %v4744
  %v4746 = vsel %vm494, %v4591, 0.0
  %v4747 = vadd.f32 %v4745, %v4746
  %v4748 = vsel %vm494, %v4594, 0.0
  %v4749 = vadd.f32 %v4747, %v4748
  %v4750 = vsel %vm494, %v4597, 0.0
  %v4751 = vadd.f32 %v4749, %v4750
  %v4752 = vsel %vm494, %v4600, 0.0
  %v4753 = vadd.f32 %v4751, %v4752
  %v4754 = vsel %vm494, %v4603, 0.0
  %v4755 = vadd.f32 %v4753, %v4754
  %v4756 = vsel %vm494, %v4606, 0.0
  %v4757 = vadd.f32 %v4755, %v4756
  %v4758 = vsel %vm494, %v4609, 0.0
  %v4759 = vadd.f32 %v4757, %v4758
  %v4760 = vsel %vm494, %v4612, 0.0
  %v4761 = vadd.f32 %v4759, %v4760
  %v4762 = vsel %vm494, %v4615, 0.0
  %v4763 = vadd.f32 %v4761, %v4762
  %v4764 = vsel %vm494, %v4618, 0.0
  %v4765 = vadd.f32 %v4763, %v4764
  %v4766 = vsel %vm494, %v4621, 0.0
  %v4767 = vadd.f32 %v4765, %v4766
  %v4768 = vsel %vm494, %v4624, 0.0
  %v4769 = vadd.f32 %v4767, %v4768
  %v4770 = vsel %vm494, %v4627, 0.0
  %v4771 = vadd.f32 %v4769, %v4770
  %v4772 = vsel %vm494, %v4630, 0.0
  %v4773 = vadd.f32 %v4771, %v4772
  %v4774 = vsel %vm494, %v4633, 0.0
  %v4775 = vadd.f32 %v4773, %v4774
  %v4776 = vsel %vm494, %v4636, 0.0
  %v4777 = vadd.f32 %v4775, %v4776
  %v4778 = vsel %vm494, %v4639, 0.0
  %v4779 = vadd.f32 %v4777, %v4778
  %v4780 = vsel %vm494, %v4642, 0.0
  %v4781 = vadd.f32 %v4779, %v4780
  %v4782 = vsel %vm494, %v4645, 0.0
  %v4783 = vadd.f32 %v4781, %v4782
  %v4784 = vsel %vm494, %v4648, 0.0
  %v4785 = vadd.f32 %v4783, %v4784
  %v4786 = vsel %vm494, %v4651, 0.0
  %v4787 = vadd.f32 %v4785, %v4786
  %v4788 = vsel %vm494, %v4654, 0.0
  %v4789 = vadd.f32 %v4787, %v4788
  %v4790 = vsel %vm494, %v4657, 0.0
  %v4791 = vadd.f32 %v4789, %v4790
  %v4792 = vsel %vm494, %v4660, 0.0
  %v4793 = vadd.f32 %v4791, %v4792
  %v4794 = vsel %vm494, %v4663, 0.0
  %v4795 = vadd.f32 %v4793, %v4794
  %v4796 = vsel %vm494, %v4666, 0.0
  %v4797 = vadd.f32 %v4795, %v4796
  %v4798 = vsel %vm494, %v4669, 0.0
  %v4799 = vadd.f32 %v4797, %v4798
  %v4800 = vsel %vm494, %v4672, 0.0
  %v4801 = vadd.f32 %v4799, %v4800
  %v4802 = vsel %vm494, %v4675, 0.0
  %v4803 = vadd.f32 %v4801, %v4802
  %v4804 = vrot.slane %v4803, 4
  %v4805 = vadd.f32 %v4803, %v4804
  %v4806 = vrot.slane %v4805, 2
  %v4807 = vadd.f32 %v4805, %v4806
  %v4808 = vrot.slane %v4807, 1
  %v4809 = vadd.f32 %v4807, %v4808
  %v4810 = vmul.f32 %v4486, %v4486
  %v4811 = vmul.f32 %v4489, %v4489
  %v4812 = vmul.f32 %v4492, %v4492
  %v4813 = vmul.f32 %v4495, %v4495
  %v4814 = vmul.f32 %v4498, %v4498
  %v4815 = vmul.f32 %v4501, %v4501
  %v4816 = vmul.f32 %v4504, %v4504
  %v4817 = vmul.f32 %v4507, %v4507
  %v4818 = vmul.f32 %v4510, %v4510
  %v4819 = vmul.f32 %v4513, %v4513
  %v4820 = vmul.f32 %v4516, %v4516
  %v4821 = vmul.f32 %v4519, %v4519
  %v4822 = vmul.f32 %v4522, %v4522
  %v4823 = vmul.f32 %v4525, %v4525
  %v4824 = vmul.f32 %v4528, %v4528
  %v4825 = vmul.f32 %v4531, %v4531
  %v4826 = vmul.f32 %v4534, %v4534
  %v4827 = vmul.f32 %v4537, %v4537
  %v4828 = vmul.f32 %v4540, %v4540
  %v4829 = vmul.f32 %v4543, %v4543
  %v4830 = vmul.f32 %v4546, %v4546
  %v4831 = vmul.f32 %v4549, %v4549
  %v4832 = vmul.f32 %v4552, %v4552
  %v4833 = vmul.f32 %v4555, %v4555
  %v4834 = vmul.f32 %v4558, %v4558
  %v4835 = vmul.f32 %v4561, %v4561
  %v4836 = vmul.f32 %v4564, %v4564
  %v4837 = vmul.f32 %v4567, %v4567
  %v4838 = vmul.f32 %v4570, %v4570
  %v4839 = vmul.f32 %v4573, %v4573
  %v4840 = vmul.f32 %v4576, %v4576
  %v4841 = vmul.f32 %v4579, %v4579
  %v4842 = vmul.f32 %v4582, %v4582
  %v4843 = vmul.f32 %v4585, %v4585
  %v4844 = vmul.f32 %v4588, %v4588
  %v4845 = vmul.f32 %v4591, %v4591
  %v4846 = vmul.f32 %v4594, %v4594
  %v4847 = vmul.f32 %v4597, %v4597
  %v4848 = vmul.f32 %v4600, %v4600
  %v4849 = vmul.f32 %v4603, %v4603
  %v4850 = vmul.f32 %v4606, %v4606
  %v4851 = vmul.f32 %v4609, %v4609
  %v4852 = vmul.f32 %v4612, %v4612
  %v4853 = vmul.f32 %v4615, %v4615
  %v4854 = vmul.f32 %v4618, %v4618
  %v4855 = vmul.f32 %v4621, %v4621
  %v4856 = vmul.f32 %v4624, %v4624
  %v4857 = vmul.f32 %v4627, %v4627
  %v4858 = vmul.f32 %v4630, %v4630
  %v4859 = vmul.f32 %v4633, %v4633
  %v4860 = vmul.f32 %v4636, %v4636
  %v4861 = vmul.f32 %v4639, %v4639
  %v4862 = vmul.f32 %v4642, %v4642
  %v4863 = vmul.f32 %v4645, %v4645
  %v4864 = vmul.f32 %v4648, %v4648
  %v4865 = vmul.f32 %v4651, %v4651
  %v4866 = vmul.f32 %v4654, %v4654
  %v4867 = vmul.f32 %v4657, %v4657
  %v4868 = vmul.f32 %v4660, %v4660
  %v4869 = vmul.f32 %v4663, %v4663
  %v4870 = vmul.f32 %v4666, %v4666
  %v4871 = vmul.f32 %v4669, %v4669
  %v4872 = vmul.f32 %v4672, %v4672
  %v4873 = vmul.f32 %v4675, %v4675
  %v4874 = vsel %vm494, %v4810, 0.0
  %v4875 = vsel %vm494, %v4811, 0.0
  %v4876 = vadd.f32 %v4874, %v4875
  %v4877 = vsel %vm494, %v4812, 0.0
  %v4878 = vadd.f32 %v4876, %v4877
  %v4879 = vsel %vm494, %v4813, 0.0
  %v4880 = vadd.f32 %v4878, %v4879
  %v4881 = vsel %vm494, %v4814, 0.0
  %v4882 = vadd.f32 %v4880, %v4881
  %v4883 = vsel %vm494, %v4815, 0.0
  %v4884 = vadd.f32 %v4882, %v4883
  %v4885 = vsel %vm494, %v4816, 0.0
  %v4886 = vadd.f32 %v4884, %v4885
  %v4887 = vsel %vm494, %v4817, 0.0
  %v4888 = vadd.f32 %v4886, %v4887
  %v4889 = vsel %vm494, %v4818, 0.0
  %v4890 = vadd.f32 %v4888, %v4889
  %v4891 = vsel %vm494, %v4819, 0.0
  %v4892 = vadd.f32 %v4890, %v4891
  %v4893 = vsel %vm494, %v4820, 0.0
  %v4894 = vadd.f32 %v4892, %v4893
  %v4895 = vsel %vm494, %v4821, 0.0
  %v4896 = vadd.f32 %v4894, %v4895
  %v4897 = vsel %vm494, %v4822, 0.0
  %v4898 = vadd.f32 %v4896, %v4897
  %v4899 = vsel %vm494, %v4823, 0.0
  %v4900 = vadd.f32 %v4898, %v4899
  %v4901 = vsel %vm494, %v4824, 0.0
  %v4902 = vadd.f32 %v4900, %v4901
  %v4903 = vsel %vm494, %v4825, 0.0
  %v4904 = vadd.f32 %v4902, %v4903
  %v4905 = vsel %vm494, %v4826, 0.0
  %v4906 = vadd.f32 %v4904, %v4905
  %v4907 = vsel %vm494, %v4827, 0.0
  %v4908 = vadd.f32 %v4906, %v4907
  %v4909 = vsel %vm494, %v4828, 0.0
  %v4910 = vadd.f32 %v4908, %v4909
  %v4911 = vsel %vm494, %v4829, 0.0
  %v4912 = vadd.f32 %v4910, %v4911
  %v4913 = vsel %vm494, %v4830, 0.0
  %v4914 = vadd.f32 %v4912, %v4913
  %v4915 = vsel %vm494, %v4831, 0.0
  %v4916 = vadd.f32 %v4914, %v4915
  %v4917 = vsel %vm494, %v4832, 0.0
  %v4918 = vadd.f32 %v4916, %v4917
  %v4919 = vsel %vm494, %v4833, 0.0
  %v4920 = vadd.f32 %v4918, %v4919
  %v4921 = vsel %vm494, %v4834, 0.0
  %v4922 = vadd.f32 %v4920, %v4921
  %v4923 = vsel %vm494, %v4835, 0.0
  %v4924 = vadd.f32 %v4922, %v4923
  %v4925 = vsel %vm494, %v4836, 0.0
  %v4926 = vadd.f32 %v4924, %v4925
  %v4927 = vsel %vm494, %v4837, 0.0
  %v4928 = vadd.f32 %v4926, %v4927
  %v4929 = vsel %vm494, %v4838, 0.0
  %v4930 = vadd.f32 %v4928, %v4929
  %v4931 = vsel %vm494, %v4839, 0.0
  %v4932 = vadd.f32 %v4930, %v4931
  %v4933 = vsel %vm494, %v4840, 0.0
  %v4934 = vadd.f32 %v4932, %v4933
  %v4935 = vsel %vm494, %v4841, 0.0
  %v4936 = vadd.f32 %v4934, %v4935
  %v4937 = vsel %vm494, %v4842, 0.0
  %v4938 = vadd.f32 %v4936, %v4937
  %v4939 = vsel %vm494, %v4843, 0.0
  %v4940 = vadd.f32 %v4938, %v4939
  %v4941 = vsel %vm494, %v4844, 0.0
  %v4942 = vadd.f32 %v4940, %v4941
  %v4943 = vsel %vm494, %v4845, 0.0
  %v4944 = vadd.f32 %v4942, %v4943
  %v4945 = vsel %vm494, %v4846, 0.0
  %v4946 = vadd.f32 %v4944, %v4945
  %v4947 = vsel %vm494, %v4847, 0.0
  %v4948 = vadd.f32 %v4946, %v4947
  %v4949 = vsel %vm494, %v4848, 0.0
  %v4950 = vadd.f32 %v4948, %v4949
  %v4951 = vsel %vm494, %v4849, 0.0
  %v4952 = vadd.f32 %v4950, %v4951
  %v4953 = vsel %vm494, %v4850, 0.0
  %v4954 = vadd.f32 %v4952, %v4953
  %v4955 = vsel %vm494, %v4851, 0.0
  %v4956 = vadd.f32 %v4954, %v4955
  %v4957 = vsel %vm494, %v4852, 0.0
  %v4958 = vadd.f32 %v4956, %v4957
  %v4959 = vsel %vm494, %v4853, 0.0
  %v4960 = vadd.f32 %v4958, %v4959
  %v4961 = vsel %vm494, %v4854, 0.0
  %v4962 = vadd.f32 %v4960, %v4961
  %v4963 = vsel %vm494, %v4855, 0.0
  %v4964 = vadd.f32 %v4962, %v4963
  %v4965 = vsel %vm494, %v4856, 0.0
  %v4966 = vadd.f32 %v4964, %v4965
  %v4967 = vsel %vm494, %v4857, 0.0
  %v4968 = vadd.f32 %v4966, %v4967
  %v4969 = vsel %vm494, %v4858, 0.0
  %v4970 = vadd.f32 %v4968, %v4969
  %v4971 = vsel %vm494, %v4859, 0.0
  %v4972 = vadd.f32 %v4970, %v4971
  %v4973 = vsel %vm494, %v4860, 0.0
  %v4974 = vadd.f32 %v4972, %v4973
  %v4975 = vsel %vm494, %v4861, 0.0
  %v4976 = vadd.f32 %v4974, %v4975
  %v4977 = vsel %vm494, %v4862, 0.0
  %v4978 = vadd.f32 %v4976, %v4977
  %v4979 = vsel %vm494, %v4863, 0.0
  %v4980 = vadd.f32 %v4978, %v4979
  %v4981 = vsel %vm494, %v4864, 0.0
  %v4982 = vadd.f32 %v4980, %v4981
  %v4983 = vsel %vm494, %v4865, 0.0
  %v4984 = vadd.f32 %v4982, %v4983
  %v4985 = vsel %vm494, %v4866, 0.0
  %v4986 = vadd.f32 %v4984, %v4985
  %v4987 = vsel %vm494, %v4867, 0.0
  %v4988 = vadd.f32 %v4986, %v4987
  %v4989 = vsel %vm494, %v4868, 0.0
  %v4990 = vadd.f32 %v4988, %v4989
  %v4991 = vsel %vm494, %v4869, 0.0
  %v4992 = vadd.f32 %v4990, %v4991
  %v4993 = vsel %vm494, %v4870, 0.0
  %v4994 = vadd.f32 %v4992, %v4993
  %v4995 = vsel %vm494, %v4871, 0.0
  %v4996 = vadd.f32 %v4994, %v4995
  %v4997 = vsel %vm494, %v4872, 0.0
  %v4998 = vadd.f32 %v4996, %v4997
  %v4999 = vsel %vm494, %v4873, 0.0
  %v5000 = vadd.f32 %v4998, %v4999
  %v5001 = vrot.slane %v5000, 4
  %v5002 = vadd.f32 %v5000, %v5001
  %v5003 = vrot.slane %v5002, 2
  %v5004 = vadd.f32 %v5002, %v5003
  %v5005 = vrot.slane %v5004, 1
  %v5006 = vadd.f32 %v5004, %v5005
  %v5007 = vmul.f32 %v4809, 0.001953125
  %v5008 = vmul.f32 %v5006, 0.001953125
  %v5009 = vmul.f32 %v5007, %v5007
  %v5010 = vsub.f32 %v5008, %v5009
  %v5011 = vld [vmem:[%s5] sm:$0x1]
  %v5012 = vadd.f32 %v5010, 1e-05
  %v5013 = vrsqrt.pop %v5012
  %v5014 = vmul.f32 %v5013, %v5012
  %v5015 = vmul.f32 %v5014, %v5013
  %v5016 = vmul.f32 0.5, %v5015
  %v5017 = vsub.f32 1.5, %v5016
  %v5018 = vmul.f32 %v5013, %v5017
  %vm5019 = vweird.f32 %v5012
  %vm5020 = vweird.f32 %v5013
  %vm5021 = vmor %vm5019, %vm5020
  %v5022 = vsel %vm5021, %v5013, %v5018
  %v5023 = vmul.f32 %v5011, %v5022
  %v5024 = vld [vmem:[%s6] sm:$0x1]
  %v5025 = vmul.f32 %v5007, %v5023
  %v5026 = vsub.f32 %v5024, %v5025
  %v5028 = vperm.slane %v5023, 0
  %v5030 = vmul.f32 %v4486, %v5028
  %v5031 = vmul.f32 %v4489, %v5028
  %v5032 = vmul.f32 %v4492, %v5028
  %v5033 = vmul.f32 %v4495, %v5028
  %v5034 = vmul.f32 %v4498, %v5028
  %v5035 = vmul.f32 %v4501, %v5028
  %v5036 = vmul.f32 %v4504, %v5028
  %v5037 = vmul.f32 %v4507, %v5028
  %v5038 = vmul.f32 %v4510, %v5028
  %v5039 = vmul.f32 %v4513, %v5028
  %v5040 = vmul.f32 %v4516, %v5028
  %v5041 = vmul.f32 %v4519, %v5028
  %v5042 = vmul.f32 %v4522, %v5028
  %v5043 = vmul.f32 %v4525, %v5028
  %v5044 = vmul.f32 %v4528, %v5028
  %v5045 = vmul.f32 %v4531, %v5028
  %v5046 = vmul.f32 %v4534, %v5028
  %v5047 = vmul.f32 %v4537, %v5028
  %v5048 = vmul.f32 %v4540, %v5028
  %v5049 = vmul.f32 %v4543, %v5028
  %v5050 = vmul.f32 %v4546, %v5028
  %v5051 = vmul.f32 %v4549, %v5028
  %v5052 = vmul.f32 %v4552, %v5028
  %v5053 = vmul.f32 %v4555, %v5028
  %v5054 = vmul.f32 %v4558, %v5028
  %v5055 = vmul.f32 %v4561, %v5028
  %v5056 = vmul.f32 %v4564, %v5028
  %v5057 = vmul.f32 %v4567, %v5028
  %v5058 = vmul.f32 %v4570, %v5028
  %v5059 = vmul.f32 %v4573, %v5028
  %v5060 = vmul.f32 %v4576, %v5028
  %v5061 = vmul.f32 %v4579, %v5028
  %v5062 = vmul.f32 %v4582, %v5028
  %v5063 = vmul.f32 %v4585, %v5028
  %v5064 = vmul.f32 %v4588, %v5028
  %v5065 = vmul.f32 %v4591, %v5028
  %v5066 = vmul.f32 %v4594, %v5028
  %v5067 = vmul.f32 %v4597, %v5028
  %v5068 = vmul.f32 %v4600, %v5028
  %v5069 = vmul.f32 %v4603, %v5028
  %v5070 = vmul.f32 %v4606, %v5028
  %v5071 = vmul.f32 %v4609, %v5028
  %v5072 = vmul.f32 %v4612, %v5028
  %v5073 = vmul.f32 %v4615, %v5028
  %v5074 = vmul.f32 %v4618, %v5028
  %v5075 = vmul.f32 %v4621, %v5028
  %v5076 = vmul.f32 %v4624, %v5028
  %v5077 = vmul.f32 %v4627, %v5028
  %v5078 = vmul.f32 %v4630, %v5028
  %v5079 = vmul.f32 %v4633, %v5028
  %v5080 = vmul.f32 %v4636, %v5028
  %v5081 = vmul.f32 %v4639, %v5028
  %v5082 = vmul.f32 %v4642, %v5028
  %v5083 = vmul.f32 %v4645, %v5028
  %v5084 = vmul.f32 %v4648, %v5028
  %v5085 = vmul.f32 %v4651, %v5028
  %v5086 = vmul.f32 %v4654, %v5028
  %v5087 = vmul.f32 %v4657, %v5028
  %v5088 = vmul.f32 %v4660, %v5028
  %v5089 = vmul.f32 %v4663, %v5028
  %v5090 = vmul.f32 %v4666, %v5028
  %v5091 = vmul.f32 %v4669, %v5028
  %v5092 = vmul.f32 %v4672, %v5028
  %v5093 = vmul.f32 %v4675, %v5028
  %v5095 = vperm.slane %v5026, 0
  %v5097 = vadd.f32 %v5030, %v5095
  %v5098 = vadd.f32 %v5031, %v5095
  %v5099 = vadd.f32 %v5032, %v5095
  %v5100 = vadd.f32 %v5033, %v5095
  %v5101 = vadd.f32 %v5034, %v5095
  %v5102 = vadd.f32 %v5035, %v5095
  %v5103 = vadd.f32 %v5036, %v5095
  %v5104 = vadd.f32 %v5037, %v5095
  %v5105 = vadd.f32 %v5038, %v5095
  %v5106 = vadd.f32 %v5039, %v5095
  %v5107 = vadd.f32 %v5040, %v5095
  %v5108 = vadd.f32 %v5041, %v5095
  %v5109 = vadd.f32 %v5042, %v5095
  %v5110 = vadd.f32 %v5043, %v5095
  %v5111 = vadd.f32 %v5044, %v5095
  %v5112 = vadd.f32 %v5045, %v5095
  %v5113 = vadd.f32 %v5046, %v5095
  %v5114 = vadd.f32 %v5047, %v5095
  %v5115 = vadd.f32 %v5048, %v5095
  %v5116 = vadd.f32 %v5049, %v5095
  %v5117 = vadd.f32 %v5050, %v5095
  %v5118 = vadd.f32 %v5051, %v5095
  %v5119 = vadd.f32 %v5052, %v5095
  %v5120 = vadd.f32 %v5053, %v5095
  %v5121 = vadd.f32 %v5054, %v5095
  %v5122 = vadd.f32 %v5055, %v5095
  %v5123 = vadd.f32 %v5056, %v5095
  %v5124 = vadd.f32 %v5057, %v5095
  %v5125 = vadd.f32 %v5058, %v5095
  %v5126 = vadd.f32 %v5059, %v5095
  %v5127 = vadd.f32 %v5060, %v5095
  %v5128 = vadd.f32 %v5061, %v5095
  %v5129 = vadd.f32 %v5062, %v5095
  %v5130 = vadd.f32 %v5063, %v5095
  %v5131 = vadd.f32 %v5064, %v5095
  %v5132 = vadd.f32 %v5065, %v5095
  %v5133 = vadd.f32 %v5066, %v5095
  %v5134 = vadd.f32 %v5067, %v5095
  %v5135 = vadd.f32 %v5068, %v5095
  %v5136 = vadd.f32 %v5069, %v5095
  %v5137 = vadd.f32 %v5070, %v5095
  %v5138 = vadd.f32 %v5071, %v5095
  %v5139 = vadd.f32 %v5072, %v5095
  %v5140 = vadd.f32 %v5073, %v5095
  %v5141 = vadd.f32 %v5074, %v5095
  %v5142 = vadd.f32 %v5075, %v5095
  %v5143 = vadd.f32 %v5076, %v5095
  %v5144 = vadd.f32 %v5077, %v5095
  %v5145 = vadd.f32 %v5078, %v5095
  %v5146 = vadd.f32 %v5079, %v5095
  %v5147 = vadd.f32 %v5080, %v5095
  %v5148 = vadd.f32 %v5081, %v5095
  %v5149 = vadd.f32 %v5082, %v5095
  %v5150 = vadd.f32 %v5083, %v5095
  %v5151 = vadd.f32 %v5084, %v5095
  %v5152 = vadd.f32 %v5085, %v5095
  %v5153 = vadd.f32 %v5086, %v5095
  %v5154 = vadd.f32 %v5087, %v5095
  %v5155 = vadd.f32 %v5088, %v5095
  %v5156 = vadd.f32 %v5089, %v5095
  %v5157 = vadd.f32 %v5090, %v5095
  %v5158 = vadd.f32 %v5091, %v5095
  %v5159 = vadd.f32 %v5092, %v5095
  %v5160 = vadd.f32 %v5093, %v5095
  %5161 = vst.msk [vmem:[%s7] sm:$0xff] %vm494, %v5097
  %5162 = vst.msk [vmem:[%s7 + $0x8] sm:$0xff] %vm494, %v5098
  %5163 = vst.msk [vmem:[%s7 + $0x10] sm:$0xff] %vm494, %v5099
  %5164 = vst.msk [vmem:[%s7 + $0x18] sm:$0xff] %vm494, %v5100
  %5165 = vst.msk [vmem:[%s7 + $0x20] sm:$0xff] %vm494, %v5101
  %5166 = vst.msk [vmem:[%s7 + $0x28] sm:$0xff] %vm494, %v5102
  %5167 = vst.msk [vmem:[%s7 + $0x30] sm:$0xff] %vm494, %v5103
  %5168 = vst.msk [vmem:[%s7 + $0x38] sm:$0xff] %vm494, %v5104
  %5169 = vst.msk [vmem:[%s7 + $0x40] sm:$0xff] %vm494, %v5105
  %5170 = vst.msk [vmem:[%s7 + $0x48] sm:$0xff] %vm494, %v5106
  %5171 = vst.msk [vmem:[%s7 + $0x50] sm:$0xff] %vm494, %v5107
  %5172 = vst.msk [vmem:[%s7 + $0x58] sm:$0xff] %vm494, %v5108
  %5173 = vst.msk [vmem:[%s7 + $0x60] sm:$0xff] %vm494, %v5109
  %5174 = vst.msk [vmem:[%s7 + $0x68] sm:$0xff] %vm494, %v5110
  %5175 = vst.msk [vmem:[%s7 + $0x70] sm:$0xff] %vm494, %v5111
  %5176 = vst.msk [vmem:[%s7 + $0x78] sm:$0xff] %vm494, %v5112
  %5177 = vst.msk [vmem:[%s7 + $0x80] sm:$0xff] %vm494, %v5113
  %5178 = vst.msk [vmem:[%s7 + $0x88] sm:$0xff] %vm494, %v5114
  %5179 = vst.msk [vmem:[%s7 + $0x90] sm:$0xff] %vm494, %v5115
  %5180 = vst.msk [vmem:[%s7 + $0x98] sm:$0xff] %vm494, %v5116
  %5181 = vst.msk [vmem:[%s7 + $0xa0] sm:$0xff] %vm494, %v5117
  %5182 = vst.msk [vmem:[%s7 + $0xa8] sm:$0xff] %vm494, %v5118
  %5183 = vst.msk [vmem:[%s7 + $0xb0] sm:$0xff] %vm494, %v5119
  %5184 = vst.msk [vmem:[%s7 + $0xb8] sm:$0xff] %vm494, %v5120
  %5185 = vst.msk [vmem:[%s7 + $0xc0] sm:$0xff] %vm494, %v5121
  %5186 = vst.msk [vmem:[%s7 + $0xc8] sm:$0xff] %vm494, %v5122
  %5187 = vst.msk [vmem:[%s7 + $0xd0] sm:$0xff] %vm494, %v5123
  %5188 = vst.msk [vmem:[%s7 + $0xd8] sm:$0xff] %vm494, %v5124
  %5189 = vst.msk [vmem:[%s7 + $0xe0] sm:$0xff] %vm494, %v5125
  %5190 = vst.msk [vmem:[%s7 + $0xe8] sm:$0xff] %vm494, %v5126
  %5191 = vst.msk [vmem:[%s7 + $0xf0] sm:$0xff] %vm494, %v5127
  %5192 = vst.msk [vmem:[%s7 + $0xf8] sm:$0xff] %vm494, %v5128
  %5193 = vst.msk [vmem:[%s7 + $0x100] sm:$0xff] %vm494, %v5129
  %5194 = vst.msk [vmem:[%s7 + $0x108] sm:$0xff] %vm494, %v5130
  %5195 = vst.msk [vmem:[%s7 + $0x110] sm:$0xff] %vm494, %v5131
  %5196 = vst.msk [vmem:[%s7 + $0x118] sm:$0xff] %vm494, %v5132
  %5197 = vst.msk [vmem:[%s7 + $0x120] sm:$0xff] %vm494, %v5133
  %5198 = vst.msk [vmem:[%s7 + $0x128] sm:$0xff] %vm494, %v5134
  %5199 = vst.msk [vmem:[%s7 + $0x130] sm:$0xff] %vm494, %v5135
  %5200 = vst.msk [vmem:[%s7 + $0x138] sm:$0xff] %vm494, %v5136
  %5201 = vst.msk [vmem:[%s7 + $0x140] sm:$0xff] %vm494, %v5137
  %5202 = vst.msk [vmem:[%s7 + $0x148] sm:$0xff] %vm494, %v5138
  %5203 = vst.msk [vmem:[%s7 + $0x150] sm:$0xff] %vm494, %v5139
  %5204 = vst.msk [vmem:[%s7 + $0x158] sm:$0xff] %vm494, %v5140
  %5205 = vst.msk [vmem:[%s7 + $0x160] sm:$0xff] %vm494, %v5141
  %5206 = vst.msk [vmem:[%s7 + $0x168] sm:$0xff] %vm494, %v5142
  %5207 = vst.msk [vmem:[%s7 + $0x170] sm:$0xff] %vm494, %v5143
  %5208 = vst.msk [vmem:[%s7 + $0x178] sm:$0xff] %vm494, %v5144
  %5209 = vst.msk [vmem:[%s7 + $0x180] sm:$0xff] %vm494, %v5145
  %5210 = vst.msk [vmem:[%s7 + $0x188] sm:$0xff] %vm494, %v5146
  %5211 = vst.msk [vmem:[%s7 + $0x190] sm:$0xff] %vm494, %v5147
  %5212 = vst.msk [vmem:[%s7 + $0x198] sm:$0xff] %vm494, %v5148
  %5213 = vst.msk [vmem:[%s7 + $0x1a0] sm:$0xff] %vm494, %v5149
  %5214 = vst.msk [vmem:[%s7 + $0x1a8] sm:$0xff] %vm494, %v5150
  %5215 = vst.msk [vmem:[%s7 + $0x1b0] sm:$0xff] %vm494, %v5151
  %5216 = vst.msk [vmem:[%s7 + $0x1b8] sm:$0xff] %vm494, %v5152
  %5217 = vst.msk [vmem:[%s7 + $0x1c0] sm:$0xff] %vm494, %v5153
  %5218 = vst.msk [vmem:[%s7 + $0x1c8] sm:$0xff] %vm494, %v5154
  %5219 = vst.msk [vmem:[%s7 + $0x1d0] sm:$0xff] %vm494, %v5155
  %5220 = vst.msk [vmem:[%s7 + $0x1d8] sm:$0xff] %vm494, %v5156
  %5221 = vst.msk [vmem:[%s7 + $0x1e0] sm:$0xff] %vm494, %v5157
  %5222 = vst.msk [vmem:[%s7 + $0x1e8] sm:$0xff] %vm494, %v5158
  %5223 = vst.msk [vmem:[%s7 + $0x1f0] sm:$0xff] %vm494, %v5159
  %5224 = vst.msk [vmem:[%s7 + $0x1f8] sm:$0xff] %vm494, %v5160
  // Predicated region
  $region30: #{tpu_custom_call.1} parent=0 // pred_check
    _
  $region31: #{tpu_custom_call.1} parent=0 // pred_check_branch
    %5226 = sbr.rel (0) target = $region33
  $region32: #{tpu_custom_call.1} parent=0 // pred_region
    _
  $region33: #{tpu_custom_call.1} parent=0 // pred_fallthru
    _
  // Predicated region
  $region34: #{tpu_custom_call.1} parent=0 // pred_check
    _
  $region35: #{tpu_custom_call.1} parent=0 // pred_check_branch
    %5228 = sbr.rel (0) target = $region37
  $region36: #{tpu_custom_call.1} parent=0 // pred_region
    _
  $region37: #{tpu_custom_call.1} parent=0 // pred_fallthru
    _

</llo_original>
